<compile_context>
chip_gen: v6e
topology: v6e:2x2x1
jax: 0.10.0
libtpu: 0.0.40
codegen_flags: <defaults>
</compile_context>

<pallas_src>
import math
import functools

import jax
import jax.numpy as jnp
from jax.experimental import pallas as pl
from jax.experimental.pallas import tpu as pltpu

LEAKY_SLOPE = 0.2       # nn.LeakyReLU(0.2) in the reference module
LN_EPS = 1e-5           # nn.LayerNorm default eps


# ----------------------------------------------------------------------------
# Positional-encoding table (standard sin/cos, added in eval mode, no dropout)
# ----------------------------------------------------------------------------
def make_pe(max_len, d_model):
    pos = jnp.arange(max_len, dtype=jnp.float32)[:, None]
    div = jnp.exp(jnp.arange(0, d_model, 2, dtype=jnp.float32)
                  * (-math.log(10000.0) / d_model))
    pe = jnp.zeros((max_len, d_model), dtype=jnp.float32)
    pe = pe.at[:, 0::2].set(jnp.sin(pos * div))
    pe = pe.at[:, 1::2].set(jnp.cos(pos * div))
    return pe


# ----------------------------------------------------------------------------
# Wrapper-side constant builders (hoisted out of the kernel; folded by XLA)
# ----------------------------------------------------------------------------
def _conv_taps(w):
    """torch Conv1d weight [Cout, Cin, 3] -> [3, Cin, Cout] per-tap matrices.
    Tap 0 multiplies x[t-1], tap 1 multiplies x[t], tap 2 multiplies x[t+1]."""
    return jnp.transpose(w, (2, 1, 0))


def _shift_matrices(b, t):
    """0/1 matrices [B*T, B*T] picking the previous / next frame within each
    batch element (rows at batch boundaries are all-zero -> zero padding)."""
    idx = jnp.arange(b * t)
    b_r, t_r = (idx // t)[:, None], (idx % t)[:, None]
    b_c, t_c = (idx // t)[None, :], (idx % t)[None, :]
    same = b_r == b_c
    sp = (same & (t_c == t_r - 1)).astype(jnp.float32)   # x[t-1]   (0 at t==0)
    sn = (same & (t_c == t_r + 1)).astype(jnp.float32)   # x[t+1]   (0 at t==T-1)
    return dict(sp=sp, sn=sn)


def _upsample_matrix(b, t_in):
    """0/1 matrix [B*2T, B*T]: nearest x2 upsample on the flat [B*T, C] layout."""
    t_out = 2 * t_in
    i = jnp.arange(b * t_out)
    src = (i // t_out) * t_in + (i % t_out) // 2
    return (jnp.arange(b * t_in)[None, :] == src[:, None]).astype(jnp.float32)


def _cumsum_matrix(b, t):
    """0/1 matrix [B*T, B*T]: per-batch running sum with frame 0 zeroed
    (convert_sublocal_to_subglobal on the translation channels)."""
    idx = jnp.arange(b * t)
    b_r, t_r = (idx // t)[:, None], (idx % t)[:, None]
    b_c, t_c = (idx // t)[None, :], (idx % t)[None, :]
    return ((b_r == b_c) & (t_c >= 1) & (t_c <= t_r)).astype(jnp.float32)


# ----------------------------------------------------------------------------
# In-kernel math helpers (traced inside the pallas kernel only)
# ----------------------------------------------------------------------------
def _erf(x):
    # Abramowitz & Stegun 7.1.26 (|err| < 1.5e-7); reciprocal goes to the EUP.
    ax = jnp.abs(x)
    t = pl.reciprocal(1.0 + 0.3275911 * ax, approx=True)
    poly = ((((1.061405429 * t - 1.453152027) * t + 1.421413741) * t
             - 0.284496736) * t + 0.254829592) * t
    y = 1.0 - poly * jnp.exp(-ax * ax)
    return jnp.where(x < 0, -y, y)


def _gelu(x):
    return 0.5 * x * (1.0 + _erf(x * 0.7071067811865476))


def _layer_norm(z, g, b):
    mu = jnp.mean(z, axis=-1, keepdims=True)
    var = jnp.mean((z - mu) ** 2, axis=-1, keepdims=True)
    return (z - mu) * jax.lax.rsqrt(var + LN_EPS) * g + b


# ----------------------------------------------------------------------------
# Full forward pass (matches VQDecoderV3.forward, inference / dropout off)
# ----------------------------------------------------------------------------
def vq_decoder_v3_forward(x, params, *, num_heads):
    B, T0, Cin = x.shape
    n_up = len(params["ups"])
    c_out = params["conv_last_w"].shape[0]
    D = params["s2g_w"].shape[0]            # transformer d_model == input_size
    H = num_heads
    hd = D // H
    Tn = T0 * (2 ** n_up)
    Mn = B * Tn

    # ---- bundle of kernel inputs (weights pre-transposed, constants hoisted) --
    bundle = dict(
        x=x.reshape(B * T0, Cin).astype(jnp.float32),
        conv0=dict(w=_conv_taps(params["conv0_w"]),
                   b=params["conv0_b"][None, :]),
        res=[dict(w1=_conv_taps(rp["w1"]), b1=rp["b1"][None, :],
                  w2=_conv_taps(rp["w2"]), b2=rp["b2"][None, :])
             for rp in params["resblocks"]],
        ups=[dict(U=_upsample_matrix(B, T0 * (2 ** i)),
                  w=_conv_taps(up["w"]), b=up["b"][None, :])
             for i, up in enumerate(params["ups"])],
        conv_last=dict(w=_conv_taps(params["conv_last_w"]),
                       b=params["conv_last_b"][None, :]),
        shifts=[_shift_matrices(B, T0 * (2 ** i)) for i in range(n_up + 1)],
        L=_cumsum_matrix(B, Tn),
        first3=(jnp.arange(c_out) < 3).astype(jnp.float32)[None, :],
        s2g_w=params["s2g_w"].T,                      # [c_out, D]
        pe=jnp.tile(params["pe"][:Tn], (B, 1)),       # [Mn, D]
        layers=[dict(wqkv=lp["in_proj_w"].T, bqkv=lp["in_proj_b"][None, :],
                     wo=lp["out_proj_w"].T, bo=lp["out_proj_b"][None, :],
                     g1=lp["ln1_g"][None, :], b1=lp["ln1_b"][None, :],
                     w1=lp["w1"].T, bf1=lp["b1"][None, :],
                     w2=lp["w2"].T, bf2=lp["b2"][None, :],
                     g2=lp["ln2_g"][None, :], b2=lp["ln2_b"][None, :])
                for lp in params["layers"]],
        final=dict(w=_conv_taps(params["final_w"]),
                   b=params["final_b"][None, :]),
    )
    flat, treedef = jax.tree_util.tree_flatten(bundle)

    def kernel(*refs):
        o_ref = refs[-1]
        p = jax.tree_util.tree_unflatten(treedef, refs[:-1])

        def conv3(xv, w_ref, b_ref, sh, leaky):
            # Conv1d(k=3, s=1, p=1): time shifts (with per-batch zero padding)
            # come from tiny constant 0/1 matmuls; one matmul per tap, no
            # lane-axis concat / relayout inside the kernel.
            x_prev = jnp.dot(sh["sp"][...], xv, preferred_element_type=jnp.float32)
            x_next = jnp.dot(sh["sn"][...], xv, preferred_element_type=jnp.float32)
            y = (jnp.dot(x_prev, w_ref[0], preferred_element_type=jnp.float32)
                 + jnp.dot(xv,     w_ref[1], preferred_element_type=jnp.float32)
                 + jnp.dot(x_next, w_ref[2], preferred_element_type=jnp.float32)
                 + b_ref[...])
            if leaky:
                y = jnp.where(y > 0, y, LEAKY_SLOPE * y)
            return y

        def mha(z, lw):
            scale = 1.0 / math.sqrt(hd)
            qkv = jnp.dot(z, lw["wqkv"][...],
                          preferred_element_type=jnp.float32) + lw["bqkv"][...]
            qs, ks, vs = [], [], []
            for b in range(B):
                r0 = b * Tn
                for h in range(H):
                    c0 = h * hd
                    qs.append(qkv[r0:r0 + Tn, c0:c0 + hd])
                    ks.append(qkv[r0:r0 + Tn, D + c0:D + c0 + hd])
                    vs.append(qkv[r0:r0 + Tn, 2 * D + c0:2 * D + c0 + hd])
            qh = jnp.stack(qs, axis=0) * scale             # [B*H, Tn, hd]
            kh = jnp.stack(ks, axis=0)
            vh = jnp.stack(vs, axis=0)
            s = jnp.einsum("bqd,bkd->bqk", qh, kh,
                           preferred_element_type=jnp.float32)      # [B*H,Tn,Tn]
            s = s - jnp.max(s, axis=-1, keepdims=True)
            e = jnp.exp(s)
            pr = e * pl.reciprocal(jnp.sum(e, axis=-1, keepdims=True),
                                   approx=True)
            ctx = jnp.einsum("bqk,bkd->bqd", pr, vh,
                             preferred_element_type=jnp.float32)    # [B*H,Tn,hd]
            per_b = [jnp.concatenate([ctx[b * H + h] for h in range(H)], axis=-1)
                     for b in range(B)]
            ctx2 = jnp.concatenate(per_b, axis=0)          # [Mn, D]
            return jnp.dot(ctx2, lw["wo"][...],
                           preferred_element_type=jnp.float32) + lw["bo"][...]

        def encoder_layer(z, lw):
            # post-norm nn.TransformerEncoderLayer (MHA + FFN + 2x LayerNorm)
            y1 = _layer_norm(z + mha(z, lw), lw["g1"][...], lw["b1"][...])
            hf = _gelu(jnp.dot(y1, lw["w1"][...],
                               preferred_element_type=jnp.float32) + lw["bf1"][...])
            ff = jnp.dot(hf, lw["w2"][...],
                         preferred_element_type=jnp.float32) + lw["bf2"][...]
            return _layer_norm(y1 + ff, lw["g2"][...], lw["b2"][...])

        # --- self.convs (channels-last, batch folded into rows) -------------
        h = conv3(p["x"][...], p["conv0"]["w"], p["conv0"]["b"],
                  p["shifts"][0], leaky=False)
        for rb in p["res"]:
            # TODO(synk): ResBlock class is not in the provided excerpt; using
            # the repo-standard Conv1d -> LeakyReLU(0.2) -> Conv1d + identity skip.
            r = conv3(h, rb["w1"], rb["b1"], p["shifts"][0], leaky=True)
            r = conv3(r, rb["w2"], rb["b2"], p["shifts"][0], leaky=False)
            h = h + r
        for i, up in enumerate(p["ups"]):
            h = jnp.dot(up["U"][...], h, preferred_element_type=jnp.float32)
            h = conv3(h, up["w"], up["b"], p["shifts"][i + 1], leaky=True)
        sl = conv3(h, p["conv_last"]["w"], p["conv_last"]["b"],
                   p["shifts"][n_up], leaky=False)          # [Mn, c_out]

        # --- convert_sublocal_to_subglobal ----------------------------------
        f3 = p["first3"][...]
        sg = f3 * jnp.dot(p["L"][...], sl,
                          preferred_element_type=jnp.float32) + (1.0 - f3) * sl

        # --- convert_subglobal_to_global ------------------------------------
        z = jnp.dot(sg, p["s2g_w"][...],
                    preferred_element_type=jnp.float32) + p["pe"][...]
        for lw in p["layers"]:
            z = encoder_layer(z, lw)
        y = conv3(z, p["final"]["w"], p["final"]["b"], p["shifts"][n_up],
                  leaky=False)                              # [Mn, c_out]
        o_ref[...] = y.astype(o_ref.dtype)

    out = pl.pallas_call(
        kernel,
        out_shape=jax.ShapeDtypeStruct((Mn, c_out), jnp.float32),
        compiler_params=pltpu.CompilerParams(
            vmem_limit_bytes=32 * 1024 * 1024),
    )(*flat)
    return out.reshape(B, Tn, c_out)


# ----------------------------------------------------------------------------
# Parameter init (deterministic, xavier-normal for conv/linear weights)
# ----------------------------------------------------------------------------
def init_params(key, input_size, channels, n_resblk, n_up,
                hidden_dims, num_layers, num_heads):
    keys = iter(jax.random.split(key, 128))

    def xn(shape, fan_in, fan_out):
        std = math.sqrt(2.0 / (fan_in + fan_out))
        return std * jax.random.normal(next(keys), shape, dtype=jnp.float32)

    def conv_p(cin, cout):
        return xn((cout, cin, 3), cin * 3, cout * 3), jnp.zeros((cout,), jnp.float32)

    p = {}
    c0 = channels[0]
    assert input_size != c0, "example config keeps the initial conv in the stack"
    p["conv0_w"], p["conv0_b"] = conv_p(input_size, c0)

    p["resblocks"] = []
    for _ in range(n_resblk):
        w1, b1 = conv_p(c0, c0)
        w2, b2 = conv_p(c0, c0)
        p["resblocks"].append(dict(w1=w1, b1=b1, w2=w2, b2=b2))

    p["ups"] = []
    for i in range(n_up):
        w, b = conv_p(channels[i], channels[i + 1])
        p["ups"].append(dict(w=w, b=b))

    p["conv_last_w"], p["conv_last_b"] = conv_p(channels[-1], channels[-1])

    out_size = channels[-1]
    D = input_size
    # s2g_linear: nn.Linear(out_size, input_size, bias=False) -> weight [D, out_size]
    p["s2g_w"] = xn((D, out_size), out_size, D)

    p["layers"] = []
    for _ in range(num_layers):
        p["layers"].append(dict(
            in_proj_w=xn((3 * D, D), D, 3 * D),
            in_proj_b=jnp.zeros((3 * D,), jnp.float32),
            out_proj_w=xn((D, D), D, D),
            out_proj_b=jnp.zeros((D,), jnp.float32),
            ln1_g=jnp.ones((D,), jnp.float32),
            ln1_b=jnp.zeros((D,), jnp.float32),
            w1=xn((hidden_dims, D), D, hidden_dims),
            b1=jnp.zeros((hidden_dims,), jnp.float32),
            w2=xn((D, hidden_dims), hidden_dims, D),
            b2=jnp.zeros((D,), jnp.float32),
            ln2_g=jnp.ones((D,), jnp.float32),
            ln2_b=jnp.zeros((D,), jnp.float32),
        ))

    # final: nn.Conv1d(input_size, out_size, k=3, p=1)
    p["final_w"], p["final_b"] = conv_p(D, out_size)
    p["pe"] = make_pe(5000, D)
    return p


# ----------------------------------------------------------------------------
if __name__ == "__main__":
    # Small config consistent with the module:
    #   input_size=32, channels=[48, 64], n_resblk=1, n_up=1,
    #   hidden_dims=64, num_layers=2, num_heads=4, dropout=0.0, activation='gelu'
    B, n_tokens = 2, 8
    input_size = 32
    channels = [48, 64]
    n_resblk, n_up = 1, 1
    hidden_dims, num_layers, num_heads = 64, 2, 4

    key = jax.random.PRNGKey(0)
    k_in, k_par = jax.random.split(key)
    x = jax.random.normal(k_in, (B, n_tokens, input_size), dtype=jnp.float32)
    params = init_params(k_par, input_size, channels, n_resblk, n_up,
                         hidden_dims, num_layers, num_heads)

    fwd = jax.jit(functools.partial(vq_decoder_v3_forward, num_heads=num_heads))
    y = fwd(x, params)
    jax.block_until_ready(y)

    expected_shape = (B, n_tokens * (2 ** n_up), channels[-1])
    assert y.shape == expected_shape, (y.shape, expected_shape)
    assert bool(jnp.all(jnp.isfinite(y)))
    print("KERNEL_OK")
</pallas_src>

<mosaic_0001>
module attributes {stable_mosaic.version = 11 : i64} {
  func.func @kernel(%arg0: memref<32x32xf32, #tpu.memory_space<vmem>>, %arg1: memref<1x48xf32, #tpu.memory_space<vmem>>, %arg2: memref<3x32x48xf32, #tpu.memory_space<vmem>>, %arg3: memref<1x64xf32, #tpu.memory_space<vmem>>, %arg4: memref<3x64x64xf32, #tpu.memory_space<vmem>>, %arg5: memref<1x64xf32, #tpu.memory_space<vmem>>, %arg6: memref<3x32x64xf32, #tpu.memory_space<vmem>>, %arg7: memref<1x64xf32, #tpu.memory_space<vmem>>, %arg8: memref<1x32xf32, #tpu.memory_space<vmem>>, %arg9: memref<1x32xf32, #tpu.memory_space<vmem>>, %arg10: memref<1x64xf32, #tpu.memory_space<vmem>>, %arg11: memref<1x32xf32, #tpu.memory_space<vmem>>, %arg12: memref<1x32xf32, #tpu.memory_space<vmem>>, %arg13: memref<1x96xf32, #tpu.memory_space<vmem>>, %arg14: memref<1x32xf32, #tpu.memory_space<vmem>>, %arg15: memref<1x32xf32, #tpu.memory_space<vmem>>, %arg16: memref<32x64xf32, #tpu.memory_space<vmem>>, %arg17: memref<64x32xf32, #tpu.memory_space<vmem>>, %arg18: memref<32x32xf32, #tpu.memory_space<vmem>>, %arg19: memref<32x96xf32, #tpu.memory_space<vmem>>, %arg20: memref<1x32xf32, #tpu.memory_space<vmem>>, %arg21: memref<1x32xf32, #tpu.memory_space<vmem>>, %arg22: memref<1x64xf32, #tpu.memory_space<vmem>>, %arg23: memref<1x32xf32, #tpu.memory_space<vmem>>, %arg24: memref<1x32xf32, #tpu.memory_space<vmem>>, %arg25: memref<1x96xf32, #tpu.memory_space<vmem>>, %arg26: memref<1x32xf32, #tpu.memory_space<vmem>>, %arg27: memref<1x32xf32, #tpu.memory_space<vmem>>, %arg28: memref<32x64xf32, #tpu.memory_space<vmem>>, %arg29: memref<64x32xf32, #tpu.memory_space<vmem>>, %arg30: memref<32x32xf32, #tpu.memory_space<vmem>>, %arg31: memref<32x96xf32, #tpu.memory_space<vmem>>, %arg32: memref<32x32xf32, #tpu.memory_space<vmem>>, %arg33: memref<1x48xf32, #tpu.memory_space<vmem>>, %arg34: memref<1x48xf32, #tpu.memory_space<vmem>>, %arg35: memref<3x48x48xf32, #tpu.memory_space<vmem>>, %arg36: memref<3x48x48xf32, #tpu.memory_space<vmem>>, %arg37: memref<64x32xf32, #tpu.memory_space<vmem>>, %arg38: memref<16x16xf32, #tpu.memory_space<vmem>>, %arg39: memref<16x16xf32, #tpu.memory_space<vmem>>, %arg40: memref<32x32xf32, #tpu.memory_space<vmem>>, %arg41: memref<32x32xf32, #tpu.memory_space<vmem>>, %arg42: memref<32x16xf32, #tpu.memory_space<vmem>>, %arg43: memref<1x64xf32, #tpu.memory_space<vmem>>, %arg44: memref<3x48x64xf32, #tpu.memory_space<vmem>>, %arg45: memref<16x32xf32, #tpu.memory_space<vmem>>, %arg46: memref<32x64xf32, #tpu.memory_space<vmem>>) attributes {dimension_semantics = [], scalar_prefetch = 0 : i64, scratch_operands = 0 : i64, tpu.core_type = #tpu.core_type<tc>} {
    %c0 = arith.constant 0 : index
    %c0_0 = arith.constant 0 : index
    %0 = vector.load %arg45[%c0, %c0_0] : memref<16x32xf32, #tpu.memory_space<vmem>>, vector<16x32xf32>
    %c0_1 = arith.constant 0 : index
    %c0_2 = arith.constant 0 : index
    %1 = vector.load %arg39[%c0_1, %c0_2] : memref<16x16xf32, #tpu.memory_space<vmem>>, vector<16x16xf32>
    %cst = arith.constant dense<0.000000e+00> : vector<16x32xf32>
    %2 = tpu.matmul %1, %0, %cst {dimension_numbers = #tpu.dot_dimension_numbers<[1], [0], [0], [1], [0, 0, 1, 1], [], []>} : vector<16x16xf32>, vector<16x32xf32>, vector<16x32xf32> -> vector<16x32xf32>
    %c0_3 = arith.constant 0 : index
    %c0_4 = arith.constant 0 : index
    %3 = vector.load %arg38[%c0_3, %c0_4] : memref<16x16xf32, #tpu.memory_space<vmem>>, vector<16x16xf32>
    %cst_5 = arith.constant dense<0.000000e+00> : vector<16x32xf32>
    %4 = tpu.matmul %3, %0, %cst_5 {dimension_numbers = #tpu.dot_dimension_numbers<[1], [0], [0], [1], [0, 0, 1, 1], [], []>} : vector<16x16xf32>, vector<16x32xf32>, vector<16x32xf32> -> vector<16x32xf32>
    %c0_6 = arith.constant 0 : index
    %c0_7 = arith.constant 0 : index
    %c0_8 = arith.constant 0 : index
    %5 = vector.load %arg2[%c0_6, %c0_7, %c0_8] : memref<3x32x48xf32, #tpu.memory_space<vmem>>, vector<1x32x48xf32>
    %6 = vector.shape_cast %5 : vector<1x32x48xf32> to vector<32x48xf32>
    %cst_9 = arith.constant dense<0.000000e+00> : vector<16x48xf32>
    %7 = tpu.matmul %2, %6, %cst_9 {dimension_numbers = #tpu.dot_dimension_numbers<[1], [0], [0], [1], [0, 0, 1, 1], [], []>} : vector<16x32xf32>, vector<32x48xf32>, vector<16x48xf32> -> vector<16x48xf32>
    %c1 = arith.constant 1 : index
    %c0_10 = arith.constant 0 : index
    %c0_11 = arith.constant 0 : index
    %8 = vector.load %arg2[%c1, %c0_10, %c0_11] : memref<3x32x48xf32, #tpu.memory_space<vmem>>, vector<1x32x48xf32>
    %9 = vector.shape_cast %8 : vector<1x32x48xf32> to vector<32x48xf32>
    %cst_12 = arith.constant dense<0.000000e+00> : vector<16x48xf32>
    %10 = tpu.matmul %0, %9, %cst_12 {dimension_numbers = #tpu.dot_dimension_numbers<[1], [0], [0], [1], [0, 0, 1, 1], [], []>} : vector<16x32xf32>, vector<32x48xf32>, vector<16x48xf32> -> vector<16x48xf32>
    %11 = arith.addf %7, %10 : vector<16x48xf32>
    %c2 = arith.constant 2 : index
    %c0_13 = arith.constant 0 : index
    %c0_14 = arith.constant 0 : index
    %12 = vector.load %arg2[%c2, %c0_13, %c0_14] : memref<3x32x48xf32, #tpu.memory_space<vmem>>, vector<1x32x48xf32>
    %13 = vector.shape_cast %12 : vector<1x32x48xf32> to vector<32x48xf32>
    %cst_15 = arith.constant dense<0.000000e+00> : vector<16x48xf32>
    %14 = tpu.matmul %4, %13, %cst_15 {dimension_numbers = #tpu.dot_dimension_numbers<[1], [0], [0], [1], [0, 0, 1, 1], [], []>} : vector<16x32xf32>, vector<32x48xf32>, vector<16x48xf32> -> vector<16x48xf32>
    %15 = arith.addf %11, %14 : vector<16x48xf32>
    %c0_16 = arith.constant 0 : index
    %c0_17 = arith.constant 0 : index
    %16 = vector.load %arg1[%c0_16, %c0_17] : memref<1x48xf32, #tpu.memory_space<vmem>>, vector<1x48xf32>
    %17 = vector.broadcast %16 : vector<1x48xf32> to vector<16x48xf32>
    %18 = arith.addf %15, %17 : vector<16x48xf32>
    %c0_18 = arith.constant 0 : index
    %c0_19 = arith.constant 0 : index
    %19 = vector.load %arg39[%c0_18, %c0_19] : memref<16x16xf32, #tpu.memory_space<vmem>>, vector<16x16xf32>
    %cst_20 = arith.constant dense<0.000000e+00> : vector<16x48xf32>
    %20 = tpu.matmul %19, %18, %cst_20 {dimension_numbers = #tpu.dot_dimension_numbers<[1], [0], [0], [1], [0, 0, 1, 1], [], []>} : vector<16x16xf32>, vector<16x48xf32>, vector<16x48xf32> -> vector<16x48xf32>
    %c0_21 = arith.constant 0 : index
    %c0_22 = arith.constant 0 : index
    %21 = vector.load %arg38[%c0_21, %c0_22] : memref<16x16xf32, #tpu.memory_space<vmem>>, vector<16x16xf32>
    %cst_23 = arith.constant dense<0.000000e+00> : vector<16x48xf32>
    %22 = tpu.matmul %21, %18, %cst_23 {dimension_numbers = #tpu.dot_dimension_numbers<[1], [0], [0], [1], [0, 0, 1, 1], [], []>} : vector<16x16xf32>, vector<16x48xf32>, vector<16x48xf32> -> vector<16x48xf32>
    %c0_24 = arith.constant 0 : index
    %c0_25 = arith.constant 0 : index
    %c0_26 = arith.constant 0 : index
    %23 = vector.load %arg35[%c0_24, %c0_25, %c0_26] : memref<3x48x48xf32, #tpu.memory_space<vmem>>, vector<1x48x48xf32>
    %24 = vector.shape_cast %23 : vector<1x48x48xf32> to vector<48x48xf32>
    %cst_27 = arith.constant dense<0.000000e+00> : vector<16x48xf32>
    %25 = tpu.matmul %20, %24, %cst_27 {dimension_numbers = #tpu.dot_dimension_numbers<[1], [0], [0], [1], [0, 0, 1, 1], [], []>} : vector<16x48xf32>, vector<48x48xf32>, vector<16x48xf32> -> vector<16x48xf32>
    %c1_28 = arith.constant 1 : index
    %c0_29 = arith.constant 0 : index
    %c0_30 = arith.constant 0 : index
    %26 = vector.load %arg35[%c1_28, %c0_29, %c0_30] : memref<3x48x48xf32, #tpu.memory_space<vmem>>, vector<1x48x48xf32>
    %27 = vector.shape_cast %26 : vector<1x48x48xf32> to vector<48x48xf32>
    %cst_31 = arith.constant dense<0.000000e+00> : vector<16x48xf32>
    %28 = tpu.matmul %18, %27, %cst_31 {dimension_numbers = #tpu.dot_dimension_numbers<[1], [0], [0], [1], [0, 0, 1, 1], [], []>} : vector<16x48xf32>, vector<48x48xf32>, vector<16x48xf32> -> vector<16x48xf32>
    %29 = arith.addf %25, %28 : vector<16x48xf32>
    %c2_32 = arith.constant 2 : index
    %c0_33 = arith.constant 0 : index
    %c0_34 = arith.constant 0 : index
    %30 = vector.load %arg35[%c2_32, %c0_33, %c0_34] : memref<3x48x48xf32, #tpu.memory_space<vmem>>, vector<1x48x48xf32>
    %31 = vector.shape_cast %30 : vector<1x48x48xf32> to vector<48x48xf32>
    %cst_35 = arith.constant dense<0.000000e+00> : vector<16x48xf32>
    %32 = tpu.matmul %22, %31, %cst_35 {dimension_numbers = #tpu.dot_dimension_numbers<[1], [0], [0], [1], [0, 0, 1, 1], [], []>} : vector<16x48xf32>, vector<48x48xf32>, vector<16x48xf32> -> vector<16x48xf32>
    %33 = arith.addf %29, %32 : vector<16x48xf32>
    %c0_36 = arith.constant 0 : index
    %c0_37 = arith.constant 0 : index
    %34 = vector.load %arg33[%c0_36, %c0_37] : memref<1x48xf32, #tpu.memory_space<vmem>>, vector<1x48xf32>
    %35 = vector.broadcast %34 : vector<1x48xf32> to vector<16x48xf32>
    %36 = arith.addf %33, %35 : vector<16x48xf32>
    %cst_38 = arith.constant 0.000000e+00 : f32
    %37 = vector.broadcast %cst_38 : f32 to vector<16x48xf32>
    %38 = arith.cmpf ogt, %36, %37 : vector<16x48xf32>
    %cst_39 = arith.constant 2.000000e-01 : f32
    %39 = vector.broadcast %cst_39 : f32 to vector<16x48xf32>
    %40 = arith.mulf %39, %36 : vector<16x48xf32>
    %41 = arith.select %38, %36, %40 : vector<16x48xi1>, vector<16x48xf32>
    %c0_40 = arith.constant 0 : index
    %c0_41 = arith.constant 0 : index
    %42 = vector.load %arg39[%c0_40, %c0_41] : memref<16x16xf32, #tpu.memory_space<vmem>>, vector<16x16xf32>
    %cst_42 = arith.constant dense<0.000000e+00> : vector<16x48xf32>
    %43 = tpu.matmul %42, %41, %cst_42 {dimension_numbers = #tpu.dot_dimension_numbers<[1], [0], [0], [1], [0, 0, 1, 1], [], []>} : vector<16x16xf32>, vector<16x48xf32>, vector<16x48xf32> -> vector<16x48xf32>
    %c0_43 = arith.constant 0 : index
    %c0_44 = arith.constant 0 : index
    %44 = vector.load %arg38[%c0_43, %c0_44] : memref<16x16xf32, #tpu.memory_space<vmem>>, vector<16x16xf32>
    %cst_45 = arith.constant dense<0.000000e+00> : vector<16x48xf32>
    %45 = tpu.matmul %44, %41, %cst_45 {dimension_numbers = #tpu.dot_dimension_numbers<[1], [0], [0], [1], [0, 0, 1, 1], [], []>} : vector<16x16xf32>, vector<16x48xf32>, vector<16x48xf32> -> vector<16x48xf32>
    %c0_46 = arith.constant 0 : index
    %c0_47 = arith.constant 0 : index
    %c0_48 = arith.constant 0 : index
    %46 = vector.load %arg36[%c0_46, %c0_47, %c0_48] : memref<3x48x48xf32, #tpu.memory_space<vmem>>, vector<1x48x48xf32>
    %47 = vector.shape_cast %46 : vector<1x48x48xf32> to vector<48x48xf32>
    %cst_49 = arith.constant dense<0.000000e+00> : vector<16x48xf32>
    %48 = tpu.matmul %43, %47, %cst_49 {dimension_numbers = #tpu.dot_dimension_numbers<[1], [0], [0], [1], [0, 0, 1, 1], [], []>} : vector<16x48xf32>, vector<48x48xf32>, vector<16x48xf32> -> vector<16x48xf32>
    %c1_50 = arith.constant 1 : index
    %c0_51 = arith.constant 0 : index
    %c0_52 = arith.constant 0 : index
    %49 = vector.load %arg36[%c1_50, %c0_51, %c0_52] : memref<3x48x48xf32, #tpu.memory_space<vmem>>, vector<1x48x48xf32>
    %50 = vector.shape_cast %49 : vector<1x48x48xf32> to vector<48x48xf32>
    %cst_53 = arith.constant dense<0.000000e+00> : vector<16x48xf32>
    %51 = tpu.matmul %41, %50, %cst_53 {dimension_numbers = #tpu.dot_dimension_numbers<[1], [0], [0], [1], [0, 0, 1, 1], [], []>} : vector<16x48xf32>, vector<48x48xf32>, vector<16x48xf32> -> vector<16x48xf32>
    %52 = arith.addf %48, %51 : vector<16x48xf32>
    %c2_54 = arith.constant 2 : index
    %c0_55 = arith.constant 0 : index
    %c0_56 = arith.constant 0 : index
    %53 = vector.load %arg36[%c2_54, %c0_55, %c0_56] : memref<3x48x48xf32, #tpu.memory_space<vmem>>, vector<1x48x48xf32>
    %54 = vector.shape_cast %53 : vector<1x48x48xf32> to vector<48x48xf32>
    %cst_57 = arith.constant dense<0.000000e+00> : vector<16x48xf32>
    %55 = tpu.matmul %45, %54, %cst_57 {dimension_numbers = #tpu.dot_dimension_numbers<[1], [0], [0], [1], [0, 0, 1, 1], [], []>} : vector<16x48xf32>, vector<48x48xf32>, vector<16x48xf32> -> vector<16x48xf32>
    %56 = arith.addf %52, %55 : vector<16x48xf32>
    %c0_58 = arith.constant 0 : index
    %c0_59 = arith.constant 0 : index
    %57 = vector.load %arg34[%c0_58, %c0_59] : memref<1x48xf32, #tpu.memory_space<vmem>>, vector<1x48xf32>
    %58 = vector.broadcast %57 : vector<1x48xf32> to vector<16x48xf32>
    %59 = arith.addf %56, %58 : vector<16x48xf32>
    %60 = arith.addf %18, %59 : vector<16x48xf32>
    %c0_60 = arith.constant 0 : index
    %c0_61 = arith.constant 0 : index
    %61 = vector.load %arg42[%c0_60, %c0_61] : memref<32x16xf32, #tpu.memory_space<vmem>>, vector<32x16xf32>
    %cst_62 = arith.constant dense<0.000000e+00> : vector<32x48xf32>
    %62 = tpu.matmul %61, %60, %cst_62 {dimension_numbers = #tpu.dot_dimension_numbers<[1], [0], [0], [1], [0, 0, 1, 1], [], []>} : vector<32x16xf32>, vector<16x48xf32>, vector<32x48xf32> -> vector<32x48xf32>
    %c0_63 = arith.constant 0 : index
    %c0_64 = arith.constant 0 : index
    %63 = vector.load %arg41[%c0_63, %c0_64] : memref<32x32xf32, #tpu.memory_space<vmem>>, vector<32x32xf32>
    %cst_65 = arith.constant dense<0.000000e+00> : vector<32x48xf32>
    %64 = tpu.matmul %63, %62, %cst_65 {dimension_numbers = #tpu.dot_dimension_numbers<[1], [0], [0], [1], [0, 0, 1, 1], [], []>} : vector<32x32xf32>, vector<32x48xf32>, vector<32x48xf32> -> vector<32x48xf32>
    %c0_66 = arith.constant 0 : index
    %c0_67 = arith.constant 0 : index
    %65 = vector.load %arg40[%c0_66, %c0_67] : memref<32x32xf32, #tpu.memory_space<vmem>>, vector<32x32xf32>
    %cst_68 = arith.constant dense<0.000000e+00> : vector<32x48xf32>
    %66 = tpu.matmul %65, %62, %cst_68 {dimension_numbers = #tpu.dot_dimension_numbers<[1], [0], [0], [1], [0, 0, 1, 1], [], []>} : vector<32x32xf32>, vector<32x48xf32>, vector<32x48xf32> -> vector<32x48xf32>
    %c0_69 = arith.constant 0 : index
    %c0_70 = arith.constant 0 : index
    %c0_71 = arith.constant 0 : index
    %67 = vector.load %arg44[%c0_69, %c0_70, %c0_71] : memref<3x48x64xf32, #tpu.memory_space<vmem>>, vector<1x48x64xf32>
    %68 = vector.shape_cast %67 : vector<1x48x64xf32> to vector<48x64xf32>
    %cst_72 = arith.constant dense<0.000000e+00> : vector<32x64xf32>
    %69 = tpu.matmul %64, %68, %cst_72 {dimension_numbers = #tpu.dot_dimension_numbers<[1], [0], [0], [1], [0, 0, 1, 1], [], []>} : vector<32x48xf32>, vector<48x64xf32>, vector<32x64xf32> -> vector<32x64xf32>
    %c1_73 = arith.constant 1 : index
    %c0_74 = arith.constant 0 : index
    %c0_75 = arith.constant 0 : index
    %70 = vector.load %arg44[%c1_73, %c0_74, %c0_75] : memref<3x48x64xf32, #tpu.memory_space<vmem>>, vector<1x48x64xf32>
    %71 = vector.shape_cast %70 : vector<1x48x64xf32> to vector<48x64xf32>
    %cst_76 = arith.constant dense<0.000000e+00> : vector<32x64xf32>
    %72 = tpu.matmul %62, %71, %cst_76 {dimension_numbers = #tpu.dot_dimension_numbers<[1], [0], [0], [1], [0, 0, 1, 1], [], []>} : vector<32x48xf32>, vector<48x64xf32>, vector<32x64xf32> -> vector<32x64xf32>
    %73 = arith.addf %69, %72 : vector<32x64xf32>
    %c2_77 = arith.constant 2 : index
    %c0_78 = arith.constant 0 : index
    %c0_79 = arith.constant 0 : index
    %74 = vector.load %arg44[%c2_77, %c0_78, %c0_79] : memref<3x48x64xf32, #tpu.memory_space<vmem>>, vector<1x48x64xf32>
    %75 = vector.shape_cast %74 : vector<1x48x64xf32> to vector<48x64xf32>
    %cst_80 = arith.constant dense<0.000000e+00> : vector<32x64xf32>
    %76 = tpu.matmul %66, %75, %cst_80 {dimension_numbers = #tpu.dot_dimension_numbers<[1], [0], [0], [1], [0, 0, 1, 1], [], []>} : vector<32x48xf32>, vector<48x64xf32>, vector<32x64xf32> -> vector<32x64xf32>
    %77 = arith.addf %73, %76 : vector<32x64xf32>
    %c0_81 = arith.constant 0 : index
    %c0_82 = arith.constant 0 : index
    %78 = vector.load %arg43[%c0_81, %c0_82] : memref<1x64xf32, #tpu.memory_space<vmem>>, vector<1x64xf32>
    %79 = vector.broadcast %78 : vector<1x64xf32> to vector<32x64xf32>
    %80 = arith.addf %77, %79 : vector<32x64xf32>
    %cst_83 = arith.constant 0.000000e+00 : f32
    %81 = vector.broadcast %cst_83 : f32 to vector<32x64xf32>
    %82 = arith.cmpf ogt, %80, %81 : vector<32x64xf32>
    %cst_84 = arith.constant 2.000000e-01 : f32
    %83 = vector.broadcast %cst_84 : f32 to vector<32x64xf32>
    %84 = arith.mulf %83, %80 : vector<32x64xf32>
    %85 = arith.select %82, %80, %84 : vector<32x64xi1>, vector<32x64xf32>
    %c0_85 = arith.constant 0 : index
    %c0_86 = arith.constant 0 : index
    %86 = vector.load %arg41[%c0_85, %c0_86] : memref<32x32xf32, #tpu.memory_space<vmem>>, vector<32x32xf32>
    %cst_87 = arith.constant dense<0.000000e+00> : vector<32x64xf32>
    %87 = tpu.matmul %86, %85, %cst_87 {dimension_numbers = #tpu.dot_dimension_numbers<[1], [0], [0], [1], [0, 0, 1, 1], [], []>} : vector<32x32xf32>, vector<32x64xf32>, vector<32x64xf32> -> vector<32x64xf32>
    %c0_88 = arith.constant 0 : index
    %c0_89 = arith.constant 0 : index
    %88 = vector.load %arg40[%c0_88, %c0_89] : memref<32x32xf32, #tpu.memory_space<vmem>>, vector<32x32xf32>
    %cst_90 = arith.constant dense<0.000000e+00> : vector<32x64xf32>
    %89 = tpu.matmul %88, %85, %cst_90 {dimension_numbers = #tpu.dot_dimension_numbers<[1], [0], [0], [1], [0, 0, 1, 1], [], []>} : vector<32x32xf32>, vector<32x64xf32>, vector<32x64xf32> -> vector<32x64xf32>
    %c0_91 = arith.constant 0 : index
    %c0_92 = arith.constant 0 : index
    %c0_93 = arith.constant 0 : index
    %90 = vector.load %arg4[%c0_91, %c0_92, %c0_93] : memref<3x64x64xf32, #tpu.memory_space<vmem>>, vector<1x64x64xf32>
    %91 = vector.shape_cast %90 : vector<1x64x64xf32> to vector<64x64xf32>
    %cst_94 = arith.constant dense<0.000000e+00> : vector<32x64xf32>
    %92 = tpu.matmul %87, %91, %cst_94 {dimension_numbers = #tpu.dot_dimension_numbers<[1], [0], [0], [1], [0, 0, 1, 1], [], []>} : vector<32x64xf32>, vector<64x64xf32>, vector<32x64xf32> -> vector<32x64xf32>
    %c1_95 = arith.constant 1 : index
    %c0_96 = arith.constant 0 : index
    %c0_97 = arith.constant 0 : index
    %93 = vector.load %arg4[%c1_95, %c0_96, %c0_97] : memref<3x64x64xf32, #tpu.memory_space<vmem>>, vector<1x64x64xf32>
    %94 = vector.shape_cast %93 : vector<1x64x64xf32> to vector<64x64xf32>
    %cst_98 = arith.constant dense<0.000000e+00> : vector<32x64xf32>
    %95 = tpu.matmul %85, %94, %cst_98 {dimension_numbers = #tpu.dot_dimension_numbers<[1], [0], [0], [1], [0, 0, 1, 1], [], []>} : vector<32x64xf32>, vector<64x64xf32>, vector<32x64xf32> -> vector<32x64xf32>
    %96 = arith.addf %92, %95 : vector<32x64xf32>
    %c2_99 = arith.constant 2 : index
    %c0_100 = arith.constant 0 : index
    %c0_101 = arith.constant 0 : index
    %97 = vector.load %arg4[%c2_99, %c0_100, %c0_101] : memref<3x64x64xf32, #tpu.memory_space<vmem>>, vector<1x64x64xf32>
    %98 = vector.shape_cast %97 : vector<1x64x64xf32> to vector<64x64xf32>
    %cst_102 = arith.constant dense<0.000000e+00> : vector<32x64xf32>
    %99 = tpu.matmul %89, %98, %cst_102 {dimension_numbers = #tpu.dot_dimension_numbers<[1], [0], [0], [1], [0, 0, 1, 1], [], []>} : vector<32x64xf32>, vector<64x64xf32>, vector<32x64xf32> -> vector<32x64xf32>
    %100 = arith.addf %96, %99 : vector<32x64xf32>
    %c0_103 = arith.constant 0 : index
    %c0_104 = arith.constant 0 : index
    %101 = vector.load %arg3[%c0_103, %c0_104] : memref<1x64xf32, #tpu.memory_space<vmem>>, vector<1x64xf32>
    %102 = vector.broadcast %101 : vector<1x64xf32> to vector<32x64xf32>
    %103 = arith.addf %100, %102 : vector<32x64xf32>
    %c0_105 = arith.constant 0 : index
    %c0_106 = arith.constant 0 : index
    %104 = vector.load %arg7[%c0_105, %c0_106] : memref<1x64xf32, #tpu.memory_space<vmem>>, vector<1x64xf32>
    %c0_107 = arith.constant 0 : index
    %c0_108 = arith.constant 0 : index
    %105 = vector.load %arg0[%c0_107, %c0_108] : memref<32x32xf32, #tpu.memory_space<vmem>>, vector<32x32xf32>
    %cst_109 = arith.constant dense<0.000000e+00> : vector<32x64xf32>
    %106 = tpu.matmul %105, %103, %cst_109 {dimension_numbers = #tpu.dot_dimension_numbers<[1], [0], [0], [1], [0, 0, 1, 1], [], []>} : vector<32x32xf32>, vector<32x64xf32>, vector<32x64xf32> -> vector<32x64xf32>
    %107 = vector.broadcast %104 : vector<1x64xf32> to vector<32x64xf32>
    %108 = arith.mulf %107, %106 : vector<32x64xf32>
    %cst_110 = arith.constant 1.000000e+00 : f32
    %109 = vector.broadcast %cst_110 : f32 to vector<1x64xf32>
    %110 = arith.subf %109, %104 : vector<1x64xf32>
    %111 = vector.broadcast %110 : vector<1x64xf32> to vector<32x64xf32>
    %112 = arith.mulf %111, %103 : vector<32x64xf32>
    %113 = arith.addf %108, %112 : vector<32x64xf32>
    %c0_111 = arith.constant 0 : index
    %c0_112 = arith.constant 0 : index
    %114 = vector.load %arg37[%c0_111, %c0_112] : memref<64x32xf32, #tpu.memory_space<vmem>>, vector<64x32xf32>
    %cst_113 = arith.constant dense<0.000000e+00> : vector<32x32xf32>
    %115 = tpu.matmul %113, %114, %cst_113 {dimension_numbers = #tpu.dot_dimension_numbers<[1], [0], [0], [1], [0, 0, 1, 1], [], []>} : vector<32x64xf32>, vector<64x32xf32>, vector<32x32xf32> -> vector<32x32xf32>
    %c0_114 = arith.constant 0 : index
    %c0_115 = arith.constant 0 : index
    %116 = vector.load %arg32[%c0_114, %c0_115] : memref<32x32xf32, #tpu.memory_space<vmem>>, vector<32x32xf32>
    %117 = arith.addf %115, %116 : vector<32x32xf32>
    %c0_116 = arith.constant 0 : index
    %c0_117 = arith.constant 0 : index
    %118 = vector.load %arg19[%c0_116, %c0_117] : memref<32x96xf32, #tpu.memory_space<vmem>>, vector<32x96xf32>
    %cst_118 = arith.constant dense<0.000000e+00> : vector<32x96xf32>
    %119 = tpu.matmul %117, %118, %cst_118 {dimension_numbers = #tpu.dot_dimension_numbers<[1], [0], [0], [1], [0, 0, 1, 1], [], []>} : vector<32x32xf32>, vector<32x96xf32>, vector<32x96xf32> -> vector<32x96xf32>
    %c0_119 = arith.constant 0 : index
    %c0_120 = arith.constant 0 : index
    %120 = vector.load %arg13[%c0_119, %c0_120] : memref<1x96xf32, #tpu.memory_space<vmem>>, vector<1x96xf32>
    %121 = vector.broadcast %120 : vector<1x96xf32> to vector<32x96xf32>
    %122 = arith.addf %119, %121 : vector<32x96xf32>
    %123 = vector.extract_strided_slice %122 {offsets = [0, 0], sizes = [16, 8], strides = [1, 1]} : vector<32x96xf32> to vector<16x8xf32>
    %124 = vector.extract_strided_slice %122 {offsets = [0, 32], sizes = [16, 8], strides = [1, 1]} : vector<32x96xf32> to vector<16x8xf32>
    %125 = vector.extract_strided_slice %122 {offsets = [0, 64], sizes = [16, 8], strides = [1, 1]} : vector<32x96xf32> to vector<16x8xf32>
    %126 = vector.extract_strided_slice %122 {offsets = [0, 8], sizes = [16, 8], strides = [1, 1]} : vector<32x96xf32> to vector<16x8xf32>
    %127 = vector.extract_strided_slice %122 {offsets = [0, 40], sizes = [16, 8], strides = [1, 1]} : vector<32x96xf32> to vector<16x8xf32>
    %128 = vector.extract_strided_slice %122 {offsets = [0, 72], sizes = [16, 8], strides = [1, 1]} : vector<32x96xf32> to vector<16x8xf32>
    %129 = vector.extract_strided_slice %122 {offsets = [0, 16], sizes = [16, 8], strides = [1, 1]} : vector<32x96xf32> to vector<16x8xf32>
    %130 = vector.extract_strided_slice %122 {offsets = [0, 48], sizes = [16, 8], strides = [1, 1]} : vector<32x96xf32> to vector<16x8xf32>
    %131 = vector.extract_strided_slice %122 {offsets = [0, 80], sizes = [16, 8], strides = [1, 1]} : vector<32x96xf32> to vector<16x8xf32>
    %132 = vector.extract_strided_slice %122 {offsets = [0, 24], sizes = [16, 8], strides = [1, 1]} : vector<32x96xf32> to vector<16x8xf32>
    %133 = vector.extract_strided_slice %122 {offsets = [0, 56], sizes = [16, 8], strides = [1, 1]} : vector<32x96xf32> to vector<16x8xf32>
    %134 = vector.extract_strided_slice %122 {offsets = [0, 88], sizes = [16, 8], strides = [1, 1]} : vector<32x96xf32> to vector<16x8xf32>
    %135 = vector.extract_strided_slice %122 {offsets = [16, 0], sizes = [16, 8], strides = [1, 1]} : vector<32x96xf32> to vector<16x8xf32>
    %136 = vector.extract_strided_slice %122 {offsets = [16, 32], sizes = [16, 8], strides = [1, 1]} : vector<32x96xf32> to vector<16x8xf32>
    %137 = vector.extract_strided_slice %122 {offsets = [16, 64], sizes = [16, 8], strides = [1, 1]} : vector<32x96xf32> to vector<16x8xf32>
    %138 = vector.extract_strided_slice %122 {offsets = [16, 8], sizes = [16, 8], strides = [1, 1]} : vector<32x96xf32> to vector<16x8xf32>
    %139 = vector.extract_strided_slice %122 {offsets = [16, 40], sizes = [16, 8], strides = [1, 1]} : vector<32x96xf32> to vector<16x8xf32>
    %140 = vector.extract_strided_slice %122 {offsets = [16, 72], sizes = [16, 8], strides = [1, 1]} : vector<32x96xf32> to vector<16x8xf32>
    %141 = vector.extract_strided_slice %122 {offsets = [16, 16], sizes = [16, 8], strides = [1, 1]} : vector<32x96xf32> to vector<16x8xf32>
    %142 = vector.extract_strided_slice %122 {offsets = [16, 48], sizes = [16, 8], strides = [1, 1]} : vector<32x96xf32> to vector<16x8xf32>
    %143 = vector.extract_strided_slice %122 {offsets = [16, 80], sizes = [16, 8], strides = [1, 1]} : vector<32x96xf32> to vector<16x8xf32>
    %144 = vector.extract_strided_slice %122 {offsets = [16, 24], sizes = [16, 8], strides = [1, 1]} : vector<32x96xf32> to vector<16x8xf32>
    %145 = vector.extract_strided_slice %122 {offsets = [16, 56], sizes = [16, 8], strides = [1, 1]} : vector<32x96xf32> to vector<16x8xf32>
    %146 = vector.extract_strided_slice %122 {offsets = [16, 88], sizes = [16, 8], strides = [1, 1]} : vector<32x96xf32> to vector<16x8xf32>
    %147 = vector.shape_cast %123 : vector<16x8xf32> to vector<1x16x8xf32>
    %148 = vector.shape_cast %126 : vector<16x8xf32> to vector<1x16x8xf32>
    %149 = vector.shape_cast %129 : vector<16x8xf32> to vector<1x16x8xf32>
    %150 = vector.shape_cast %132 : vector<16x8xf32> to vector<1x16x8xf32>
    %151 = vector.shape_cast %135 : vector<16x8xf32> to vector<1x16x8xf32>
    %152 = vector.shape_cast %138 : vector<16x8xf32> to vector<1x16x8xf32>
    %153 = vector.shape_cast %141 : vector<16x8xf32> to vector<1x16x8xf32>
    %154 = vector.shape_cast %144 : vector<16x8xf32> to vector<1x16x8xf32>
    %155 = tpu.concatenate %147, %148, %149, %150, %151, %152, %153, %154 in 0 : vector<1x16x8xf32>, vector<1x16x8xf32>, vector<1x16x8xf32>, vector<1x16x8xf32>, vector<1x16x8xf32>, vector<1x16x8xf32>, vector<1x16x8xf32>, vector<1x16x8xf32> -> vector<8x16x8xf32>
    %cst_121 = arith.constant 0.353553385 : f32
    %156 = vector.broadcast %cst_121 : f32 to vector<8x16x8xf32>
    %157 = arith.mulf %155, %156 : vector<8x16x8xf32>
    %158 = vector.shape_cast %124 : vector<16x8xf32> to vector<1x16x8xf32>
    %159 = vector.shape_cast %127 : vector<16x8xf32> to vector<1x16x8xf32>
    %160 = vector.shape_cast %130 : vector<16x8xf32> to vector<1x16x8xf32>
    %161 = vector.shape_cast %133 : vector<16x8xf32> to vector<1x16x8xf32>
    %162 = vector.shape_cast %136 : vector<16x8xf32> to vector<1x16x8xf32>
    %163 = vector.shape_cast %139 : vector<16x8xf32> to vector<1x16x8xf32>
    %164 = vector.shape_cast %142 : vector<16x8xf32> to vector<1x16x8xf32>
    %165 = vector.shape_cast %145 : vector<16x8xf32> to vector<1x16x8xf32>
    %166 = tpu.concatenate %158, %159, %160, %161, %162, %163, %164, %165 in 0 : vector<1x16x8xf32>, vector<1x16x8xf32>, vector<1x16x8xf32>, vector<1x16x8xf32>, vector<1x16x8xf32>, vector<1x16x8xf32>, vector<1x16x8xf32>, vector<1x16x8xf32> -> vector<8x16x8xf32>
    %167 = vector.shape_cast %125 : vector<16x8xf32> to vector<1x16x8xf32>
    %168 = vector.shape_cast %128 : vector<16x8xf32> to vector<1x16x8xf32>
    %169 = vector.shape_cast %131 : vector<16x8xf32> to vector<1x16x8xf32>
    %170 = vector.shape_cast %134 : vector<16x8xf32> to vector<1x16x8xf32>
    %171 = vector.shape_cast %137 : vector<16x8xf32> to vector<1x16x8xf32>
    %172 = vector.shape_cast %140 : vector<16x8xf32> to vector<1x16x8xf32>
    %173 = vector.shape_cast %143 : vector<16x8xf32> to vector<1x16x8xf32>
    %174 = vector.shape_cast %146 : vector<16x8xf32> to vector<1x16x8xf32>
    %175 = tpu.concatenate %167, %168, %169, %170, %171, %172, %173, %174 in 0 : vector<1x16x8xf32>, vector<1x16x8xf32>, vector<1x16x8xf32>, vector<1x16x8xf32>, vector<1x16x8xf32>, vector<1x16x8xf32>, vector<1x16x8xf32>, vector<1x16x8xf32> -> vector<8x16x8xf32>
    "tpu.trace_start"() <{level = 10 : i32, message = "bqd,bkd->bqk"}> : () -> ()
    %cst_122 = arith.constant dense<0.000000e+00> : vector<8x16x16xf32>
    %176 = tpu.matmul %157, %166, %cst_122 {dimension_numbers = #tpu.dot_dimension_numbers<[2], [2], [1], [1], [0, 0, 0, 1, 1, 1], [0], [0]>} : vector<8x16x8xf32>, vector<8x16x8xf32>, vector<8x16x16xf32> -> vector<8x16x16xf32>
    "tpu.trace_stop"() : () -> ()
    %cst_123 = arith.constant dense<0xFF800000> : vector<8x16xf32>
    %177 = vector.multi_reduction <maximumf>, %176, %cst_123 [2] : vector<8x16x16xf32> to vector<8x16xf32>
    %178 = vector.shape_cast %177 : vector<8x16xf32> to vector<8x16x1xf32>
    %179 = vector.broadcast %178 : vector<8x16x1xf32> to vector<8x16x16xf32>
    %180 = arith.subf %176, %179 : vector<8x16x16xf32>
    %181 = math.exp %180 : vector<8x16x16xf32>
    %cst_124 = arith.constant dense<0.000000e+00> : vector<8x16xf32>
    %182 = vector.multi_reduction <add>, %181, %cst_124 [2] : vector<8x16x16xf32> to vector<8x16xf32>
    %183 = vector.shape_cast %182 : vector<8x16xf32> to vector<8x16x1xf32>
    %184 = tpu.reciprocal %183 {approx = true} : vector<8x16x1xf32> -> vector<8x16x1xf32>
    %185 = vector.broadcast %184 : vector<8x16x1xf32> to vector<8x16x16xf32>
    %186 = arith.mulf %181, %185 : vector<8x16x16xf32>
    "tpu.trace_start"() <{level = 10 : i32, message = "bqk,bkd->bqd"}> : () -> ()
    %cst_125 = arith.constant dense<0.000000e+00> : vector<8x16x8xf32>
    %187 = tpu.matmul %186, %175, %cst_125 {dimension_numbers = #tpu.dot_dimension_numbers<[2], [1], [1], [2], [0, 0, 0, 1, 1, 2], [0], [0]>} : vector<8x16x16xf32>, vector<8x16x8xf32>, vector<8x16x8xf32> -> vector<8x16x8xf32>
    "tpu.trace_stop"() : () -> ()
    %188 = vector.extract_strided_slice %187 {offsets = [0, 0, 0], sizes = [1, 16, 8], strides = [1, 1, 1]} : vector<8x16x8xf32> to vector<1x16x8xf32>
    %189 = vector.shape_cast %188 : vector<1x16x8xf32> to vector<16x8xf32>
    %190 = vector.extract_strided_slice %187 {offsets = [1, 0, 0], sizes = [1, 16, 8], strides = [1, 1, 1]} : vector<8x16x8xf32> to vector<1x16x8xf32>
    %191 = vector.shape_cast %190 : vector<1x16x8xf32> to vector<16x8xf32>
    %192 = vector.extract_strided_slice %187 {offsets = [2, 0, 0], sizes = [1, 16, 8], strides = [1, 1, 1]} : vector<8x16x8xf32> to vector<1x16x8xf32>
    %193 = vector.shape_cast %192 : vector<1x16x8xf32> to vector<16x8xf32>
    %194 = vector.extract_strided_slice %187 {offsets = [3, 0, 0], sizes = [1, 16, 8], strides = [1, 1, 1]} : vector<8x16x8xf32> to vector<1x16x8xf32>
    %195 = vector.shape_cast %194 : vector<1x16x8xf32> to vector<16x8xf32>
    %196 = tpu.concatenate %189, %191, %193, %195 in 1 : vector<16x8xf32>, vector<16x8xf32>, vector<16x8xf32>, vector<16x8xf32> -> vector<16x32xf32>
    %197 = vector.extract_strided_slice %187 {offsets = [4, 0, 0], sizes = [1, 16, 8], strides = [1, 1, 1]} : vector<8x16x8xf32> to vector<1x16x8xf32>
    %198 = vector.shape_cast %197 : vector<1x16x8xf32> to vector<16x8xf32>
    %199 = vector.extract_strided_slice %187 {offsets = [5, 0, 0], sizes = [1, 16, 8], strides = [1, 1, 1]} : vector<8x16x8xf32> to vector<1x16x8xf32>
    %200 = vector.shape_cast %199 : vector<1x16x8xf32> to vector<16x8xf32>
    %201 = vector.extract_strided_slice %187 {offsets = [6, 0, 0], sizes = [1, 16, 8], strides = [1, 1, 1]} : vector<8x16x8xf32> to vector<1x16x8xf32>
    %202 = vector.shape_cast %201 : vector<1x16x8xf32> to vector<16x8xf32>
    %203 = vector.extract_strided_slice %187 {offsets = [7, 0, 0], sizes = [1, 16, 8], strides = [1, 1, 1]} : vector<8x16x8xf32> to vector<1x16x8xf32>
    %204 = vector.shape_cast %203 : vector<1x16x8xf32> to vector<16x8xf32>
    %205 = tpu.concatenate %198, %200, %202, %204 in 1 : vector<16x8xf32>, vector<16x8xf32>, vector<16x8xf32>, vector<16x8xf32> -> vector<16x32xf32>
    %206 = tpu.concatenate %196, %205 in 0 : vector<16x32xf32>, vector<16x32xf32> -> vector<32x32xf32>
    %c0_126 = arith.constant 0 : index
    %c0_127 = arith.constant 0 : index
    %207 = vector.load %arg18[%c0_126, %c0_127] : memref<32x32xf32, #tpu.memory_space<vmem>>, vector<32x32xf32>
    %cst_128 = arith.constant dense<0.000000e+00> : vector<32x32xf32>
    %208 = tpu.matmul %206, %207, %cst_128 {dimension_numbers = #tpu.dot_dimension_numbers<[1], [0], [0], [1], [0, 0, 1, 1], [], []>} : vector<32x32xf32>, vector<32x32xf32>, vector<32x32xf32> -> vector<32x32xf32>
    %c0_129 = arith.constant 0 : index
    %c0_130 = arith.constant 0 : index
    %209 = vector.load %arg12[%c0_129, %c0_130] : memref<1x32xf32, #tpu.memory_space<vmem>>, vector<1x32xf32>
    %210 = vector.broadcast %209 : vector<1x32xf32> to vector<32x32xf32>
    %211 = arith.addf %208, %210 : vector<32x32xf32>
    %212 = arith.addf %117, %211 : vector<32x32xf32>
    %c0_131 = arith.constant 0 : index
    %c0_132 = arith.constant 0 : index
    %213 = vector.load %arg14[%c0_131, %c0_132] : memref<1x32xf32, #tpu.memory_space<vmem>>, vector<1x32xf32>
    %c0_133 = arith.constant 0 : index
    %c0_134 = arith.constant 0 : index
    %214 = vector.load %arg8[%c0_133, %c0_134] : memref<1x32xf32, #tpu.memory_space<vmem>>, vector<1x32xf32>
    %cst_135 = arith.constant dense<0.000000e+00> : vector<32xf32>
    %215 = vector.multi_reduction <add>, %212, %cst_135 [1] : vector<32x32xf32> to vector<32xf32>
    %216 = vector.shape_cast %215 : vector<32xf32> to vector<32x1xf32>
    %cst_136 = arith.constant 3.200000e+01 : f32
    %217 = vector.broadcast %cst_136 : f32 to vector<32x1xf32>
    %218 = arith.divf %216, %217 : vector<32x1xf32>
    %219 = vector.broadcast %218 : vector<32x1xf32> to vector<32x32xf32>
    %220 = arith.subf %212, %219 : vector<32x32xf32>
    %221 = arith.mulf %220, %220 : vector<32x32xf32>
    %cst_137 = arith.constant dense<0.000000e+00> : vector<32xf32>
    %222 = vector.multi_reduction <add>, %221, %cst_137 [1] : vector<32x32xf32> to vector<32xf32>
    %223 = vector.shape_cast %222 : vector<32xf32> to vector<32x1xf32>
    %cst_138 = arith.constant 3.200000e+01 : f32
    %224 = vector.broadcast %cst_138 : f32 to vector<32x1xf32>
    %225 = arith.divf %223, %224 : vector<32x1xf32>
    %226 = vector.broadcast %218 : vector<32x1xf32> to vector<32x32xf32>
    %227 = arith.subf %212, %226 : vector<32x32xf32>
    %cst_139 = arith.constant 9.99999974E-6 : f32
    %228 = vector.broadcast %cst_139 : f32 to vector<32x1xf32>
    %229 = arith.addf %225, %228 : vector<32x1xf32>
    %230 = math.rsqrt %229 : vector<32x1xf32>
    %231 = vector.broadcast %230 : vector<32x1xf32> to vector<32x32xf32>
    %232 = arith.mulf %227, %231 : vector<32x32xf32>
    %233 = vector.broadcast %213 : vector<1x32xf32> to vector<32x32xf32>
    %234 = arith.mulf %232, %233 : vector<32x32xf32>
    %235 = vector.broadcast %214 : vector<1x32xf32> to vector<32x32xf32>
    %236 = arith.addf %234, %235 : vector<32x32xf32>
    %c0_140 = arith.constant 0 : index
    %c0_141 = arith.constant 0 : index
    %237 = vector.load %arg16[%c0_140, %c0_141] : memref<32x64xf32, #tpu.memory_space<vmem>>, vector<32x64xf32>
    %cst_142 = arith.constant dense<0.000000e+00> : vector<32x64xf32>
    %238 = tpu.matmul %236, %237, %cst_142 {dimension_numbers = #tpu.dot_dimension_numbers<[1], [0], [0], [1], [0, 0, 1, 1], [], []>} : vector<32x32xf32>, vector<32x64xf32>, vector<32x64xf32> -> vector<32x64xf32>
    %c0_143 = arith.constant 0 : index
    %c0_144 = arith.constant 0 : index
    %239 = vector.load %arg10[%c0_143, %c0_144] : memref<1x64xf32, #tpu.memory_space<vmem>>, vector<1x64xf32>
    %240 = vector.broadcast %239 : vector<1x64xf32> to vector<32x64xf32>
    %241 = arith.addf %238, %240 : vector<32x64xf32>
    %cst_145 = arith.constant 5.000000e-01 : f32
    %242 = vector.broadcast %cst_145 : f32 to vector<32x64xf32>
    %243 = arith.mulf %242, %241 : vector<32x64xf32>
    %cst_146 = arith.constant 0.707106769 : f32
    %244 = vector.broadcast %cst_146 : f32 to vector<32x64xf32>
    %245 = arith.mulf %241, %244 : vector<32x64xf32>
    %246 = math.absf %245 : vector<32x64xf32>
    %cst_147 = arith.constant 0.327591091 : f32
    %247 = vector.broadcast %cst_147 : f32 to vector<32x64xf32>
    %248 = arith.mulf %247, %246 : vector<32x64xf32>
    %cst_148 = arith.constant 1.000000e+00 : f32
    %249 = vector.broadcast %cst_148 : f32 to vector<32x64xf32>
    %250 = arith.addf %249, %248 : vector<32x64xf32>
    %251 = tpu.reciprocal %250 {approx = true} : vector<32x64xf32> -> vector<32x64xf32>
    %cst_149 = arith.constant 1.06140542 : f32
    %252 = vector.broadcast %cst_149 : f32 to vector<32x64xf32>
    %253 = arith.mulf %252, %251 : vector<32x64xf32>
    %cst_150 = arith.constant 1.45315206 : f32
    %254 = vector.broadcast %cst_150 : f32 to vector<32x64xf32>
    %255 = arith.subf %253, %254 : vector<32x64xf32>
    %256 = arith.mulf %255, %251 : vector<32x64xf32>
    %cst_151 = arith.constant 1.42141378 : f32
    %257 = vector.broadcast %cst_151 : f32 to vector<32x64xf32>
    %258 = arith.addf %256, %257 : vector<32x64xf32>
    %259 = arith.mulf %258, %251 : vector<32x64xf32>
    %cst_152 = arith.constant 0.284496725 : f32
    %260 = vector.broadcast %cst_152 : f32 to vector<32x64xf32>
    %261 = arith.subf %259, %260 : vector<32x64xf32>
    %262 = arith.mulf %261, %251 : vector<32x64xf32>
    %cst_153 = arith.constant 0.254829586 : f32
    %263 = vector.broadcast %cst_153 : f32 to vector<32x64xf32>
    %264 = arith.addf %262, %263 : vector<32x64xf32>
    %265 = arith.mulf %264, %251 : vector<32x64xf32>
    %cst_154 = arith.constant 0.000000e+00 : f32
    %266 = vector.broadcast %cst_154 : f32 to vector<32x64xf32>
    %267 = arith.subf %266, %246 : vector<32x64xf32>
    %268 = arith.mulf %267, %246 : vector<32x64xf32>
    %269 = math.exp %268 : vector<32x64xf32>
    %270 = arith.mulf %265, %269 : vector<32x64xf32>
    %cst_155 = arith.constant 1.000000e+00 : f32
    %271 = vector.broadcast %cst_155 : f32 to vector<32x64xf32>
    %272 = arith.subf %271, %270 : vector<32x64xf32>
    %cst_156 = arith.constant 0.000000e+00 : f32
    %273 = vector.broadcast %cst_156 : f32 to vector<32x64xf32>
    %274 = arith.cmpf olt, %245, %273 : vector<32x64xf32>
    %cst_157 = arith.constant 0.000000e+00 : f32
    %275 = vector.broadcast %cst_157 : f32 to vector<32x64xf32>
    %276 = arith.subf %275, %272 : vector<32x64xf32>
    %277 = arith.select %274, %276, %272 : vector<32x64xi1>, vector<32x64xf32>
    %cst_158 = arith.constant 1.000000e+00 : f32
    %278 = vector.broadcast %cst_158 : f32 to vector<32x64xf32>
    %279 = arith.addf %278, %277 : vector<32x64xf32>
    %280 = arith.mulf %243, %279 : vector<32x64xf32>
    %c0_159 = arith.constant 0 : index
    %c0_160 = arith.constant 0 : index
    %281 = vector.load %arg17[%c0_159, %c0_160] : memref<64x32xf32, #tpu.memory_space<vmem>>, vector<64x32xf32>
    %cst_161 = arith.constant dense<0.000000e+00> : vector<32x32xf32>
    %282 = tpu.matmul %280, %281, %cst_161 {dimension_numbers = #tpu.dot_dimension_numbers<[1], [0], [0], [1], [0, 0, 1, 1], [], []>} : vector<32x64xf32>, vector<64x32xf32>, vector<32x32xf32> -> vector<32x32xf32>
    %c0_162 = arith.constant 0 : index
    %c0_163 = arith.constant 0 : index
    %283 = vector.load %arg11[%c0_162, %c0_163] : memref<1x32xf32, #tpu.memory_space<vmem>>, vector<1x32xf32>
    %284 = vector.broadcast %283 : vector<1x32xf32> to vector<32x32xf32>
    %285 = arith.addf %282, %284 : vector<32x32xf32>
    %286 = arith.addf %236, %285 : vector<32x32xf32>
    %c0_164 = arith.constant 0 : index
    %c0_165 = arith.constant 0 : index
    %287 = vector.load %arg15[%c0_164, %c0_165] : memref<1x32xf32, #tpu.memory_space<vmem>>, vector<1x32xf32>
    %c0_166 = arith.constant 0 : index
    %c0_167 = arith.constant 0 : index
    %288 = vector.load %arg9[%c0_166, %c0_167] : memref<1x32xf32, #tpu.memory_space<vmem>>, vector<1x32xf32>
    %cst_168 = arith.constant dense<0.000000e+00> : vector<32xf32>
    %289 = vector.multi_reduction <add>, %286, %cst_168 [1] : vector<32x32xf32> to vector<32xf32>
    %290 = vector.shape_cast %289 : vector<32xf32> to vector<32x1xf32>
    %cst_169 = arith.constant 3.200000e+01 : f32
    %291 = vector.broadcast %cst_169 : f32 to vector<32x1xf32>
    %292 = arith.divf %290, %291 : vector<32x1xf32>
    %293 = vector.broadcast %292 : vector<32x1xf32> to vector<32x32xf32>
    %294 = arith.subf %286, %293 : vector<32x32xf32>
    %295 = arith.mulf %294, %294 : vector<32x32xf32>
    %cst_170 = arith.constant dense<0.000000e+00> : vector<32xf32>
    %296 = vector.multi_reduction <add>, %295, %cst_170 [1] : vector<32x32xf32> to vector<32xf32>
    %297 = vector.shape_cast %296 : vector<32xf32> to vector<32x1xf32>
    %cst_171 = arith.constant 3.200000e+01 : f32
    %298 = vector.broadcast %cst_171 : f32 to vector<32x1xf32>
    %299 = arith.divf %297, %298 : vector<32x1xf32>
    %300 = vector.broadcast %292 : vector<32x1xf32> to vector<32x32xf32>
    %301 = arith.subf %286, %300 : vector<32x32xf32>
    %cst_172 = arith.constant 9.99999974E-6 : f32
    %302 = vector.broadcast %cst_172 : f32 to vector<32x1xf32>
    %303 = arith.addf %299, %302 : vector<32x1xf32>
    %304 = math.rsqrt %303 : vector<32x1xf32>
    %305 = vector.broadcast %304 : vector<32x1xf32> to vector<32x32xf32>
    %306 = arith.mulf %301, %305 : vector<32x32xf32>
    %307 = vector.broadcast %287 : vector<1x32xf32> to vector<32x32xf32>
    %308 = arith.mulf %306, %307 : vector<32x32xf32>
    %309 = vector.broadcast %288 : vector<1x32xf32> to vector<32x32xf32>
    %310 = arith.addf %308, %309 : vector<32x32xf32>
    %c0_173 = arith.constant 0 : index
    %c0_174 = arith.constant 0 : index
    %311 = vector.load %arg31[%c0_173, %c0_174] : memref<32x96xf32, #tpu.memory_space<vmem>>, vector<32x96xf32>
    %cst_175 = arith.constant dense<0.000000e+00> : vector<32x96xf32>
    %312 = tpu.matmul %310, %311, %cst_175 {dimension_numbers = #tpu.dot_dimension_numbers<[1], [0], [0], [1], [0, 0, 1, 1], [], []>} : vector<32x32xf32>, vector<32x96xf32>, vector<32x96xf32> -> vector<32x96xf32>
    %c0_176 = arith.constant 0 : index
    %c0_177 = arith.constant 0 : index
    %313 = vector.load %arg25[%c0_176, %c0_177] : memref<1x96xf32, #tpu.memory_space<vmem>>, vector<1x96xf32>
    %314 = vector.broadcast %313 : vector<1x96xf32> to vector<32x96xf32>
    %315 = arith.addf %312, %314 : vector<32x96xf32>
    %316 = vector.extract_strided_slice %315 {offsets = [0, 0], sizes = [16, 8], strides = [1, 1]} : vector<32x96xf32> to vector<16x8xf32>
    %317 = vector.extract_strided_slice %315 {offsets = [0, 32], sizes = [16, 8], strides = [1, 1]} : vector<32x96xf32> to vector<16x8xf32>
    %318 = vector.extract_strided_slice %315 {offsets = [0, 64], sizes = [16, 8], strides = [1, 1]} : vector<32x96xf32> to vector<16x8xf32>
    %319 = vector.extract_strided_slice %315 {offsets = [0, 8], sizes = [16, 8], strides = [1, 1]} : vector<32x96xf32> to vector<16x8xf32>
    %320 = vector.extract_strided_slice %315 {offsets = [0, 40], sizes = [16, 8], strides = [1, 1]} : vector<32x96xf32> to vector<16x8xf32>
    %321 = vector.extract_strided_slice %315 {offsets = [0, 72], sizes = [16, 8], strides = [1, 1]} : vector<32x96xf32> to vector<16x8xf32>
    %322 = vector.extract_strided_slice %315 {offsets = [0, 16], sizes = [16, 8], strides = [1, 1]} : vector<32x96xf32> to vector<16x8xf32>
    %323 = vector.extract_strided_slice %315 {offsets = [0, 48], sizes = [16, 8], strides = [1, 1]} : vector<32x96xf32> to vector<16x8xf32>
    %324 = vector.extract_strided_slice %315 {offsets = [0, 80], sizes = [16, 8], strides = [1, 1]} : vector<32x96xf32> to vector<16x8xf32>
    %325 = vector.extract_strided_slice %315 {offsets = [0, 24], sizes = [16, 8], strides = [1, 1]} : vector<32x96xf32> to vector<16x8xf32>
    %326 = vector.extract_strided_slice %315 {offsets = [0, 56], sizes = [16, 8], strides = [1, 1]} : vector<32x96xf32> to vector<16x8xf32>
    %327 = vector.extract_strided_slice %315 {offsets = [0, 88], sizes = [16, 8], strides = [1, 1]} : vector<32x96xf32> to vector<16x8xf32>
    %328 = vector.extract_strided_slice %315 {offsets = [16, 0], sizes = [16, 8], strides = [1, 1]} : vector<32x96xf32> to vector<16x8xf32>
    %329 = vector.extract_strided_slice %315 {offsets = [16, 32], sizes = [16, 8], strides = [1, 1]} : vector<32x96xf32> to vector<16x8xf32>
    %330 = vector.extract_strided_slice %315 {offsets = [16, 64], sizes = [16, 8], strides = [1, 1]} : vector<32x96xf32> to vector<16x8xf32>
    %331 = vector.extract_strided_slice %315 {offsets = [16, 8], sizes = [16, 8], strides = [1, 1]} : vector<32x96xf32> to vector<16x8xf32>
    %332 = vector.extract_strided_slice %315 {offsets = [16, 40], sizes = [16, 8], strides = [1, 1]} : vector<32x96xf32> to vector<16x8xf32>
    %333 = vector.extract_strided_slice %315 {offsets = [16, 72], sizes = [16, 8], strides = [1, 1]} : vector<32x96xf32> to vector<16x8xf32>
    %334 = vector.extract_strided_slice %315 {offsets = [16, 16], sizes = [16, 8], strides = [1, 1]} : vector<32x96xf32> to vector<16x8xf32>
    %335 = vector.extract_strided_slice %315 {offsets = [16, 48], sizes = [16, 8], strides = [1, 1]} : vector<32x96xf32> to vector<16x8xf32>
    %336 = vector.extract_strided_slice %315 {offsets = [16, 80], sizes = [16, 8], strides = [1, 1]} : vector<32x96xf32> to vector<16x8xf32>
    %337 = vector.extract_strided_slice %315 {offsets = [16, 24], sizes = [16, 8], strides = [1, 1]} : vector<32x96xf32> to vector<16x8xf32>
    %338 = vector.extract_strided_slice %315 {offsets = [16, 56], sizes = [16, 8], strides = [1, 1]} : vector<32x96xf32> to vector<16x8xf32>
    %339 = vector.extract_strided_slice %315 {offsets = [16, 88], sizes = [16, 8], strides = [1, 1]} : vector<32x96xf32> to vector<16x8xf32>
    %340 = vector.shape_cast %316 : vector<16x8xf32> to vector<1x16x8xf32>
    %341 = vector.shape_cast %319 : vector<16x8xf32> to vector<1x16x8xf32>
    %342 = vector.shape_cast %322 : vector<16x8xf32> to vector<1x16x8xf32>
    %343 = vector.shape_cast %325 : vector<16x8xf32> to vector<1x16x8xf32>
    %344 = vector.shape_cast %328 : vector<16x8xf32> to vector<1x16x8xf32>
    %345 = vector.shape_cast %331 : vector<16x8xf32> to vector<1x16x8xf32>
    %346 = vector.shape_cast %334 : vector<16x8xf32> to vector<1x16x8xf32>
    %347 = vector.shape_cast %337 : vector<16x8xf32> to vector<1x16x8xf32>
    %348 = tpu.concatenate %340, %341, %342, %343, %344, %345, %346, %347 in 0 : vector<1x16x8xf32>, vector<1x16x8xf32>, vector<1x16x8xf32>, vector<1x16x8xf32>, vector<1x16x8xf32>, vector<1x16x8xf32>, vector<1x16x8xf32>, vector<1x16x8xf32> -> vector<8x16x8xf32>
    %cst_178 = arith.constant 0.353553385 : f32
    %349 = vector.broadcast %cst_178 : f32 to vector<8x16x8xf32>
    %350 = arith.mulf %348, %349 : vector<8x16x8xf32>
    %351 = vector.shape_cast %317 : vector<16x8xf32> to vector<1x16x8xf32>
    %352 = vector.shape_cast %320 : vector<16x8xf32> to vector<1x16x8xf32>
    %353 = vector.shape_cast %323 : vector<16x8xf32> to vector<1x16x8xf32>
    %354 = vector.shape_cast %326 : vector<16x8xf32> to vector<1x16x8xf32>
    %355 = vector.shape_cast %329 : vector<16x8xf32> to vector<1x16x8xf32>
    %356 = vector.shape_cast %332 : vector<16x8xf32> to vector<1x16x8xf32>
    %357 = vector.shape_cast %335 : vector<16x8xf32> to vector<1x16x8xf32>
    %358 = vector.shape_cast %338 : vector<16x8xf32> to vector<1x16x8xf32>
    %359 = tpu.concatenate %351, %352, %353, %354, %355, %356, %357, %358 in 0 : vector<1x16x8xf32>, vector<1x16x8xf32>, vector<1x16x8xf32>, vector<1x16x8xf32>, vector<1x16x8xf32>, vector<1x16x8xf32>, vector<1x16x8xf32>, vector<1x16x8xf32> -> vector<8x16x8xf32>
    %360 = vector.shape_cast %318 : vector<16x8xf32> to vector<1x16x8xf32>
    %361 = vector.shape_cast %321 : vector<16x8xf32> to vector<1x16x8xf32>
    %362 = vector.shape_cast %324 : vector<16x8xf32> to vector<1x16x8xf32>
    %363 = vector.shape_cast %327 : vector<16x8xf32> to vector<1x16x8xf32>
    %364 = vector.shape_cast %330 : vector<16x8xf32> to vector<1x16x8xf32>
    %365 = vector.shape_cast %333 : vector<16x8xf32> to vector<1x16x8xf32>
    %366 = vector.shape_cast %336 : vector<16x8xf32> to vector<1x16x8xf32>
    %367 = vector.shape_cast %339 : vector<16x8xf32> to vector<1x16x8xf32>
    %368 = tpu.concatenate %360, %361, %362, %363, %364, %365, %366, %367 in 0 : vector<1x16x8xf32>, vector<1x16x8xf32>, vector<1x16x8xf32>, vector<1x16x8xf32>, vector<1x16x8xf32>, vector<1x16x8xf32>, vector<1x16x8xf32>, vector<1x16x8xf32> -> vector<8x16x8xf32>
    "tpu.trace_start"() <{level = 10 : i32, message = "bqd,bkd->bqk"}> : () -> ()
    %cst_179 = arith.constant dense<0.000000e+00> : vector<8x16x16xf32>
    %369 = tpu.matmul %350, %359, %cst_179 {dimension_numbers = #tpu.dot_dimension_numbers<[2], [2], [1], [1], [0, 0, 0, 1, 1, 1], [0], [0]>} : vector<8x16x8xf32>, vector<8x16x8xf32>, vector<8x16x16xf32> -> vector<8x16x16xf32>
    "tpu.trace_stop"() : () -> ()
    %cst_180 = arith.constant dense<0xFF800000> : vector<8x16xf32>
    %370 = vector.multi_reduction <maximumf>, %369, %cst_180 [2] : vector<8x16x16xf32> to vector<8x16xf32>
    %371 = vector.shape_cast %370 : vector<8x16xf32> to vector<8x16x1xf32>
    %372 = vector.broadcast %371 : vector<8x16x1xf32> to vector<8x16x16xf32>
    %373 = arith.subf %369, %372 : vector<8x16x16xf32>
    %374 = math.exp %373 : vector<8x16x16xf32>
    %cst_181 = arith.constant dense<0.000000e+00> : vector<8x16xf32>
    %375 = vector.multi_reduction <add>, %374, %cst_181 [2] : vector<8x16x16xf32> to vector<8x16xf32>
    %376 = vector.shape_cast %375 : vector<8x16xf32> to vector<8x16x1xf32>
    %377 = tpu.reciprocal %376 {approx = true} : vector<8x16x1xf32> -> vector<8x16x1xf32>
    %378 = vector.broadcast %377 : vector<8x16x1xf32> to vector<8x16x16xf32>
    %379 = arith.mulf %374, %378 : vector<8x16x16xf32>
    "tpu.trace_start"() <{level = 10 : i32, message = "bqk,bkd->bqd"}> : () -> ()
    %cst_182 = arith.constant dense<0.000000e+00> : vector<8x16x8xf32>
    %380 = tpu.matmul %379, %368, %cst_182 {dimension_numbers = #tpu.dot_dimension_numbers<[2], [1], [1], [2], [0, 0, 0, 1, 1, 2], [0], [0]>} : vector<8x16x16xf32>, vector<8x16x8xf32>, vector<8x16x8xf32> -> vector<8x16x8xf32>
    "tpu.trace_stop"() : () -> ()
    %381 = vector.extract_strided_slice %380 {offsets = [0, 0, 0], sizes = [1, 16, 8], strides = [1, 1, 1]} : vector<8x16x8xf32> to vector<1x16x8xf32>
    %382 = vector.shape_cast %381 : vector<1x16x8xf32> to vector<16x8xf32>
    %383 = vector.extract_strided_slice %380 {offsets = [1, 0, 0], sizes = [1, 16, 8], strides = [1, 1, 1]} : vector<8x16x8xf32> to vector<1x16x8xf32>
    %384 = vector.shape_cast %383 : vector<1x16x8xf32> to vector<16x8xf32>
    %385 = vector.extract_strided_slice %380 {offsets = [2, 0, 0], sizes = [1, 16, 8], strides = [1, 1, 1]} : vector<8x16x8xf32> to vector<1x16x8xf32>
    %386 = vector.shape_cast %385 : vector<1x16x8xf32> to vector<16x8xf32>
    %387 = vector.extract_strided_slice %380 {offsets = [3, 0, 0], sizes = [1, 16, 8], strides = [1, 1, 1]} : vector<8x16x8xf32> to vector<1x16x8xf32>
    %388 = vector.shape_cast %387 : vector<1x16x8xf32> to vector<16x8xf32>
    %389 = tpu.concatenate %382, %384, %386, %388 in 1 : vector<16x8xf32>, vector<16x8xf32>, vector<16x8xf32>, vector<16x8xf32> -> vector<16x32xf32>
    %390 = vector.extract_strided_slice %380 {offsets = [4, 0, 0], sizes = [1, 16, 8], strides = [1, 1, 1]} : vector<8x16x8xf32> to vector<1x16x8xf32>
    %391 = vector.shape_cast %390 : vector<1x16x8xf32> to vector<16x8xf32>
    %392 = vector.extract_strided_slice %380 {offsets = [5, 0, 0], sizes = [1, 16, 8], strides = [1, 1, 1]} : vector<8x16x8xf32> to vector<1x16x8xf32>
    %393 = vector.shape_cast %392 : vector<1x16x8xf32> to vector<16x8xf32>
    %394 = vector.extract_strided_slice %380 {offsets = [6, 0, 0], sizes = [1, 16, 8], strides = [1, 1, 1]} : vector<8x16x8xf32> to vector<1x16x8xf32>
    %395 = vector.shape_cast %394 : vector<1x16x8xf32> to vector<16x8xf32>
    %396 = vector.extract_strided_slice %380 {offsets = [7, 0, 0], sizes = [1, 16, 8], strides = [1, 1, 1]} : vector<8x16x8xf32> to vector<1x16x8xf32>
    %397 = vector.shape_cast %396 : vector<1x16x8xf32> to vector<16x8xf32>
    %398 = tpu.concatenate %391, %393, %395, %397 in 1 : vector<16x8xf32>, vector<16x8xf32>, vector<16x8xf32>, vector<16x8xf32> -> vector<16x32xf32>
    %399 = tpu.concatenate %389, %398 in 0 : vector<16x32xf32>, vector<16x32xf32> -> vector<32x32xf32>
    %c0_183 = arith.constant 0 : index
    %c0_184 = arith.constant 0 : index
    %400 = vector.load %arg30[%c0_183, %c0_184] : memref<32x32xf32, #tpu.memory_space<vmem>>, vector<32x32xf32>
    %cst_185 = arith.constant dense<0.000000e+00> : vector<32x32xf32>
    %401 = tpu.matmul %399, %400, %cst_185 {dimension_numbers = #tpu.dot_dimension_numbers<[1], [0], [0], [1], [0, 0, 1, 1], [], []>} : vector<32x32xf32>, vector<32x32xf32>, vector<32x32xf32> -> vector<32x32xf32>
    %c0_186 = arith.constant 0 : index
    %c0_187 = arith.constant 0 : index
    %402 = vector.load %arg24[%c0_186, %c0_187] : memref<1x32xf32, #tpu.memory_space<vmem>>, vector<1x32xf32>
    %403 = vector.broadcast %402 : vector<1x32xf32> to vector<32x32xf32>
    %404 = arith.addf %401, %403 : vector<32x32xf32>
    %405 = arith.addf %310, %404 : vector<32x32xf32>
    %c0_188 = arith.constant 0 : index
    %c0_189 = arith.constant 0 : index
    %406 = vector.load %arg26[%c0_188, %c0_189] : memref<1x32xf32, #tpu.memory_space<vmem>>, vector<1x32xf32>
    %c0_190 = arith.constant 0 : index
    %c0_191 = arith.constant 0 : index
    %407 = vector.load %arg20[%c0_190, %c0_191] : memref<1x32xf32, #tpu.memory_space<vmem>>, vector<1x32xf32>
    %cst_192 = arith.constant dense<0.000000e+00> : vector<32xf32>
    %408 = vector.multi_reduction <add>, %405, %cst_192 [1] : vector<32x32xf32> to vector<32xf32>
    %409 = vector.shape_cast %408 : vector<32xf32> to vector<32x1xf32>
    %cst_193 = arith.constant 3.200000e+01 : f32
    %410 = vector.broadcast %cst_193 : f32 to vector<32x1xf32>
    %411 = arith.divf %409, %410 : vector<32x1xf32>
    %412 = vector.broadcast %411 : vector<32x1xf32> to vector<32x32xf32>
    %413 = arith.subf %405, %412 : vector<32x32xf32>
    %414 = arith.mulf %413, %413 : vector<32x32xf32>
    %cst_194 = arith.constant dense<0.000000e+00> : vector<32xf32>
    %415 = vector.multi_reduction <add>, %414, %cst_194 [1] : vector<32x32xf32> to vector<32xf32>
    %416 = vector.shape_cast %415 : vector<32xf32> to vector<32x1xf32>
    %cst_195 = arith.constant 3.200000e+01 : f32
    %417 = vector.broadcast %cst_195 : f32 to vector<32x1xf32>
    %418 = arith.divf %416, %417 : vector<32x1xf32>
    %419 = vector.broadcast %411 : vector<32x1xf32> to vector<32x32xf32>
    %420 = arith.subf %405, %419 : vector<32x32xf32>
    %cst_196 = arith.constant 9.99999974E-6 : f32
    %421 = vector.broadcast %cst_196 : f32 to vector<32x1xf32>
    %422 = arith.addf %418, %421 : vector<32x1xf32>
    %423 = math.rsqrt %422 : vector<32x1xf32>
    %424 = vector.broadcast %423 : vector<32x1xf32> to vector<32x32xf32>
    %425 = arith.mulf %420, %424 : vector<32x32xf32>
    %426 = vector.broadcast %406 : vector<1x32xf32> to vector<32x32xf32>
    %427 = arith.mulf %425, %426 : vector<32x32xf32>
    %428 = vector.broadcast %407 : vector<1x32xf32> to vector<32x32xf32>
    %429 = arith.addf %427, %428 : vector<32x32xf32>
    %c0_197 = arith.constant 0 : index
    %c0_198 = arith.constant 0 : index
    %430 = vector.load %arg28[%c0_197, %c0_198] : memref<32x64xf32, #tpu.memory_space<vmem>>, vector<32x64xf32>
    %cst_199 = arith.constant dense<0.000000e+00> : vector<32x64xf32>
    %431 = tpu.matmul %429, %430, %cst_199 {dimension_numbers = #tpu.dot_dimension_numbers<[1], [0], [0], [1], [0, 0, 1, 1], [], []>} : vector<32x32xf32>, vector<32x64xf32>, vector<32x64xf32> -> vector<32x64xf32>
    %c0_200 = arith.constant 0 : index
    %c0_201 = arith.constant 0 : index
    %432 = vector.load %arg22[%c0_200, %c0_201] : memref<1x64xf32, #tpu.memory_space<vmem>>, vector<1x64xf32>
    %433 = vector.broadcast %432 : vector<1x64xf32> to vector<32x64xf32>
    %434 = arith.addf %431, %433 : vector<32x64xf32>
    %cst_202 = arith.constant 5.000000e-01 : f32
    %435 = vector.broadcast %cst_202 : f32 to vector<32x64xf32>
    %436 = arith.mulf %435, %434 : vector<32x64xf32>
    %cst_203 = arith.constant 0.707106769 : f32
    %437 = vector.broadcast %cst_203 : f32 to vector<32x64xf32>
    %438 = arith.mulf %434, %437 : vector<32x64xf32>
    %439 = math.absf %438 : vector<32x64xf32>
    %cst_204 = arith.constant 0.327591091 : f32
    %440 = vector.broadcast %cst_204 : f32 to vector<32x64xf32>
    %441 = arith.mulf %440, %439 : vector<32x64xf32>
    %cst_205 = arith.constant 1.000000e+00 : f32
    %442 = vector.broadcast %cst_205 : f32 to vector<32x64xf32>
    %443 = arith.addf %442, %441 : vector<32x64xf32>
    %444 = tpu.reciprocal %443 {approx = true} : vector<32x64xf32> -> vector<32x64xf32>
    %cst_206 = arith.constant 1.06140542 : f32
    %445 = vector.broadcast %cst_206 : f32 to vector<32x64xf32>
    %446 = arith.mulf %445, %444 : vector<32x64xf32>
    %cst_207 = arith.constant 1.45315206 : f32
    %447 = vector.broadcast %cst_207 : f32 to vector<32x64xf32>
    %448 = arith.subf %446, %447 : vector<32x64xf32>
    %449 = arith.mulf %448, %444 : vector<32x64xf32>
    %cst_208 = arith.constant 1.42141378 : f32
    %450 = vector.broadcast %cst_208 : f32 to vector<32x64xf32>
    %451 = arith.addf %449, %450 : vector<32x64xf32>
    %452 = arith.mulf %451, %444 : vector<32x64xf32>
    %cst_209 = arith.constant 0.284496725 : f32
    %453 = vector.broadcast %cst_209 : f32 to vector<32x64xf32>
    %454 = arith.subf %452, %453 : vector<32x64xf32>
    %455 = arith.mulf %454, %444 : vector<32x64xf32>
    %cst_210 = arith.constant 0.254829586 : f32
    %456 = vector.broadcast %cst_210 : f32 to vector<32x64xf32>
    %457 = arith.addf %455, %456 : vector<32x64xf32>
    %458 = arith.mulf %457, %444 : vector<32x64xf32>
    %cst_211 = arith.constant 0.000000e+00 : f32
    %459 = vector.broadcast %cst_211 : f32 to vector<32x64xf32>
    %460 = arith.subf %459, %439 : vector<32x64xf32>
    %461 = arith.mulf %460, %439 : vector<32x64xf32>
    %462 = math.exp %461 : vector<32x64xf32>
    %463 = arith.mulf %458, %462 : vector<32x64xf32>
    %cst_212 = arith.constant 1.000000e+00 : f32
    %464 = vector.broadcast %cst_212 : f32 to vector<32x64xf32>
    %465 = arith.subf %464, %463 : vector<32x64xf32>
    %cst_213 = arith.constant 0.000000e+00 : f32
    %466 = vector.broadcast %cst_213 : f32 to vector<32x64xf32>
    %467 = arith.cmpf olt, %438, %466 : vector<32x64xf32>
    %cst_214 = arith.constant 0.000000e+00 : f32
    %468 = vector.broadcast %cst_214 : f32 to vector<32x64xf32>
    %469 = arith.subf %468, %465 : vector<32x64xf32>
    %470 = arith.select %467, %469, %465 : vector<32x64xi1>, vector<32x64xf32>
    %cst_215 = arith.constant 1.000000e+00 : f32
    %471 = vector.broadcast %cst_215 : f32 to vector<32x64xf32>
    %472 = arith.addf %471, %470 : vector<32x64xf32>
    %473 = arith.mulf %436, %472 : vector<32x64xf32>
    %c0_216 = arith.constant 0 : index
    %c0_217 = arith.constant 0 : index
    %474 = vector.load %arg29[%c0_216, %c0_217] : memref<64x32xf32, #tpu.memory_space<vmem>>, vector<64x32xf32>
    %cst_218 = arith.constant dense<0.000000e+00> : vector<32x32xf32>
    %475 = tpu.matmul %473, %474, %cst_218 {dimension_numbers = #tpu.dot_dimension_numbers<[1], [0], [0], [1], [0, 0, 1, 1], [], []>} : vector<32x64xf32>, vector<64x32xf32>, vector<32x32xf32> -> vector<32x32xf32>
    %c0_219 = arith.constant 0 : index
    %c0_220 = arith.constant 0 : index
    %476 = vector.load %arg23[%c0_219, %c0_220] : memref<1x32xf32, #tpu.memory_space<vmem>>, vector<1x32xf32>
    %477 = vector.broadcast %476 : vector<1x32xf32> to vector<32x32xf32>
    %478 = arith.addf %475, %477 : vector<32x32xf32>
    %479 = arith.addf %429, %478 : vector<32x32xf32>
    %c0_221 = arith.constant 0 : index
    %c0_222 = arith.constant 0 : index
    %480 = vector.load %arg27[%c0_221, %c0_222] : memref<1x32xf32, #tpu.memory_space<vmem>>, vector<1x32xf32>
    %c0_223 = arith.constant 0 : index
    %c0_224 = arith.constant 0 : index
    %481 = vector.load %arg21[%c0_223, %c0_224] : memref<1x32xf32, #tpu.memory_space<vmem>>, vector<1x32xf32>
    %cst_225 = arith.constant dense<0.000000e+00> : vector<32xf32>
    %482 = vector.multi_reduction <add>, %479, %cst_225 [1] : vector<32x32xf32> to vector<32xf32>
    %483 = vector.shape_cast %482 : vector<32xf32> to vector<32x1xf32>
    %cst_226 = arith.constant 3.200000e+01 : f32
    %484 = vector.broadcast %cst_226 : f32 to vector<32x1xf32>
    %485 = arith.divf %483, %484 : vector<32x1xf32>
    %486 = vector.broadcast %485 : vector<32x1xf32> to vector<32x32xf32>
    %487 = arith.subf %479, %486 : vector<32x32xf32>
    %488 = arith.mulf %487, %487 : vector<32x32xf32>
    %cst_227 = arith.constant dense<0.000000e+00> : vector<32xf32>
    %489 = vector.multi_reduction <add>, %488, %cst_227 [1] : vector<32x32xf32> to vector<32xf32>
    %490 = vector.shape_cast %489 : vector<32xf32> to vector<32x1xf32>
    %cst_228 = arith.constant 3.200000e+01 : f32
    %491 = vector.broadcast %cst_228 : f32 to vector<32x1xf32>
    %492 = arith.divf %490, %491 : vector<32x1xf32>
    %493 = vector.broadcast %485 : vector<32x1xf32> to vector<32x32xf32>
    %494 = arith.subf %479, %493 : vector<32x32xf32>
    %cst_229 = arith.constant 9.99999974E-6 : f32
    %495 = vector.broadcast %cst_229 : f32 to vector<32x1xf32>
    %496 = arith.addf %492, %495 : vector<32x1xf32>
    %497 = math.rsqrt %496 : vector<32x1xf32>
    %498 = vector.broadcast %497 : vector<32x1xf32> to vector<32x32xf32>
    %499 = arith.mulf %494, %498 : vector<32x32xf32>
    %500 = vector.broadcast %480 : vector<1x32xf32> to vector<32x32xf32>
    %501 = arith.mulf %499, %500 : vector<32x32xf32>
    %502 = vector.broadcast %481 : vector<1x32xf32> to vector<32x32xf32>
    %503 = arith.addf %501, %502 : vector<32x32xf32>
    %c0_230 = arith.constant 0 : index
    %c0_231 = arith.constant 0 : index
    %504 = vector.load %arg41[%c0_230, %c0_231] : memref<32x32xf32, #tpu.memory_space<vmem>>, vector<32x32xf32>
    %cst_232 = arith.constant dense<0.000000e+00> : vector<32x32xf32>
    %505 = tpu.matmul %504, %503, %cst_232 {dimension_numbers = #tpu.dot_dimension_numbers<[1], [0], [0], [1], [0, 0, 1, 1], [], []>} : vector<32x32xf32>, vector<32x32xf32>, vector<32x32xf32> -> vector<32x32xf32>
    %c0_233 = arith.constant 0 : index
    %c0_234 = arith.constant 0 : index
    %506 = vector.load %arg40[%c0_233, %c0_234] : memref<32x32xf32, #tpu.memory_space<vmem>>, vector<32x32xf32>
    %cst_235 = arith.constant dense<0.000000e+00> : vector<32x32xf32>
    %507 = tpu.matmul %506, %503, %cst_235 {dimension_numbers = #tpu.dot_dimension_numbers<[1], [0], [0], [1], [0, 0, 1, 1], [], []>} : vector<32x32xf32>, vector<32x32xf32>, vector<32x32xf32> -> vector<32x32xf32>
    %c0_236 = arith.constant 0 : index
    %c0_237 = arith.constant 0 : index
    %c0_238 = arith.constant 0 : index
    %508 = vector.load %arg6[%c0_236, %c0_237, %c0_238] : memref<3x32x64xf32, #tpu.memory_space<vmem>>, vector<1x32x64xf32>
    %509 = vector.shape_cast %508 : vector<1x32x64xf32> to vector<32x64xf32>
    %cst_239 = arith.constant dense<0.000000e+00> : vector<32x64xf32>
    %510 = tpu.matmul %505, %509, %cst_239 {dimension_numbers = #tpu.dot_dimension_numbers<[1], [0], [0], [1], [0, 0, 1, 1], [], []>} : vector<32x32xf32>, vector<32x64xf32>, vector<32x64xf32> -> vector<32x64xf32>
    %c1_240 = arith.constant 1 : index
    %c0_241 = arith.constant 0 : index
    %c0_242 = arith.constant 0 : index
    %511 = vector.load %arg6[%c1_240, %c0_241, %c0_242] : memref<3x32x64xf32, #tpu.memory_space<vmem>>, vector<1x32x64xf32>
    %512 = vector.shape_cast %511 : vector<1x32x64xf32> to vector<32x64xf32>
    %cst_243 = arith.constant dense<0.000000e+00> : vector<32x64xf32>
    %513 = tpu.matmul %503, %512, %cst_243 {dimension_numbers = #tpu.dot_dimension_numbers<[1], [0], [0], [1], [0, 0, 1, 1], [], []>} : vector<32x32xf32>, vector<32x64xf32>, vector<32x64xf32> -> vector<32x64xf32>
    %514 = arith.addf %510, %513 : vector<32x64xf32>
    %c2_244 = arith.constant 2 : index
    %c0_245 = arith.constant 0 : index
    %c0_246 = arith.constant 0 : index
    %515 = vector.load %arg6[%c2_244, %c0_245, %c0_246] : memref<3x32x64xf32, #tpu.memory_space<vmem>>, vector<1x32x64xf32>
    %516 = vector.shape_cast %515 : vector<1x32x64xf32> to vector<32x64xf32>
    %cst_247 = arith.constant dense<0.000000e+00> : vector<32x64xf32>
    %517 = tpu.matmul %507, %516, %cst_247 {dimension_numbers = #tpu.dot_dimension_numbers<[1], [0], [0], [1], [0, 0, 1, 1], [], []>} : vector<32x32xf32>, vector<32x64xf32>, vector<32x64xf32> -> vector<32x64xf32>
    %518 = arith.addf %514, %517 : vector<32x64xf32>
    %c0_248 = arith.constant 0 : index
    %c0_249 = arith.constant 0 : index
    %519 = vector.load %arg5[%c0_248, %c0_249] : memref<1x64xf32, #tpu.memory_space<vmem>>, vector<1x64xf32>
    %520 = vector.broadcast %519 : vector<1x64xf32> to vector<32x64xf32>
    %521 = arith.addf %518, %520 : vector<32x64xf32>
    %c0_250 = arith.constant 0 : index
    %c0_251 = arith.constant 0 : index
    %522 = vector.load %arg46[%c0_250, %c0_251] : memref<32x64xf32, #tpu.memory_space<vmem>>, vector<32x64xf32>
    tpu.vector_store %arg46[%c0_250, %c0_251], %521 {strides = array<i32>} : memref<32x64xf32, #tpu.memory_space<vmem>>, vector<32x64xf32>,
    return
  }
}

</mosaic_0001>

<llo_original>
// kernel: vq_decoder_v3_forward.1
$region0: #{vq_decoder_v3_forward.1}
  #allocation0 [shape = 'u32[]', space=smem, size = 0x4, offset = 0x4, fixed_abs, tag = 'smem constant byte address 0x4 - core index']
  #allocation1 [shape = 'u32[144,128]{1,0:T(1,128)}', space=vmem, size = 0x12000, scoped, tag = 'internal scratch']
  %s0 = inlined_call_operand.smem [shape: u32[47], index: -1, kind: input, shape index: {}]
  %s1 = sld [smem:[%s0]]
  %s2 = scalar_lea.smem %s0, 1
  %s3 = sld [smem:[%s2]]
  %s4 = scalar_lea.smem %s0, 2
  %s5 = sld [smem:[%s4]]
  %s6 = scalar_lea.smem %s0, 3
  %s7 = sld [smem:[%s6]]
  %s8 = scalar_lea.smem %s0, 4
  %s9 = sld [smem:[%s8]]
  %s10 = scalar_lea.smem %s0, 5
  %s11 = sld [smem:[%s10]]
  %s12 = scalar_lea.smem %s0, 6
  %s13 = sld [smem:[%s12]]
  %s14 = scalar_lea.smem %s0, 7
  %s15 = sld [smem:[%s14]]
  %s16 = scalar_lea.smem %s0, 8
  %s17 = sld [smem:[%s16]]
  %s18 = scalar_lea.smem %s0, 9
  %s19 = sld [smem:[%s18]]
  %s20 = scalar_lea.smem %s0, 10
  %s21 = sld [smem:[%s20]]
  %s22 = scalar_lea.smem %s0, 11
  %s23 = sld [smem:[%s22]]
  %s24 = scalar_lea.smem %s0, 12
  %s25 = sld [smem:[%s24]]
  %s26 = scalar_lea.smem %s0, 13
  %s27 = sld [smem:[%s26]]
  %s28 = scalar_lea.smem %s0, 14
  %s29 = sld [smem:[%s28]]
  %s30 = scalar_lea.smem %s0, 15
  %s31 = sld [smem:[%s30]]
  %s32 = scalar_lea.smem %s0, 16
  %s33 = sld [smem:[%s32]]
  %s34 = scalar_lea.smem %s0, 17
  %s35 = sld [smem:[%s34]]
  %s36 = scalar_lea.smem %s0, 18
  %s37 = sld [smem:[%s36]]
  %s38 = scalar_lea.smem %s0, 19
  %s39 = sld [smem:[%s38]]
  %s40 = scalar_lea.smem %s0, 20
  %s41 = sld [smem:[%s40]]
  %s42 = scalar_lea.smem %s0, 21
  %s43 = sld [smem:[%s42]]
  %s44 = scalar_lea.smem %s0, 22
  %s45 = sld [smem:[%s44]]
  %s46 = scalar_lea.smem %s0, 23
  %s47 = sld [smem:[%s46]]
  %s48 = scalar_lea.smem %s0, 24
  %s49 = sld [smem:[%s48]]
  %s50 = scalar_lea.smem %s0, 25
  %s51 = sld [smem:[%s50]]
  %s52 = scalar_lea.smem %s0, 26
  %s53 = sld [smem:[%s52]]
  %s54 = scalar_lea.smem %s0, 27
  %s55 = sld [smem:[%s54]]
  %s56 = scalar_lea.smem %s0, 28
  %s57 = sld [smem:[%s56]]
  %s58 = scalar_lea.smem %s0, 29
  %s59 = sld [smem:[%s58]]
  %s60 = scalar_lea.smem %s0, 30
  %s61 = sld [smem:[%s60]]
  %s62 = scalar_lea.smem %s0, 31
  %s63 = sld [smem:[%s62]]
  %s64 = scalar_lea.smem %s0, 32
  %s65 = sld [smem:[%s64]]
  %s66 = scalar_lea.smem %s0, 33
  %s67 = sld [smem:[%s66]]
  %s68 = scalar_lea.smem %s0, 34
  %s69 = sld [smem:[%s68]]
  %s70 = scalar_lea.smem %s0, 35
  %s71 = sld [smem:[%s70]]
  %s72 = scalar_lea.smem %s0, 36
  %s73 = sld [smem:[%s72]]
  %s74 = scalar_lea.smem %s0, 37
  %s75 = sld [smem:[%s74]]
  %s76 = scalar_lea.smem %s0, 38
  %s77 = sld [smem:[%s76]]
  %s78 = scalar_lea.smem %s0, 39
  %s79 = sld [smem:[%s78]]
  %s80 = scalar_lea.smem %s0, 40
  %s81 = sld [smem:[%s80]]
  %s82 = scalar_lea.smem %s0, 41
  %s83 = sld [smem:[%s82]]
  %s84 = scalar_lea.smem %s0, 42
  %s85 = sld [smem:[%s84]]
  %s86 = scalar_lea.smem %s0, 43
  %s87 = sld [smem:[%s86]]
  %s88 = scalar_lea.smem %s0, 44
  %s89 = sld [smem:[%s88]]
  %s90 = scalar_lea.smem %s0, 45
  %s91 = sld [smem:[%s90]]
  %s92 = scalar_lea.smem %s0, 46
  %s93 = sld [smem:[%s92]]
  %s94 = sld [smem:[#allocation0]]
  $region194: #{vq_decoder_v3_forward.1} parent=0
    _
  %s96 = ssub.s32 1, %s94
  %s97 = scalar_select 0, %s96, %s94
  $region1: #{vq_decoder_v3_forward.1} parent=0
    #allocation2 [shape = 'u8[16384]{0}', space=vmem, size = 0x4000, scoped, tag = 'output window, operand 0, single buffered']
    #allocation3 [shape = 's32[1]{0}', space=sflag, size = 0x4, scoped, tag = 'scoped memory for vq_decoder_v3_forward.1']
    %98 = vsyncpa [#allocation3], 0
    // Predicated region
    $region2: #{vq_decoder_v3_forward.1} parent=1 // pred_check
      _
    $region3: #{vq_decoder_v3_forward.1} parent=1 // pred_check_branch
      %100 = sbr.rel (0) target = $region5
    $region4: #{vq_decoder_v3_forward.1} parent=1 // pred_region
      _
    $region5: #{vq_decoder_v3_forward.1} parent=1 // pred_fallthru
      _
    // Predicated region
    $region6: #{vq_decoder_v3_forward.1} parent=1 // pred_check
      _
    $region7: #{vq_decoder_v3_forward.1} parent=1 // pred_check_branch
      %102 = sbr.rel (0) target = $region9
    $region8: #{vq_decoder_v3_forward.1} parent=1 // pred_region
      _
    $region9: #{vq_decoder_v3_forward.1} parent=1 // pred_fallthru
      _
    // Predicated region
    $region10: #{vq_decoder_v3_forward.1} parent=1 // pred_check
      _
    $region11: #{vq_decoder_v3_forward.1} parent=1 // pred_check_branch
      %104 = sbr.rel (0) target = $region13
    $region12: #{vq_decoder_v3_forward.1} parent=1 // pred_region
      _
    $region13: #{vq_decoder_v3_forward.1} parent=1 // pred_fallthru
      _
    // Predicated region
    $region14: #{vq_decoder_v3_forward.1} parent=1 // pred_check
      _
    $region15: #{vq_decoder_v3_forward.1} parent=1 // pred_check_branch
      %106 = sbr.rel (0) target = $region17
    $region16: #{vq_decoder_v3_forward.1} parent=1 // pred_region
      _
    $region17: #{vq_decoder_v3_forward.1} parent=1 // pred_fallthru
      _
    // Predicated region
    $region18: #{vq_decoder_v3_forward.1} parent=1 // pred_check
      _
    $region19: #{vq_decoder_v3_forward.1} parent=1 // pred_check_branch
      %108 = sbr.rel (0) target = $region21
    $region20: #{vq_decoder_v3_forward.1} parent=1 // pred_region
      _
    $region21: #{vq_decoder_v3_forward.1} parent=1 // pred_fallthru
      _
    // Predicated region
    $region22: #{vq_decoder_v3_forward.1} parent=1 // pred_check
      _
    $region23: #{vq_decoder_v3_forward.1} parent=1 // pred_check_branch
      %110 = sbr.rel (0) target = $region25
    $region24: #{vq_decoder_v3_forward.1} parent=1 // pred_region
      _
    $region25: #{vq_decoder_v3_forward.1} parent=1 // pred_fallthru
      _
    // Predicated region
    $region26: #{vq_decoder_v3_forward.1} parent=1 // pred_check
      _
    $region27: #{vq_decoder_v3_forward.1} parent=1 // pred_check_branch
      %112 = sbr.rel (0) target = $region29
    $region28: #{vq_decoder_v3_forward.1} parent=1 // pred_region
      _
    $region29: #{vq_decoder_v3_forward.1} parent=1 // pred_fallthru
      _
    // Predicated region
    $region30: #{vq_decoder_v3_forward.1} parent=1 // pred_check
      _
    $region31: #{vq_decoder_v3_forward.1} parent=1 // pred_check_branch
      %114 = sbr.rel (0) target = $region33
    $region32: #{vq_decoder_v3_forward.1} parent=1 // pred_region
      _
    $region33: #{vq_decoder_v3_forward.1} parent=1 // pred_fallthru
      _
    // Predicated region
    $region34: #{vq_decoder_v3_forward.1} parent=1 // pred_check
      _
    $region35: #{vq_decoder_v3_forward.1} parent=1 // pred_check_branch
      %116 = sbr.rel (0) target = $region37
    $region36: #{vq_decoder_v3_forward.1} parent=1 // pred_region
      _
    $region37: #{vq_decoder_v3_forward.1} parent=1 // pred_fallthru
      _
    // Predicated region
    $region38: #{vq_decoder_v3_forward.1} parent=1 // pred_check
      _
    $region39: #{vq_decoder_v3_forward.1} parent=1 // pred_check_branch
      %118 = sbr.rel (0) target = $region41
    $region40: #{vq_decoder_v3_forward.1} parent=1 // pred_region
      _
    $region41: #{vq_decoder_v3_forward.1} parent=1 // pred_fallthru
      _
    // Predicated region
    $region42: #{vq_decoder_v3_forward.1} parent=1 // pred_check
      _
    $region43: #{vq_decoder_v3_forward.1} parent=1 // pred_check_branch
      %120 = sbr.rel (0) target = $region45
    $region44: #{vq_decoder_v3_forward.1} parent=1 // pred_region
      _
    $region45: #{vq_decoder_v3_forward.1} parent=1 // pred_fallthru
      _
    // Predicated region
    $region46: #{vq_decoder_v3_forward.1} parent=1 // pred_check
      _
    $region47: #{vq_decoder_v3_forward.1} parent=1 // pred_check_branch
      %122 = sbr.rel (0) target = $region49
    $region48: #{vq_decoder_v3_forward.1} parent=1 // pred_region
      _
    $region49: #{vq_decoder_v3_forward.1} parent=1 // pred_fallthru
      _
    // Predicated region
    $region50: #{vq_decoder_v3_forward.1} parent=1 // pred_check
      _
    $region51: #{vq_decoder_v3_forward.1} parent=1 // pred_check_branch
      %124 = sbr.rel (0) target = $region53
    $region52: #{vq_decoder_v3_forward.1} parent=1 // pred_region
      _
    $region53: #{vq_decoder_v3_forward.1} parent=1 // pred_fallthru
      _
    // Predicated region
    $region54: #{vq_decoder_v3_forward.1} parent=1 // pred_check
      _
    $region55: #{vq_decoder_v3_forward.1} parent=1 // pred_check_branch
      %126 = sbr.rel (0) target = $region57
    $region56: #{vq_decoder_v3_forward.1} parent=1 // pred_region
      _
    $region57: #{vq_decoder_v3_forward.1} parent=1 // pred_fallthru
      _
    // Predicated region
    $region58: #{vq_decoder_v3_forward.1} parent=1 // pred_check
      _
    $region59: #{vq_decoder_v3_forward.1} parent=1 // pred_check_branch
      %128 = sbr.rel (0) target = $region61
    $region60: #{vq_decoder_v3_forward.1} parent=1 // pred_region
      _
    $region61: #{vq_decoder_v3_forward.1} parent=1 // pred_fallthru
      _
    // Predicated region
    $region62: #{vq_decoder_v3_forward.1} parent=1 // pred_check
      _
    $region63: #{vq_decoder_v3_forward.1} parent=1 // pred_check_branch
      %130 = sbr.rel (0) target = $region65
    $region64: #{vq_decoder_v3_forward.1} parent=1 // pred_region
      _
    $region65: #{vq_decoder_v3_forward.1} parent=1 // pred_fallthru
      _
    // Predicated region
    $region66: #{vq_decoder_v3_forward.1} parent=1 // pred_check
      _
    $region67: #{vq_decoder_v3_forward.1} parent=1 // pred_check_branch
      %132 = sbr.rel (0) target = $region69
    $region68: #{vq_decoder_v3_forward.1} parent=1 // pred_region
      _
    $region69: #{vq_decoder_v3_forward.1} parent=1 // pred_fallthru
      _
    // Predicated region
    $region70: #{vq_decoder_v3_forward.1} parent=1 // pred_check
      _
    $region71: #{vq_decoder_v3_forward.1} parent=1 // pred_check_branch
      %134 = sbr.rel (0) target = $region73
    $region72: #{vq_decoder_v3_forward.1} parent=1 // pred_region
      _
    $region73: #{vq_decoder_v3_forward.1} parent=1 // pred_fallthru
      _
    // Predicated region
    $region74: #{vq_decoder_v3_forward.1} parent=1 // pred_check
      _
    $region75: #{vq_decoder_v3_forward.1} parent=1 // pred_check_branch
      %136 = sbr.rel (0) target = $region77
    $region76: #{vq_decoder_v3_forward.1} parent=1 // pred_region
      _
    $region77: #{vq_decoder_v3_forward.1} parent=1 // pred_fallthru
      _
    // Predicated region
    $region78: #{vq_decoder_v3_forward.1} parent=1 // pred_check
      _
    $region79: #{vq_decoder_v3_forward.1} parent=1 // pred_check_branch
      %138 = sbr.rel (0) target = $region81
    $region80: #{vq_decoder_v3_forward.1} parent=1 // pred_region
      _
    $region81: #{vq_decoder_v3_forward.1} parent=1 // pred_fallthru
      _
    // Predicated region
    $region82: #{vq_decoder_v3_forward.1} parent=1 // pred_check
      _
    $region83: #{vq_decoder_v3_forward.1} parent=1 // pred_check_branch
      %140 = sbr.rel (0) target = $region85
    $region84: #{vq_decoder_v3_forward.1} parent=1 // pred_region
      _
    $region85: #{vq_decoder_v3_forward.1} parent=1 // pred_fallthru
      _
    // Predicated region
    $region86: #{vq_decoder_v3_forward.1} parent=1 // pred_check
      _
    $region87: #{vq_decoder_v3_forward.1} parent=1 // pred_check_branch
      %142 = sbr.rel (0) target = $region89
    $region88: #{vq_decoder_v3_forward.1} parent=1 // pred_region
      _
    $region89: #{vq_decoder_v3_forward.1} parent=1 // pred_fallthru
      _
    // Predicated region
    $region90: #{vq_decoder_v3_forward.1} parent=1 // pred_check
      _
    $region91: #{vq_decoder_v3_forward.1} parent=1 // pred_check_branch
      %144 = sbr.rel (0) target = $region93
    $region92: #{vq_decoder_v3_forward.1} parent=1 // pred_region
      _
    $region93: #{vq_decoder_v3_forward.1} parent=1 // pred_fallthru
      _
    // Predicated region
    $region94: #{vq_decoder_v3_forward.1} parent=1 // pred_check
      _
    $region95: #{vq_decoder_v3_forward.1} parent=1 // pred_check_branch
      %146 = sbr.rel (0) target = $region97
    $region96: #{vq_decoder_v3_forward.1} parent=1 // pred_region
      _
    $region97: #{vq_decoder_v3_forward.1} parent=1 // pred_fallthru
      _
    // Predicated region
    $region98: #{vq_decoder_v3_forward.1} parent=1 // pred_check
      _
    $region99: #{vq_decoder_v3_forward.1} parent=1 // pred_check_branch
      %148 = sbr.rel (0) target = $region101
    $region100: #{vq_decoder_v3_forward.1} parent=1 // pred_region
      _
    $region101: #{vq_decoder_v3_forward.1} parent=1 // pred_fallthru
      _
    // Predicated region
    $region102: #{vq_decoder_v3_forward.1} parent=1 // pred_check
      _
    $region103: #{vq_decoder_v3_forward.1} parent=1 // pred_check_branch
      %150 = sbr.rel (0) target = $region105
    $region104: #{vq_decoder_v3_forward.1} parent=1 // pred_region
      _
    $region105: #{vq_decoder_v3_forward.1} parent=1 // pred_fallthru
      _
    // Predicated region
    $region106: #{vq_decoder_v3_forward.1} parent=1 // pred_check
      _
    $region107: #{vq_decoder_v3_forward.1} parent=1 // pred_check_branch
      %152 = sbr.rel (0) target = $region109
    $region108: #{vq_decoder_v3_forward.1} parent=1 // pred_region
      _
    $region109: #{vq_decoder_v3_forward.1} parent=1 // pred_fallthru
      _
    // Predicated region
    $region110: #{vq_decoder_v3_forward.1} parent=1 // pred_check
      _
    $region111: #{vq_decoder_v3_forward.1} parent=1 // pred_check_branch
      %154 = sbr.rel (0) target = $region113
    $region112: #{vq_decoder_v3_forward.1} parent=1 // pred_region
      _
    $region113: #{vq_decoder_v3_forward.1} parent=1 // pred_fallthru
      _
    // Predicated region
    $region114: #{vq_decoder_v3_forward.1} parent=1 // pred_check
      _
    $region115: #{vq_decoder_v3_forward.1} parent=1 // pred_check_branch
      %156 = sbr.rel (0) target = $region117
    $region116: #{vq_decoder_v3_forward.1} parent=1 // pred_region
      _
    $region117: #{vq_decoder_v3_forward.1} parent=1 // pred_fallthru
      _
    // Predicated region
    $region118: #{vq_decoder_v3_forward.1} parent=1 // pred_check
      _
    $region119: #{vq_decoder_v3_forward.1} parent=1 // pred_check_branch
      %158 = sbr.rel (0) target = $region121
    $region120: #{vq_decoder_v3_forward.1} parent=1 // pred_region
      _
    $region121: #{vq_decoder_v3_forward.1} parent=1 // pred_fallthru
      _
    // Predicated region
    $region122: #{vq_decoder_v3_forward.1} parent=1 // pred_check
      _
    $region123: #{vq_decoder_v3_forward.1} parent=1 // pred_check_branch
      %160 = sbr.rel (0) target = $region125
    $region124: #{vq_decoder_v3_forward.1} parent=1 // pred_region
      _
    $region125: #{vq_decoder_v3_forward.1} parent=1 // pred_fallthru
      _
    // Predicated region
    $region126: #{vq_decoder_v3_forward.1} parent=1 // pred_check
      _
    $region127: #{vq_decoder_v3_forward.1} parent=1 // pred_check_branch
      %162 = sbr.rel (0) target = $region129
    $region128: #{vq_decoder_v3_forward.1} parent=1 // pred_region
      _
    $region129: #{vq_decoder_v3_forward.1} parent=1 // pred_fallthru
      _
    // Predicated region
    $region130: #{vq_decoder_v3_forward.1} parent=1 // pred_check
      _
    $region131: #{vq_decoder_v3_forward.1} parent=1 // pred_check_branch
      %164 = sbr.rel (0) target = $region133
    $region132: #{vq_decoder_v3_forward.1} parent=1 // pred_region
      _
    $region133: #{vq_decoder_v3_forward.1} parent=1 // pred_fallthru
      _
    // Predicated region
    $region134: #{vq_decoder_v3_forward.1} parent=1 // pred_check
      _
    $region135: #{vq_decoder_v3_forward.1} parent=1 // pred_check_branch
      %166 = sbr.rel (0) target = $region137
    $region136: #{vq_decoder_v3_forward.1} parent=1 // pred_region
      _
    $region137: #{vq_decoder_v3_forward.1} parent=1 // pred_fallthru
      _
    // Predicated region
    $region138: #{vq_decoder_v3_forward.1} parent=1 // pred_check
      _
    $region139: #{vq_decoder_v3_forward.1} parent=1 // pred_check_branch
      %168 = sbr.rel (0) target = $region141
    $region140: #{vq_decoder_v3_forward.1} parent=1 // pred_region
      _
    $region141: #{vq_decoder_v3_forward.1} parent=1 // pred_fallthru
      _
    // Predicated region
    $region142: #{vq_decoder_v3_forward.1} parent=1 // pred_check
      _
    $region143: #{vq_decoder_v3_forward.1} parent=1 // pred_check_branch
      %170 = sbr.rel (0) target = $region145
    $region144: #{vq_decoder_v3_forward.1} parent=1 // pred_region
      _
    $region145: #{vq_decoder_v3_forward.1} parent=1 // pred_fallthru
      _
    // Predicated region
    $region146: #{vq_decoder_v3_forward.1} parent=1 // pred_check
      _
    $region147: #{vq_decoder_v3_forward.1} parent=1 // pred_check_branch
      %172 = sbr.rel (0) target = $region149
    $region148: #{vq_decoder_v3_forward.1} parent=1 // pred_region
      _
    $region149: #{vq_decoder_v3_forward.1} parent=1 // pred_fallthru
      _
    // Predicated region
    $region150: #{vq_decoder_v3_forward.1} parent=1 // pred_check
      _
    $region151: #{vq_decoder_v3_forward.1} parent=1 // pred_check_branch
      %174 = sbr.rel (0) target = $region153
    $region152: #{vq_decoder_v3_forward.1} parent=1 // pred_region
      _
    $region153: #{vq_decoder_v3_forward.1} parent=1 // pred_fallthru
      _
    // Predicated region
    $region154: #{vq_decoder_v3_forward.1} parent=1 // pred_check
      _
    $region155: #{vq_decoder_v3_forward.1} parent=1 // pred_check_branch
      %176 = sbr.rel (0) target = $region157
    $region156: #{vq_decoder_v3_forward.1} parent=1 // pred_region
      _
    $region157: #{vq_decoder_v3_forward.1} parent=1 // pred_fallthru
      _
    // Predicated region
    $region158: #{vq_decoder_v3_forward.1} parent=1 // pred_check
      _
    $region159: #{vq_decoder_v3_forward.1} parent=1 // pred_check_branch
      %178 = sbr.rel (0) target = $region161
    $region160: #{vq_decoder_v3_forward.1} parent=1 // pred_region
      _
    $region161: #{vq_decoder_v3_forward.1} parent=1 // pred_fallthru
      _
    // Predicated region
    $region162: #{vq_decoder_v3_forward.1} parent=1 // pred_check
      _
    $region163: #{vq_decoder_v3_forward.1} parent=1 // pred_check_branch
      %180 = sbr.rel (0) target = $region165
    $region164: #{vq_decoder_v3_forward.1} parent=1 // pred_region
      _
    $region165: #{vq_decoder_v3_forward.1} parent=1 // pred_fallthru
      _
    // Predicated region
    $region166: #{vq_decoder_v3_forward.1} parent=1 // pred_check
      _
    $region167: #{vq_decoder_v3_forward.1} parent=1 // pred_check_branch
      %182 = sbr.rel (0) target = $region169
    $region168: #{vq_decoder_v3_forward.1} parent=1 // pred_region
      _
    $region169: #{vq_decoder_v3_forward.1} parent=1 // pred_fallthru
      _
    // Predicated region
    $region170: #{vq_decoder_v3_forward.1} parent=1 // pred_check
      _
    $region171: #{vq_decoder_v3_forward.1} parent=1 // pred_check_branch
      %184 = sbr.rel (0) target = $region173
    $region172: #{vq_decoder_v3_forward.1} parent=1 // pred_region
      _
    $region173: #{vq_decoder_v3_forward.1} parent=1 // pred_fallthru
      _
    // Predicated region
    $region174: #{vq_decoder_v3_forward.1} parent=1 // pred_check
      _
    $region175: #{vq_decoder_v3_forward.1} parent=1 // pred_check_branch
      %186 = sbr.rel (0) target = $region177
    $region176: #{vq_decoder_v3_forward.1} parent=1 // pred_region
      _
    $region177: #{vq_decoder_v3_forward.1} parent=1 // pred_fallthru
      _
    // Predicated region
    $region178: #{vq_decoder_v3_forward.1} parent=1 // pred_check
      _
    $region179: #{vq_decoder_v3_forward.1} parent=1 // pred_check_branch
      %188 = sbr.rel (0) target = $region181
    $region180: #{vq_decoder_v3_forward.1} parent=1 // pred_region
      _
    $region181: #{vq_decoder_v3_forward.1} parent=1 // pred_fallthru
      _
    // Predicated region
    $region182: #{vq_decoder_v3_forward.1} parent=1 // pred_check
      _
    $region183: #{vq_decoder_v3_forward.1} parent=1 // pred_check_branch
      %190 = sbr.rel (0) target = $region185
    $region184: #{vq_decoder_v3_forward.1} parent=1 // pred_region
      _
    $region185: #{vq_decoder_v3_forward.1} parent=1 // pred_fallthru
      _
    %v191 = vld [vmem:[%s91] sm:$0xff]
    %v192 = vld [vmem:[%s91 + $0x8] sm:$0xff]
    %v193 = vld [vmem:[%s79] sm:$0xff]
    %v194 = vld [vmem:[%s79 + $0x8] sm:$0xff]
    %vm195 = vcmask 130048
    %v197 = vsel %vm195, %v193, 0
    %v200 = vsel %vm195, %v194, 0
    %202 = vmatprep.subr.mxu0 0.0
    %203 = vmatpush1.msra.mxu0 0.0
    %204 = vmatprep.subr.mxu0 0.0
    %205 = vmatpush1.msra.mxu0 0.0
    %206 = vmatprep.subr.mxu0 0.0
    %207 = vmatpush1.msra.mxu0 0.0
    %208 = vmatprep.subr.mxu0 0.0
    %209 = vmatpush1.msra.mxu0 0.0
    %210 = vmatprep.subr.mxu0 0.0
    %211 = vmatpush1.msra.mxu0 0.0
    %212 = vmatprep.subr.mxu0 0.0
    %213 = vmatpush1.msra.mxu0 0.0
    %214 = vmatprep.subr.mxu0 0.0
    %215 = vmatpush1.msra.mxu0 0.0
    %216 = vmatprep.subr.mxu0 0.0
    %217 = vmatpush1.msra.mxu0 0.0
    %218 = vmatprep.subr.mxu0 0.0
    %219 = vmatpush1.msra.mxu0 0.0
    %220 = vmatprep.subr.mxu0 0.0
    %221 = vmatpush1.msra.mxu0 0.0
    %222 = vmatprep.subr.mxu0 0.0
    %223 = vmatpush1.msra.mxu0 0.0
    %224 = vmatprep.subr.mxu0 0.0
    %225 = vmatpush1.msra.mxu0 0.0
    %226 = vmatprep.subr.mxu0 0.0
    %227 = vmatpush1.msra.mxu0 0.0
    %228 = vmatprep.subr.mxu0 0.0
    %229 = vmatpush1.msra.mxu0 0.0
    %230 = vmatprep.subr.mxu0 0.0
    %231 = vmatpush1.msra.mxu0 %v192
    %232 = vmatprep.subr.mxu0 0.0
    %233 = vmatpush1.msra.mxu0 %v191
    %234 = vmatprep.subr.mxu0 0.0
    %235 = vmatpush2.msra.mxu0 0.0
    %236 = vmatprep.subr.mxu0 0.0
    %237 = vmatpush2.msra.mxu0 0.0
    %238 = vmatprep.subr.mxu0 0.0
    %239 = vmatpush2.msra.mxu0 0.0
    %240 = vmatprep.subr.mxu0 0.0
    %241 = vmatpush2.msra.mxu0 0.0
    %242 = vmatprep.subr.mxu0 0.0
    %243 = vmatpush2.msra.mxu0 0.0
    %244 = vmatprep.subr.mxu0 0.0
    %245 = vmatpush2.msra.mxu0 0.0
    %246 = vmatprep.subr.mxu0 0.0
    %247 = vmatpush2.msra.mxu0 0.0
    %248 = vmatprep.subr.mxu0 0.0
    %249 = vmatpush2.msra.mxu0 0.0
    %250 = vmatprep.subr.mxu0 0.0
    %251 = vmatpush2.msra.mxu0 0.0
    %252 = vmatprep.subr.mxu0 0.0
    %253 = vmatpush2.msra.mxu0 0.0
    %254 = vmatprep.subr.mxu0 0.0
    %255 = vmatpush2.msra.mxu0 0.0
    %256 = vmatprep.subr.mxu0 0.0
    %257 = vmatpush2.msra.mxu0 0.0
    %258 = vmatprep.subr.mxu0 0.0
    %259 = vmatpush2.msra.mxu0 0.0
    %260 = vmatprep.subr.mxu0 0.0
    %261 = vmatpush2.msra.mxu0 0.0
    %262 = vmatprep.subr.mxu0 0.0
    %263 = vmatpush2.msra.mxu0 0.0
    %264 = vmatprep.subr.mxu0 0.0
    %265 = vmatpush2.msra.mxu0 0.0
    %266 = vmatprep.mubr.f32.mxu0 0.0
    %267 = vmatmul.mubr.f32.gmra.mxu0 %v197
    %v268 = vpop.f32.mrf.mxu0
    %v269 = vadd.f32 0.0, %v268
    %v270 = vpop.f32.mrf.mxu0
    %271 = vmatprep.mubr.f32.mxu0 0.0
    %272 = vmatmul.mubr.f32.gmra.mxu0 %v200
    %v273 = vpop.f32.mrf.mxu0
    %v274 = vadd.f32 0.0, %v273
    %v275 = vpop.f32.mrf.mxu0
    %276 = vdwg.mxu0
    %v277 = vld [vmem:[%s77] sm:$0xff]
    %v278 = vld [vmem:[%s77 + $0x8] sm:$0xff]
    %v280 = vsel %vm195, %v277, 0
    %v283 = vsel %vm195, %v278, 0
    %285 = vmatprep.subr.mxu0 0.0
    %286 = vmatpush1.msra.mxu0 0.0
    %287 = vmatprep.subr.mxu0 0.0
    %288 = vmatpush1.msra.mxu0 0.0
    %289 = vmatprep.subr.mxu0 0.0
    %290 = vmatpush1.msra.mxu0 0.0
    %291 = vmatprep.subr.mxu0 0.0
    %292 = vmatpush1.msra.mxu0 0.0
    %293 = vmatprep.subr.mxu0 0.0
    %294 = vmatpush1.msra.mxu0 0.0
    %295 = vmatprep.subr.mxu0 0.0
    %296 = vmatpush1.msra.mxu0 0.0
    %297 = vmatprep.subr.mxu0 0.0
    %298 = vmatpush1.msra.mxu0 0.0
    %299 = vmatprep.subr.mxu0 0.0
    %300 = vmatpush1.msra.mxu0 0.0
    %301 = vmatprep.subr.mxu0 0.0
    %302 = vmatpush1.msra.mxu0 0.0
    %303 = vmatprep.subr.mxu0 0.0
    %304 = vmatpush1.msra.mxu0 0.0
    %305 = vmatprep.subr.mxu0 0.0
    %306 = vmatpush1.msra.mxu0 0.0
    %307 = vmatprep.subr.mxu0 0.0
    %308 = vmatpush1.msra.mxu0 0.0
    %309 = vmatprep.subr.mxu0 0.0
    %310 = vmatpush1.msra.mxu0 0.0
    %311 = vmatprep.subr.mxu0 0.0
    %312 = vmatpush1.msra.mxu0 0.0
    %313 = vmatprep.subr.mxu0 0.0
    %314 = vmatpush1.msra.mxu0 %v192
    %315 = vmatprep.subr.mxu0 0.0
    %316 = vmatpush1.msra.mxu0 %v191
    %317 = vmatprep.subr.mxu0 0.0
    %318 = vmatpush2.msra.mxu0 0.0
    %319 = vmatprep.subr.mxu0 0.0
    %320 = vmatpush2.msra.mxu0 0.0
    %321 = vmatprep.subr.mxu0 0.0
    %322 = vmatpush2.msra.mxu0 0.0
    %323 = vmatprep.subr.mxu0 0.0
    %324 = vmatpush2.msra.mxu0 0.0
    %325 = vmatprep.subr.mxu0 0.0
    %326 = vmatpush2.msra.mxu0 0.0
    %327 = vmatprep.subr.mxu0 0.0
    %328 = vmatpush2.msra.mxu0 0.0
    %329 = vmatprep.subr.mxu0 0.0
    %330 = vmatpush2.msra.mxu0 0.0
    %331 = vmatprep.subr.mxu0 0.0
    %332 = vmatpush2.msra.mxu0 0.0
    %333 = vmatprep.subr.mxu0 0.0
    %334 = vmatpush2.msra.mxu0 0.0
    %335 = vmatprep.subr.mxu0 0.0
    %336 = vmatpush2.msra.mxu0 0.0
    %337 = vmatprep.subr.mxu0 0.0
    %338 = vmatpush2.msra.mxu0 0.0
    %339 = vmatprep.subr.mxu0 0.0
    %340 = vmatpush2.msra.mxu0 0.0
    %341 = vmatprep.subr.mxu0 0.0
    %342 = vmatpush2.msra.mxu0 0.0
    %343 = vmatprep.subr.mxu0 0.0
    %344 = vmatpush2.msra.mxu0 0.0
    %345 = vmatprep.subr.mxu0 0.0
    %346 = vmatpush2.msra.mxu0 0.0
    %347 = vmatprep.subr.mxu0 0.0
    %348 = vmatpush2.msra.mxu0 0.0
    %349 = vmatprep.mubr.f32.mxu0 0.0
    %350 = vmatmul.mubr.f32.gmra.mxu0 %v280
    %v351 = vpop.f32.mrf.mxu0
    %v352 = vadd.f32 0.0, %v351
    %v353 = vpop.f32.mrf.mxu0
    %354 = vmatprep.mubr.f32.mxu0 0.0
    %355 = vmatmul.mubr.f32.gmra.mxu0 %v283
    %v356 = vpop.f32.mrf.mxu0
    %v357 = vadd.f32 0.0, %v356
    %v358 = vpop.f32.mrf.mxu0
    %359 = vdwg.mxu0
    %v360 = vld [vmem:[%s5] sm:$0xff]
    %v361 = vld [vmem:[%s5 + $0x8] sm:$0xff]
    %v362 = vld [vmem:[%s5 + $0x10] sm:$0xff]
    %v363 = vld [vmem:[%s5 + $0x18] sm:$0xff]
    %s364 = scalar_lea.vmem %s5, 32
    %v365 = vld [vmem:[%s364] sm:$0xff]
    %v366 = vld [vmem:[%s364 + $0x8] sm:$0xff]
    %v367 = vld [vmem:[%s364 + $0x10] sm:$0xff]
    %v368 = vld [vmem:[%s364 + $0x18] sm:$0xff]
    %vm369 = vcmask 261120
    %v371 = vsel %vm369, %v191, 0
    %v374 = vsel %vm369, %v192, 0
    %376 = vmatprep.subr.mxu0 0.0
    %377 = vmatpush1.msra.mxu0 0.0
    %378 = vmatprep.subr.mxu0 0.0
    %379 = vmatpush1.msra.mxu0 0.0
    %380 = vmatprep.subr.mxu0 0.0
    %381 = vmatpush1.msra.mxu0 0.0
    %382 = vmatprep.subr.mxu0 0.0
    %383 = vmatpush1.msra.mxu0 0.0
    %384 = vmatprep.subr.mxu0 0.0
    %385 = vmatpush1.msra.mxu0 0.0
    %386 = vmatprep.subr.mxu0 0.0
    %387 = vmatpush1.msra.mxu0 0.0
    %388 = vmatprep.subr.mxu0 0.0
    %389 = vmatpush1.msra.mxu0 0.0
    %390 = vmatprep.subr.mxu0 0.0
    %391 = vmatpush1.msra.mxu0 0.0
    %392 = vmatprep.subr.mxu0 0.0
    %393 = vmatpush1.msra.mxu0 0.0
    %394 = vmatprep.subr.mxu0 0.0
    %395 = vmatpush1.msra.mxu0 0.0
    %396 = vmatprep.subr.mxu0 0.0
    %397 = vmatpush1.msra.mxu0 0.0
    %398 = vmatprep.subr.mxu0 0.0
    %399 = vmatpush1.msra.mxu0 0.0
    %400 = vmatprep.subr.mxu0 0.0
    %401 = vmatpush1.msra.mxu0 %v368
    %402 = vmatprep.subr.mxu0 0.0
    %403 = vmatpush1.msra.mxu0 %v367
    %404 = vmatprep.subr.mxu0 0.0
    %405 = vmatpush1.msra.mxu0 %v366
    %406 = vmatprep.subr.mxu0 0.0
    %407 = vmatpush1.msra.mxu0 %v365
    %408 = vmatprep.subr.mxu0 0.0
    %409 = vmatpush2.msra.mxu0 0.0
    %410 = vmatprep.subr.mxu0 0.0
    %411 = vmatpush2.msra.mxu0 0.0
    %412 = vmatprep.subr.mxu0 0.0
    %413 = vmatpush2.msra.mxu0 0.0
    %414 = vmatprep.subr.mxu0 0.0
    %415 = vmatpush2.msra.mxu0 0.0
    %416 = vmatprep.subr.mxu0 0.0
    %417 = vmatpush2.msra.mxu0 0.0
    %418 = vmatprep.subr.mxu0 0.0
    %419 = vmatpush2.msra.mxu0 0.0
    %420 = vmatprep.subr.mxu0 0.0
    %421 = vmatpush2.msra.mxu0 0.0
    %422 = vmatprep.subr.mxu0 0.0
    %423 = vmatpush2.msra.mxu0 0.0
    %424 = vmatprep.subr.mxu0 0.0
    %425 = vmatpush2.msra.mxu0 0.0
    %426 = vmatprep.subr.mxu0 0.0
    %427 = vmatpush2.msra.mxu0 0.0
    %428 = vmatprep.subr.mxu0 0.0
    %429 = vmatpush2.msra.mxu0 0.0
    %430 = vmatprep.subr.mxu0 0.0
    %431 = vmatpush2.msra.mxu0 0.0
    %432 = vmatprep.subr.mxu0 0.0
    %433 = vmatpush2.msra.mxu0 0.0
    %434 = vmatprep.subr.mxu0 0.0
    %435 = vmatpush2.msra.mxu0 0.0
    %436 = vmatprep.subr.mxu0 0.0
    %437 = vmatpush2.msra.mxu0 0.0
    %438 = vmatprep.subr.mxu0 0.0
    %439 = vmatpush2.msra.mxu0 0.0
    %440 = vmatprep.mubr.f32.mxu0 0.0
    %441 = vmatmul.mubr.f32.gmra.mxu0 %v371
    %v442 = vpop.f32.mrf.mxu0
    %v443 = vadd.f32 0.0, %v442
    %v444 = vpop.f32.mrf.mxu0
    %445 = vmatprep.mubr.f32.mxu0 0.0
    %446 = vmatmul.mubr.f32.gmra.mxu0 %v374
    %v447 = vpop.f32.mrf.mxu0
    %v448 = vadd.f32 0.0, %v447
    %v449 = vpop.f32.mrf.mxu0
    %450 = vdwg.mxu0
    %v452 = vsel %vm369, %v269, 0
    %v455 = vsel %vm369, %v274, 0
    %457 = vmatprep.subr.mxu0 0.0
    %458 = vmatpush1.msra.mxu0 0.0
    %459 = vmatprep.subr.mxu0 0.0
    %460 = vmatpush1.msra.mxu0 0.0
    %461 = vmatprep.subr.mxu0 0.0
    %462 = vmatpush1.msra.mxu0 0.0
    %463 = vmatprep.subr.mxu0 0.0
    %464 = vmatpush1.msra.mxu0 0.0
    %465 = vmatprep.subr.mxu0 0.0
    %466 = vmatpush1.msra.mxu0 0.0
    %467 = vmatprep.subr.mxu0 0.0
    %468 = vmatpush1.msra.mxu0 0.0
    %469 = vmatprep.subr.mxu0 0.0
    %470 = vmatpush1.msra.mxu0 0.0
    %471 = vmatprep.subr.mxu0 0.0
    %472 = vmatpush1.msra.mxu0 0.0
    %473 = vmatprep.subr.mxu0 0.0
    %474 = vmatpush1.msra.mxu0 0.0
    %475 = vmatprep.subr.mxu0 0.0
    %476 = vmatpush1.msra.mxu0 0.0
    %477 = vmatprep.subr.mxu0 0.0
    %478 = vmatpush1.msra.mxu0 0.0
    %479 = vmatprep.subr.mxu0 0.0
    %480 = vmatpush1.msra.mxu0 0.0
    %481 = vmatprep.subr.mxu0 0.0
    %482 = vmatpush1.msra.mxu0 %v363
    %483 = vmatprep.subr.mxu0 0.0
    %484 = vmatpush1.msra.mxu0 %v362
    %485 = vmatprep.subr.mxu0 0.0
    %486 = vmatpush1.msra.mxu0 %v361
    %487 = vmatprep.subr.mxu0 0.0
    %488 = vmatpush1.msra.mxu0 %v360
    %489 = vmatprep.subr.mxu0 0.0
    %490 = vmatpush2.msra.mxu0 0.0
    %491 = vmatprep.subr.mxu0 0.0
    %492 = vmatpush2.msra.mxu0 0.0
    %493 = vmatprep.subr.mxu0 0.0
    %494 = vmatpush2.msra.mxu0 0.0
    %495 = vmatprep.subr.mxu0 0.0
    %496 = vmatpush2.msra.mxu0 0.0
    %497 = vmatprep.subr.mxu0 0.0
    %498 = vmatpush2.msra.mxu0 0.0
    %499 = vmatprep.subr.mxu0 0.0
    %500 = vmatpush2.msra.mxu0 0.0
    %501 = vmatprep.subr.mxu0 0.0
    %502 = vmatpush2.msra.mxu0 0.0
    %503 = vmatprep.subr.mxu0 0.0
    %504 = vmatpush2.msra.mxu0 0.0
    %505 = vmatprep.subr.mxu0 0.0
    %506 = vmatpush2.msra.mxu0 0.0
    %507 = vmatprep.subr.mxu0 0.0
    %508 = vmatpush2.msra.mxu0 0.0
    %509 = vmatprep.subr.mxu0 0.0
    %510 = vmatpush2.msra.mxu0 0.0
    %511 = vmatprep.subr.mxu0 0.0
    %512 = vmatpush2.msra.mxu0 0.0
    %513 = vmatprep.subr.mxu0 0.0
    %514 = vmatpush2.msra.mxu0 0.0
    %515 = vmatprep.subr.mxu0 0.0
    %516 = vmatpush2.msra.mxu0 0.0
    %517 = vmatprep.subr.mxu0 0.0
    %518 = vmatpush2.msra.mxu0 0.0
    %519 = vmatprep.subr.mxu0 0.0
    %520 = vmatpush2.msra.mxu0 0.0
    %521 = vmatprep.mubr.f32.mxu0 0.0
    %522 = vmatmul.mubr.f32.gmra.mxu0 %v452
    %v523 = vpop.f32.mrf.mxu0
    %v524 = vadd.f32 %v443, %v523
    %v525 = vpop.f32.mrf.mxu0
    %526 = vmatprep.mubr.f32.mxu0 0.0
    %527 = vmatmul.mubr.f32.gmra.mxu0 %v455
    %v528 = vpop.f32.mrf.mxu0
    %v529 = vadd.f32 %v448, %v528
    %v530 = vpop.f32.mrf.mxu0
    %531 = vdwg.mxu0
    %s532 = scalar_lea.vmem %s5, 64
    %v533 = vld [vmem:[%s532] sm:$0xff]
    %v534 = vld [vmem:[%s532 + $0x8] sm:$0xff]
    %v535 = vld [vmem:[%s532 + $0x10] sm:$0xff]
    %v536 = vld [vmem:[%s532 + $0x18] sm:$0xff]
    %v538 = vsel %vm369, %v352, 0
    %v541 = vsel %vm369, %v357, 0
    %543 = vmatprep.subr.mxu0 0.0
    %544 = vmatpush1.msra.mxu0 0.0
    %545 = vmatprep.subr.mxu0 0.0
    %546 = vmatpush1.msra.mxu0 0.0
    %547 = vmatprep.subr.mxu0 0.0
    %548 = vmatpush1.msra.mxu0 0.0
    %549 = vmatprep.subr.mxu0 0.0
    %550 = vmatpush1.msra.mxu0 0.0
    %551 = vmatprep.subr.mxu0 0.0
    %552 = vmatpush1.msra.mxu0 0.0
    %553 = vmatprep.subr.mxu0 0.0
    %554 = vmatpush1.msra.mxu0 0.0
    %555 = vmatprep.subr.mxu0 0.0
    %556 = vmatpush1.msra.mxu0 0.0
    %557 = vmatprep.subr.mxu0 0.0
    %558 = vmatpush1.msra.mxu0 0.0
    %559 = vmatprep.subr.mxu0 0.0
    %560 = vmatpush1.msra.mxu0 0.0
    %561 = vmatprep.subr.mxu0 0.0
    %562 = vmatpush1.msra.mxu0 0.0
    %563 = vmatprep.subr.mxu0 0.0
    %564 = vmatpush1.msra.mxu0 0.0
    %565 = vmatprep.subr.mxu0 0.0
    %566 = vmatpush1.msra.mxu0 0.0
    %567 = vmatprep.subr.mxu0 0.0
    %568 = vmatpush1.msra.mxu0 %v536
    %569 = vmatprep.subr.mxu0 0.0
    %570 = vmatpush1.msra.mxu0 %v535
    %571 = vmatprep.subr.mxu0 0.0
    %572 = vmatpush1.msra.mxu0 %v534
    %573 = vmatprep.subr.mxu0 0.0
    %574 = vmatpush1.msra.mxu0 %v533
    %575 = vmatprep.subr.mxu0 0.0
    %576 = vmatpush2.msra.mxu0 0.0
    %577 = vmatprep.subr.mxu0 0.0
    %578 = vmatpush2.msra.mxu0 0.0
    %579 = vmatprep.subr.mxu0 0.0
    %580 = vmatpush2.msra.mxu0 0.0
    %581 = vmatprep.subr.mxu0 0.0
    %582 = vmatpush2.msra.mxu0 0.0
    %583 = vmatprep.subr.mxu0 0.0
    %584 = vmatpush2.msra.mxu0 0.0
    %585 = vmatprep.subr.mxu0 0.0
    %586 = vmatpush2.msra.mxu0 0.0
    %587 = vmatprep.subr.mxu0 0.0
    %588 = vmatpush2.msra.mxu0 0.0
    %589 = vmatprep.subr.mxu0 0.0
    %590 = vmatpush2.msra.mxu0 0.0
    %591 = vmatprep.subr.mxu0 0.0
    %592 = vmatpush2.msra.mxu0 0.0
    %593 = vmatprep.subr.mxu0 0.0
    %594 = vmatpush2.msra.mxu0 0.0
    %595 = vmatprep.subr.mxu0 0.0
    %596 = vmatpush2.msra.mxu0 0.0
    %597 = vmatprep.subr.mxu0 0.0
    %598 = vmatpush2.msra.mxu0 0.0
    %599 = vmatprep.subr.mxu0 0.0
    %600 = vmatpush2.msra.mxu0 0.0
    %601 = vmatprep.subr.mxu0 0.0
    %602 = vmatpush2.msra.mxu0 0.0
    %603 = vmatprep.subr.mxu0 0.0
    %604 = vmatpush2.msra.mxu0 0.0
    %605 = vmatprep.subr.mxu0 0.0
    %606 = vmatpush2.msra.mxu0 0.0
    %607 = vmatprep.mubr.f32.mxu0 0.0
    %608 = vmatmul.mubr.f32.gmra.mxu0 %v538
    %v609 = vpop.f32.mrf.mxu0
    %v610 = vadd.f32 0.0, %v609
    %v611 = vpop.f32.mrf.mxu0
    %612 = vmatprep.mubr.f32.mxu0 0.0
    %613 = vmatmul.mubr.f32.gmra.mxu0 %v541
    %v614 = vpop.f32.mrf.mxu0
    %v615 = vadd.f32 0.0, %v614
    %v616 = vpop.f32.mrf.mxu0
    %617 = vdwg.mxu0
    %v618 = vadd.f32 %v524, %v610
    %v619 = vadd.f32 %v529, %v615
    %v620 = vld [vmem:[%s3] sm:$0x1]
    %v622 = vlaneseq
    %v623 = vshrl.u32 %v622, 7
    %v624 = vsub.s32 0, %v623
    %v625 = vrot.slane %v620, %v624
    %v627 = vadd.f32 %v618, %v625
    %v628 = vadd.f32 %v619, %v625
    %629 = vmatprep.subr.mxu0 0.0
    %630 = vmatpush1.msra.mxu0 0.0
    %631 = vmatprep.subr.mxu0 0.0
    %632 = vmatpush1.msra.mxu0 0.0
    %633 = vmatprep.subr.mxu0 0.0
    %634 = vmatpush1.msra.mxu0 0.0
    %635 = vmatprep.subr.mxu0 0.0
    %636 = vmatpush1.msra.mxu0 0.0
    %637 = vmatprep.subr.mxu0 0.0
    %638 = vmatpush1.msra.mxu0 0.0
    %639 = vmatprep.subr.mxu0 0.0
    %640 = vmatpush1.msra.mxu0 0.0
    %641 = vmatprep.subr.mxu0 0.0
    %642 = vmatpush1.msra.mxu0 0.0
    %643 = vmatprep.subr.mxu0 0.0
    %644 = vmatpush1.msra.mxu0 0.0
    %645 = vmatprep.subr.mxu0 0.0
    %646 = vmatpush1.msra.mxu0 0.0
    %647 = vmatprep.subr.mxu0 0.0
    %648 = vmatpush1.msra.mxu0 0.0
    %649 = vmatprep.subr.mxu0 0.0
    %650 = vmatpush1.msra.mxu0 0.0
    %651 = vmatprep.subr.mxu0 0.0
    %652 = vmatpush1.msra.mxu0 0.0
    %653 = vmatprep.subr.mxu0 0.0
    %654 = vmatpush1.msra.mxu0 0.0
    %655 = vmatprep.subr.mxu0 0.0
    %656 = vmatpush1.msra.mxu0 0.0
    %657 = vmatprep.subr.mxu0 0.0
    %658 = vmatpush1.msra.mxu0 %v628
    %659 = vmatprep.subr.mxu0 0.0
    %660 = vmatpush1.msra.mxu0 %v627
    %661 = vmatprep.subr.mxu0 0.0
    %662 = vmatpush2.msra.mxu0 0.0
    %663 = vmatprep.subr.mxu0 0.0
    %664 = vmatpush2.msra.mxu0 0.0
    %665 = vmatprep.subr.mxu0 0.0
    %666 = vmatpush2.msra.mxu0 0.0
    %667 = vmatprep.subr.mxu0 0.0
    %668 = vmatpush2.msra.mxu0 0.0
    %669 = vmatprep.subr.mxu0 0.0
    %670 = vmatpush2.msra.mxu0 0.0
    %671 = vmatprep.subr.mxu0 0.0
    %672 = vmatpush2.msra.mxu0 0.0
    %673 = vmatprep.subr.mxu0 0.0
    %674 = vmatpush2.msra.mxu0 0.0
    %675 = vmatprep.subr.mxu0 0.0
    %676 = vmatpush2.msra.mxu0 0.0
    %677 = vmatprep.subr.mxu0 0.0
    %678 = vmatpush2.msra.mxu0 0.0
    %679 = vmatprep.subr.mxu0 0.0
    %680 = vmatpush2.msra.mxu0 0.0
    %681 = vmatprep.subr.mxu0 0.0
    %682 = vmatpush2.msra.mxu0 0.0
    %683 = vmatprep.subr.mxu0 0.0
    %684 = vmatpush2.msra.mxu0 0.0
    %685 = vmatprep.subr.mxu0 0.0
    %686 = vmatpush2.msra.mxu0 0.0
    %687 = vmatprep.subr.mxu0 0.0
    %688 = vmatpush2.msra.mxu0 0.0
    %689 = vmatprep.subr.mxu0 0.0
    %690 = vmatpush2.msra.mxu0 0.0
    %691 = vmatprep.subr.mxu0 0.0
    %692 = vmatpush2.msra.mxu0 0.0
    %693 = vmatprep.mubr.f32.mxu0 0.0
    %694 = vmatmul.mubr.f32.gmra.mxu0 %v197
    %v695 = vpop.f32.mrf.mxu0
    %v696 = vadd.f32 0.0, %v695
    %v697 = vpop.f32.mrf.mxu0
    %698 = vmatprep.mubr.f32.mxu0 0.0
    %699 = vmatmul.mubr.f32.gmra.mxu0 %v200
    %v700 = vpop.f32.mrf.mxu0
    %v701 = vadd.f32 0.0, %v700
    %v702 = vpop.f32.mrf.mxu0
    %703 = vdwg.mxu0
    %704 = vmatprep.subr.mxu0 0.0
    %705 = vmatpush1.msra.mxu0 0.0
    %706 = vmatprep.subr.mxu0 0.0
    %707 = vmatpush1.msra.mxu0 0.0
    %708 = vmatprep.subr.mxu0 0.0
    %709 = vmatpush1.msra.mxu0 0.0
    %710 = vmatprep.subr.mxu0 0.0
    %711 = vmatpush1.msra.mxu0 0.0
    %712 = vmatprep.subr.mxu0 0.0
    %713 = vmatpush1.msra.mxu0 0.0
    %714 = vmatprep.subr.mxu0 0.0
    %715 = vmatpush1.msra.mxu0 0.0
    %716 = vmatprep.subr.mxu0 0.0
    %717 = vmatpush1.msra.mxu0 0.0
    %718 = vmatprep.subr.mxu0 0.0
    %719 = vmatpush1.msra.mxu0 0.0
    %720 = vmatprep.subr.mxu0 0.0
    %721 = vmatpush1.msra.mxu0 0.0
    %722 = vmatprep.subr.mxu0 0.0
    %723 = vmatpush1.msra.mxu0 0.0
    %724 = vmatprep.subr.mxu0 0.0
    %725 = vmatpush1.msra.mxu0 0.0
    %726 = vmatprep.subr.mxu0 0.0
    %727 = vmatpush1.msra.mxu0 0.0
    %728 = vmatprep.subr.mxu0 0.0
    %729 = vmatpush1.msra.mxu0 0.0
    %730 = vmatprep.subr.mxu0 0.0
    %731 = vmatpush1.msra.mxu0 0.0
    %732 = vmatprep.subr.mxu0 0.0
    %733 = vmatpush1.msra.mxu0 %v628
    %734 = vmatprep.subr.mxu0 0.0
    %735 = vmatpush1.msra.mxu0 %v627
    %736 = vmatprep.subr.mxu0 0.0
    %737 = vmatpush2.msra.mxu0 0.0
    %738 = vmatprep.subr.mxu0 0.0
    %739 = vmatpush2.msra.mxu0 0.0
    %740 = vmatprep.subr.mxu0 0.0
    %741 = vmatpush2.msra.mxu0 0.0
    %742 = vmatprep.subr.mxu0 0.0
    %743 = vmatpush2.msra.mxu0 0.0
    %744 = vmatprep.subr.mxu0 0.0
    %745 = vmatpush2.msra.mxu0 0.0
    %746 = vmatprep.subr.mxu0 0.0
    %747 = vmatpush2.msra.mxu0 0.0
    %748 = vmatprep.subr.mxu0 0.0
    %749 = vmatpush2.msra.mxu0 0.0
    %750 = vmatprep.subr.mxu0 0.0
    %751 = vmatpush2.msra.mxu0 0.0
    %752 = vmatprep.subr.mxu0 0.0
    %753 = vmatpush2.msra.mxu0 0.0
    %754 = vmatprep.subr.mxu0 0.0
    %755 = vmatpush2.msra.mxu0 0.0
    %756 = vmatprep.subr.mxu0 0.0
    %757 = vmatpush2.msra.mxu0 0.0
    %758 = vmatprep.subr.mxu0 0.0
    %759 = vmatpush2.msra.mxu0 0.0
    %760 = vmatprep.subr.mxu0 0.0
    %761 = vmatpush2.msra.mxu0 0.0
    %762 = vmatprep.subr.mxu0 0.0
    %763 = vmatpush2.msra.mxu0 0.0
    %764 = vmatprep.subr.mxu0 0.0
    %765 = vmatpush2.msra.mxu0 0.0
    %766 = vmatprep.subr.mxu0 0.0
    %767 = vmatpush2.msra.mxu0 0.0
    %768 = vmatprep.mubr.f32.mxu0 0.0
    %769 = vmatmul.mubr.f32.gmra.mxu0 %v280
    %v770 = vpop.f32.mrf.mxu0
    %v771 = vadd.f32 0.0, %v770
    %v772 = vpop.f32.mrf.mxu0
    %773 = vmatprep.mubr.f32.mxu0 0.0
    %774 = vmatmul.mubr.f32.gmra.mxu0 %v283
    %v775 = vpop.f32.mrf.mxu0
    %v776 = vadd.f32 0.0, %v775
    %v777 = vpop.f32.mrf.mxu0
    %778 = vdwg.mxu0
    %v779 = vld [vmem:[%s71] sm:$0xff]
    %v780 = vld [vmem:[%s71 + $0x8] sm:$0xff]
    %v781 = vld [vmem:[%s71 + $0x10] sm:$0xff]
    %v782 = vld [vmem:[%s71 + $0x18] sm:$0xff]
    %v783 = vld [vmem:[%s71 + $0x20] sm:$0xff]
    %v784 = vld [vmem:[%s71 + $0x28] sm:$0xff]
    %s785 = scalar_lea.vmem %s71, 48
    %v786 = vld [vmem:[%s785] sm:$0xff]
    %v787 = vld [vmem:[%s785 + $0x8] sm:$0xff]
    %v788 = vld [vmem:[%s785 + $0x10] sm:$0xff]
    %v789 = vld [vmem:[%s785 + $0x18] sm:$0xff]
    %v790 = vld [vmem:[%s785 + $0x20] sm:$0xff]
    %v791 = vld [vmem:[%s785 + $0x28] sm:$0xff]
    %vm792 = vcmask 392192
    %v794 = vsel %vm792, %v627, 0
    %v797 = vsel %vm792, %v628, 0
    %799 = vmatprep.subr.mxu0 0.0
    %800 = vmatpush1.msra.mxu0 0.0
    %801 = vmatprep.subr.mxu0 0.0
    %802 = vmatpush1.msra.mxu0 0.0
    %803 = vmatprep.subr.mxu0 0.0
    %804 = vmatpush1.msra.mxu0 0.0
    %805 = vmatprep.subr.mxu0 0.0
    %806 = vmatpush1.msra.mxu0 0.0
    %807 = vmatprep.subr.mxu0 0.0
    %808 = vmatpush1.msra.mxu0 0.0
    %809 = vmatprep.subr.mxu0 0.0
    %810 = vmatpush1.msra.mxu0 0.0
    %811 = vmatprep.subr.mxu0 0.0
    %812 = vmatpush1.msra.mxu0 0.0
    %813 = vmatprep.subr.mxu0 0.0
    %814 = vmatpush1.msra.mxu0 0.0
    %815 = vmatprep.subr.mxu0 0.0
    %816 = vmatpush1.msra.mxu0 0.0
    %817 = vmatprep.subr.mxu0 0.0
    %818 = vmatpush1.msra.mxu0 0.0
    %819 = vmatprep.subr.mxu0 0.0
    %820 = vmatpush1.msra.mxu0 %v791
    %821 = vmatprep.subr.mxu0 0.0
    %822 = vmatpush1.msra.mxu0 %v790
    %823 = vmatprep.subr.mxu0 0.0
    %824 = vmatpush1.msra.mxu0 %v789
    %825 = vmatprep.subr.mxu0 0.0
    %826 = vmatpush1.msra.mxu0 %v788
    %827 = vmatprep.subr.mxu0 0.0
    %828 = vmatpush1.msra.mxu0 %v787
    %829 = vmatprep.subr.mxu0 0.0
    %830 = vmatpush1.msra.mxu0 %v786
    %831 = vmatprep.subr.mxu0 0.0
    %832 = vmatpush2.msra.mxu0 0.0
    %833 = vmatprep.subr.mxu0 0.0
    %834 = vmatpush2.msra.mxu0 0.0
    %835 = vmatprep.subr.mxu0 0.0
    %836 = vmatpush2.msra.mxu0 0.0
    %837 = vmatprep.subr.mxu0 0.0
    %838 = vmatpush2.msra.mxu0 0.0
    %839 = vmatprep.subr.mxu0 0.0
    %840 = vmatpush2.msra.mxu0 0.0
    %841 = vmatprep.subr.mxu0 0.0
    %842 = vmatpush2.msra.mxu0 0.0
    %843 = vmatprep.subr.mxu0 0.0
    %844 = vmatpush2.msra.mxu0 0.0
    %845 = vmatprep.subr.mxu0 0.0
    %846 = vmatpush2.msra.mxu0 0.0
    %847 = vmatprep.subr.mxu0 0.0
    %848 = vmatpush2.msra.mxu0 0.0
    %849 = vmatprep.subr.mxu0 0.0
    %850 = vmatpush2.msra.mxu0 0.0
    %851 = vmatprep.subr.mxu0 0.0
    %852 = vmatpush2.msra.mxu0 0.0
    %853 = vmatprep.subr.mxu0 0.0
    %854 = vmatpush2.msra.mxu0 0.0
    %855 = vmatprep.subr.mxu0 0.0
    %856 = vmatpush2.msra.mxu0 0.0
    %857 = vmatprep.subr.mxu0 0.0
    %858 = vmatpush2.msra.mxu0 0.0
    %859 = vmatprep.subr.mxu0 0.0
    %860 = vmatpush2.msra.mxu0 0.0
    %861 = vmatprep.subr.mxu0 0.0
    %862 = vmatpush2.msra.mxu0 0.0
    %863 = vmatprep.mubr.f32.mxu0 0.0
    %864 = vmatmul.mubr.f32.gmra.mxu0 %v794
    %v865 = vpop.f32.mrf.mxu0
    %v866 = vadd.f32 0.0, %v865
    %v867 = vpop.f32.mrf.mxu0
    %868 = vmatprep.mubr.f32.mxu0 0.0
    %869 = vmatmul.mubr.f32.gmra.mxu0 %v797
    %v870 = vpop.f32.mrf.mxu0
    %v871 = vadd.f32 0.0, %v870
    %v872 = vpop.f32.mrf.mxu0
    %873 = vdwg.mxu0
    %v875 = vsel %vm792, %v696, 0
    %v878 = vsel %vm792, %v701, 0
    %880 = vmatprep.subr.mxu0 0.0
    %881 = vmatpush1.msra.mxu0 0.0
    %882 = vmatprep.subr.mxu0 0.0
    %883 = vmatpush1.msra.mxu0 0.0
    %884 = vmatprep.subr.mxu0 0.0
    %885 = vmatpush1.msra.mxu0 0.0
    %886 = vmatprep.subr.mxu0 0.0
    %887 = vmatpush1.msra.mxu0 0.0
    %888 = vmatprep.subr.mxu0 0.0
    %889 = vmatpush1.msra.mxu0 0.0
    %890 = vmatprep.subr.mxu0 0.0
    %891 = vmatpush1.msra.mxu0 0.0
    %892 = vmatprep.subr.mxu0 0.0
    %893 = vmatpush1.msra.mxu0 0.0
    %894 = vmatprep.subr.mxu0 0.0
    %895 = vmatpush1.msra.mxu0 0.0
    %896 = vmatprep.subr.mxu0 0.0
    %897 = vmatpush1.msra.mxu0 0.0
    %898 = vmatprep.subr.mxu0 0.0
    %899 = vmatpush1.msra.mxu0 0.0
    %900 = vmatprep.subr.mxu0 0.0
    %901 = vmatpush1.msra.mxu0 %v784
    %902 = vmatprep.subr.mxu0 0.0
    %903 = vmatpush1.msra.mxu0 %v783
    %904 = vmatprep.subr.mxu0 0.0
    %905 = vmatpush1.msra.mxu0 %v782
    %906 = vmatprep.subr.mxu0 0.0
    %907 = vmatpush1.msra.mxu0 %v781
    %908 = vmatprep.subr.mxu0 0.0
    %909 = vmatpush1.msra.mxu0 %v780
    %910 = vmatprep.subr.mxu0 0.0
    %911 = vmatpush1.msra.mxu0 %v779
    %912 = vmatprep.subr.mxu0 0.0
    %913 = vmatpush2.msra.mxu0 0.0
    %914 = vmatprep.subr.mxu0 0.0
    %915 = vmatpush2.msra.mxu0 0.0
    %916 = vmatprep.subr.mxu0 0.0
    %917 = vmatpush2.msra.mxu0 0.0
    %918 = vmatprep.subr.mxu0 0.0
    %919 = vmatpush2.msra.mxu0 0.0
    %920 = vmatprep.subr.mxu0 0.0
    %921 = vmatpush2.msra.mxu0 0.0
    %922 = vmatprep.subr.mxu0 0.0
    %923 = vmatpush2.msra.mxu0 0.0
    %924 = vmatprep.subr.mxu0 0.0
    %925 = vmatpush2.msra.mxu0 0.0
    %926 = vmatprep.subr.mxu0 0.0
    %927 = vmatpush2.msra.mxu0 0.0
    %928 = vmatprep.subr.mxu0 0.0
    %929 = vmatpush2.msra.mxu0 0.0
    %930 = vmatprep.subr.mxu0 0.0
    %931 = vmatpush2.msra.mxu0 0.0
    %932 = vmatprep.subr.mxu0 0.0
    %933 = vmatpush2.msra.mxu0 0.0
    %934 = vmatprep.subr.mxu0 0.0
    %935 = vmatpush2.msra.mxu0 0.0
    %936 = vmatprep.subr.mxu0 0.0
    %937 = vmatpush2.msra.mxu0 0.0
    %938 = vmatprep.subr.mxu0 0.0
    %939 = vmatpush2.msra.mxu0 0.0
    %940 = vmatprep.subr.mxu0 0.0
    %941 = vmatpush2.msra.mxu0 0.0
    %942 = vmatprep.subr.mxu0 0.0
    %943 = vmatpush2.msra.mxu0 0.0
    %944 = vmatprep.mubr.f32.mxu0 0.0
    %945 = vmatmul.mubr.f32.gmra.mxu0 %v875
    %v946 = vpop.f32.mrf.mxu0
    %v947 = vadd.f32 %v866, %v946
    %v948 = vpop.f32.mrf.mxu0
    %949 = vmatprep.mubr.f32.mxu0 0.0
    %950 = vmatmul.mubr.f32.gmra.mxu0 %v878
    %v951 = vpop.f32.mrf.mxu0
    %v952 = vadd.f32 %v871, %v951
    %v953 = vpop.f32.mrf.mxu0
    %954 = vdwg.mxu0
    %s955 = scalar_lea.vmem %s71, 96
    %v956 = vld [vmem:[%s955] sm:$0xff]
    %v957 = vld [vmem:[%s955 + $0x8] sm:$0xff]
    %v958 = vld [vmem:[%s955 + $0x10] sm:$0xff]
    %v959 = vld [vmem:[%s955 + $0x18] sm:$0xff]
    %v960 = vld [vmem:[%s955 + $0x20] sm:$0xff]
    %v961 = vld [vmem:[%s955 + $0x28] sm:$0xff]
    %v963 = vsel %vm792, %v771, 0
    %v966 = vsel %vm792, %v776, 0
    %968 = vmatprep.subr.mxu0 0.0
    %969 = vmatpush1.msra.mxu0 0.0
    %970 = vmatprep.subr.mxu0 0.0
    %971 = vmatpush1.msra.mxu0 0.0
    %972 = vmatprep.subr.mxu0 0.0
    %973 = vmatpush1.msra.mxu0 0.0
    %974 = vmatprep.subr.mxu0 0.0
    %975 = vmatpush1.msra.mxu0 0.0
    %976 = vmatprep.subr.mxu0 0.0
    %977 = vmatpush1.msra.mxu0 0.0
    %978 = vmatprep.subr.mxu0 0.0
    %979 = vmatpush1.msra.mxu0 0.0
    %980 = vmatprep.subr.mxu0 0.0
    %981 = vmatpush1.msra.mxu0 0.0
    %982 = vmatprep.subr.mxu0 0.0
    %983 = vmatpush1.msra.mxu0 0.0
    %984 = vmatprep.subr.mxu0 0.0
    %985 = vmatpush1.msra.mxu0 0.0
    %986 = vmatprep.subr.mxu0 0.0
    %987 = vmatpush1.msra.mxu0 0.0
    %988 = vmatprep.subr.mxu0 0.0
    %989 = vmatpush1.msra.mxu0 %v961
    %990 = vmatprep.subr.mxu0 0.0
    %991 = vmatpush1.msra.mxu0 %v960
    %992 = vmatprep.subr.mxu0 0.0
    %993 = vmatpush1.msra.mxu0 %v959
    %994 = vmatprep.subr.mxu0 0.0
    %995 = vmatpush1.msra.mxu0 %v958
    %996 = vmatprep.subr.mxu0 0.0
    %997 = vmatpush1.msra.mxu0 %v957
    %998 = vmatprep.subr.mxu0 0.0
    %999 = vmatpush1.msra.mxu0 %v956
    %1000 = vmatprep.subr.mxu0 0.0
    %1001 = vmatpush2.msra.mxu0 0.0
    %1002 = vmatprep.subr.mxu0 0.0
    %1003 = vmatpush2.msra.mxu0 0.0
    %1004 = vmatprep.subr.mxu0 0.0
    %1005 = vmatpush2.msra.mxu0 0.0
    %1006 = vmatprep.subr.mxu0 0.0
    %1007 = vmatpush2.msra.mxu0 0.0
    %1008 = vmatprep.subr.mxu0 0.0
    %1009 = vmatpush2.msra.mxu0 0.0
    %1010 = vmatprep.subr.mxu0 0.0
    %1011 = vmatpush2.msra.mxu0 0.0
    %1012 = vmatprep.subr.mxu0 0.0
    %1013 = vmatpush2.msra.mxu0 0.0
    %1014 = vmatprep.subr.mxu0 0.0
    %1015 = vmatpush2.msra.mxu0 0.0
    %1016 = vmatprep.subr.mxu0 0.0
    %1017 = vmatpush2.msra.mxu0 0.0
    %1018 = vmatprep.subr.mxu0 0.0
    %1019 = vmatpush2.msra.mxu0 0.0
    %1020 = vmatprep.subr.mxu0 0.0
    %1021 = vmatpush2.msra.mxu0 0.0
    %1022 = vmatprep.subr.mxu0 0.0
    %1023 = vmatpush2.msra.mxu0 0.0
    %1024 = vmatprep.subr.mxu0 0.0
    %1025 = vmatpush2.msra.mxu0 0.0
    %1026 = vmatprep.subr.mxu0 0.0
    %1027 = vmatpush2.msra.mxu0 0.0
    %1028 = vmatprep.subr.mxu0 0.0
    %1029 = vmatpush2.msra.mxu0 0.0
    %1030 = vmatprep.subr.mxu0 0.0
    %1031 = vmatpush2.msra.mxu0 0.0
    %1032 = vmatprep.mubr.f32.mxu0 0.0
    %1033 = vmatmul.mubr.f32.gmra.mxu0 %v963
    %v1034 = vpop.f32.mrf.mxu0
    %v1035 = vadd.f32 0.0, %v1034
    %v1036 = vpop.f32.mrf.mxu0
    %1037 = vmatprep.mubr.f32.mxu0 0.0
    %1038 = vmatmul.mubr.f32.gmra.mxu0 %v966
    %v1039 = vpop.f32.mrf.mxu0
    %v1040 = vadd.f32 0.0, %v1039
    %v1041 = vpop.f32.mrf.mxu0
    %1042 = vdwg.mxu0
    %v1043 = vadd.f32 %v947, %v1035
    %v1044 = vadd.f32 %v952, %v1040
    %v1045 = vld [vmem:[%s67] sm:$0x1]
    %v1047 = vlaneseq
    %v1048 = vshrl.u32 %v1047, 7
    %v1049 = vsub.s32 0, %v1048
    %v1050 = vrot.slane %v1045, %v1049
    %v1052 = vadd.f32 %v1043, %v1050
    %v1053 = vadd.f32 %v1044, %v1050
    %vm1054 = vcmp.gt.f32.partialorder %v1052, 0.0
    %vm1055 = vcmp.gt.f32.partialorder %v1053, 0.0
    %v1056 = vmul.f32 %v1052, 0.2
    %v1057 = vmul.f32 %v1053, 0.2
    %v1058 = vsel %vm1054, %v1052, %v1056
    %v1059 = vsel %vm1055, %v1053, %v1057
    %1060 = vmatprep.subr.mxu0 0.0
    %1061 = vmatpush1.msra.mxu0 0.0
    %1062 = vmatprep.subr.mxu0 0.0
    %1063 = vmatpush1.msra.mxu0 0.0
    %1064 = vmatprep.subr.mxu0 0.0
    %1065 = vmatpush1.msra.mxu0 0.0
    %1066 = vmatprep.subr.mxu0 0.0
    %1067 = vmatpush1.msra.mxu0 0.0
    %1068 = vmatprep.subr.mxu0 0.0
    %1069 = vmatpush1.msra.mxu0 0.0
    %1070 = vmatprep.subr.mxu0 0.0
    %1071 = vmatpush1.msra.mxu0 0.0
    %1072 = vmatprep.subr.mxu0 0.0
    %1073 = vmatpush1.msra.mxu0 0.0
    %1074 = vmatprep.subr.mxu0 0.0
    %1075 = vmatpush1.msra.mxu0 0.0
    %1076 = vmatprep.subr.mxu0 0.0
    %1077 = vmatpush1.msra.mxu0 0.0
    %1078 = vmatprep.subr.mxu0 0.0
    %1079 = vmatpush1.msra.mxu0 0.0
    %1080 = vmatprep.subr.mxu0 0.0
    %1081 = vmatpush1.msra.mxu0 0.0
    %1082 = vmatprep.subr.mxu0 0.0
    %1083 = vmatpush1.msra.mxu0 0.0
    %1084 = vmatprep.subr.mxu0 0.0
    %1085 = vmatpush1.msra.mxu0 0.0
    %1086 = vmatprep.subr.mxu0 0.0
    %1087 = vmatpush1.msra.mxu0 0.0
    %1088 = vmatprep.subr.mxu0 0.0
    %1089 = vmatpush1.msra.mxu0 %v1059
    %1090 = vmatprep.subr.mxu0 0.0
    %1091 = vmatpush1.msra.mxu0 %v1058
    %1092 = vmatprep.subr.mxu0 0.0
    %1093 = vmatpush2.msra.mxu0 0.0
    %1094 = vmatprep.subr.mxu0 0.0
    %1095 = vmatpush2.msra.mxu0 0.0
    %1096 = vmatprep.subr.mxu0 0.0
    %1097 = vmatpush2.msra.mxu0 0.0
    %1098 = vmatprep.subr.mxu0 0.0
    %1099 = vmatpush2.msra.mxu0 0.0
    %1100 = vmatprep.subr.mxu0 0.0
    %1101 = vmatpush2.msra.mxu0 0.0
    %1102 = vmatprep.subr.mxu0 0.0
    %1103 = vmatpush2.msra.mxu0 0.0
    %1104 = vmatprep.subr.mxu0 0.0
    %1105 = vmatpush2.msra.mxu0 0.0
    %1106 = vmatprep.subr.mxu0 0.0
    %1107 = vmatpush2.msra.mxu0 0.0
    %1108 = vmatprep.subr.mxu0 0.0
    %1109 = vmatpush2.msra.mxu0 0.0
    %1110 = vmatprep.subr.mxu0 0.0
    %1111 = vmatpush2.msra.mxu0 0.0
    %1112 = vmatprep.subr.mxu0 0.0
    %1113 = vmatpush2.msra.mxu0 0.0
    %1114 = vmatprep.subr.mxu0 0.0
    %1115 = vmatpush2.msra.mxu0 0.0
    %1116 = vmatprep.subr.mxu0 0.0
    %1117 = vmatpush2.msra.mxu0 0.0
    %1118 = vmatprep.subr.mxu0 0.0
    %1119 = vmatpush2.msra.mxu0 0.0
    %1120 = vmatprep.subr.mxu0 0.0
    %1121 = vmatpush2.msra.mxu0 0.0
    %1122 = vmatprep.subr.mxu0 0.0
    %1123 = vmatpush2.msra.mxu0 0.0
    %1124 = vmatprep.mubr.f32.mxu0 0.0
    %1125 = vmatmul.mubr.f32.gmra.mxu0 %v197
    %v1126 = vpop.f32.mrf.mxu0
    %v1127 = vadd.f32 0.0, %v1126
    %v1128 = vpop.f32.mrf.mxu0
    %1129 = vmatprep.mubr.f32.mxu0 0.0
    %1130 = vmatmul.mubr.f32.gmra.mxu0 %v200
    %v1131 = vpop.f32.mrf.mxu0
    %v1132 = vadd.f32 0.0, %v1131
    %v1133 = vpop.f32.mrf.mxu0
    %1134 = vdwg.mxu0
    %1135 = vmatprep.subr.mxu0 0.0
    %1136 = vmatpush1.msra.mxu0 0.0
    %1137 = vmatprep.subr.mxu0 0.0
    %1138 = vmatpush1.msra.mxu0 0.0
    %1139 = vmatprep.subr.mxu0 0.0
    %1140 = vmatpush1.msra.mxu0 0.0
    %1141 = vmatprep.subr.mxu0 0.0
    %1142 = vmatpush1.msra.mxu0 0.0
    %1143 = vmatprep.subr.mxu0 0.0
    %1144 = vmatpush1.msra.mxu0 0.0
    %1145 = vmatprep.subr.mxu0 0.0
    %1146 = vmatpush1.msra.mxu0 0.0
    %1147 = vmatprep.subr.mxu0 0.0
    %1148 = vmatpush1.msra.mxu0 0.0
    %1149 = vmatprep.subr.mxu0 0.0
    %1150 = vmatpush1.msra.mxu0 0.0
    %1151 = vmatprep.subr.mxu0 0.0
    %1152 = vmatpush1.msra.mxu0 0.0
    %1153 = vmatprep.subr.mxu0 0.0
    %1154 = vmatpush1.msra.mxu0 0.0
    %1155 = vmatprep.subr.mxu0 0.0
    %1156 = vmatpush1.msra.mxu0 0.0
    %1157 = vmatprep.subr.mxu0 0.0
    %1158 = vmatpush1.msra.mxu0 0.0
    %1159 = vmatprep.subr.mxu0 0.0
    %1160 = vmatpush1.msra.mxu0 0.0
    %1161 = vmatprep.subr.mxu0 0.0
    %1162 = vmatpush1.msra.mxu0 0.0
    %1163 = vmatprep.subr.mxu0 0.0
    %1164 = vmatpush1.msra.mxu0 %v1059
    %1165 = vmatprep.subr.mxu0 0.0
    %1166 = vmatpush1.msra.mxu0 %v1058
    %1167 = vmatprep.subr.mxu0 0.0
    %1168 = vmatpush2.msra.mxu0 0.0
    %1169 = vmatprep.subr.mxu0 0.0
    %1170 = vmatpush2.msra.mxu0 0.0
    %1171 = vmatprep.subr.mxu0 0.0
    %1172 = vmatpush2.msra.mxu0 0.0
    %1173 = vmatprep.subr.mxu0 0.0
    %1174 = vmatpush2.msra.mxu0 0.0
    %1175 = vmatprep.subr.mxu0 0.0
    %1176 = vmatpush2.msra.mxu0 0.0
    %1177 = vmatprep.subr.mxu0 0.0
    %1178 = vmatpush2.msra.mxu0 0.0
    %1179 = vmatprep.subr.mxu0 0.0
    %1180 = vmatpush2.msra.mxu0 0.0
    %1181 = vmatprep.subr.mxu0 0.0
    %1182 = vmatpush2.msra.mxu0 0.0
    %1183 = vmatprep.subr.mxu0 0.0
    %1184 = vmatpush2.msra.mxu0 0.0
    %1185 = vmatprep.subr.mxu0 0.0
    %1186 = vmatpush2.msra.mxu0 0.0
    %1187 = vmatprep.subr.mxu0 0.0
    %1188 = vmatpush2.msra.mxu0 0.0
    %1189 = vmatprep.subr.mxu0 0.0
    %1190 = vmatpush2.msra.mxu0 0.0
    %1191 = vmatprep.subr.mxu0 0.0
    %1192 = vmatpush2.msra.mxu0 0.0
    %1193 = vmatprep.subr.mxu0 0.0
    %1194 = vmatpush2.msra.mxu0 0.0
    %1195 = vmatprep.subr.mxu0 0.0
    %1196 = vmatpush2.msra.mxu0 0.0
    %1197 = vmatprep.subr.mxu0 0.0
    %1198 = vmatpush2.msra.mxu0 0.0
    %1199 = vmatprep.mubr.f32.mxu0 0.0
    %1200 = vmatmul.mubr.f32.gmra.mxu0 %v280
    %v1201 = vpop.f32.mrf.mxu0
    %v1202 = vadd.f32 0.0, %v1201
    %v1203 = vpop.f32.mrf.mxu0
    %1204 = vmatprep.mubr.f32.mxu0 0.0
    %1205 = vmatmul.mubr.f32.gmra.mxu0 %v283
    %v1206 = vpop.f32.mrf.mxu0
    %v1207 = vadd.f32 0.0, %v1206
    %v1208 = vpop.f32.mrf.mxu0
    %1209 = vdwg.mxu0
    %v1210 = vld [vmem:[%s73] sm:$0xff]
    %v1211 = vld [vmem:[%s73 + $0x8] sm:$0xff]
    %v1212 = vld [vmem:[%s73 + $0x10] sm:$0xff]
    %v1213 = vld [vmem:[%s73 + $0x18] sm:$0xff]
    %v1214 = vld [vmem:[%s73 + $0x20] sm:$0xff]
    %v1215 = vld [vmem:[%s73 + $0x28] sm:$0xff]
    %s1216 = scalar_lea.vmem %s73, 48
    %v1217 = vld [vmem:[%s1216] sm:$0xff]
    %v1218 = vld [vmem:[%s1216 + $0x8] sm:$0xff]
    %v1219 = vld [vmem:[%s1216 + $0x10] sm:$0xff]
    %v1220 = vld [vmem:[%s1216 + $0x18] sm:$0xff]
    %v1221 = vld [vmem:[%s1216 + $0x20] sm:$0xff]
    %v1222 = vld [vmem:[%s1216 + $0x28] sm:$0xff]
    %v1224 = vsel %vm792, %v1058, 0
    %v1227 = vsel %vm792, %v1059, 0
    %1229 = vmatprep.subr.mxu0 0.0
    %1230 = vmatpush1.msra.mxu0 0.0
    %1231 = vmatprep.subr.mxu0 0.0
    %1232 = vmatpush1.msra.mxu0 0.0
    %1233 = vmatprep.subr.mxu0 0.0
    %1234 = vmatpush1.msra.mxu0 0.0
    %1235 = vmatprep.subr.mxu0 0.0
    %1236 = vmatpush1.msra.mxu0 0.0
    %1237 = vmatprep.subr.mxu0 0.0
    %1238 = vmatpush1.msra.mxu0 0.0
    %1239 = vmatprep.subr.mxu0 0.0
    %1240 = vmatpush1.msra.mxu0 0.0
    %1241 = vmatprep.subr.mxu0 0.0
    %1242 = vmatpush1.msra.mxu0 0.0
    %1243 = vmatprep.subr.mxu0 0.0
    %1244 = vmatpush1.msra.mxu0 0.0
    %1245 = vmatprep.subr.mxu0 0.0
    %1246 = vmatpush1.msra.mxu0 0.0
    %1247 = vmatprep.subr.mxu0 0.0
    %1248 = vmatpush1.msra.mxu0 0.0
    %1249 = vmatprep.subr.mxu0 0.0
    %1250 = vmatpush1.msra.mxu0 %v1222
    %1251 = vmatprep.subr.mxu0 0.0
    %1252 = vmatpush1.msra.mxu0 %v1221
    %1253 = vmatprep.subr.mxu0 0.0
    %1254 = vmatpush1.msra.mxu0 %v1220
    %1255 = vmatprep.subr.mxu0 0.0
    %1256 = vmatpush1.msra.mxu0 %v1219
    %1257 = vmatprep.subr.mxu0 0.0
    %1258 = vmatpush1.msra.mxu0 %v1218
    %1259 = vmatprep.subr.mxu0 0.0
    %1260 = vmatpush1.msra.mxu0 %v1217
    %1261 = vmatprep.subr.mxu0 0.0
    %1262 = vmatpush2.msra.mxu0 0.0
    %1263 = vmatprep.subr.mxu0 0.0
    %1264 = vmatpush2.msra.mxu0 0.0
    %1265 = vmatprep.subr.mxu0 0.0
    %1266 = vmatpush2.msra.mxu0 0.0
    %1267 = vmatprep.subr.mxu0 0.0
    %1268 = vmatpush2.msra.mxu0 0.0
    %1269 = vmatprep.subr.mxu0 0.0
    %1270 = vmatpush2.msra.mxu0 0.0
    %1271 = vmatprep.subr.mxu0 0.0
    %1272 = vmatpush2.msra.mxu0 0.0
    %1273 = vmatprep.subr.mxu0 0.0
    %1274 = vmatpush2.msra.mxu0 0.0
    %1275 = vmatprep.subr.mxu0 0.0
    %1276 = vmatpush2.msra.mxu0 0.0
    %1277 = vmatprep.subr.mxu0 0.0
    %1278 = vmatpush2.msra.mxu0 0.0
    %1279 = vmatprep.subr.mxu0 0.0
    %1280 = vmatpush2.msra.mxu0 0.0
    %1281 = vmatprep.subr.mxu0 0.0
    %1282 = vmatpush2.msra.mxu0 0.0
    %1283 = vmatprep.subr.mxu0 0.0
    %1284 = vmatpush2.msra.mxu0 0.0
    %1285 = vmatprep.subr.mxu0 0.0
    %1286 = vmatpush2.msra.mxu0 0.0
    %1287 = vmatprep.subr.mxu0 0.0
    %1288 = vmatpush2.msra.mxu0 0.0
    %1289 = vmatprep.subr.mxu0 0.0
    %1290 = vmatpush2.msra.mxu0 0.0
    %1291 = vmatprep.subr.mxu0 0.0
    %1292 = vmatpush2.msra.mxu0 0.0
    %1293 = vmatprep.mubr.f32.mxu0 0.0
    %1294 = vmatmul.mubr.f32.gmra.mxu0 %v1224
    %v1295 = vpop.f32.mrf.mxu0
    %v1296 = vadd.f32 0.0, %v1295
    %v1297 = vpop.f32.mrf.mxu0
    %1298 = vmatprep.mubr.f32.mxu0 0.0
    %1299 = vmatmul.mubr.f32.gmra.mxu0 %v1227
    %v1300 = vpop.f32.mrf.mxu0
    %v1301 = vadd.f32 0.0, %v1300
    %v1302 = vpop.f32.mrf.mxu0
    %1303 = vdwg.mxu0
    %v1305 = vsel %vm792, %v1127, 0
    %v1308 = vsel %vm792, %v1132, 0
    %1310 = vmatprep.subr.mxu0 0.0
    %1311 = vmatpush1.msra.mxu0 0.0
    %1312 = vmatprep.subr.mxu0 0.0
    %1313 = vmatpush1.msra.mxu0 0.0
    %1314 = vmatprep.subr.mxu0 0.0
    %1315 = vmatpush1.msra.mxu0 0.0
    %1316 = vmatprep.subr.mxu0 0.0
    %1317 = vmatpush1.msra.mxu0 0.0
    %1318 = vmatprep.subr.mxu0 0.0
    %1319 = vmatpush1.msra.mxu0 0.0
    %1320 = vmatprep.subr.mxu0 0.0
    %1321 = vmatpush1.msra.mxu0 0.0
    %1322 = vmatprep.subr.mxu0 0.0
    %1323 = vmatpush1.msra.mxu0 0.0
    %1324 = vmatprep.subr.mxu0 0.0
    %1325 = vmatpush1.msra.mxu0 0.0
    %1326 = vmatprep.subr.mxu0 0.0
    %1327 = vmatpush1.msra.mxu0 0.0
    %1328 = vmatprep.subr.mxu0 0.0
    %1329 = vmatpush1.msra.mxu0 0.0
    %1330 = vmatprep.subr.mxu0 0.0
    %1331 = vmatpush1.msra.mxu0 %v1215
    %1332 = vmatprep.subr.mxu0 0.0
    %1333 = vmatpush1.msra.mxu0 %v1214
    %1334 = vmatprep.subr.mxu0 0.0
    %1335 = vmatpush1.msra.mxu0 %v1213
    %1336 = vmatprep.subr.mxu0 0.0
    %1337 = vmatpush1.msra.mxu0 %v1212
    %1338 = vmatprep.subr.mxu0 0.0
    %1339 = vmatpush1.msra.mxu0 %v1211
    %1340 = vmatprep.subr.mxu0 0.0
    %1341 = vmatpush1.msra.mxu0 %v1210
    %1342 = vmatprep.subr.mxu0 0.0
    %1343 = vmatpush2.msra.mxu0 0.0
    %1344 = vmatprep.subr.mxu0 0.0
    %1345 = vmatpush2.msra.mxu0 0.0
    %1346 = vmatprep.subr.mxu0 0.0
    %1347 = vmatpush2.msra.mxu0 0.0
    %1348 = vmatprep.subr.mxu0 0.0
    %1349 = vmatpush2.msra.mxu0 0.0
    %1350 = vmatprep.subr.mxu0 0.0
    %1351 = vmatpush2.msra.mxu0 0.0
    %1352 = vmatprep.subr.mxu0 0.0
    %1353 = vmatpush2.msra.mxu0 0.0
    %1354 = vmatprep.subr.mxu0 0.0
    %1355 = vmatpush2.msra.mxu0 0.0
    %1356 = vmatprep.subr.mxu0 0.0
    %1357 = vmatpush2.msra.mxu0 0.0
    %1358 = vmatprep.subr.mxu0 0.0
    %1359 = vmatpush2.msra.mxu0 0.0
    %1360 = vmatprep.subr.mxu0 0.0
    %1361 = vmatpush2.msra.mxu0 0.0
    %1362 = vmatprep.subr.mxu0 0.0
    %1363 = vmatpush2.msra.mxu0 0.0
    %1364 = vmatprep.subr.mxu0 0.0
    %1365 = vmatpush2.msra.mxu0 0.0
    %1366 = vmatprep.subr.mxu0 0.0
    %1367 = vmatpush2.msra.mxu0 0.0
    %1368 = vmatprep.subr.mxu0 0.0
    %1369 = vmatpush2.msra.mxu0 0.0
    %1370 = vmatprep.subr.mxu0 0.0
    %1371 = vmatpush2.msra.mxu0 0.0
    %1372 = vmatprep.subr.mxu0 0.0
    %1373 = vmatpush2.msra.mxu0 0.0
    %1374 = vmatprep.mubr.f32.mxu0 0.0
    %1375 = vmatmul.mubr.f32.gmra.mxu0 %v1305
    %v1376 = vpop.f32.mrf.mxu0
    %v1377 = vadd.f32 %v1296, %v1376
    %v1378 = vpop.f32.mrf.mxu0
    %1379 = vmatprep.mubr.f32.mxu0 0.0
    %1380 = vmatmul.mubr.f32.gmra.mxu0 %v1308
    %v1381 = vpop.f32.mrf.mxu0
    %v1382 = vadd.f32 %v1301, %v1381
    %v1383 = vpop.f32.mrf.mxu0
    %1384 = vdwg.mxu0
    %s1385 = scalar_lea.vmem %s73, 96
    %v1386 = vld [vmem:[%s1385] sm:$0xff]
    %v1387 = vld [vmem:[%s1385 + $0x8] sm:$0xff]
    %v1388 = vld [vmem:[%s1385 + $0x10] sm:$0xff]
    %v1389 = vld [vmem:[%s1385 + $0x18] sm:$0xff]
    %v1390 = vld [vmem:[%s1385 + $0x20] sm:$0xff]
    %v1391 = vld [vmem:[%s1385 + $0x28] sm:$0xff]
    %v1393 = vsel %vm792, %v1202, 0
    %v1396 = vsel %vm792, %v1207, 0
    %1398 = vmatprep.subr.mxu0 0.0
    %1399 = vmatpush1.msra.mxu0 0.0
    %1400 = vmatprep.subr.mxu0 0.0
    %1401 = vmatpush1.msra.mxu0 0.0
    %1402 = vmatprep.subr.mxu0 0.0
    %1403 = vmatpush1.msra.mxu0 0.0
    %1404 = vmatprep.subr.mxu0 0.0
    %1405 = vmatpush1.msra.mxu0 0.0
    %1406 = vmatprep.subr.mxu0 0.0
    %1407 = vmatpush1.msra.mxu0 0.0
    %1408 = vmatprep.subr.mxu0 0.0
    %1409 = vmatpush1.msra.mxu0 0.0
    %1410 = vmatprep.subr.mxu0 0.0
    %1411 = vmatpush1.msra.mxu0 0.0
    %1412 = vmatprep.subr.mxu0 0.0
    %1413 = vmatpush1.msra.mxu0 0.0
    %1414 = vmatprep.subr.mxu0 0.0
    %1415 = vmatpush1.msra.mxu0 0.0
    %1416 = vmatprep.subr.mxu0 0.0
    %1417 = vmatpush1.msra.mxu0 0.0
    %1418 = vmatprep.subr.mxu0 0.0
    %1419 = vmatpush1.msra.mxu0 %v1391
    %1420 = vmatprep.subr.mxu0 0.0
    %1421 = vmatpush1.msra.mxu0 %v1390
    %1422 = vmatprep.subr.mxu0 0.0
    %1423 = vmatpush1.msra.mxu0 %v1389
    %1424 = vmatprep.subr.mxu0 0.0
    %1425 = vmatpush1.msra.mxu0 %v1388
    %1426 = vmatprep.subr.mxu0 0.0
    %1427 = vmatpush1.msra.mxu0 %v1387
    %1428 = vmatprep.subr.mxu0 0.0
    %1429 = vmatpush1.msra.mxu0 %v1386
    %1430 = vmatprep.subr.mxu0 0.0
    %1431 = vmatpush2.msra.mxu0 0.0
    %1432 = vmatprep.subr.mxu0 0.0
    %1433 = vmatpush2.msra.mxu0 0.0
    %1434 = vmatprep.subr.mxu0 0.0
    %1435 = vmatpush2.msra.mxu0 0.0
    %1436 = vmatprep.subr.mxu0 0.0
    %1437 = vmatpush2.msra.mxu0 0.0
    %1438 = vmatprep.subr.mxu0 0.0
    %1439 = vmatpush2.msra.mxu0 0.0
    %1440 = vmatprep.subr.mxu0 0.0
    %1441 = vmatpush2.msra.mxu0 0.0
    %1442 = vmatprep.subr.mxu0 0.0
    %1443 = vmatpush2.msra.mxu0 0.0
    %1444 = vmatprep.subr.mxu0 0.0
    %1445 = vmatpush2.msra.mxu0 0.0
    %1446 = vmatprep.subr.mxu0 0.0
    %1447 = vmatpush2.msra.mxu0 0.0
    %1448 = vmatprep.subr.mxu0 0.0
    %1449 = vmatpush2.msra.mxu0 0.0
    %1450 = vmatprep.subr.mxu0 0.0
    %1451 = vmatpush2.msra.mxu0 0.0
    %1452 = vmatprep.subr.mxu0 0.0
    %1453 = vmatpush2.msra.mxu0 0.0
    %1454 = vmatprep.subr.mxu0 0.0
    %1455 = vmatpush2.msra.mxu0 0.0
    %1456 = vmatprep.subr.mxu0 0.0
    %1457 = vmatpush2.msra.mxu0 0.0
    %1458 = vmatprep.subr.mxu0 0.0
    %1459 = vmatpush2.msra.mxu0 0.0
    %1460 = vmatprep.subr.mxu0 0.0
    %1461 = vmatpush2.msra.mxu0 0.0
    %1462 = vmatprep.mubr.f32.mxu0 0.0
    %1463 = vmatmul.mubr.f32.gmra.mxu0 %v1393
    %v1464 = vpop.f32.mrf.mxu0
    %v1465 = vadd.f32 0.0, %v1464
    %v1466 = vpop.f32.mrf.mxu0
    %1467 = vmatprep.mubr.f32.mxu0 0.0
    %1468 = vmatmul.mubr.f32.gmra.mxu0 %v1396
    %v1469 = vpop.f32.mrf.mxu0
    %v1470 = vadd.f32 0.0, %v1469
    %v1471 = vpop.f32.mrf.mxu0
    %1472 = vdwg.mxu0
    %v1473 = vadd.f32 %v1377, %v1465
    %v1474 = vadd.f32 %v1382, %v1470
    %v1475 = vld [vmem:[%s69] sm:$0x1]
    %v1477 = vlaneseq
    %v1478 = vshrl.u32 %v1477, 7
    %v1479 = vsub.s32 0, %v1478
    %v1480 = vrot.slane %v1475, %v1479
    %v1482 = vadd.f32 %v1473, %v1480
    %v1483 = vadd.f32 %v1474, %v1480
    %v1484 = vadd.f32 %v627, %v1482
    %v1485 = vadd.f32 %v628, %v1483
    %v1486 = vld [vmem:[%s85] sm:$0xff]
    %v1487 = vld [vmem:[%s85 + $0x8] sm:$0xff]
    %v1488 = vld [vmem:[%s85 + $0x10] sm:$0xff]
    %v1489 = vld [vmem:[%s85 + $0x18] sm:$0xff]
    %v1491 = vsel %vm195, %v1486, 0
    %v1494 = vsel %vm195, %v1487, 0
    %v1497 = vsel %vm195, %v1488, 0
    %v1500 = vsel %vm195, %v1489, 0
    %1502 = vmatprep.subr.mxu0 0.0
    %1503 = vmatpush1.msra.mxu0 0.0
    %1504 = vmatprep.subr.mxu0 0.0
    %1505 = vmatpush1.msra.mxu0 0.0
    %1506 = vmatprep.subr.mxu0 0.0
    %1507 = vmatpush1.msra.mxu0 0.0
    %1508 = vmatprep.subr.mxu0 0.0
    %1509 = vmatpush1.msra.mxu0 0.0
    %1510 = vmatprep.subr.mxu0 0.0
    %1511 = vmatpush1.msra.mxu0 0.0
    %1512 = vmatprep.subr.mxu0 0.0
    %1513 = vmatpush1.msra.mxu0 0.0
    %1514 = vmatprep.subr.mxu0 0.0
    %1515 = vmatpush1.msra.mxu0 0.0
    %1516 = vmatprep.subr.mxu0 0.0
    %1517 = vmatpush1.msra.mxu0 0.0
    %1518 = vmatprep.subr.mxu0 0.0
    %1519 = vmatpush1.msra.mxu0 0.0
    %1520 = vmatprep.subr.mxu0 0.0
    %1521 = vmatpush1.msra.mxu0 0.0
    %1522 = vmatprep.subr.mxu0 0.0
    %1523 = vmatpush1.msra.mxu0 0.0
    %1524 = vmatprep.subr.mxu0 0.0
    %1525 = vmatpush1.msra.mxu0 0.0
    %1526 = vmatprep.subr.mxu0 0.0
    %1527 = vmatpush1.msra.mxu0 0.0
    %1528 = vmatprep.subr.mxu0 0.0
    %1529 = vmatpush1.msra.mxu0 0.0
    %1530 = vmatprep.subr.mxu0 0.0
    %1531 = vmatpush1.msra.mxu0 %v1485
    %1532 = vmatprep.subr.mxu0 0.0
    %1533 = vmatpush1.msra.mxu0 %v1484
    %1534 = vmatprep.subr.mxu0 0.0
    %1535 = vmatpush2.msra.mxu0 0.0
    %1536 = vmatprep.subr.mxu0 0.0
    %1537 = vmatpush2.msra.mxu0 0.0
    %1538 = vmatprep.subr.mxu0 0.0
    %1539 = vmatpush2.msra.mxu0 0.0
    %1540 = vmatprep.subr.mxu0 0.0
    %1541 = vmatpush2.msra.mxu0 0.0
    %1542 = vmatprep.subr.mxu0 0.0
    %1543 = vmatpush2.msra.mxu0 0.0
    %1544 = vmatprep.subr.mxu0 0.0
    %1545 = vmatpush2.msra.mxu0 0.0
    %1546 = vmatprep.subr.mxu0 0.0
    %1547 = vmatpush2.msra.mxu0 0.0
    %1548 = vmatprep.subr.mxu0 0.0
    %1549 = vmatpush2.msra.mxu0 0.0
    %1550 = vmatprep.subr.mxu0 0.0
    %1551 = vmatpush2.msra.mxu0 0.0
    %1552 = vmatprep.subr.mxu0 0.0
    %1553 = vmatpush2.msra.mxu0 0.0
    %1554 = vmatprep.subr.mxu0 0.0
    %1555 = vmatpush2.msra.mxu0 0.0
    %1556 = vmatprep.subr.mxu0 0.0
    %1557 = vmatpush2.msra.mxu0 0.0
    %1558 = vmatprep.subr.mxu0 0.0
    %1559 = vmatpush2.msra.mxu0 0.0
    %1560 = vmatprep.subr.mxu0 0.0
    %1561 = vmatpush2.msra.mxu0 0.0
    %1562 = vmatprep.subr.mxu0 0.0
    %1563 = vmatpush2.msra.mxu0 0.0
    %1564 = vmatprep.subr.mxu0 0.0
    %1565 = vmatpush2.msra.mxu0 0.0
    %1566 = vmatprep.mubr.f32.mxu0 0.0
    %1567 = vmatmul.mubr.f32.gmra.mxu0 %v1491
    %v1568 = vpop.f32.mrf.mxu0
    %v1569 = vadd.f32 0.0, %v1568
    %v1570 = vpop.f32.mrf.mxu0
    %1571 = vmatprep.mubr.f32.mxu0 0.0
    %1572 = vmatmul.mubr.f32.gmra.mxu0 %v1494
    %v1573 = vpop.f32.mrf.mxu0
    %v1574 = vadd.f32 0.0, %v1573
    %v1575 = vpop.f32.mrf.mxu0
    %1576 = vmatprep.mubr.f32.mxu0 0.0
    %1577 = vmatmul.mubr.f32.gmra.mxu0 %v1497
    %v1578 = vpop.f32.mrf.mxu0
    %v1579 = vadd.f32 0.0, %v1578
    %v1580 = vpop.f32.mrf.mxu0
    %1581 = vmatprep.mubr.f32.mxu0 0.0
    %1582 = vmatmul.mubr.f32.gmra.mxu0 %v1500
    %v1583 = vpop.f32.mrf.mxu0
    %v1584 = vadd.f32 0.0, %v1583
    %v1585 = vpop.f32.mrf.mxu0
    %1586 = vdwg.mxu0
    %v1587 = vld [vmem:[%s83] sm:$0xff]
    %v1588 = vld [vmem:[%s83 + $0x8] sm:$0xff]
    %v1589 = vld [vmem:[%s83 + $0x10] sm:$0xff]
    %v1590 = vld [vmem:[%s83 + $0x18] sm:$0xff]
    %v1592 = vsel %vm369, %v1587, 0
    %v1595 = vsel %vm369, %v1588, 0
    %v1598 = vsel %vm369, %v1589, 0
    %v1601 = vsel %vm369, %v1590, 0
    %1603 = vmatprep.subr.mxu0 0.0
    %1604 = vmatpush1.msra.mxu0 0.0
    %1605 = vmatprep.subr.mxu0 0.0
    %1606 = vmatpush1.msra.mxu0 0.0
    %1607 = vmatprep.subr.mxu0 0.0
    %1608 = vmatpush1.msra.mxu0 0.0
    %1609 = vmatprep.subr.mxu0 0.0
    %1610 = vmatpush1.msra.mxu0 0.0
    %1611 = vmatprep.subr.mxu0 0.0
    %1612 = vmatpush1.msra.mxu0 0.0
    %1613 = vmatprep.subr.mxu0 0.0
    %1614 = vmatpush1.msra.mxu0 0.0
    %1615 = vmatprep.subr.mxu0 0.0
    %1616 = vmatpush1.msra.mxu0 0.0
    %1617 = vmatprep.subr.mxu0 0.0
    %1618 = vmatpush1.msra.mxu0 0.0
    %1619 = vmatprep.subr.mxu0 0.0
    %1620 = vmatpush1.msra.mxu0 0.0
    %1621 = vmatprep.subr.mxu0 0.0
    %1622 = vmatpush1.msra.mxu0 0.0
    %1623 = vmatprep.subr.mxu0 0.0
    %1624 = vmatpush1.msra.mxu0 0.0
    %1625 = vmatprep.subr.mxu0 0.0
    %1626 = vmatpush1.msra.mxu0 0.0
    %1627 = vmatprep.subr.mxu0 0.0
    %1628 = vmatpush1.msra.mxu0 %v1584
    %1629 = vmatprep.subr.mxu0 0.0
    %1630 = vmatpush1.msra.mxu0 %v1579
    %1631 = vmatprep.subr.mxu0 0.0
    %1632 = vmatpush1.msra.mxu0 %v1574
    %1633 = vmatprep.subr.mxu0 0.0
    %1634 = vmatpush1.msra.mxu0 %v1569
    %1635 = vmatprep.subr.mxu0 0.0
    %1636 = vmatpush2.msra.mxu0 0.0
    %1637 = vmatprep.subr.mxu0 0.0
    %1638 = vmatpush2.msra.mxu0 0.0
    %1639 = vmatprep.subr.mxu0 0.0
    %1640 = vmatpush2.msra.mxu0 0.0
    %1641 = vmatprep.subr.mxu0 0.0
    %1642 = vmatpush2.msra.mxu0 0.0
    %1643 = vmatprep.subr.mxu0 0.0
    %1644 = vmatpush2.msra.mxu0 0.0
    %1645 = vmatprep.subr.mxu0 0.0
    %1646 = vmatpush2.msra.mxu0 0.0
    %1647 = vmatprep.subr.mxu0 0.0
    %1648 = vmatpush2.msra.mxu0 0.0
    %1649 = vmatprep.subr.mxu0 0.0
    %1650 = vmatpush2.msra.mxu0 0.0
    %1651 = vmatprep.subr.mxu0 0.0
    %1652 = vmatpush2.msra.mxu0 0.0
    %1653 = vmatprep.subr.mxu0 0.0
    %1654 = vmatpush2.msra.mxu0 0.0
    %1655 = vmatprep.subr.mxu0 0.0
    %1656 = vmatpush2.msra.mxu0 0.0
    %1657 = vmatprep.subr.mxu0 0.0
    %1658 = vmatpush2.msra.mxu0 0.0
    %1659 = vmatprep.subr.mxu0 0.0
    %1660 = vmatpush2.msra.mxu0 0.0
    %1661 = vmatprep.subr.mxu0 0.0
    %1662 = vmatpush2.msra.mxu0 0.0
    %1663 = vmatprep.subr.mxu0 0.0
    %1664 = vmatpush2.msra.mxu0 0.0
    %1665 = vmatprep.subr.mxu0 0.0
    %1666 = vmatpush2.msra.mxu0 0.0
    %1667 = vmatprep.mubr.f32.mxu0 0.0
    %1668 = vmatmul.mubr.f32.gmra.mxu0 %v1592
    %v1669 = vpop.f32.mrf.mxu0
    %v1670 = vadd.f32 0.0, %v1669
    %v1671 = vpop.f32.mrf.mxu0
    %1672 = vmatprep.mubr.f32.mxu0 0.0
    %1673 = vmatmul.mubr.f32.gmra.mxu0 %v1595
    %v1674 = vpop.f32.mrf.mxu0
    %v1675 = vadd.f32 0.0, %v1674
    %v1676 = vpop.f32.mrf.mxu0
    %1677 = vmatprep.mubr.f32.mxu0 0.0
    %1678 = vmatmul.mubr.f32.gmra.mxu0 %v1598
    %v1679 = vpop.f32.mrf.mxu0
    %v1680 = vadd.f32 0.0, %v1679
    %v1681 = vpop.f32.mrf.mxu0
    %1682 = vmatprep.mubr.f32.mxu0 0.0
    %1683 = vmatmul.mubr.f32.gmra.mxu0 %v1601
    %v1684 = vpop.f32.mrf.mxu0
    %v1685 = vadd.f32 0.0, %v1684
    %v1686 = vpop.f32.mrf.mxu0
    %1687 = vdwg.mxu0
    %v1688 = vld [vmem:[%s81] sm:$0xff]
    %v1689 = vld [vmem:[%s81 + $0x8] sm:$0xff]
    %v1690 = vld [vmem:[%s81 + $0x10] sm:$0xff]
    %v1691 = vld [vmem:[%s81 + $0x18] sm:$0xff]
    %v1693 = vsel %vm369, %v1688, 0
    %v1696 = vsel %vm369, %v1689, 0
    %v1699 = vsel %vm369, %v1690, 0
    %v1702 = vsel %vm369, %v1691, 0
    %1704 = vmatprep.subr.mxu0 0.0
    %1705 = vmatpush1.msra.mxu0 0.0
    %1706 = vmatprep.subr.mxu0 0.0
    %1707 = vmatpush1.msra.mxu0 0.0
    %1708 = vmatprep.subr.mxu0 0.0
    %1709 = vmatpush1.msra.mxu0 0.0
    %1710 = vmatprep.subr.mxu0 0.0
    %1711 = vmatpush1.msra.mxu0 0.0
    %1712 = vmatprep.subr.mxu0 0.0
    %1713 = vmatpush1.msra.mxu0 0.0
    %1714 = vmatprep.subr.mxu0 0.0
    %1715 = vmatpush1.msra.mxu0 0.0
    %1716 = vmatprep.subr.mxu0 0.0
    %1717 = vmatpush1.msra.mxu0 0.0
    %1718 = vmatprep.subr.mxu0 0.0
    %1719 = vmatpush1.msra.mxu0 0.0
    %1720 = vmatprep.subr.mxu0 0.0
    %1721 = vmatpush1.msra.mxu0 0.0
    %1722 = vmatprep.subr.mxu0 0.0
    %1723 = vmatpush1.msra.mxu0 0.0
    %1724 = vmatprep.subr.mxu0 0.0
    %1725 = vmatpush1.msra.mxu0 0.0
    %1726 = vmatprep.subr.mxu0 0.0
    %1727 = vmatpush1.msra.mxu0 0.0
    %1728 = vmatprep.subr.mxu0 0.0
    %1729 = vmatpush1.msra.mxu0 %v1584
    %1730 = vmatprep.subr.mxu0 0.0
    %1731 = vmatpush1.msra.mxu0 %v1579
    %1732 = vmatprep.subr.mxu0 0.0
    %1733 = vmatpush1.msra.mxu0 %v1574
    %1734 = vmatprep.subr.mxu0 0.0
    %1735 = vmatpush1.msra.mxu0 %v1569
    %1736 = vmatprep.subr.mxu0 0.0
    %1737 = vmatpush2.msra.mxu0 0.0
    %1738 = vmatprep.subr.mxu0 0.0
    %1739 = vmatpush2.msra.mxu0 0.0
    %1740 = vmatprep.subr.mxu0 0.0
    %1741 = vmatpush2.msra.mxu0 0.0
    %1742 = vmatprep.subr.mxu0 0.0
    %1743 = vmatpush2.msra.mxu0 0.0
    %1744 = vmatprep.subr.mxu0 0.0
    %1745 = vmatpush2.msra.mxu0 0.0
    %1746 = vmatprep.subr.mxu0 0.0
    %1747 = vmatpush2.msra.mxu0 0.0
    %1748 = vmatprep.subr.mxu0 0.0
    %1749 = vmatpush2.msra.mxu0 0.0
    %1750 = vmatprep.subr.mxu0 0.0
    %1751 = vmatpush2.msra.mxu0 0.0
    %1752 = vmatprep.subr.mxu0 0.0
    %1753 = vmatpush2.msra.mxu0 0.0
    %1754 = vmatprep.subr.mxu0 0.0
    %1755 = vmatpush2.msra.mxu0 0.0
    %1756 = vmatprep.subr.mxu0 0.0
    %1757 = vmatpush2.msra.mxu0 0.0
    %1758 = vmatprep.subr.mxu0 0.0
    %1759 = vmatpush2.msra.mxu0 0.0
    %1760 = vmatprep.subr.mxu0 0.0
    %1761 = vmatpush2.msra.mxu0 0.0
    %1762 = vmatprep.subr.mxu0 0.0
    %1763 = vmatpush2.msra.mxu0 0.0
    %1764 = vmatprep.subr.mxu0 0.0
    %1765 = vmatpush2.msra.mxu0 0.0
    %1766 = vmatprep.subr.mxu0 0.0
    %1767 = vmatpush2.msra.mxu0 0.0
    %1768 = vmatprep.mubr.f32.mxu0 0.0
    %1769 = vmatmul.mubr.f32.gmra.mxu0 %v1693
    %v1770 = vpop.f32.mrf.mxu0
    %v1771 = vadd.f32 0.0, %v1770
    %v1772 = vpop.f32.mrf.mxu0
    %1773 = vmatprep.mubr.f32.mxu0 0.0
    %1774 = vmatmul.mubr.f32.gmra.mxu0 %v1696
    %v1775 = vpop.f32.mrf.mxu0
    %v1776 = vadd.f32 0.0, %v1775
    %v1777 = vpop.f32.mrf.mxu0
    %1778 = vmatprep.mubr.f32.mxu0 0.0
    %1779 = vmatmul.mubr.f32.gmra.mxu0 %v1699
    %v1780 = vpop.f32.mrf.mxu0
    %v1781 = vadd.f32 0.0, %v1780
    %v1782 = vpop.f32.mrf.mxu0
    %1783 = vmatprep.mubr.f32.mxu0 0.0
    %1784 = vmatmul.mubr.f32.gmra.mxu0 %v1702
    %v1785 = vpop.f32.mrf.mxu0
    %v1786 = vadd.f32 0.0, %v1785
    %v1787 = vpop.f32.mrf.mxu0
    %1788 = vdwg.mxu0
    %v1789 = vld [vmem:[%s89] sm:$0xff]
    %v1790 = vld [vmem:[%s89 + $0x8] sm:$0xff]
    %v1791 = vld [vmem:[%s89 + $0x10] sm:$0xff]
    %v1792 = vld [vmem:[%s89 + $0x18] sm:$0xff]
    %v1793 = vld [vmem:[%s89 + $0x20] sm:$0xff]
    %v1794 = vld [vmem:[%s89 + $0x28] sm:$0xff]
    %s1795 = scalar_lea.vmem %s89, 48
    %v1796 = vld [vmem:[%s1795] sm:$0xff]
    %v1797 = vld [vmem:[%s1795 + $0x8] sm:$0xff]
    %v1798 = vld [vmem:[%s1795 + $0x10] sm:$0xff]
    %v1799 = vld [vmem:[%s1795 + $0x18] sm:$0xff]
    %v1800 = vld [vmem:[%s1795 + $0x20] sm:$0xff]
    %v1801 = vld [vmem:[%s1795 + $0x28] sm:$0xff]
    %v1803 = vsel %vm792, %v1569, 0
    %v1806 = vsel %vm792, %v1574, 0
    %v1809 = vsel %vm792, %v1579, 0
    %v1812 = vsel %vm792, %v1584, 0
    %1814 = vmatprep.subr.mxu0 0.0
    %1815 = vmatpush1.msra.mxu0 0.0
    %1816 = vmatprep.subr.mxu0 0.0
    %1817 = vmatpush1.msra.mxu0 0.0
    %1818 = vmatprep.subr.mxu0 0.0
    %1819 = vmatpush1.msra.mxu0 0.0
    %1820 = vmatprep.subr.mxu0 0.0
    %1821 = vmatpush1.msra.mxu0 0.0
    %1822 = vmatprep.subr.mxu0 0.0
    %1823 = vmatpush1.msra.mxu0 0.0
    %1824 = vmatprep.subr.mxu0 0.0
    %1825 = vmatpush1.msra.mxu0 0.0
    %1826 = vmatprep.subr.mxu0 0.0
    %1827 = vmatpush1.msra.mxu0 0.0
    %1828 = vmatprep.subr.mxu0 0.0
    %1829 = vmatpush1.msra.mxu0 0.0
    %1830 = vmatprep.subr.mxu0 0.0
    %1831 = vmatpush1.msra.mxu0 0.0
    %1832 = vmatprep.subr.mxu0 0.0
    %1833 = vmatpush1.msra.mxu0 0.0
    %1834 = vmatprep.subr.mxu0 0.0
    %1835 = vmatpush1.msra.mxu0 %v1801
    %1836 = vmatprep.subr.mxu0 0.0
    %1837 = vmatpush1.msra.mxu0 %v1800
    %1838 = vmatprep.subr.mxu0 0.0
    %1839 = vmatpush1.msra.mxu0 %v1799
    %1840 = vmatprep.subr.mxu0 0.0
    %1841 = vmatpush1.msra.mxu0 %v1798
    %1842 = vmatprep.subr.mxu0 0.0
    %1843 = vmatpush1.msra.mxu0 %v1797
    %1844 = vmatprep.subr.mxu0 0.0
    %1845 = vmatpush1.msra.mxu0 %v1796
    %1846 = vmatprep.subr.mxu0 0.0
    %1847 = vmatpush2.msra.mxu0 0.0
    %1848 = vmatprep.subr.mxu0 0.0
    %1849 = vmatpush2.msra.mxu0 0.0
    %1850 = vmatprep.subr.mxu0 0.0
    %1851 = vmatpush2.msra.mxu0 0.0
    %1852 = vmatprep.subr.mxu0 0.0
    %1853 = vmatpush2.msra.mxu0 0.0
    %1854 = vmatprep.subr.mxu0 0.0
    %1855 = vmatpush2.msra.mxu0 0.0
    %1856 = vmatprep.subr.mxu0 0.0
    %1857 = vmatpush2.msra.mxu0 0.0
    %1858 = vmatprep.subr.mxu0 0.0
    %1859 = vmatpush2.msra.mxu0 0.0
    %1860 = vmatprep.subr.mxu0 0.0
    %1861 = vmatpush2.msra.mxu0 0.0
    %1862 = vmatprep.subr.mxu0 0.0
    %1863 = vmatpush2.msra.mxu0 0.0
    %1864 = vmatprep.subr.mxu0 0.0
    %1865 = vmatpush2.msra.mxu0 0.0
    %1866 = vmatprep.subr.mxu0 0.0
    %1867 = vmatpush2.msra.mxu0 0.0
    %1868 = vmatprep.subr.mxu0 0.0
    %1869 = vmatpush2.msra.mxu0 0.0
    %1870 = vmatprep.subr.mxu0 0.0
    %1871 = vmatpush2.msra.mxu0 0.0
    %1872 = vmatprep.subr.mxu0 0.0
    %1873 = vmatpush2.msra.mxu0 0.0
    %1874 = vmatprep.subr.mxu0 0.0
    %1875 = vmatpush2.msra.mxu0 0.0
    %1876 = vmatprep.subr.mxu0 0.0
    %1877 = vmatpush2.msra.mxu0 0.0
    %1878 = vmatprep.mubr.f32.mxu0 0.0
    %1879 = vmatmul.mubr.f32.gmra.mxu0 %v1803
    %v1880 = vpop.f32.mrf.mxu0
    %v1881 = vadd.f32 0.0, %v1880
    %v1882 = vpop.f32.mrf.mxu0
    %1883 = vmatprep.mubr.f32.mxu0 0.0
    %1884 = vmatmul.mubr.f32.gmra.mxu0 %v1806
    %v1885 = vpop.f32.mrf.mxu0
    %v1886 = vadd.f32 0.0, %v1885
    %v1887 = vpop.f32.mrf.mxu0
    %1888 = vmatprep.mubr.f32.mxu0 0.0
    %1889 = vmatmul.mubr.f32.gmra.mxu0 %v1809
    %v1890 = vpop.f32.mrf.mxu0
    %v1891 = vadd.f32 0.0, %v1890
    %v1892 = vpop.f32.mrf.mxu0
    %1893 = vmatprep.mubr.f32.mxu0 0.0
    %1894 = vmatmul.mubr.f32.gmra.mxu0 %v1812
    %v1895 = vpop.f32.mrf.mxu0
    %v1896 = vadd.f32 0.0, %v1895
    %v1897 = vpop.f32.mrf.mxu0
    %1898 = vdwg.mxu0
    %v1900 = vsel %vm792, %v1670, 0
    %v1903 = vsel %vm792, %v1675, 0
    %v1906 = vsel %vm792, %v1680, 0
    %v1909 = vsel %vm792, %v1685, 0
    %1911 = vmatprep.subr.mxu0 0.0
    %1912 = vmatpush1.msra.mxu0 0.0
    %1913 = vmatprep.subr.mxu0 0.0
    %1914 = vmatpush1.msra.mxu0 0.0
    %1915 = vmatprep.subr.mxu0 0.0
    %1916 = vmatpush1.msra.mxu0 0.0
    %1917 = vmatprep.subr.mxu0 0.0
    %1918 = vmatpush1.msra.mxu0 0.0
    %1919 = vmatprep.subr.mxu0 0.0
    %1920 = vmatpush1.msra.mxu0 0.0
    %1921 = vmatprep.subr.mxu0 0.0
    %1922 = vmatpush1.msra.mxu0 0.0
    %1923 = vmatprep.subr.mxu0 0.0
    %1924 = vmatpush1.msra.mxu0 0.0
    %1925 = vmatprep.subr.mxu0 0.0
    %1926 = vmatpush1.msra.mxu0 0.0
    %1927 = vmatprep.subr.mxu0 0.0
    %1928 = vmatpush1.msra.mxu0 0.0
    %1929 = vmatprep.subr.mxu0 0.0
    %1930 = vmatpush1.msra.mxu0 0.0
    %1931 = vmatprep.subr.mxu0 0.0
    %1932 = vmatpush1.msra.mxu0 %v1794
    %1933 = vmatprep.subr.mxu0 0.0
    %1934 = vmatpush1.msra.mxu0 %v1793
    %1935 = vmatprep.subr.mxu0 0.0
    %1936 = vmatpush1.msra.mxu0 %v1792
    %1937 = vmatprep.subr.mxu0 0.0
    %1938 = vmatpush1.msra.mxu0 %v1791
    %1939 = vmatprep.subr.mxu0 0.0
    %1940 = vmatpush1.msra.mxu0 %v1790
    %1941 = vmatprep.subr.mxu0 0.0
    %1942 = vmatpush1.msra.mxu0 %v1789
    %1943 = vmatprep.subr.mxu0 0.0
    %1944 = vmatpush2.msra.mxu0 0.0
    %1945 = vmatprep.subr.mxu0 0.0
    %1946 = vmatpush2.msra.mxu0 0.0
    %1947 = vmatprep.subr.mxu0 0.0
    %1948 = vmatpush2.msra.mxu0 0.0
    %1949 = vmatprep.subr.mxu0 0.0
    %1950 = vmatpush2.msra.mxu0 0.0
    %1951 = vmatprep.subr.mxu0 0.0
    %1952 = vmatpush2.msra.mxu0 0.0
    %1953 = vmatprep.subr.mxu0 0.0
    %1954 = vmatpush2.msra.mxu0 0.0
    %1955 = vmatprep.subr.mxu0 0.0
    %1956 = vmatpush2.msra.mxu0 0.0
    %1957 = vmatprep.subr.mxu0 0.0
    %1958 = vmatpush2.msra.mxu0 0.0
    %1959 = vmatprep.subr.mxu0 0.0
    %1960 = vmatpush2.msra.mxu0 0.0
    %1961 = vmatprep.subr.mxu0 0.0
    %1962 = vmatpush2.msra.mxu0 0.0
    %1963 = vmatprep.subr.mxu0 0.0
    %1964 = vmatpush2.msra.mxu0 0.0
    %1965 = vmatprep.subr.mxu0 0.0
    %1966 = vmatpush2.msra.mxu0 0.0
    %1967 = vmatprep.subr.mxu0 0.0
    %1968 = vmatpush2.msra.mxu0 0.0
    %1969 = vmatprep.subr.mxu0 0.0
    %1970 = vmatpush2.msra.mxu0 0.0
    %1971 = vmatprep.subr.mxu0 0.0
    %1972 = vmatpush2.msra.mxu0 0.0
    %1973 = vmatprep.subr.mxu0 0.0
    %1974 = vmatpush2.msra.mxu0 0.0
    %1975 = vmatprep.mubr.f32.mxu0 0.0
    %1976 = vmatmul.mubr.f32.gmra.mxu0 %v1900
    %v1977 = vpop.f32.mrf.mxu0
    %v1978 = vadd.f32 %v1881, %v1977
    %v1979 = vpop.f32.mrf.mxu0
    %1980 = vmatprep.mubr.f32.mxu0 0.0
    %1981 = vmatmul.mubr.f32.gmra.mxu0 %v1903
    %v1982 = vpop.f32.mrf.mxu0
    %v1983 = vadd.f32 %v1886, %v1982
    %v1984 = vpop.f32.mrf.mxu0
    %1985 = vmatprep.mubr.f32.mxu0 0.0
    %1986 = vmatmul.mubr.f32.gmra.mxu0 %v1906
    %v1987 = vpop.f32.mrf.mxu0
    %v1988 = vadd.f32 %v1891, %v1987
    %v1989 = vpop.f32.mrf.mxu0
    %1990 = vmatprep.mubr.f32.mxu0 0.0
    %1991 = vmatmul.mubr.f32.gmra.mxu0 %v1909
    %v1992 = vpop.f32.mrf.mxu0
    %v1993 = vadd.f32 %v1896, %v1992
    %v1994 = vpop.f32.mrf.mxu0
    %1995 = vdwg.mxu0
    %s1996 = scalar_lea.vmem %s89, 96
    %v1997 = vld [vmem:[%s1996] sm:$0xff]
    %v1998 = vld [vmem:[%s1996 + $0x8] sm:$0xff]
    %v1999 = vld [vmem:[%s1996 + $0x10] sm:$0xff]
    %v2000 = vld [vmem:[%s1996 + $0x18] sm:$0xff]
    %v2001 = vld [vmem:[%s1996 + $0x20] sm:$0xff]
    %v2002 = vld [vmem:[%s1996 + $0x28] sm:$0xff]
    %v2004 = vsel %vm792, %v1771, 0
    %v2007 = vsel %vm792, %v1776, 0
    %v2010 = vsel %vm792, %v1781, 0
    %v2013 = vsel %vm792, %v1786, 0
    %2015 = vmatprep.subr.mxu0 0.0
    %2016 = vmatpush1.msra.mxu0 0.0
    %2017 = vmatprep.subr.mxu0 0.0
    %2018 = vmatpush1.msra.mxu0 0.0
    %2019 = vmatprep.subr.mxu0 0.0
    %2020 = vmatpush1.msra.mxu0 0.0
    %2021 = vmatprep.subr.mxu0 0.0
    %2022 = vmatpush1.msra.mxu0 0.0
    %2023 = vmatprep.subr.mxu0 0.0
    %2024 = vmatpush1.msra.mxu0 0.0
    %2025 = vmatprep.subr.mxu0 0.0
    %2026 = vmatpush1.msra.mxu0 0.0
    %2027 = vmatprep.subr.mxu0 0.0
    %2028 = vmatpush1.msra.mxu0 0.0
    %2029 = vmatprep.subr.mxu0 0.0
    %2030 = vmatpush1.msra.mxu0 0.0
    %2031 = vmatprep.subr.mxu0 0.0
    %2032 = vmatpush1.msra.mxu0 0.0
    %2033 = vmatprep.subr.mxu0 0.0
    %2034 = vmatpush1.msra.mxu0 0.0
    %2035 = vmatprep.subr.mxu0 0.0
    %2036 = vmatpush1.msra.mxu0 %v2002
    %2037 = vmatprep.subr.mxu0 0.0
    %2038 = vmatpush1.msra.mxu0 %v2001
    %2039 = vmatprep.subr.mxu0 0.0
    %2040 = vmatpush1.msra.mxu0 %v2000
    %2041 = vmatprep.subr.mxu0 0.0
    %2042 = vmatpush1.msra.mxu0 %v1999
    %2043 = vmatprep.subr.mxu0 0.0
    %2044 = vmatpush1.msra.mxu0 %v1998
    %2045 = vmatprep.subr.mxu0 0.0
    %2046 = vmatpush1.msra.mxu0 %v1997
    %2047 = vmatprep.subr.mxu0 0.0
    %2048 = vmatpush2.msra.mxu0 0.0
    %2049 = vmatprep.subr.mxu0 0.0
    %2050 = vmatpush2.msra.mxu0 0.0
    %2051 = vmatprep.subr.mxu0 0.0
    %2052 = vmatpush2.msra.mxu0 0.0
    %2053 = vmatprep.subr.mxu0 0.0
    %2054 = vmatpush2.msra.mxu0 0.0
    %2055 = vmatprep.subr.mxu0 0.0
    %2056 = vmatpush2.msra.mxu0 0.0
    %2057 = vmatprep.subr.mxu0 0.0
    %2058 = vmatpush2.msra.mxu0 0.0
    %2059 = vmatprep.subr.mxu0 0.0
    %2060 = vmatpush2.msra.mxu0 0.0
    %2061 = vmatprep.subr.mxu0 0.0
    %2062 = vmatpush2.msra.mxu0 0.0
    %2063 = vmatprep.subr.mxu0 0.0
    %2064 = vmatpush2.msra.mxu0 0.0
    %2065 = vmatprep.subr.mxu0 0.0
    %2066 = vmatpush2.msra.mxu0 0.0
    %2067 = vmatprep.subr.mxu0 0.0
    %2068 = vmatpush2.msra.mxu0 0.0
    %2069 = vmatprep.subr.mxu0 0.0
    %2070 = vmatpush2.msra.mxu0 0.0
    %2071 = vmatprep.subr.mxu0 0.0
    %2072 = vmatpush2.msra.mxu0 0.0
    %2073 = vmatprep.subr.mxu0 0.0
    %2074 = vmatpush2.msra.mxu0 0.0
    %2075 = vmatprep.subr.mxu0 0.0
    %2076 = vmatpush2.msra.mxu0 0.0
    %2077 = vmatprep.subr.mxu0 0.0
    %2078 = vmatpush2.msra.mxu0 0.0
    %2079 = vmatprep.mubr.f32.mxu0 0.0
    %2080 = vmatmul.mubr.f32.gmra.mxu0 %v2004
    %v2081 = vpop.f32.mrf.mxu0
    %v2082 = vadd.f32 0.0, %v2081
    %v2083 = vpop.f32.mrf.mxu0
    %2084 = vmatprep.mubr.f32.mxu0 0.0
    %2085 = vmatmul.mubr.f32.gmra.mxu0 %v2007
    %v2086 = vpop.f32.mrf.mxu0
    %v2087 = vadd.f32 0.0, %v2086
    %v2088 = vpop.f32.mrf.mxu0
    %2089 = vmatprep.mubr.f32.mxu0 0.0
    %2090 = vmatmul.mubr.f32.gmra.mxu0 %v2010
    %v2091 = vpop.f32.mrf.mxu0
    %v2092 = vadd.f32 0.0, %v2091
    %v2093 = vpop.f32.mrf.mxu0
    %2094 = vmatprep.mubr.f32.mxu0 0.0
    %2095 = vmatmul.mubr.f32.gmra.mxu0 %v2013
    %v2096 = vpop.f32.mrf.mxu0
    %v2097 = vadd.f32 0.0, %v2096
    %v2098 = vpop.f32.mrf.mxu0
    %2099 = vdwg.mxu0
    %v2100 = vadd.f32 %v1978, %v2082
    %v2101 = vadd.f32 %v1983, %v2087
    %v2102 = vadd.f32 %v1988, %v2092
    %v2103 = vadd.f32 %v1993, %v2097
    %v2104 = vld [vmem:[%s87] sm:$0x1]
    %v2106 = vlaneseq
    %v2107 = vshrl.u32 %v2106, 7
    %v2108 = vsub.s32 0, %v2107
    %v2109 = vrot.slane %v2104, %v2108
    %v2111 = vadd.f32 %v2100, %v2109
    %v2112 = vadd.f32 %v2101, %v2109
    %v2113 = vadd.f32 %v2102, %v2109
    %v2114 = vadd.f32 %v2103, %v2109
    %vm2115 = vcmp.gt.f32.partialorder %v2111, 0.0
    %vm2116 = vcmp.gt.f32.partialorder %v2112, 0.0
    %vm2117 = vcmp.gt.f32.partialorder %v2113, 0.0
    %vm2118 = vcmp.gt.f32.partialorder %v2114, 0.0
    %v2119 = vmul.f32 %v2111, 0.2
    %v2120 = vmul.f32 %v2112, 0.2
    %v2121 = vmul.f32 %v2113, 0.2
    %v2122 = vmul.f32 %v2114, 0.2
    %v2123 = vsel %vm2115, %v2111, %v2119
    %v2124 = vsel %vm2116, %v2112, %v2120
    %v2125 = vsel %vm2117, %v2113, %v2121
    %v2126 = vsel %vm2118, %v2114, %v2122
    %2127 = vmatprep.subr.mxu0 0.0
    %2128 = vmatpush1.msra.mxu0 0.0
    %2129 = vmatprep.subr.mxu0 0.0
    %2130 = vmatpush1.msra.mxu0 0.0
    %2131 = vmatprep.subr.mxu0 0.0
    %2132 = vmatpush1.msra.mxu0 0.0
    %2133 = vmatprep.subr.mxu0 0.0
    %2134 = vmatpush1.msra.mxu0 0.0
    %2135 = vmatprep.subr.mxu0 0.0
    %2136 = vmatpush1.msra.mxu0 0.0
    %2137 = vmatprep.subr.mxu0 0.0
    %2138 = vmatpush1.msra.mxu0 0.0
    %2139 = vmatprep.subr.mxu0 0.0
    %2140 = vmatpush1.msra.mxu0 0.0
    %2141 = vmatprep.subr.mxu0 0.0
    %2142 = vmatpush1.msra.mxu0 0.0
    %2143 = vmatprep.subr.mxu0 0.0
    %2144 = vmatpush1.msra.mxu0 0.0
    %2145 = vmatprep.subr.mxu0 0.0
    %2146 = vmatpush1.msra.mxu0 0.0
    %2147 = vmatprep.subr.mxu0 0.0
    %2148 = vmatpush1.msra.mxu0 0.0
    %2149 = vmatprep.subr.mxu0 0.0
    %2150 = vmatpush1.msra.mxu0 0.0
    %2151 = vmatprep.subr.mxu0 0.0
    %2152 = vmatpush1.msra.mxu0 %v2126
    %2153 = vmatprep.subr.mxu0 0.0
    %2154 = vmatpush1.msra.mxu0 %v2125
    %2155 = vmatprep.subr.mxu0 0.0
    %2156 = vmatpush1.msra.mxu0 %v2124
    %2157 = vmatprep.subr.mxu0 0.0
    %2158 = vmatpush1.msra.mxu0 %v2123
    %2159 = vmatprep.subr.mxu0 0.0
    %2160 = vmatpush2.msra.mxu0 0.0
    %2161 = vmatprep.subr.mxu0 0.0
    %2162 = vmatpush2.msra.mxu0 0.0
    %2163 = vmatprep.subr.mxu0 0.0
    %2164 = vmatpush2.msra.mxu0 0.0
    %2165 = vmatprep.subr.mxu0 0.0
    %2166 = vmatpush2.msra.mxu0 0.0
    %2167 = vmatprep.subr.mxu0 0.0
    %2168 = vmatpush2.msra.mxu0 0.0
    %2169 = vmatprep.subr.mxu0 0.0
    %2170 = vmatpush2.msra.mxu0 0.0
    %2171 = vmatprep.subr.mxu0 0.0
    %2172 = vmatpush2.msra.mxu0 0.0
    %2173 = vmatprep.subr.mxu0 0.0
    %2174 = vmatpush2.msra.mxu0 0.0
    %2175 = vmatprep.subr.mxu0 0.0
    %2176 = vmatpush2.msra.mxu0 0.0
    %2177 = vmatprep.subr.mxu0 0.0
    %2178 = vmatpush2.msra.mxu0 0.0
    %2179 = vmatprep.subr.mxu0 0.0
    %2180 = vmatpush2.msra.mxu0 0.0
    %2181 = vmatprep.subr.mxu0 0.0
    %2182 = vmatpush2.msra.mxu0 0.0
    %2183 = vmatprep.subr.mxu0 0.0
    %2184 = vmatpush2.msra.mxu0 0.0
    %2185 = vmatprep.subr.mxu0 0.0
    %2186 = vmatpush2.msra.mxu0 0.0
    %2187 = vmatprep.subr.mxu0 0.0
    %2188 = vmatpush2.msra.mxu0 0.0
    %2189 = vmatprep.subr.mxu0 0.0
    %2190 = vmatpush2.msra.mxu0 0.0
    %2191 = vmatprep.mubr.f32.mxu0 0.0
    %2192 = vmatmul.mubr.f32.gmra.mxu0 %v1592
    %v2193 = vpop.f32.mrf.mxu0
    %v2194 = vadd.f32 0.0, %v2193
    %v2195 = vpop.f32.mrf.mxu0
    %2196 = vmatprep.mubr.f32.mxu0 0.0
    %2197 = vmatmul.mubr.f32.gmra.mxu0 %v1595
    %v2198 = vpop.f32.mrf.mxu0
    %v2199 = vadd.f32 0.0, %v2198
    %v2200 = vpop.f32.mrf.mxu0
    %2201 = vmatprep.mubr.f32.mxu0 0.0
    %2202 = vmatmul.mubr.f32.gmra.mxu0 %v1598
    %v2203 = vpop.f32.mrf.mxu0
    %v2204 = vadd.f32 0.0, %v2203
    %v2205 = vpop.f32.mrf.mxu0
    %2206 = vmatprep.mubr.f32.mxu0 0.0
    %2207 = vmatmul.mubr.f32.gmra.mxu0 %v1601
    %v2208 = vpop.f32.mrf.mxu0
    %v2209 = vadd.f32 0.0, %v2208
    %v2210 = vpop.f32.mrf.mxu0
    %2211 = vdwg.mxu0
    %2212 = vmatprep.subr.mxu0 0.0
    %2213 = vmatpush1.msra.mxu0 0.0
    %2214 = vmatprep.subr.mxu0 0.0
    %2215 = vmatpush1.msra.mxu0 0.0
    %2216 = vmatprep.subr.mxu0 0.0
    %2217 = vmatpush1.msra.mxu0 0.0
    %2218 = vmatprep.subr.mxu0 0.0
    %2219 = vmatpush1.msra.mxu0 0.0
    %2220 = vmatprep.subr.mxu0 0.0
    %2221 = vmatpush1.msra.mxu0 0.0
    %2222 = vmatprep.subr.mxu0 0.0
    %2223 = vmatpush1.msra.mxu0 0.0
    %2224 = vmatprep.subr.mxu0 0.0
    %2225 = vmatpush1.msra.mxu0 0.0
    %2226 = vmatprep.subr.mxu0 0.0
    %2227 = vmatpush1.msra.mxu0 0.0
    %2228 = vmatprep.subr.mxu0 0.0
    %2229 = vmatpush1.msra.mxu0 0.0
    %2230 = vmatprep.subr.mxu0 0.0
    %2231 = vmatpush1.msra.mxu0 0.0
    %2232 = vmatprep.subr.mxu0 0.0
    %2233 = vmatpush1.msra.mxu0 0.0
    %2234 = vmatprep.subr.mxu0 0.0
    %2235 = vmatpush1.msra.mxu0 0.0
    %2236 = vmatprep.subr.mxu0 0.0
    %2237 = vmatpush1.msra.mxu0 %v2126
    %2238 = vmatprep.subr.mxu0 0.0
    %2239 = vmatpush1.msra.mxu0 %v2125
    %2240 = vmatprep.subr.mxu0 0.0
    %2241 = vmatpush1.msra.mxu0 %v2124
    %2242 = vmatprep.subr.mxu0 0.0
    %2243 = vmatpush1.msra.mxu0 %v2123
    %2244 = vmatprep.subr.mxu0 0.0
    %2245 = vmatpush2.msra.mxu0 0.0
    %2246 = vmatprep.subr.mxu0 0.0
    %2247 = vmatpush2.msra.mxu0 0.0
    %2248 = vmatprep.subr.mxu0 0.0
    %2249 = vmatpush2.msra.mxu0 0.0
    %2250 = vmatprep.subr.mxu0 0.0
    %2251 = vmatpush2.msra.mxu0 0.0
    %2252 = vmatprep.subr.mxu0 0.0
    %2253 = vmatpush2.msra.mxu0 0.0
    %2254 = vmatprep.subr.mxu0 0.0
    %2255 = vmatpush2.msra.mxu0 0.0
    %2256 = vmatprep.subr.mxu0 0.0
    %2257 = vmatpush2.msra.mxu0 0.0
    %2258 = vmatprep.subr.mxu0 0.0
    %2259 = vmatpush2.msra.mxu0 0.0
    %2260 = vmatprep.subr.mxu0 0.0
    %2261 = vmatpush2.msra.mxu0 0.0
    %2262 = vmatprep.subr.mxu0 0.0
    %2263 = vmatpush2.msra.mxu0 0.0
    %2264 = vmatprep.subr.mxu0 0.0
    %2265 = vmatpush2.msra.mxu0 0.0
    %2266 = vmatprep.subr.mxu0 0.0
    %2267 = vmatpush2.msra.mxu0 0.0
    %2268 = vmatprep.subr.mxu0 0.0
    %2269 = vmatpush2.msra.mxu0 0.0
    %2270 = vmatprep.subr.mxu0 0.0
    %2271 = vmatpush2.msra.mxu0 0.0
    %2272 = vmatprep.subr.mxu0 0.0
    %2273 = vmatpush2.msra.mxu0 0.0
    %2274 = vmatprep.subr.mxu0 0.0
    %2275 = vmatpush2.msra.mxu0 0.0
    %2276 = vmatprep.mubr.f32.mxu0 0.0
    %2277 = vmatmul.mubr.f32.gmra.mxu0 %v1693
    %v2278 = vpop.f32.mrf.mxu0
    %v2279 = vadd.f32 0.0, %v2278
    %v2280 = vpop.f32.mrf.mxu0
    %2281 = vmatprep.mubr.f32.mxu0 0.0
    %2282 = vmatmul.mubr.f32.gmra.mxu0 %v1696
    %v2283 = vpop.f32.mrf.mxu0
    %v2284 = vadd.f32 0.0, %v2283
    %v2285 = vpop.f32.mrf.mxu0
    %2286 = vmatprep.mubr.f32.mxu0 0.0
    %2287 = vmatmul.mubr.f32.gmra.mxu0 %v1699
    %v2288 = vpop.f32.mrf.mxu0
    %v2289 = vadd.f32 0.0, %v2288
    %v2290 = vpop.f32.mrf.mxu0
    %2291 = vmatprep.mubr.f32.mxu0 0.0
    %2292 = vmatmul.mubr.f32.gmra.mxu0 %v1702
    %v2293 = vpop.f32.mrf.mxu0
    %v2294 = vadd.f32 0.0, %v2293
    %v2295 = vpop.f32.mrf.mxu0
    %2296 = vdwg.mxu0
    %v2297 = vld [vmem:[%s9] sm:$0xff]
    %v2298 = vld [vmem:[%s9 + $0x8] sm:$0xff]
    %v2299 = vld [vmem:[%s9 + $0x10] sm:$0xff]
    %v2300 = vld [vmem:[%s9 + $0x18] sm:$0xff]
    %v2301 = vld [vmem:[%s9 + $0x20] sm:$0xff]
    %v2302 = vld [vmem:[%s9 + $0x28] sm:$0xff]
    %v2303 = vld [vmem:[%s9 + $0x30] sm:$0xff]
    %v2304 = vld [vmem:[%s9 + $0x38] sm:$0xff]
    %s2305 = scalar_lea.vmem %s9, 64
    %v2306 = vld [vmem:[%s2305] sm:$0xff]
    %v2307 = vld [vmem:[%s2305 + $0x8] sm:$0xff]
    %v2308 = vld [vmem:[%s2305 + $0x10] sm:$0xff]
    %v2309 = vld [vmem:[%s2305 + $0x18] sm:$0xff]
    %v2310 = vld [vmem:[%s2305 + $0x20] sm:$0xff]
    %v2311 = vld [vmem:[%s2305 + $0x28] sm:$0xff]
    %v2312 = vld [vmem:[%s2305 + $0x30] sm:$0xff]
    %v2313 = vld [vmem:[%s2305 + $0x38] sm:$0xff]
    %vm2314 = vcmask 523264
    %v2316 = vsel %vm2314, %v2123, 0
    %v2319 = vsel %vm2314, %v2124, 0
    %v2322 = vsel %vm2314, %v2125, 0
    %v2325 = vsel %vm2314, %v2126, 0
    %2327 = vmatprep.subr.mxu0 0.0
    %2328 = vmatpush1.msra.mxu0 0.0
    %2329 = vmatprep.subr.mxu0 0.0
    %2330 = vmatpush1.msra.mxu0 0.0
    %2331 = vmatprep.subr.mxu0 0.0
    %2332 = vmatpush1.msra.mxu0 0.0
    %2333 = vmatprep.subr.mxu0 0.0
    %2334 = vmatpush1.msra.mxu0 0.0
    %2335 = vmatprep.subr.mxu0 0.0
    %2336 = vmatpush1.msra.mxu0 0.0
    %2337 = vmatprep.subr.mxu0 0.0
    %2338 = vmatpush1.msra.mxu0 0.0
    %2339 = vmatprep.subr.mxu0 0.0
    %2340 = vmatpush1.msra.mxu0 0.0
    %2341 = vmatprep.subr.mxu0 0.0
    %2342 = vmatpush1.msra.mxu0 0.0
    %2343 = vmatprep.subr.mxu0 0.0
    %2344 = vmatpush1.msra.mxu0 %v2313
    %2345 = vmatprep.subr.mxu0 0.0
    %2346 = vmatpush1.msra.mxu0 %v2312
    %2347 = vmatprep.subr.mxu0 0.0
    %2348 = vmatpush1.msra.mxu0 %v2311
    %2349 = vmatprep.subr.mxu0 0.0
    %2350 = vmatpush1.msra.mxu0 %v2310
    %2351 = vmatprep.subr.mxu0 0.0
    %2352 = vmatpush1.msra.mxu0 %v2309
    %2353 = vmatprep.subr.mxu0 0.0
    %2354 = vmatpush1.msra.mxu0 %v2308
    %2355 = vmatprep.subr.mxu0 0.0
    %2356 = vmatpush1.msra.mxu0 %v2307
    %2357 = vmatprep.subr.mxu0 0.0
    %2358 = vmatpush1.msra.mxu0 %v2306
    %2359 = vmatprep.subr.mxu0 0.0
    %2360 = vmatpush2.msra.mxu0 0.0
    %2361 = vmatprep.subr.mxu0 0.0
    %2362 = vmatpush2.msra.mxu0 0.0
    %2363 = vmatprep.subr.mxu0 0.0
    %2364 = vmatpush2.msra.mxu0 0.0
    %2365 = vmatprep.subr.mxu0 0.0
    %2366 = vmatpush2.msra.mxu0 0.0
    %2367 = vmatprep.subr.mxu0 0.0
    %2368 = vmatpush2.msra.mxu0 0.0
    %2369 = vmatprep.subr.mxu0 0.0
    %2370 = vmatpush2.msra.mxu0 0.0
    %2371 = vmatprep.subr.mxu0 0.0
    %2372 = vmatpush2.msra.mxu0 0.0
    %2373 = vmatprep.subr.mxu0 0.0
    %2374 = vmatpush2.msra.mxu0 0.0
    %2375 = vmatprep.subr.mxu0 0.0
    %2376 = vmatpush2.msra.mxu0 0.0
    %2377 = vmatprep.subr.mxu0 0.0
    %2378 = vmatpush2.msra.mxu0 0.0
    %2379 = vmatprep.subr.mxu0 0.0
    %2380 = vmatpush2.msra.mxu0 0.0
    %2381 = vmatprep.subr.mxu0 0.0
    %2382 = vmatpush2.msra.mxu0 0.0
    %2383 = vmatprep.subr.mxu0 0.0
    %2384 = vmatpush2.msra.mxu0 0.0
    %2385 = vmatprep.subr.mxu0 0.0
    %2386 = vmatpush2.msra.mxu0 0.0
    %2387 = vmatprep.subr.mxu0 0.0
    %2388 = vmatpush2.msra.mxu0 0.0
    %2389 = vmatprep.subr.mxu0 0.0
    %2390 = vmatpush2.msra.mxu0 0.0
    %2391 = vmatprep.mubr.f32.mxu0 0.0
    %2392 = vmatmul.mubr.f32.gmra.mxu0 %v2316
    %v2393 = vpop.f32.mrf.mxu0
    %v2394 = vadd.f32 0.0, %v2393
    %v2395 = vpop.f32.mrf.mxu0
    %2396 = vmatprep.mubr.f32.mxu0 0.0
    %2397 = vmatmul.mubr.f32.gmra.mxu0 %v2319
    %v2398 = vpop.f32.mrf.mxu0
    %v2399 = vadd.f32 0.0, %v2398
    %v2400 = vpop.f32.mrf.mxu0
    %2401 = vmatprep.mubr.f32.mxu0 0.0
    %2402 = vmatmul.mubr.f32.gmra.mxu0 %v2322
    %v2403 = vpop.f32.mrf.mxu0
    %v2404 = vadd.f32 0.0, %v2403
    %v2405 = vpop.f32.mrf.mxu0
    %2406 = vmatprep.mubr.f32.mxu0 0.0
    %2407 = vmatmul.mubr.f32.gmra.mxu0 %v2325
    %v2408 = vpop.f32.mrf.mxu0
    %v2409 = vadd.f32 0.0, %v2408
    %v2410 = vpop.f32.mrf.mxu0
    %2411 = vdwg.mxu0
    %v2413 = vsel %vm2314, %v2194, 0
    %v2416 = vsel %vm2314, %v2199, 0
    %v2419 = vsel %vm2314, %v2204, 0
    %v2422 = vsel %vm2314, %v2209, 0
    %2424 = vmatprep.subr.mxu0 0.0
    %2425 = vmatpush1.msra.mxu0 0.0
    %2426 = vmatprep.subr.mxu0 0.0
    %2427 = vmatpush1.msra.mxu0 0.0
    %2428 = vmatprep.subr.mxu0 0.0
    %2429 = vmatpush1.msra.mxu0 0.0
    %2430 = vmatprep.subr.mxu0 0.0
    %2431 = vmatpush1.msra.mxu0 0.0
    %2432 = vmatprep.subr.mxu0 0.0
    %2433 = vmatpush1.msra.mxu0 0.0
    %2434 = vmatprep.subr.mxu0 0.0
    %2435 = vmatpush1.msra.mxu0 0.0
    %2436 = vmatprep.subr.mxu0 0.0
    %2437 = vmatpush1.msra.mxu0 0.0
    %2438 = vmatprep.subr.mxu0 0.0
    %2439 = vmatpush1.msra.mxu0 0.0
    %2440 = vmatprep.subr.mxu0 0.0
    %2441 = vmatpush1.msra.mxu0 %v2304
    %2442 = vmatprep.subr.mxu0 0.0
    %2443 = vmatpush1.msra.mxu0 %v2303
    %2444 = vmatprep.subr.mxu0 0.0
    %2445 = vmatpush1.msra.mxu0 %v2302
    %2446 = vmatprep.subr.mxu0 0.0
    %2447 = vmatpush1.msra.mxu0 %v2301
    %2448 = vmatprep.subr.mxu0 0.0
    %2449 = vmatpush1.msra.mxu0 %v2300
    %2450 = vmatprep.subr.mxu0 0.0
    %2451 = vmatpush1.msra.mxu0 %v2299
    %2452 = vmatprep.subr.mxu0 0.0
    %2453 = vmatpush1.msra.mxu0 %v2298
    %2454 = vmatprep.subr.mxu0 0.0
    %2455 = vmatpush1.msra.mxu0 %v2297
    %2456 = vmatprep.subr.mxu0 0.0
    %2457 = vmatpush2.msra.mxu0 0.0
    %2458 = vmatprep.subr.mxu0 0.0
    %2459 = vmatpush2.msra.mxu0 0.0
    %2460 = vmatprep.subr.mxu0 0.0
    %2461 = vmatpush2.msra.mxu0 0.0
    %2462 = vmatprep.subr.mxu0 0.0
    %2463 = vmatpush2.msra.mxu0 0.0
    %2464 = vmatprep.subr.mxu0 0.0
    %2465 = vmatpush2.msra.mxu0 0.0
    %2466 = vmatprep.subr.mxu0 0.0
    %2467 = vmatpush2.msra.mxu0 0.0
    %2468 = vmatprep.subr.mxu0 0.0
    %2469 = vmatpush2.msra.mxu0 0.0
    %2470 = vmatprep.subr.mxu0 0.0
    %2471 = vmatpush2.msra.mxu0 0.0
    %2472 = vmatprep.subr.mxu0 0.0
    %2473 = vmatpush2.msra.mxu0 0.0
    %2474 = vmatprep.subr.mxu0 0.0
    %2475 = vmatpush2.msra.mxu0 0.0
    %2476 = vmatprep.subr.mxu0 0.0
    %2477 = vmatpush2.msra.mxu0 0.0
    %2478 = vmatprep.subr.mxu0 0.0
    %2479 = vmatpush2.msra.mxu0 0.0
    %2480 = vmatprep.subr.mxu0 0.0
    %2481 = vmatpush2.msra.mxu0 0.0
    %2482 = vmatprep.subr.mxu0 0.0
    %2483 = vmatpush2.msra.mxu0 0.0
    %2484 = vmatprep.subr.mxu0 0.0
    %2485 = vmatpush2.msra.mxu0 0.0
    %2486 = vmatprep.subr.mxu0 0.0
    %2487 = vmatpush2.msra.mxu0 0.0
    %2488 = vmatprep.mubr.f32.mxu0 0.0
    %2489 = vmatmul.mubr.f32.gmra.mxu0 %v2413
    %v2490 = vpop.f32.mrf.mxu0
    %v2491 = vadd.f32 %v2394, %v2490
    %v2492 = vpop.f32.mrf.mxu0
    %2493 = vmatprep.mubr.f32.mxu0 0.0
    %2494 = vmatmul.mubr.f32.gmra.mxu0 %v2416
    %v2495 = vpop.f32.mrf.mxu0
    %v2496 = vadd.f32 %v2399, %v2495
    %v2497 = vpop.f32.mrf.mxu0
    %2498 = vmatprep.mubr.f32.mxu0 0.0
    %2499 = vmatmul.mubr.f32.gmra.mxu0 %v2419
    %v2500 = vpop.f32.mrf.mxu0
    %v2501 = vadd.f32 %v2404, %v2500
    %v2502 = vpop.f32.mrf.mxu0
    %2503 = vmatprep.mubr.f32.mxu0 0.0
    %2504 = vmatmul.mubr.f32.gmra.mxu0 %v2422
    %v2505 = vpop.f32.mrf.mxu0
    %v2506 = vadd.f32 %v2409, %v2505
    %v2507 = vpop.f32.mrf.mxu0
    %2508 = vdwg.mxu0
    %s2509 = scalar_lea.vmem %s9, 128
    %v2510 = vld [vmem:[%s2509] sm:$0xff]
    %v2511 = vld [vmem:[%s2509 + $0x8] sm:$0xff]
    %v2512 = vld [vmem:[%s2509 + $0x10] sm:$0xff]
    %v2513 = vld [vmem:[%s2509 + $0x18] sm:$0xff]
    %v2514 = vld [vmem:[%s2509 + $0x20] sm:$0xff]
    %v2515 = vld [vmem:[%s2509 + $0x28] sm:$0xff]
    %v2516 = vld [vmem:[%s2509 + $0x30] sm:$0xff]
    %v2517 = vld [vmem:[%s2509 + $0x38] sm:$0xff]
    %v2519 = vsel %vm2314, %v2279, 0
    %v2522 = vsel %vm2314, %v2284, 0
    %v2525 = vsel %vm2314, %v2289, 0
    %v2528 = vsel %vm2314, %v2294, 0
    %2530 = vmatprep.subr.mxu0 0.0
    %2531 = vmatpush1.msra.mxu0 0.0
    %2532 = vmatprep.subr.mxu0 0.0
    %2533 = vmatpush1.msra.mxu0 0.0
    %2534 = vmatprep.subr.mxu0 0.0
    %2535 = vmatpush1.msra.mxu0 0.0
    %2536 = vmatprep.subr.mxu0 0.0
    %2537 = vmatpush1.msra.mxu0 0.0
    %2538 = vmatprep.subr.mxu0 0.0
    %2539 = vmatpush1.msra.mxu0 0.0
    %2540 = vmatprep.subr.mxu0 0.0
    %2541 = vmatpush1.msra.mxu0 0.0
    %2542 = vmatprep.subr.mxu0 0.0
    %2543 = vmatpush1.msra.mxu0 0.0
    %2544 = vmatprep.subr.mxu0 0.0
    %2545 = vmatpush1.msra.mxu0 0.0
    %2546 = vmatprep.subr.mxu0 0.0
    %2547 = vmatpush1.msra.mxu0 %v2517
    %2548 = vmatprep.subr.mxu0 0.0
    %2549 = vmatpush1.msra.mxu0 %v2516
    %2550 = vmatprep.subr.mxu0 0.0
    %2551 = vmatpush1.msra.mxu0 %v2515
    %2552 = vmatprep.subr.mxu0 0.0
    %2553 = vmatpush1.msra.mxu0 %v2514
    %2554 = vmatprep.subr.mxu0 0.0
    %2555 = vmatpush1.msra.mxu0 %v2513
    %2556 = vmatprep.subr.mxu0 0.0
    %2557 = vmatpush1.msra.mxu0 %v2512
    %2558 = vmatprep.subr.mxu0 0.0
    %2559 = vmatpush1.msra.mxu0 %v2511
    %2560 = vmatprep.subr.mxu0 0.0
    %2561 = vmatpush1.msra.mxu0 %v2510
    %2562 = vmatprep.subr.mxu0 0.0
    %2563 = vmatpush2.msra.mxu0 0.0
    %2564 = vmatprep.subr.mxu0 0.0
    %2565 = vmatpush2.msra.mxu0 0.0
    %2566 = vmatprep.subr.mxu0 0.0
    %2567 = vmatpush2.msra.mxu0 0.0
    %2568 = vmatprep.subr.mxu0 0.0
    %2569 = vmatpush2.msra.mxu0 0.0
    %2570 = vmatprep.subr.mxu0 0.0
    %2571 = vmatpush2.msra.mxu0 0.0
    %2572 = vmatprep.subr.mxu0 0.0
    %2573 = vmatpush2.msra.mxu0 0.0
    %2574 = vmatprep.subr.mxu0 0.0
    %2575 = vmatpush2.msra.mxu0 0.0
    %2576 = vmatprep.subr.mxu0 0.0
    %2577 = vmatpush2.msra.mxu0 0.0
    %2578 = vmatprep.subr.mxu0 0.0
    %2579 = vmatpush2.msra.mxu0 0.0
    %2580 = vmatprep.subr.mxu0 0.0
    %2581 = vmatpush2.msra.mxu0 0.0
    %2582 = vmatprep.subr.mxu0 0.0
    %2583 = vmatpush2.msra.mxu0 0.0
    %2584 = vmatprep.subr.mxu0 0.0
    %2585 = vmatpush2.msra.mxu0 0.0
    %2586 = vmatprep.subr.mxu0 0.0
    %2587 = vmatpush2.msra.mxu0 0.0
    %2588 = vmatprep.subr.mxu0 0.0
    %2589 = vmatpush2.msra.mxu0 0.0
    %2590 = vmatprep.subr.mxu0 0.0
    %2591 = vmatpush2.msra.mxu0 0.0
    %2592 = vmatprep.subr.mxu0 0.0
    %2593 = vmatpush2.msra.mxu0 0.0
    %2594 = vmatprep.mubr.f32.mxu0 0.0
    %2595 = vmatmul.mubr.f32.gmra.mxu0 %v2519
    %v2596 = vpop.f32.mrf.mxu0
    %v2597 = vadd.f32 0.0, %v2596
    %v2598 = vpop.f32.mrf.mxu0
    %2599 = vmatprep.mubr.f32.mxu0 0.0
    %2600 = vmatmul.mubr.f32.gmra.mxu0 %v2522
    %v2601 = vpop.f32.mrf.mxu0
    %v2602 = vadd.f32 0.0, %v2601
    %v2603 = vpop.f32.mrf.mxu0
    %2604 = vmatprep.mubr.f32.mxu0 0.0
    %2605 = vmatmul.mubr.f32.gmra.mxu0 %v2525
    %v2606 = vpop.f32.mrf.mxu0
    %v2607 = vadd.f32 0.0, %v2606
    %v2608 = vpop.f32.mrf.mxu0
    %2609 = vmatprep.mubr.f32.mxu0 0.0
    %2610 = vmatmul.mubr.f32.gmra.mxu0 %v2528
    %v2611 = vpop.f32.mrf.mxu0
    %v2612 = vadd.f32 0.0, %v2611
    %v2613 = vpop.f32.mrf.mxu0
    %2614 = vdwg.mxu0
    %v2615 = vadd.f32 %v2491, %v2597
    %v2616 = vadd.f32 %v2496, %v2602
    %v2617 = vadd.f32 %v2501, %v2607
    %v2618 = vadd.f32 %v2506, %v2612
    %v2619 = vld [vmem:[%s7] sm:$0x1]
    %v2621 = vlaneseq
    %v2622 = vshrl.u32 %v2621, 7
    %v2623 = vsub.s32 0, %v2622
    %v2624 = vrot.slane %v2619, %v2623
    %v2626 = vadd.f32 %v2615, %v2624
    %v2627 = vadd.f32 %v2616, %v2624
    %v2628 = vadd.f32 %v2617, %v2624
    %v2629 = vadd.f32 %v2618, %v2624
    %v2630 = vld [vmem:[%s15] sm:$0x1]
    %v2631 = vld [vmem:[%s1] sm:$0xff]
    %v2632 = vld [vmem:[%s1 + $0x8] sm:$0xff]
    %v2633 = vld [vmem:[%s1 + $0x10] sm:$0xff]
    %v2634 = vld [vmem:[%s1 + $0x18] sm:$0xff]
    %v2636 = vsel %vm369, %v2631, 0
    %v2639 = vsel %vm369, %v2632, 0
    %v2642 = vsel %vm369, %v2633, 0
    %v2645 = vsel %vm369, %v2634, 0
    %2647 = vmatprep.subr.mxu0 0.0
    %2648 = vmatpush1.msra.mxu0 0.0
    %2649 = vmatprep.subr.mxu0 0.0
    %2650 = vmatpush1.msra.mxu0 0.0
    %2651 = vmatprep.subr.mxu0 0.0
    %2652 = vmatpush1.msra.mxu0 0.0
    %2653 = vmatprep.subr.mxu0 0.0
    %2654 = vmatpush1.msra.mxu0 0.0
    %2655 = vmatprep.subr.mxu0 0.0
    %2656 = vmatpush1.msra.mxu0 0.0
    %2657 = vmatprep.subr.mxu0 0.0
    %2658 = vmatpush1.msra.mxu0 0.0
    %2659 = vmatprep.subr.mxu0 0.0
    %2660 = vmatpush1.msra.mxu0 0.0
    %2661 = vmatprep.subr.mxu0 0.0
    %2662 = vmatpush1.msra.mxu0 0.0
    %2663 = vmatprep.subr.mxu0 0.0
    %2664 = vmatpush1.msra.mxu0 0.0
    %2665 = vmatprep.subr.mxu0 0.0
    %2666 = vmatpush1.msra.mxu0 0.0
    %2667 = vmatprep.subr.mxu0 0.0
    %2668 = vmatpush1.msra.mxu0 0.0
    %2669 = vmatprep.subr.mxu0 0.0
    %2670 = vmatpush1.msra.mxu0 0.0
    %2671 = vmatprep.subr.mxu0 0.0
    %2672 = vmatpush1.msra.mxu0 %v2629
    %2673 = vmatprep.subr.mxu0 0.0
    %2674 = vmatpush1.msra.mxu0 %v2628
    %2675 = vmatprep.subr.mxu0 0.0
    %2676 = vmatpush1.msra.mxu0 %v2627
    %2677 = vmatprep.subr.mxu0 0.0
    %2678 = vmatpush1.msra.mxu0 %v2626
    %2679 = vmatprep.subr.mxu0 0.0
    %2680 = vmatpush2.msra.mxu0 0.0
    %2681 = vmatprep.subr.mxu0 0.0
    %2682 = vmatpush2.msra.mxu0 0.0
    %2683 = vmatprep.subr.mxu0 0.0
    %2684 = vmatpush2.msra.mxu0 0.0
    %2685 = vmatprep.subr.mxu0 0.0
    %2686 = vmatpush2.msra.mxu0 0.0
    %2687 = vmatprep.subr.mxu0 0.0
    %2688 = vmatpush2.msra.mxu0 0.0
    %2689 = vmatprep.subr.mxu0 0.0
    %2690 = vmatpush2.msra.mxu0 0.0
    %2691 = vmatprep.subr.mxu0 0.0
    %2692 = vmatpush2.msra.mxu0 0.0
    %2693 = vmatprep.subr.mxu0 0.0
    %2694 = vmatpush2.msra.mxu0 0.0
    %2695 = vmatprep.subr.mxu0 0.0
    %2696 = vmatpush2.msra.mxu0 0.0
    %2697 = vmatprep.subr.mxu0 0.0
    %2698 = vmatpush2.msra.mxu0 0.0
    %2699 = vmatprep.subr.mxu0 0.0
    %2700 = vmatpush2.msra.mxu0 0.0
    %2701 = vmatprep.subr.mxu0 0.0
    %2702 = vmatpush2.msra.mxu0 0.0
    %2703 = vmatprep.subr.mxu0 0.0
    %2704 = vmatpush2.msra.mxu0 0.0
    %2705 = vmatprep.subr.mxu0 0.0
    %2706 = vmatpush2.msra.mxu0 0.0
    %2707 = vmatprep.subr.mxu0 0.0
    %2708 = vmatpush2.msra.mxu0 0.0
    %2709 = vmatprep.subr.mxu0 0.0
    %2710 = vmatpush2.msra.mxu0 0.0
    %2711 = vmatprep.mubr.f32.mxu0 0.0
    %2712 = vmatmul.mubr.f32.gmra.mxu0 %v2636
    %v2713 = vpop.f32.mrf.mxu0
    %v2714 = vadd.f32 0.0, %v2713
    %v2715 = vpop.f32.mrf.mxu0
    %2716 = vmatprep.mubr.f32.mxu0 0.0
    %2717 = vmatmul.mubr.f32.gmra.mxu0 %v2639
    %v2718 = vpop.f32.mrf.mxu0
    %v2719 = vadd.f32 0.0, %v2718
    %v2720 = vpop.f32.mrf.mxu0
    %2721 = vmatprep.mubr.f32.mxu0 0.0
    %2722 = vmatmul.mubr.f32.gmra.mxu0 %v2642
    %v2723 = vpop.f32.mrf.mxu0
    %v2724 = vadd.f32 0.0, %v2723
    %v2725 = vpop.f32.mrf.mxu0
    %2726 = vmatprep.mubr.f32.mxu0 0.0
    %2727 = vmatmul.mubr.f32.gmra.mxu0 %v2645
    %v2728 = vpop.f32.mrf.mxu0
    %v2729 = vadd.f32 0.0, %v2728
    %v2730 = vpop.f32.mrf.mxu0
    %2731 = vdwg.mxu0
    %v2733 = vlaneseq
    %v2734 = vshrl.u32 %v2733, 7
    %v2735 = vsub.s32 0, %v2734
    %v2736 = vrot.slane %v2630, %v2735
    %v2738 = vmul.f32 %v2736, %v2714
    %v2739 = vmul.f32 %v2736, %v2719
    %v2740 = vmul.f32 %v2736, %v2724
    %v2741 = vmul.f32 %v2736, %v2729
    %v2742 = vsub.f32 1.0, %v2630
    %v2744 = vlaneseq
    %v2745 = vshrl.u32 %v2744, 7
    %v2746 = vsub.s32 0, %v2745
    %v2747 = vrot.slane %v2742, %v2746
    %v2749 = vmul.f32 %v2747, %v2626
    %v2750 = vmul.f32 %v2747, %v2627
    %v2751 = vmul.f32 %v2747, %v2628
    %v2752 = vmul.f32 %v2747, %v2629
    %v2753 = vadd.f32 %v2738, %v2749
    %v2754 = vadd.f32 %v2739, %v2750
    %v2755 = vadd.f32 %v2740, %v2751
    %v2756 = vadd.f32 %v2741, %v2752
    %v2757 = vld [vmem:[%s75] sm:$0xff]
    %v2758 = vld [vmem:[%s75 + $0x8] sm:$0xff]
    %v2759 = vld [vmem:[%s75 + $0x10] sm:$0xff]
    %v2760 = vld [vmem:[%s75 + $0x18] sm:$0xff]
    %v2761 = vld [vmem:[%s75 + $0x20] sm:$0xff]
    %v2762 = vld [vmem:[%s75 + $0x28] sm:$0xff]
    %v2763 = vld [vmem:[%s75 + $0x30] sm:$0xff]
    %v2764 = vld [vmem:[%s75 + $0x38] sm:$0xff]
    %v2765 = vld [vmem:[%s65] sm:$0xff]
    %v2766 = vld [vmem:[%s65 + $0x8] sm:$0xff]
    %v2767 = vld [vmem:[%s65 + $0x10] sm:$0xff]
    %v2768 = vld [vmem:[%s65 + $0x18] sm:$0xff]
    %v2770 = vsel %vm2314, %v2753, 0
    %v2773 = vsel %vm2314, %v2754, 0
    %v2776 = vsel %vm2314, %v2755, 0
    %v2779 = vsel %vm2314, %v2756, 0
    %2781 = vmatprep.subr.mxu0 0.0
    %2782 = vmatpush1.msra.mxu0 0.0
    %2783 = vmatprep.subr.mxu0 0.0
    %2784 = vmatpush1.msra.mxu0 0.0
    %2785 = vmatprep.subr.mxu0 0.0
    %2786 = vmatpush1.msra.mxu0 0.0
    %2787 = vmatprep.subr.mxu0 0.0
    %2788 = vmatpush1.msra.mxu0 0.0
    %2789 = vmatprep.subr.mxu0 0.0
    %2790 = vmatpush1.msra.mxu0 0.0
    %2791 = vmatprep.subr.mxu0 0.0
    %2792 = vmatpush1.msra.mxu0 0.0
    %2793 = vmatprep.subr.mxu0 0.0
    %2794 = vmatpush1.msra.mxu0 0.0
    %2795 = vmatprep.subr.mxu0 0.0
    %2796 = vmatpush1.msra.mxu0 0.0
    %2797 = vmatprep.subr.mxu0 0.0
    %2798 = vmatpush1.msra.mxu0 %v2764
    %2799 = vmatprep.subr.mxu0 0.0
    %2800 = vmatpush1.msra.mxu0 %v2763
    %2801 = vmatprep.subr.mxu0 0.0
    %2802 = vmatpush1.msra.mxu0 %v2762
    %2803 = vmatprep.subr.mxu0 0.0
    %2804 = vmatpush1.msra.mxu0 %v2761
    %2805 = vmatprep.subr.mxu0 0.0
    %2806 = vmatpush1.msra.mxu0 %v2760
    %2807 = vmatprep.subr.mxu0 0.0
    %2808 = vmatpush1.msra.mxu0 %v2759
    %2809 = vmatprep.subr.mxu0 0.0
    %2810 = vmatpush1.msra.mxu0 %v2758
    %2811 = vmatprep.subr.mxu0 0.0
    %2812 = vmatpush1.msra.mxu0 %v2757
    %2813 = vmatprep.subr.mxu0 0.0
    %2814 = vmatpush2.msra.mxu0 0.0
    %2815 = vmatprep.subr.mxu0 0.0
    %2816 = vmatpush2.msra.mxu0 0.0
    %2817 = vmatprep.subr.mxu0 0.0
    %2818 = vmatpush2.msra.mxu0 0.0
    %2819 = vmatprep.subr.mxu0 0.0
    %2820 = vmatpush2.msra.mxu0 0.0
    %2821 = vmatprep.subr.mxu0 0.0
    %2822 = vmatpush2.msra.mxu0 0.0
    %2823 = vmatprep.subr.mxu0 0.0
    %2824 = vmatpush2.msra.mxu0 0.0
    %2825 = vmatprep.subr.mxu0 0.0
    %2826 = vmatpush2.msra.mxu0 0.0
    %2827 = vmatprep.subr.mxu0 0.0
    %2828 = vmatpush2.msra.mxu0 0.0
    %2829 = vmatprep.subr.mxu0 0.0
    %2830 = vmatpush2.msra.mxu0 0.0
    %2831 = vmatprep.subr.mxu0 0.0
    %2832 = vmatpush2.msra.mxu0 0.0
    %2833 = vmatprep.subr.mxu0 0.0
    %2834 = vmatpush2.msra.mxu0 0.0
    %2835 = vmatprep.subr.mxu0 0.0
    %2836 = vmatpush2.msra.mxu0 0.0
    %2837 = vmatprep.subr.mxu0 0.0
    %2838 = vmatpush2.msra.mxu0 0.0
    %2839 = vmatprep.subr.mxu0 0.0
    %2840 = vmatpush2.msra.mxu0 0.0
    %2841 = vmatprep.subr.mxu0 0.0
    %2842 = vmatpush2.msra.mxu0 0.0
    %2843 = vmatprep.subr.mxu0 0.0
    %2844 = vmatpush2.msra.mxu0 0.0
    %2845 = vmatprep.mubr.f32.mxu0 0.0
    %2846 = vmatmul.mubr.f32.gmra.mxu0 %v2770
    %v2847 = vpop.f32.mrf.mxu0
    %v2848 = vadd.f32 %v2765, %v2847
    %v2849 = vpop.f32.mrf.mxu0
    %2850 = vmatprep.mubr.f32.mxu0 0.0
    %2851 = vmatmul.mubr.f32.gmra.mxu0 %v2773
    %v2852 = vpop.f32.mrf.mxu0
    %v2853 = vadd.f32 %v2766, %v2852
    %v2854 = vpop.f32.mrf.mxu0
    %2855 = vmatprep.mubr.f32.mxu0 0.0
    %2856 = vmatmul.mubr.f32.gmra.mxu0 %v2776
    %v2857 = vpop.f32.mrf.mxu0
    %v2858 = vadd.f32 %v2767, %v2857
    %v2859 = vpop.f32.mrf.mxu0
    %2860 = vmatprep.mubr.f32.mxu0 0.0
    %2861 = vmatmul.mubr.f32.gmra.mxu0 %v2779
    %v2862 = vpop.f32.mrf.mxu0
    %v2863 = vadd.f32 %v2768, %v2862
    %v2864 = vpop.f32.mrf.mxu0
    %2865 = vdwg.mxu0
    %v2866 = vld [vmem:[%s39] sm:$0xff]
    %v2867 = vld [vmem:[%s39 + $0x8] sm:$0xff]
    %v2868 = vld [vmem:[%s39 + $0x10] sm:$0xff]
    %v2869 = vld [vmem:[%s39 + $0x18] sm:$0xff]
    %v2870 = vld [vmem:[%s27] sm:$0x1]
    %v2872 = vlaneseq
    %v2873 = vshrl.u32 %v2872, 7
    %v2874 = vsub.s32 0, %v2873
    %v2875 = vrot.slane %v2870, %v2874
    %v2878 = vsel %vm369, %v2848, 0
    %v2881 = vsel %vm369, %v2853, 0
    %v2884 = vsel %vm369, %v2858, 0
    %v2887 = vsel %vm369, %v2863, 0
    %2889 = vmatprep.subr.mxu0 0.0
    %2890 = vmatpush1.msra.mxu0 0.0
    %2891 = vmatprep.subr.mxu0 0.0
    %2892 = vmatpush1.msra.mxu0 0.0
    %2893 = vmatprep.subr.mxu0 0.0
    %2894 = vmatpush1.msra.mxu0 0.0
    %2895 = vmatprep.subr.mxu0 0.0
    %2896 = vmatpush1.msra.mxu0 0.0
    %2897 = vmatprep.subr.mxu0 0.0
    %2898 = vmatpush1.msra.mxu0 0.0
    %2899 = vmatprep.subr.mxu0 0.0
    %2900 = vmatpush1.msra.mxu0 0.0
    %2901 = vmatprep.subr.mxu0 0.0
    %2902 = vmatpush1.msra.mxu0 0.0
    %2903 = vmatprep.subr.mxu0 0.0
    %2904 = vmatpush1.msra.mxu0 0.0
    %2905 = vmatprep.subr.mxu0 0.0
    %2906 = vmatpush1.msra.mxu0 0.0
    %2907 = vmatprep.subr.mxu0 0.0
    %2908 = vmatpush1.msra.mxu0 0.0
    %2909 = vmatprep.subr.mxu0 0.0
    %2910 = vmatpush1.msra.mxu0 0.0
    %2911 = vmatprep.subr.mxu0 0.0
    %2912 = vmatpush1.msra.mxu0 0.0
    %2913 = vmatprep.subr.mxu0 0.0
    %2914 = vmatpush1.msra.mxu0 %v2869
    %2915 = vmatprep.subr.mxu0 0.0
    %2916 = vmatpush1.msra.mxu0 %v2868
    %2917 = vmatprep.subr.mxu0 0.0
    %2918 = vmatpush1.msra.mxu0 %v2867
    %2919 = vmatprep.subr.mxu0 0.0
    %2920 = vmatpush1.msra.mxu0 %v2866
    %2921 = vmatprep.subr.mxu0 0.0
    %2922 = vmatpush2.msra.mxu0 0.0
    %2923 = vmatprep.subr.mxu0 0.0
    %2924 = vmatpush2.msra.mxu0 0.0
    %2925 = vmatprep.subr.mxu0 0.0
    %2926 = vmatpush2.msra.mxu0 0.0
    %2927 = vmatprep.subr.mxu0 0.0
    %2928 = vmatpush2.msra.mxu0 0.0
    %2929 = vmatprep.subr.mxu0 0.0
    %2930 = vmatpush2.msra.mxu0 0.0
    %2931 = vmatprep.subr.mxu0 0.0
    %2932 = vmatpush2.msra.mxu0 0.0
    %2933 = vmatprep.subr.mxu0 0.0
    %2934 = vmatpush2.msra.mxu0 0.0
    %2935 = vmatprep.subr.mxu0 0.0
    %2936 = vmatpush2.msra.mxu0 0.0
    %2937 = vmatprep.subr.mxu0 0.0
    %2938 = vmatpush2.msra.mxu0 0.0
    %2939 = vmatprep.subr.mxu0 0.0
    %2940 = vmatpush2.msra.mxu0 0.0
    %2941 = vmatprep.subr.mxu0 0.0
    %2942 = vmatpush2.msra.mxu0 0.0
    %2943 = vmatprep.subr.mxu0 0.0
    %2944 = vmatpush2.msra.mxu0 0.0
    %2945 = vmatprep.subr.mxu0 0.0
    %2946 = vmatpush2.msra.mxu0 0.0
    %2947 = vmatprep.subr.mxu0 0.0
    %2948 = vmatpush2.msra.mxu0 0.0
    %2949 = vmatprep.subr.mxu0 0.0
    %2950 = vmatpush2.msra.mxu0 0.0
    %2951 = vmatprep.subr.mxu0 0.0
    %2952 = vmatpush2.msra.mxu0 0.0
    %2953 = vmatprep.mubr.f32.mxu0 0.0
    %2954 = vmatmul.mubr.f32.gmra.mxu0 %v2878
    %v2955 = vpop.f32.mrf.mxu0
    %v2956 = vadd.f32 %v2875, %v2955
    %v2957 = vpop.f32.mrf.mxu0
    %2958 = vmatprep.mubr.f32.mxu0 0.0
    %2959 = vmatmul.mubr.f32.gmra.mxu0 %v2881
    %v2960 = vpop.f32.mrf.mxu0
    %v2961 = vadd.f32 %v2875, %v2960
    %v2962 = vpop.f32.mrf.mxu0
    %2963 = vmatprep.mubr.f32.mxu0 0.0
    %2964 = vmatmul.mubr.f32.gmra.mxu0 %v2884
    %v2965 = vpop.f32.mrf.mxu0
    %v2966 = vadd.f32 %v2875, %v2965
    %v2967 = vpop.f32.mrf.mxu0
    %2968 = vmatprep.mubr.f32.mxu0 0.0
    %2969 = vmatmul.mubr.f32.gmra.mxu0 %v2887
    %v2970 = vpop.f32.mrf.mxu0
    %v2971 = vadd.f32 %v2875, %v2970
    %v2972 = vpop.f32.mrf.mxu0
    %2973 = vdwg.mxu0
    %2976 = vrot.lane.b32.xlu0 %v2956, 120
    %v2977 = vpop.permute.xlu0 %2976
    %2978 = vrot.lane.b32.xlu0 %v2961, 120
    %v2979 = vpop.permute.xlu0 %2978
    %2982 = vrot.lane.b32.xlu0 %v2956, 112
    %v2983 = vpop.permute.xlu0 %2982
    %2984 = vrot.lane.b32.xlu0 %v2961, 112
    %v2985 = vpop.permute.xlu0 %2984
    %2988 = vrot.lane.b32.xlu0 %v2956, 104
    %v2989 = vpop.permute.xlu0 %2988
    %2990 = vrot.lane.b32.xlu0 %v2961, 104
    %v2991 = vpop.permute.xlu0 %2990
    %2996 = vrot.lane.b32.xlu0 %v2966, 120
    %v2997 = vpop.permute.xlu0 %2996
    %2998 = vrot.lane.b32.xlu0 %v2971, 120
    %v2999 = vpop.permute.xlu0 %2998
    %3002 = vrot.lane.b32.xlu0 %v2966, 112
    %v3003 = vpop.permute.xlu0 %3002
    %3004 = vrot.lane.b32.xlu0 %v2971, 112
    %v3005 = vpop.permute.xlu0 %3004
    %3008 = vrot.lane.b32.xlu0 %v2966, 104
    %v3009 = vpop.permute.xlu0 %3008
    %3010 = vrot.lane.b32.xlu0 %v2971, 104
    %v3011 = vpop.permute.xlu0 %3010
    %v3014 = vmul.f32 %v2956, 0.35355338
    %v3015 = vmul.f32 %v2961, 0.35355338
    %v3016 = vmul.f32 %v2977, 0.35355338
    %v3017 = vmul.f32 %v2979, 0.35355338
    %v3018 = vmul.f32 %v2983, 0.35355338
    %v3019 = vmul.f32 %v2985, 0.35355338
    %v3020 = vmul.f32 %v2989, 0.35355338
    %v3021 = vmul.f32 %v2991, 0.35355338
    %v3022 = vmul.f32 %v2966, 0.35355338
    %v3023 = vmul.f32 %v2971, 0.35355338
    %v3024 = vmul.f32 %v2997, 0.35355338
    %v3025 = vmul.f32 %v2999, 0.35355338
    %v3026 = vmul.f32 %v3003, 0.35355338
    %v3027 = vmul.f32 %v3005, 0.35355338
    %v3028 = vmul.f32 %v3009, 0.35355338
    %v3029 = vmul.f32 %v3011, 0.35355338
    %3030 = vrot.lane.b32.xlu0 %v2956, 96
    %v3031 = vpop.permute.xlu0 %3030
    %3032 = vrot.lane.b32.xlu0 %v2961, 96
    %v3033 = vpop.permute.xlu0 %3032
    %vm3034 = vcmask 64512
    %v3036 = vsel %vm3034, %v3014, 0
    %v3039 = vsel %vm3034, %v3015, 0
    %v3041 = vsel %vm3034, %v3031, 0
    %v3043 = vsel %vm3034, %v3033, 0
    %3045 = vmatprep.subr.mxu0 0.0
    %3046 = vmatpush1.xpose.msra.mxu0 0.0
    %3047 = vmatprep.subr.mxu0 0.0
    %3048 = vmatpush1.xpose.msra.mxu0 0.0
    %3049 = vmatprep.subr.mxu0 0.0
    %3050 = vmatpush1.xpose.msra.mxu0 0.0
    %3051 = vmatprep.subr.mxu0 0.0
    %3052 = vmatpush1.xpose.msra.mxu0 0.0
    %3053 = vmatprep.subr.mxu0 0.0
    %3054 = vmatpush1.xpose.msra.mxu0 0.0
    %3055 = vmatprep.subr.mxu0 0.0
    %3056 = vmatpush1.xpose.msra.mxu0 0.0
    %3057 = vmatprep.subr.mxu0 0.0
    %3058 = vmatpush1.xpose.msra.mxu0 0.0
    %3059 = vmatprep.subr.mxu0 0.0
    %3060 = vmatpush1.xpose.msra.mxu0 0.0
    %3061 = vmatprep.subr.mxu0 0.0
    %3062 = vmatpush1.xpose.msra.mxu0 0.0
    %3063 = vmatprep.subr.mxu0 0.0
    %3064 = vmatpush1.xpose.msra.mxu0 0.0
    %3065 = vmatprep.subr.mxu0 0.0
    %3066 = vmatpush1.xpose.msra.mxu0 0.0
    %3067 = vmatprep.subr.mxu0 0.0
    %3068 = vmatpush1.xpose.msra.mxu0 0.0
    %3069 = vmatprep.subr.mxu0 0.0
    %3070 = vmatpush1.xpose.msra.mxu0 0.0
    %3071 = vmatprep.subr.mxu0 0.0
    %3072 = vmatpush1.xpose.msra.mxu0 0.0
    %3073 = vmatprep.subr.mxu0 0.0
    %3074 = vmatpush1.xpose.msra.mxu0 %v3043
    %3075 = vmatprep.subr.mxu0 0.0
    %3076 = vmatpush1.xpose.msra.mxu0 %v3041
    %3077 = vmatprep.subr.mxu0 0.0
    %3078 = vmatpush2.xpose.msra.mxu0 0.0
    %3079 = vmatprep.subr.mxu0 0.0
    %3080 = vmatpush2.xpose.msra.mxu0 0.0
    %3081 = vmatprep.subr.mxu0 0.0
    %3082 = vmatpush2.xpose.msra.mxu0 0.0
    %3083 = vmatprep.subr.mxu0 0.0
    %3084 = vmatpush2.xpose.msra.mxu0 0.0
    %3085 = vmatprep.subr.mxu0 0.0
    %3086 = vmatpush2.xpose.msra.mxu0 0.0
    %3087 = vmatprep.subr.mxu0 0.0
    %3088 = vmatpush2.xpose.msra.mxu0 0.0
    %3089 = vmatprep.subr.mxu0 0.0
    %3090 = vmatpush2.xpose.msra.mxu0 0.0
    %3091 = vmatprep.subr.mxu0 0.0
    %3092 = vmatpush2.xpose.msra.mxu0 0.0
    %3093 = vmatprep.subr.mxu0 0.0
    %3094 = vmatpush2.xpose.msra.mxu0 0.0
    %3095 = vmatprep.subr.mxu0 0.0
    %3096 = vmatpush2.xpose.msra.mxu0 0.0
    %3097 = vmatprep.subr.mxu0 0.0
    %3098 = vmatpush2.xpose.msra.mxu0 0.0
    %3099 = vmatprep.subr.mxu0 0.0
    %3100 = vmatpush2.xpose.msra.mxu0 0.0
    %3101 = vmatprep.subr.mxu0 0.0
    %3102 = vmatpush2.xpose.msra.mxu0 0.0
    %3103 = vmatprep.subr.mxu0 0.0
    %3104 = vmatpush2.xpose.msra.mxu0 0.0
    %3105 = vmatprep.subr.mxu0 0.0
    %3106 = vmatpush2.xpose.msra.mxu0 0.0
    %3107 = vmatprep.subr.mxu0 0.0
    %3108 = vmatpush2.xpose.msra.mxu0 0.0
    %3109 = vmatprep.mubr.f32.mxu0 0.0
    %3110 = vmatmul.mubr.f32.gmra.mxu0 %v3036
    %v3111 = vpop.f32.mrf.mxu0
    %v3112 = vadd.f32 0.0, %v3111
    %v3113 = vpop.f32.mrf.mxu0
    %3114 = vmatprep.mubr.f32.mxu0 0.0
    %3115 = vmatmul.mubr.f32.gmra.mxu0 %v3039
    %v3116 = vpop.f32.mrf.mxu0
    %v3117 = vadd.f32 0.0, %v3116
    %v3118 = vpop.f32.mrf.mxu0
    %3119 = vdwg.mxu0
    %3120 = vrot.lane.b32.xlu0 %v2977, 96
    %v3121 = vpop.permute.xlu0 %3120
    %3122 = vrot.lane.b32.xlu0 %v2979, 96
    %v3123 = vpop.permute.xlu0 %3122
    %v3125 = vsel %vm3034, %v3016, 0
    %v3128 = vsel %vm3034, %v3017, 0
    %v3130 = vsel %vm3034, %v3121, 0
    %v3132 = vsel %vm3034, %v3123, 0
    %3134 = vmatprep.subr.mxu0 0.0
    %3135 = vmatpush1.xpose.msra.mxu0 0.0
    %3136 = vmatprep.subr.mxu0 0.0
    %3137 = vmatpush1.xpose.msra.mxu0 0.0
    %3138 = vmatprep.subr.mxu0 0.0
    %3139 = vmatpush1.xpose.msra.mxu0 0.0
    %3140 = vmatprep.subr.mxu0 0.0
    %3141 = vmatpush1.xpose.msra.mxu0 0.0
    %3142 = vmatprep.subr.mxu0 0.0
    %3143 = vmatpush1.xpose.msra.mxu0 0.0
    %3144 = vmatprep.subr.mxu0 0.0
    %3145 = vmatpush1.xpose.msra.mxu0 0.0
    %3146 = vmatprep.subr.mxu0 0.0
    %3147 = vmatpush1.xpose.msra.mxu0 0.0
    %3148 = vmatprep.subr.mxu0 0.0
    %3149 = vmatpush1.xpose.msra.mxu0 0.0
    %3150 = vmatprep.subr.mxu0 0.0
    %3151 = vmatpush1.xpose.msra.mxu0 0.0
    %3152 = vmatprep.subr.mxu0 0.0
    %3153 = vmatpush1.xpose.msra.mxu0 0.0
    %3154 = vmatprep.subr.mxu0 0.0
    %3155 = vmatpush1.xpose.msra.mxu0 0.0
    %3156 = vmatprep.subr.mxu0 0.0
    %3157 = vmatpush1.xpose.msra.mxu0 0.0
    %3158 = vmatprep.subr.mxu0 0.0
    %3159 = vmatpush1.xpose.msra.mxu0 0.0
    %3160 = vmatprep.subr.mxu0 0.0
    %3161 = vmatpush1.xpose.msra.mxu0 0.0
    %3162 = vmatprep.subr.mxu0 0.0
    %3163 = vmatpush1.xpose.msra.mxu0 %v3132
    %3164 = vmatprep.subr.mxu0 0.0
    %3165 = vmatpush1.xpose.msra.mxu0 %v3130
    %3166 = vmatprep.subr.mxu0 0.0
    %3167 = vmatpush2.xpose.msra.mxu0 0.0
    %3168 = vmatprep.subr.mxu0 0.0
    %3169 = vmatpush2.xpose.msra.mxu0 0.0
    %3170 = vmatprep.subr.mxu0 0.0
    %3171 = vmatpush2.xpose.msra.mxu0 0.0
    %3172 = vmatprep.subr.mxu0 0.0
    %3173 = vmatpush2.xpose.msra.mxu0 0.0
    %3174 = vmatprep.subr.mxu0 0.0
    %3175 = vmatpush2.xpose.msra.mxu0 0.0
    %3176 = vmatprep.subr.mxu0 0.0
    %3177 = vmatpush2.xpose.msra.mxu0 0.0
    %3178 = vmatprep.subr.mxu0 0.0
    %3179 = vmatpush2.xpose.msra.mxu0 0.0
    %3180 = vmatprep.subr.mxu0 0.0
    %3181 = vmatpush2.xpose.msra.mxu0 0.0
    %3182 = vmatprep.subr.mxu0 0.0
    %3183 = vmatpush2.xpose.msra.mxu0 0.0
    %3184 = vmatprep.subr.mxu0 0.0
    %3185 = vmatpush2.xpose.msra.mxu0 0.0
    %3186 = vmatprep.subr.mxu0 0.0
    %3187 = vmatpush2.xpose.msra.mxu0 0.0
    %3188 = vmatprep.subr.mxu0 0.0
    %3189 = vmatpush2.xpose.msra.mxu0 0.0
    %3190 = vmatprep.subr.mxu0 0.0
    %3191 = vmatpush2.xpose.msra.mxu0 0.0
    %3192 = vmatprep.subr.mxu0 0.0
    %3193 = vmatpush2.xpose.msra.mxu0 0.0
    %3194 = vmatprep.subr.mxu0 0.0
    %3195 = vmatpush2.xpose.msra.mxu0 0.0
    %3196 = vmatprep.subr.mxu0 0.0
    %3197 = vmatpush2.xpose.msra.mxu0 0.0
    %3198 = vmatprep.mubr.f32.mxu0 0.0
    %3199 = vmatmul.mubr.f32.gmra.mxu0 %v3125
    %v3200 = vpop.f32.mrf.mxu0
    %v3201 = vadd.f32 0.0, %v3200
    %v3202 = vpop.f32.mrf.mxu0
    %3203 = vmatprep.mubr.f32.mxu0 0.0
    %3204 = vmatmul.mubr.f32.gmra.mxu0 %v3128
    %v3205 = vpop.f32.mrf.mxu0
    %v3206 = vadd.f32 0.0, %v3205
    %v3207 = vpop.f32.mrf.mxu0
    %3208 = vdwg.mxu0
    %3209 = vrot.lane.b32.xlu0 %v2983, 96
    %v3210 = vpop.permute.xlu0 %3209
    %3211 = vrot.lane.b32.xlu0 %v2985, 96
    %v3212 = vpop.permute.xlu0 %3211
    %v3214 = vsel %vm3034, %v3018, 0
    %v3217 = vsel %vm3034, %v3019, 0
    %v3219 = vsel %vm3034, %v3210, 0
    %v3221 = vsel %vm3034, %v3212, 0
    %3223 = vmatprep.subr.mxu0 0.0
    %3224 = vmatpush1.xpose.msra.mxu0 0.0
    %3225 = vmatprep.subr.mxu0 0.0
    %3226 = vmatpush1.xpose.msra.mxu0 0.0
    %3227 = vmatprep.subr.mxu0 0.0
    %3228 = vmatpush1.xpose.msra.mxu0 0.0
    %3229 = vmatprep.subr.mxu0 0.0
    %3230 = vmatpush1.xpose.msra.mxu0 0.0
    %3231 = vmatprep.subr.mxu0 0.0
    %3232 = vmatpush1.xpose.msra.mxu0 0.0
    %3233 = vmatprep.subr.mxu0 0.0
    %3234 = vmatpush1.xpose.msra.mxu0 0.0
    %3235 = vmatprep.subr.mxu0 0.0
    %3236 = vmatpush1.xpose.msra.mxu0 0.0
    %3237 = vmatprep.subr.mxu0 0.0
    %3238 = vmatpush1.xpose.msra.mxu0 0.0
    %3239 = vmatprep.subr.mxu0 0.0
    %3240 = vmatpush1.xpose.msra.mxu0 0.0
    %3241 = vmatprep.subr.mxu0 0.0
    %3242 = vmatpush1.xpose.msra.mxu0 0.0
    %3243 = vmatprep.subr.mxu0 0.0
    %3244 = vmatpush1.xpose.msra.mxu0 0.0
    %3245 = vmatprep.subr.mxu0 0.0
    %3246 = vmatpush1.xpose.msra.mxu0 0.0
    %3247 = vmatprep.subr.mxu0 0.0
    %3248 = vmatpush1.xpose.msra.mxu0 0.0
    %3249 = vmatprep.subr.mxu0 0.0
    %3250 = vmatpush1.xpose.msra.mxu0 0.0
    %3251 = vmatprep.subr.mxu0 0.0
    %3252 = vmatpush1.xpose.msra.mxu0 %v3221
    %3253 = vmatprep.subr.mxu0 0.0
    %3254 = vmatpush1.xpose.msra.mxu0 %v3219
    %3255 = vmatprep.subr.mxu0 0.0
    %3256 = vmatpush2.xpose.msra.mxu0 0.0
    %3257 = vmatprep.subr.mxu0 0.0
    %3258 = vmatpush2.xpose.msra.mxu0 0.0
    %3259 = vmatprep.subr.mxu0 0.0
    %3260 = vmatpush2.xpose.msra.mxu0 0.0
    %3261 = vmatprep.subr.mxu0 0.0
    %3262 = vmatpush2.xpose.msra.mxu0 0.0
    %3263 = vmatprep.subr.mxu0 0.0
    %3264 = vmatpush2.xpose.msra.mxu0 0.0
    %3265 = vmatprep.subr.mxu0 0.0
    %3266 = vmatpush2.xpose.msra.mxu0 0.0
    %3267 = vmatprep.subr.mxu0 0.0
    %3268 = vmatpush2.xpose.msra.mxu0 0.0
    %3269 = vmatprep.subr.mxu0 0.0
    %3270 = vmatpush2.xpose.msra.mxu0 0.0
    %3271 = vmatprep.subr.mxu0 0.0
    %3272 = vmatpush2.xpose.msra.mxu0 0.0
    %3273 = vmatprep.subr.mxu0 0.0
    %3274 = vmatpush2.xpose.msra.mxu0 0.0
    %3275 = vmatprep.subr.mxu0 0.0
    %3276 = vmatpush2.xpose.msra.mxu0 0.0
    %3277 = vmatprep.subr.mxu0 0.0
    %3278 = vmatpush2.xpose.msra.mxu0 0.0
    %3279 = vmatprep.subr.mxu0 0.0
    %3280 = vmatpush2.xpose.msra.mxu0 0.0
    %3281 = vmatprep.subr.mxu0 0.0
    %3282 = vmatpush2.xpose.msra.mxu0 0.0
    %3283 = vmatprep.subr.mxu0 0.0
    %3284 = vmatpush2.xpose.msra.mxu0 0.0
    %3285 = vmatprep.subr.mxu0 0.0
    %3286 = vmatpush2.xpose.msra.mxu0 0.0
    %3287 = vmatprep.mubr.f32.mxu0 0.0
    %3288 = vmatmul.mubr.f32.gmra.mxu0 %v3214
    %v3289 = vpop.f32.mrf.mxu0
    %v3290 = vadd.f32 0.0, %v3289
    %v3291 = vpop.f32.mrf.mxu0
    %3292 = vmatprep.mubr.f32.mxu0 0.0
    %3293 = vmatmul.mubr.f32.gmra.mxu0 %v3217
    %v3294 = vpop.f32.mrf.mxu0
    %v3295 = vadd.f32 0.0, %v3294
    %v3296 = vpop.f32.mrf.mxu0
    %3297 = vdwg.mxu0
    %3298 = vrot.lane.b32.xlu0 %v2989, 96
    %v3299 = vpop.permute.xlu0 %3298
    %3300 = vrot.lane.b32.xlu0 %v2991, 96
    %v3301 = vpop.permute.xlu0 %3300
    %v3303 = vsel %vm3034, %v3020, 0
    %v3306 = vsel %vm3034, %v3021, 0
    %v3308 = vsel %vm3034, %v3299, 0
    %v3310 = vsel %vm3034, %v3301, 0
    %3312 = vmatprep.subr.mxu0 0.0
    %3313 = vmatpush1.xpose.msra.mxu0 0.0
    %3314 = vmatprep.subr.mxu0 0.0
    %3315 = vmatpush1.xpose.msra.mxu0 0.0
    %3316 = vmatprep.subr.mxu0 0.0
    %3317 = vmatpush1.xpose.msra.mxu0 0.0
    %3318 = vmatprep.subr.mxu0 0.0
    %3319 = vmatpush1.xpose.msra.mxu0 0.0
    %3320 = vmatprep.subr.mxu0 0.0
    %3321 = vmatpush1.xpose.msra.mxu0 0.0
    %3322 = vmatprep.subr.mxu0 0.0
    %3323 = vmatpush1.xpose.msra.mxu0 0.0
    %3324 = vmatprep.subr.mxu0 0.0
    %3325 = vmatpush1.xpose.msra.mxu0 0.0
    %3326 = vmatprep.subr.mxu0 0.0
    %3327 = vmatpush1.xpose.msra.mxu0 0.0
    %3328 = vmatprep.subr.mxu0 0.0
    %3329 = vmatpush1.xpose.msra.mxu0 0.0
    %3330 = vmatprep.subr.mxu0 0.0
    %3331 = vmatpush1.xpose.msra.mxu0 0.0
    %3332 = vmatprep.subr.mxu0 0.0
    %3333 = vmatpush1.xpose.msra.mxu0 0.0
    %3334 = vmatprep.subr.mxu0 0.0
    %3335 = vmatpush1.xpose.msra.mxu0 0.0
    %3336 = vmatprep.subr.mxu0 0.0
    %3337 = vmatpush1.xpose.msra.mxu0 0.0
    %3338 = vmatprep.subr.mxu0 0.0
    %3339 = vmatpush1.xpose.msra.mxu0 0.0
    %3340 = vmatprep.subr.mxu0 0.0
    %3341 = vmatpush1.xpose.msra.mxu0 %v3310
    %3342 = vmatprep.subr.mxu0 0.0
    %3343 = vmatpush1.xpose.msra.mxu0 %v3308
    %3344 = vmatprep.subr.mxu0 0.0
    %3345 = vmatpush2.xpose.msra.mxu0 0.0
    %3346 = vmatprep.subr.mxu0 0.0
    %3347 = vmatpush2.xpose.msra.mxu0 0.0
    %3348 = vmatprep.subr.mxu0 0.0
    %3349 = vmatpush2.xpose.msra.mxu0 0.0
    %3350 = vmatprep.subr.mxu0 0.0
    %3351 = vmatpush2.xpose.msra.mxu0 0.0
    %3352 = vmatprep.subr.mxu0 0.0
    %3353 = vmatpush2.xpose.msra.mxu0 0.0
    %3354 = vmatprep.subr.mxu0 0.0
    %3355 = vmatpush2.xpose.msra.mxu0 0.0
    %3356 = vmatprep.subr.mxu0 0.0
    %3357 = vmatpush2.xpose.msra.mxu0 0.0
    %3358 = vmatprep.subr.mxu0 0.0
    %3359 = vmatpush2.xpose.msra.mxu0 0.0
    %3360 = vmatprep.subr.mxu0 0.0
    %3361 = vmatpush2.xpose.msra.mxu0 0.0
    %3362 = vmatprep.subr.mxu0 0.0
    %3363 = vmatpush2.xpose.msra.mxu0 0.0
    %3364 = vmatprep.subr.mxu0 0.0
    %3365 = vmatpush2.xpose.msra.mxu0 0.0
    %3366 = vmatprep.subr.mxu0 0.0
    %3367 = vmatpush2.xpose.msra.mxu0 0.0
    %3368 = vmatprep.subr.mxu0 0.0
    %3369 = vmatpush2.xpose.msra.mxu0 0.0
    %3370 = vmatprep.subr.mxu0 0.0
    %3371 = vmatpush2.xpose.msra.mxu0 0.0
    %3372 = vmatprep.subr.mxu0 0.0
    %3373 = vmatpush2.xpose.msra.mxu0 0.0
    %3374 = vmatprep.subr.mxu0 0.0
    %3375 = vmatpush2.xpose.msra.mxu0 0.0
    %3376 = vmatprep.mubr.f32.mxu0 0.0
    %3377 = vmatmul.mubr.f32.gmra.mxu0 %v3303
    %v3378 = vpop.f32.mrf.mxu0
    %v3379 = vadd.f32 0.0, %v3378
    %v3380 = vpop.f32.mrf.mxu0
    %3381 = vmatprep.mubr.f32.mxu0 0.0
    %3382 = vmatmul.mubr.f32.gmra.mxu0 %v3306
    %v3383 = vpop.f32.mrf.mxu0
    %v3384 = vadd.f32 0.0, %v3383
    %v3385 = vpop.f32.mrf.mxu0
    %3386 = vdwg.mxu0
    %3387 = vrot.lane.b32.xlu0 %v2966, 96
    %v3388 = vpop.permute.xlu0 %3387
    %3389 = vrot.lane.b32.xlu0 %v2971, 96
    %v3390 = vpop.permute.xlu0 %3389
    %v3392 = vsel %vm3034, %v3022, 0
    %v3395 = vsel %vm3034, %v3023, 0
    %v3397 = vsel %vm3034, %v3388, 0
    %v3399 = vsel %vm3034, %v3390, 0
    %3401 = vmatprep.subr.mxu0 0.0
    %3402 = vmatpush1.xpose.msra.mxu0 0.0
    %3403 = vmatprep.subr.mxu0 0.0
    %3404 = vmatpush1.xpose.msra.mxu0 0.0
    %3405 = vmatprep.subr.mxu0 0.0
    %3406 = vmatpush1.xpose.msra.mxu0 0.0
    %3407 = vmatprep.subr.mxu0 0.0
    %3408 = vmatpush1.xpose.msra.mxu0 0.0
    %3409 = vmatprep.subr.mxu0 0.0
    %3410 = vmatpush1.xpose.msra.mxu0 0.0
    %3411 = vmatprep.subr.mxu0 0.0
    %3412 = vmatpush1.xpose.msra.mxu0 0.0
    %3413 = vmatprep.subr.mxu0 0.0
    %3414 = vmatpush1.xpose.msra.mxu0 0.0
    %3415 = vmatprep.subr.mxu0 0.0
    %3416 = vmatpush1.xpose.msra.mxu0 0.0
    %3417 = vmatprep.subr.mxu0 0.0
    %3418 = vmatpush1.xpose.msra.mxu0 0.0
    %3419 = vmatprep.subr.mxu0 0.0
    %3420 = vmatpush1.xpose.msra.mxu0 0.0
    %3421 = vmatprep.subr.mxu0 0.0
    %3422 = vmatpush1.xpose.msra.mxu0 0.0
    %3423 = vmatprep.subr.mxu0 0.0
    %3424 = vmatpush1.xpose.msra.mxu0 0.0
    %3425 = vmatprep.subr.mxu0 0.0
    %3426 = vmatpush1.xpose.msra.mxu0 0.0
    %3427 = vmatprep.subr.mxu0 0.0
    %3428 = vmatpush1.xpose.msra.mxu0 0.0
    %3429 = vmatprep.subr.mxu0 0.0
    %3430 = vmatpush1.xpose.msra.mxu0 %v3399
    %3431 = vmatprep.subr.mxu0 0.0
    %3432 = vmatpush1.xpose.msra.mxu0 %v3397
    %3433 = vmatprep.subr.mxu0 0.0
    %3434 = vmatpush2.xpose.msra.mxu0 0.0
    %3435 = vmatprep.subr.mxu0 0.0
    %3436 = vmatpush2.xpose.msra.mxu0 0.0
    %3437 = vmatprep.subr.mxu0 0.0
    %3438 = vmatpush2.xpose.msra.mxu0 0.0
    %3439 = vmatprep.subr.mxu0 0.0
    %3440 = vmatpush2.xpose.msra.mxu0 0.0
    %3441 = vmatprep.subr.mxu0 0.0
    %3442 = vmatpush2.xpose.msra.mxu0 0.0
    %3443 = vmatprep.subr.mxu0 0.0
    %3444 = vmatpush2.xpose.msra.mxu0 0.0
    %3445 = vmatprep.subr.mxu0 0.0
    %3446 = vmatpush2.xpose.msra.mxu0 0.0
    %3447 = vmatprep.subr.mxu0 0.0
    %3448 = vmatpush2.xpose.msra.mxu0 0.0
    %3449 = vmatprep.subr.mxu0 0.0
    %3450 = vmatpush2.xpose.msra.mxu0 0.0
    %3451 = vmatprep.subr.mxu0 0.0
    %3452 = vmatpush2.xpose.msra.mxu0 0.0
    %3453 = vmatprep.subr.mxu0 0.0
    %3454 = vmatpush2.xpose.msra.mxu0 0.0
    %3455 = vmatprep.subr.mxu0 0.0
    %3456 = vmatpush2.xpose.msra.mxu0 0.0
    %3457 = vmatprep.subr.mxu0 0.0
    %3458 = vmatpush2.xpose.msra.mxu0 0.0
    %3459 = vmatprep.subr.mxu0 0.0
    %3460 = vmatpush2.xpose.msra.mxu0 0.0
    %3461 = vmatprep.subr.mxu0 0.0
    %3462 = vmatpush2.xpose.msra.mxu0 0.0
    %3463 = vmatprep.subr.mxu0 0.0
    %3464 = vmatpush2.xpose.msra.mxu0 0.0
    %3465 = vmatprep.mubr.f32.mxu0 0.0
    %3466 = vmatmul.mubr.f32.gmra.mxu0 %v3392
    %v3467 = vpop.f32.mrf.mxu0
    %v3468 = vadd.f32 0.0, %v3467
    %v3469 = vpop.f32.mrf.mxu0
    %3470 = vmatprep.mubr.f32.mxu0 0.0
    %3471 = vmatmul.mubr.f32.gmra.mxu0 %v3395
    %v3472 = vpop.f32.mrf.mxu0
    %v3473 = vadd.f32 0.0, %v3472
    %v3474 = vpop.f32.mrf.mxu0
    %3475 = vdwg.mxu0
    %3476 = vrot.lane.b32.xlu0 %v2997, 96
    %v3477 = vpop.permute.xlu0 %3476
    %3478 = vrot.lane.b32.xlu0 %v2999, 96
    %v3479 = vpop.permute.xlu0 %3478
    %v3481 = vsel %vm3034, %v3024, 0
    %v3484 = vsel %vm3034, %v3025, 0
    %v3486 = vsel %vm3034, %v3477, 0
    %v3488 = vsel %vm3034, %v3479, 0
    %3490 = vmatprep.subr.mxu0 0.0
    %3491 = vmatpush1.xpose.msra.mxu0 0.0
    %3492 = vmatprep.subr.mxu0 0.0
    %3493 = vmatpush1.xpose.msra.mxu0 0.0
    %3494 = vmatprep.subr.mxu0 0.0
    %3495 = vmatpush1.xpose.msra.mxu0 0.0
    %3496 = vmatprep.subr.mxu0 0.0
    %3497 = vmatpush1.xpose.msra.mxu0 0.0
    %3498 = vmatprep.subr.mxu0 0.0
    %3499 = vmatpush1.xpose.msra.mxu0 0.0
    %3500 = vmatprep.subr.mxu0 0.0
    %3501 = vmatpush1.xpose.msra.mxu0 0.0
    %3502 = vmatprep.subr.mxu0 0.0
    %3503 = vmatpush1.xpose.msra.mxu0 0.0
    %3504 = vmatprep.subr.mxu0 0.0
    %3505 = vmatpush1.xpose.msra.mxu0 0.0
    %3506 = vmatprep.subr.mxu0 0.0
    %3507 = vmatpush1.xpose.msra.mxu0 0.0
    %3508 = vmatprep.subr.mxu0 0.0
    %3509 = vmatpush1.xpose.msra.mxu0 0.0
    %3510 = vmatprep.subr.mxu0 0.0
    %3511 = vmatpush1.xpose.msra.mxu0 0.0
    %3512 = vmatprep.subr.mxu0 0.0
    %3513 = vmatpush1.xpose.msra.mxu0 0.0
    %3514 = vmatprep.subr.mxu0 0.0
    %3515 = vmatpush1.xpose.msra.mxu0 0.0
    %3516 = vmatprep.subr.mxu0 0.0
    %3517 = vmatpush1.xpose.msra.mxu0 0.0
    %3518 = vmatprep.subr.mxu0 0.0
    %3519 = vmatpush1.xpose.msra.mxu0 %v3488
    %3520 = vmatprep.subr.mxu0 0.0
    %3521 = vmatpush1.xpose.msra.mxu0 %v3486
    %3522 = vmatprep.subr.mxu0 0.0
    %3523 = vmatpush2.xpose.msra.mxu0 0.0
    %3524 = vmatprep.subr.mxu0 0.0
    %3525 = vmatpush2.xpose.msra.mxu0 0.0
    %3526 = vmatprep.subr.mxu0 0.0
    %3527 = vmatpush2.xpose.msra.mxu0 0.0
    %3528 = vmatprep.subr.mxu0 0.0
    %3529 = vmatpush2.xpose.msra.mxu0 0.0
    %3530 = vmatprep.subr.mxu0 0.0
    %3531 = vmatpush2.xpose.msra.mxu0 0.0
    %3532 = vmatprep.subr.mxu0 0.0
    %3533 = vmatpush2.xpose.msra.mxu0 0.0
    %3534 = vmatprep.subr.mxu0 0.0
    %3535 = vmatpush2.xpose.msra.mxu0 0.0
    %3536 = vmatprep.subr.mxu0 0.0
    %3537 = vmatpush2.xpose.msra.mxu0 0.0
    %3538 = vmatprep.subr.mxu0 0.0
    %3539 = vmatpush2.xpose.msra.mxu0 0.0
    %3540 = vmatprep.subr.mxu0 0.0
    %3541 = vmatpush2.xpose.msra.mxu0 0.0
    %3542 = vmatprep.subr.mxu0 0.0
    %3543 = vmatpush2.xpose.msra.mxu0 0.0
    %3544 = vmatprep.subr.mxu0 0.0
    %3545 = vmatpush2.xpose.msra.mxu0 0.0
    %3546 = vmatprep.subr.mxu0 0.0
    %3547 = vmatpush2.xpose.msra.mxu0 0.0
    %3548 = vmatprep.subr.mxu0 0.0
    %3549 = vmatpush2.xpose.msra.mxu0 0.0
    %3550 = vmatprep.subr.mxu0 0.0
    %3551 = vmatpush2.xpose.msra.mxu0 0.0
    %3552 = vmatprep.subr.mxu0 0.0
    %3553 = vmatpush2.xpose.msra.mxu0 0.0
    %3554 = vmatprep.mubr.f32.mxu0 0.0
    %3555 = vmatmul.mubr.f32.gmra.mxu0 %v3481
    %v3556 = vpop.f32.mrf.mxu0
    %v3557 = vadd.f32 0.0, %v3556
    %v3558 = vpop.f32.mrf.mxu0
    %3559 = vmatprep.mubr.f32.mxu0 0.0
    %3560 = vmatmul.mubr.f32.gmra.mxu0 %v3484
    %v3561 = vpop.f32.mrf.mxu0
    %v3562 = vadd.f32 0.0, %v3561
    %v3563 = vpop.f32.mrf.mxu0
    %3564 = vdwg.mxu0
    %3565 = vrot.lane.b32.xlu0 %v3003, 96
    %v3566 = vpop.permute.xlu0 %3565
    %3567 = vrot.lane.b32.xlu0 %v3005, 96
    %v3568 = vpop.permute.xlu0 %3567
    %v3570 = vsel %vm3034, %v3026, 0
    %v3573 = vsel %vm3034, %v3027, 0
    %v3575 = vsel %vm3034, %v3566, 0
    %v3577 = vsel %vm3034, %v3568, 0
    %3579 = vmatprep.subr.mxu0 0.0
    %3580 = vmatpush1.xpose.msra.mxu0 0.0
    %3581 = vmatprep.subr.mxu0 0.0
    %3582 = vmatpush1.xpose.msra.mxu0 0.0
    %3583 = vmatprep.subr.mxu0 0.0
    %3584 = vmatpush1.xpose.msra.mxu0 0.0
    %3585 = vmatprep.subr.mxu0 0.0
    %3586 = vmatpush1.xpose.msra.mxu0 0.0
    %3587 = vmatprep.subr.mxu0 0.0
    %3588 = vmatpush1.xpose.msra.mxu0 0.0
    %3589 = vmatprep.subr.mxu0 0.0
    %3590 = vmatpush1.xpose.msra.mxu0 0.0
    %3591 = vmatprep.subr.mxu0 0.0
    %3592 = vmatpush1.xpose.msra.mxu0 0.0
    %3593 = vmatprep.subr.mxu0 0.0
    %3594 = vmatpush1.xpose.msra.mxu0 0.0
    %3595 = vmatprep.subr.mxu0 0.0
    %3596 = vmatpush1.xpose.msra.mxu0 0.0
    %3597 = vmatprep.subr.mxu0 0.0
    %3598 = vmatpush1.xpose.msra.mxu0 0.0
    %3599 = vmatprep.subr.mxu0 0.0
    %3600 = vmatpush1.xpose.msra.mxu0 0.0
    %3601 = vmatprep.subr.mxu0 0.0
    %3602 = vmatpush1.xpose.msra.mxu0 0.0
    %3603 = vmatprep.subr.mxu0 0.0
    %3604 = vmatpush1.xpose.msra.mxu0 0.0
    %3605 = vmatprep.subr.mxu0 0.0
    %3606 = vmatpush1.xpose.msra.mxu0 0.0
    %3607 = vmatprep.subr.mxu0 0.0
    %3608 = vmatpush1.xpose.msra.mxu0 %v3577
    %3609 = vmatprep.subr.mxu0 0.0
    %3610 = vmatpush1.xpose.msra.mxu0 %v3575
    %3611 = vmatprep.subr.mxu0 0.0
    %3612 = vmatpush2.xpose.msra.mxu0 0.0
    %3613 = vmatprep.subr.mxu0 0.0
    %3614 = vmatpush2.xpose.msra.mxu0 0.0
    %3615 = vmatprep.subr.mxu0 0.0
    %3616 = vmatpush2.xpose.msra.mxu0 0.0
    %3617 = vmatprep.subr.mxu0 0.0
    %3618 = vmatpush2.xpose.msra.mxu0 0.0
    %3619 = vmatprep.subr.mxu0 0.0
    %3620 = vmatpush2.xpose.msra.mxu0 0.0
    %3621 = vmatprep.subr.mxu0 0.0
    %3622 = vmatpush2.xpose.msra.mxu0 0.0
    %3623 = vmatprep.subr.mxu0 0.0
    %3624 = vmatpush2.xpose.msra.mxu0 0.0
    %3625 = vmatprep.subr.mxu0 0.0
    %3626 = vmatpush2.xpose.msra.mxu0 0.0
    %3627 = vmatprep.subr.mxu0 0.0
    %3628 = vmatpush2.xpose.msra.mxu0 0.0
    %3629 = vmatprep.subr.mxu0 0.0
    %3630 = vmatpush2.xpose.msra.mxu0 0.0
    %3631 = vmatprep.subr.mxu0 0.0
    %3632 = vmatpush2.xpose.msra.mxu0 0.0
    %3633 = vmatprep.subr.mxu0 0.0
    %3634 = vmatpush2.xpose.msra.mxu0 0.0
    %3635 = vmatprep.subr.mxu0 0.0
    %3636 = vmatpush2.xpose.msra.mxu0 0.0
    %3637 = vmatprep.subr.mxu0 0.0
    %3638 = vmatpush2.xpose.msra.mxu0 0.0
    %3639 = vmatprep.subr.mxu0 0.0
    %3640 = vmatpush2.xpose.msra.mxu0 0.0
    %3641 = vmatprep.subr.mxu0 0.0
    %3642 = vmatpush2.xpose.msra.mxu0 0.0
    %3643 = vmatprep.mubr.f32.mxu0 0.0
    %3644 = vmatmul.mubr.f32.gmra.mxu0 %v3570
    %v3645 = vpop.f32.mrf.mxu0
    %v3646 = vadd.f32 0.0, %v3645
    %v3647 = vpop.f32.mrf.mxu0
    %3648 = vmatprep.mubr.f32.mxu0 0.0
    %3649 = vmatmul.mubr.f32.gmra.mxu0 %v3573
    %v3650 = vpop.f32.mrf.mxu0
    %v3651 = vadd.f32 0.0, %v3650
    %v3652 = vpop.f32.mrf.mxu0
    %3653 = vdwg.mxu0
    %3654 = vrot.lane.b32.xlu0 %v3009, 96
    %v3655 = vpop.permute.xlu0 %3654
    %3656 = vrot.lane.b32.xlu0 %v3011, 96
    %v3657 = vpop.permute.xlu0 %3656
    %v3659 = vsel %vm3034, %v3028, 0
    %v3662 = vsel %vm3034, %v3029, 0
    %v3664 = vsel %vm3034, %v3655, 0
    %v3666 = vsel %vm3034, %v3657, 0
    %3668 = vmatprep.subr.mxu0 0.0
    %3669 = vmatpush1.xpose.msra.mxu0 0.0
    %3670 = vmatprep.subr.mxu0 0.0
    %3671 = vmatpush1.xpose.msra.mxu0 0.0
    %3672 = vmatprep.subr.mxu0 0.0
    %3673 = vmatpush1.xpose.msra.mxu0 0.0
    %3674 = vmatprep.subr.mxu0 0.0
    %3675 = vmatpush1.xpose.msra.mxu0 0.0
    %3676 = vmatprep.subr.mxu0 0.0
    %3677 = vmatpush1.xpose.msra.mxu0 0.0
    %3678 = vmatprep.subr.mxu0 0.0
    %3679 = vmatpush1.xpose.msra.mxu0 0.0
    %3680 = vmatprep.subr.mxu0 0.0
    %3681 = vmatpush1.xpose.msra.mxu0 0.0
    %3682 = vmatprep.subr.mxu0 0.0
    %3683 = vmatpush1.xpose.msra.mxu0 0.0
    %3684 = vmatprep.subr.mxu0 0.0
    %3685 = vmatpush1.xpose.msra.mxu0 0.0
    %3686 = vmatprep.subr.mxu0 0.0
    %3687 = vmatpush1.xpose.msra.mxu0 0.0
    %3688 = vmatprep.subr.mxu0 0.0
    %3689 = vmatpush1.xpose.msra.mxu0 0.0
    %3690 = vmatprep.subr.mxu0 0.0
    %3691 = vmatpush1.xpose.msra.mxu0 0.0
    %3692 = vmatprep.subr.mxu0 0.0
    %3693 = vmatpush1.xpose.msra.mxu0 0.0
    %3694 = vmatprep.subr.mxu0 0.0
    %3695 = vmatpush1.xpose.msra.mxu0 0.0
    %3696 = vmatprep.subr.mxu0 0.0
    %3697 = vmatpush1.xpose.msra.mxu0 %v3666
    %3698 = vmatprep.subr.mxu0 0.0
    %3699 = vmatpush1.xpose.msra.mxu0 %v3664
    %3700 = vmatprep.subr.mxu0 0.0
    %3701 = vmatpush2.xpose.msra.mxu0 0.0
    %3702 = vmatprep.subr.mxu0 0.0
    %3703 = vmatpush2.xpose.msra.mxu0 0.0
    %3704 = vmatprep.subr.mxu0 0.0
    %3705 = vmatpush2.xpose.msra.mxu0 0.0
    %3706 = vmatprep.subr.mxu0 0.0
    %3707 = vmatpush2.xpose.msra.mxu0 0.0
    %3708 = vmatprep.subr.mxu0 0.0
    %3709 = vmatpush2.xpose.msra.mxu0 0.0
    %3710 = vmatprep.subr.mxu0 0.0
    %3711 = vmatpush2.xpose.msra.mxu0 0.0
    %3712 = vmatprep.subr.mxu0 0.0
    %3713 = vmatpush2.xpose.msra.mxu0 0.0
    %3714 = vmatprep.subr.mxu0 0.0
    %3715 = vmatpush2.xpose.msra.mxu0 0.0
    %3716 = vmatprep.subr.mxu0 0.0
    %3717 = vmatpush2.xpose.msra.mxu0 0.0
    %3718 = vmatprep.subr.mxu0 0.0
    %3719 = vmatpush2.xpose.msra.mxu0 0.0
    %3720 = vmatprep.subr.mxu0 0.0
    %3721 = vmatpush2.xpose.msra.mxu0 0.0
    %3722 = vmatprep.subr.mxu0 0.0
    %3723 = vmatpush2.xpose.msra.mxu0 0.0
    %3724 = vmatprep.subr.mxu0 0.0
    %3725 = vmatpush2.xpose.msra.mxu0 0.0
    %3726 = vmatprep.subr.mxu0 0.0
    %3727 = vmatpush2.xpose.msra.mxu0 0.0
    %3728 = vmatprep.subr.mxu0 0.0
    %3729 = vmatpush2.xpose.msra.mxu0 0.0
    %3730 = vmatprep.subr.mxu0 0.0
    %3731 = vmatpush2.xpose.msra.mxu0 0.0
    %3732 = vmatprep.mubr.f32.mxu0 0.0
    %3733 = vmatmul.mubr.f32.gmra.mxu0 %v3659
    %v3734 = vpop.f32.mrf.mxu0
    %v3735 = vadd.f32 0.0, %v3734
    %v3736 = vpop.f32.mrf.mxu0
    %3737 = vmatprep.mubr.f32.mxu0 0.0
    %3738 = vmatmul.mubr.f32.gmra.mxu0 %v3662
    %v3739 = vpop.f32.mrf.mxu0
    %v3740 = vadd.f32 0.0, %v3739
    %v3741 = vpop.f32.mrf.mxu0
    %3742 = vdwg.mxu0
    %v3743 = vsel %vm195, %v3112, -inf
    %3744 = vmax.xlane.f32.xlu0 %v3743
    %v3745 = vpop.xlane.xlu0 %3744
    %v3746 = vsel %vm195, %v3117, -inf
    %3747 = vmax.xlane.f32.xlu0 %v3746
    %v3748 = vpop.xlane.xlu0 %3747
    %v3749 = vsel %vm195, %v3201, -inf
    %3750 = vmax.xlane.f32.xlu0 %v3749
    %v3751 = vpop.xlane.xlu0 %3750
    %v3752 = vsel %vm195, %v3206, -inf
    %3753 = vmax.xlane.f32.xlu0 %v3752
    %v3754 = vpop.xlane.xlu0 %3753
    %v3755 = vsel %vm195, %v3290, -inf
    %3756 = vmax.xlane.f32.xlu0 %v3755
    %v3757 = vpop.xlane.xlu0 %3756
    %v3758 = vsel %vm195, %v3295, -inf
    %3759 = vmax.xlane.f32.xlu0 %v3758
    %v3760 = vpop.xlane.xlu0 %3759
    %v3761 = vsel %vm195, %v3379, -inf
    %3762 = vmax.xlane.f32.xlu0 %v3761
    %v3763 = vpop.xlane.xlu0 %3762
    %v3764 = vsel %vm195, %v3384, -inf
    %3765 = vmax.xlane.f32.xlu0 %v3764
    %v3766 = vpop.xlane.xlu0 %3765
    %v3767 = vsel %vm195, %v3468, -inf
    %3768 = vmax.xlane.f32.xlu0 %v3767
    %v3769 = vpop.xlane.xlu0 %3768
    %v3770 = vsel %vm195, %v3473, -inf
    %3771 = vmax.xlane.f32.xlu0 %v3770
    %v3772 = vpop.xlane.xlu0 %3771
    %v3773 = vsel %vm195, %v3557, -inf
    %3774 = vmax.xlane.f32.xlu0 %v3773
    %v3775 = vpop.xlane.xlu0 %3774
    %v3776 = vsel %vm195, %v3562, -inf
    %3777 = vmax.xlane.f32.xlu0 %v3776
    %v3778 = vpop.xlane.xlu0 %3777
    %v3779 = vsel %vm195, %v3646, -inf
    %3780 = vmax.xlane.f32.xlu0 %v3779
    %v3781 = vpop.xlane.xlu0 %3780
    %v3782 = vsel %vm195, %v3651, -inf
    %3783 = vmax.xlane.f32.xlu0 %v3782
    %v3784 = vpop.xlane.xlu0 %3783
    %v3785 = vsel %vm195, %v3735, -inf
    %3786 = vmax.xlane.f32.xlu0 %v3785
    %v3787 = vpop.xlane.xlu0 %3786
    %v3788 = vsel %vm195, %v3740, -inf
    %3789 = vmax.xlane.f32.xlu0 %v3788
    %v3790 = vpop.xlane.xlu0 %3789
    %v3791 = vsub.f32 %v3112, %v3745
    %v3792 = vsub.f32 %v3117, %v3748
    %v3793 = vsub.f32 %v3201, %v3751
    %v3794 = vsub.f32 %v3206, %v3754
    %v3795 = vsub.f32 %v3290, %v3757
    %v3796 = vsub.f32 %v3295, %v3760
    %v3797 = vsub.f32 %v3379, %v3763
    %v3798 = vsub.f32 %v3384, %v3766
    %v3799 = vsub.f32 %v3468, %v3769
    %v3800 = vsub.f32 %v3473, %v3772
    %v3801 = vsub.f32 %v3557, %v3775
    %v3802 = vsub.f32 %v3562, %v3778
    %v3803 = vsub.f32 %v3646, %v3781
    %v3804 = vsub.f32 %v3651, %v3784
    %v3805 = vsub.f32 %v3735, %v3787
    %v3806 = vsub.f32 %v3740, %v3790
    %v3807 = vmul.f32 %v3791, 1.442695
    %v3808 = vpow.pop %v3807
    %v3809 = vmul.f32 %v3792, 1.442695
    %v3810 = vpow.pop %v3809
    %v3811 = vmul.f32 %v3793, 1.442695
    %v3812 = vpow.pop %v3811
    %v3813 = vmul.f32 %v3794, 1.442695
    %v3814 = vpow.pop %v3813
    %v3815 = vmul.f32 %v3795, 1.442695
    %v3816 = vpow.pop %v3815
    %v3817 = vmul.f32 %v3796, 1.442695
    %v3818 = vpow.pop %v3817
    %v3819 = vmul.f32 %v3797, 1.442695
    %v3820 = vpow.pop %v3819
    %v3821 = vmul.f32 %v3798, 1.442695
    %v3822 = vpow.pop %v3821
    %v3823 = vmul.f32 %v3799, 1.442695
    %v3824 = vpow.pop %v3823
    %v3825 = vmul.f32 %v3800, 1.442695
    %v3826 = vpow.pop %v3825
    %v3827 = vmul.f32 %v3801, 1.442695
    %v3828 = vpow.pop %v3827
    %v3829 = vmul.f32 %v3802, 1.442695
    %v3830 = vpow.pop %v3829
    %v3831 = vmul.f32 %v3803, 1.442695
    %v3832 = vpow.pop %v3831
    %v3833 = vmul.f32 %v3804, 1.442695
    %v3834 = vpow.pop %v3833
    %v3835 = vmul.f32 %v3805, 1.442695
    %v3836 = vpow.pop %v3835
    %v3837 = vmul.f32 %v3806, 1.442695
    %v3838 = vpow.pop %v3837
    %v3839 = vsel %vm195, %v3808, 0.0
    %3840 = vadd.xlane.f32.xlu0 %v3839
    %v3841 = vpop.xlane.xlu0 %3840
    %v3842 = vsel %vm195, %v3810, 0.0
    %3843 = vadd.xlane.f32.xlu0 %v3842
    %v3844 = vpop.xlane.xlu0 %3843
    %v3845 = vsel %vm195, %v3812, 0.0
    %3846 = vadd.xlane.f32.xlu0 %v3845
    %v3847 = vpop.xlane.xlu0 %3846
    %v3848 = vsel %vm195, %v3814, 0.0
    %3849 = vadd.xlane.f32.xlu0 %v3848
    %v3850 = vpop.xlane.xlu0 %3849
    %v3851 = vsel %vm195, %v3816, 0.0
    %3852 = vadd.xlane.f32.xlu0 %v3851
    %v3853 = vpop.xlane.xlu0 %3852
    %v3854 = vsel %vm195, %v3818, 0.0
    %3855 = vadd.xlane.f32.xlu0 %v3854
    %v3856 = vpop.xlane.xlu0 %3855
    %v3857 = vsel %vm195, %v3820, 0.0
    %3858 = vadd.xlane.f32.xlu0 %v3857
    %v3859 = vpop.xlane.xlu0 %3858
    %v3860 = vsel %vm195, %v3822, 0.0
    %3861 = vadd.xlane.f32.xlu0 %v3860
    %v3862 = vpop.xlane.xlu0 %3861
    %v3863 = vsel %vm195, %v3824, 0.0
    %3864 = vadd.xlane.f32.xlu0 %v3863
    %v3865 = vpop.xlane.xlu0 %3864
    %v3866 = vsel %vm195, %v3826, 0.0
    %3867 = vadd.xlane.f32.xlu0 %v3866
    %v3868 = vpop.xlane.xlu0 %3867
    %v3869 = vsel %vm195, %v3828, 0.0
    %3870 = vadd.xlane.f32.xlu0 %v3869
    %v3871 = vpop.xlane.xlu0 %3870
    %v3872 = vsel %vm195, %v3830, 0.0
    %3873 = vadd.xlane.f32.xlu0 %v3872
    %v3874 = vpop.xlane.xlu0 %3873
    %v3875 = vsel %vm195, %v3832, 0.0
    %3876 = vadd.xlane.f32.xlu0 %v3875
    %v3877 = vpop.xlane.xlu0 %3876
    %v3878 = vsel %vm195, %v3834, 0.0
    %3879 = vadd.xlane.f32.xlu0 %v3878
    %v3880 = vpop.xlane.xlu0 %3879
    %v3881 = vsel %vm195, %v3836, 0.0
    %3882 = vadd.xlane.f32.xlu0 %v3881
    %v3883 = vpop.xlane.xlu0 %3882
    %v3884 = vsel %vm195, %v3838, 0.0
    %3885 = vadd.xlane.f32.xlu0 %v3884
    %v3886 = vpop.xlane.xlu0 %3885
    %v3887 = vrcp.pop %v3841
    %v3888 = vrcp.pop %v3844
    %v3889 = vrcp.pop %v3847
    %v3890 = vrcp.pop %v3850
    %v3891 = vrcp.pop %v3853
    %v3892 = vrcp.pop %v3856
    %v3893 = vrcp.pop %v3859
    %v3894 = vrcp.pop %v3862
    %v3895 = vrcp.pop %v3865
    %v3896 = vrcp.pop %v3868
    %v3897 = vrcp.pop %v3871
    %v3898 = vrcp.pop %v3874
    %v3899 = vrcp.pop %v3877
    %v3900 = vrcp.pop %v3880
    %v3901 = vrcp.pop %v3883
    %v3902 = vrcp.pop %v3886
    %v3903 = vmul.f32 %v3808, %v3887
    %v3904 = vmul.f32 %v3810, %v3888
    %v3905 = vmul.f32 %v3812, %v3889
    %v3906 = vmul.f32 %v3814, %v3890
    %v3907 = vmul.f32 %v3816, %v3891
    %v3908 = vmul.f32 %v3818, %v3892
    %v3909 = vmul.f32 %v3820, %v3893
    %v3910 = vmul.f32 %v3822, %v3894
    %v3911 = vmul.f32 %v3824, %v3895
    %v3912 = vmul.f32 %v3826, %v3896
    %v3913 = vmul.f32 %v3828, %v3897
    %v3914 = vmul.f32 %v3830, %v3898
    %v3915 = vmul.f32 %v3832, %v3899
    %v3916 = vmul.f32 %v3834, %v3900
    %v3917 = vmul.f32 %v3836, %v3901
    %v3918 = vmul.f32 %v3838, %v3902
    %3919 = vrot.lane.b32.xlu0 %v2956, 64
    %v3920 = vpop.permute.xlu0 %3919
    %3921 = vrot.lane.b32.xlu0 %v2961, 64
    %v3922 = vpop.permute.xlu0 %3921
    %v3926 = vsel %vm195, %v3903, 0
    %v3929 = vsel %vm195, %v3904, 0
    %3931 = vmatprep.subr.mxu0 0.0
    %3932 = vmatpush1.msra.mxu0 0.0
    %3933 = vmatprep.subr.mxu0 0.0
    %3934 = vmatpush1.msra.mxu0 0.0
    %3935 = vmatprep.subr.mxu0 0.0
    %3936 = vmatpush1.msra.mxu0 0.0
    %3937 = vmatprep.subr.mxu0 0.0
    %3938 = vmatpush1.msra.mxu0 0.0
    %3939 = vmatprep.subr.mxu0 0.0
    %3940 = vmatpush1.msra.mxu0 0.0
    %3941 = vmatprep.subr.mxu0 0.0
    %3942 = vmatpush1.msra.mxu0 0.0
    %3943 = vmatprep.subr.mxu0 0.0
    %3944 = vmatpush1.msra.mxu0 0.0
    %3945 = vmatprep.subr.mxu0 0.0
    %3946 = vmatpush1.msra.mxu0 0.0
    %3947 = vmatprep.subr.mxu0 0.0
    %3948 = vmatpush1.msra.mxu0 0.0
    %3949 = vmatprep.subr.mxu0 0.0
    %3950 = vmatpush1.msra.mxu0 0.0
    %3951 = vmatprep.subr.mxu0 0.0
    %3952 = vmatpush1.msra.mxu0 0.0
    %3953 = vmatprep.subr.mxu0 0.0
    %3954 = vmatpush1.msra.mxu0 0.0
    %3955 = vmatprep.subr.mxu0 0.0
    %3956 = vmatpush1.msra.mxu0 0.0
    %3957 = vmatprep.subr.mxu0 0.0
    %3958 = vmatpush1.msra.mxu0 0.0
    %3959 = vmatprep.subr.mxu0 0.0
    %3960 = vmatpush1.msra.mxu0 %v3922
    %3961 = vmatprep.subr.mxu0 0.0
    %3962 = vmatpush1.msra.mxu0 %v3920
    %3963 = vmatprep.subr.mxu0 0.0
    %3964 = vmatpush2.msra.mxu0 0.0
    %3965 = vmatprep.subr.mxu0 0.0
    %3966 = vmatpush2.msra.mxu0 0.0
    %3967 = vmatprep.subr.mxu0 0.0
    %3968 = vmatpush2.msra.mxu0 0.0
    %3969 = vmatprep.subr.mxu0 0.0
    %3970 = vmatpush2.msra.mxu0 0.0
    %3971 = vmatprep.subr.mxu0 0.0
    %3972 = vmatpush2.msra.mxu0 0.0
    %3973 = vmatprep.subr.mxu0 0.0
    %3974 = vmatpush2.msra.mxu0 0.0
    %3975 = vmatprep.subr.mxu0 0.0
    %3976 = vmatpush2.msra.mxu0 0.0
    %3977 = vmatprep.subr.mxu0 0.0
    %3978 = vmatpush2.msra.mxu0 0.0
    %3979 = vmatprep.subr.mxu0 0.0
    %3980 = vmatpush2.msra.mxu0 0.0
    %3981 = vmatprep.subr.mxu0 0.0
    %3982 = vmatpush2.msra.mxu0 0.0
    %3983 = vmatprep.subr.mxu0 0.0
    %3984 = vmatpush2.msra.mxu0 0.0
    %3985 = vmatprep.subr.mxu0 0.0
    %3986 = vmatpush2.msra.mxu0 0.0
    %3987 = vmatprep.subr.mxu0 0.0
    %3988 = vmatpush2.msra.mxu0 0.0
    %3989 = vmatprep.subr.mxu0 0.0
    %3990 = vmatpush2.msra.mxu0 0.0
    %3991 = vmatprep.subr.mxu0 0.0
    %3992 = vmatpush2.msra.mxu0 0.0
    %3993 = vmatprep.subr.mxu0 0.0
    %3994 = vmatpush2.msra.mxu0 0.0
    %3995 = vmatprep.mubr.f32.mxu0 0.0
    %3996 = vmatmul.mubr.f32.gmra.mxu0 %v3926
    %v3997 = vpop.f32.mrf.mxu0
    %v3998 = vadd.f32 0.0, %v3997
    %v3999 = vpop.f32.mrf.mxu0
    %4000 = vmatprep.mubr.f32.mxu0 0.0
    %4001 = vmatmul.mubr.f32.gmra.mxu0 %v3929
    %v4002 = vpop.f32.mrf.mxu0
    %v4003 = vadd.f32 0.0, %v4002
    %v4004 = vpop.f32.mrf.mxu0
    %4005 = vdwg.mxu0
    %4006 = vrot.lane.b32.xlu0 %v2977, 64
    %v4007 = vpop.permute.xlu0 %4006
    %4008 = vrot.lane.b32.xlu0 %v2979, 64
    %v4009 = vpop.permute.xlu0 %4008
    %v4013 = vsel %vm195, %v3905, 0
    %v4016 = vsel %vm195, %v3906, 0
    %4018 = vmatprep.subr.mxu0 0.0
    %4019 = vmatpush1.msra.mxu0 0.0
    %4020 = vmatprep.subr.mxu0 0.0
    %4021 = vmatpush1.msra.mxu0 0.0
    %4022 = vmatprep.subr.mxu0 0.0
    %4023 = vmatpush1.msra.mxu0 0.0
    %4024 = vmatprep.subr.mxu0 0.0
    %4025 = vmatpush1.msra.mxu0 0.0
    %4026 = vmatprep.subr.mxu0 0.0
    %4027 = vmatpush1.msra.mxu0 0.0
    %4028 = vmatprep.subr.mxu0 0.0
    %4029 = vmatpush1.msra.mxu0 0.0
    %4030 = vmatprep.subr.mxu0 0.0
    %4031 = vmatpush1.msra.mxu0 0.0
    %4032 = vmatprep.subr.mxu0 0.0
    %4033 = vmatpush1.msra.mxu0 0.0
    %4034 = vmatprep.subr.mxu0 0.0
    %4035 = vmatpush1.msra.mxu0 0.0
    %4036 = vmatprep.subr.mxu0 0.0
    %4037 = vmatpush1.msra.mxu0 0.0
    %4038 = vmatprep.subr.mxu0 0.0
    %4039 = vmatpush1.msra.mxu0 0.0
    %4040 = vmatprep.subr.mxu0 0.0
    %4041 = vmatpush1.msra.mxu0 0.0
    %4042 = vmatprep.subr.mxu0 0.0
    %4043 = vmatpush1.msra.mxu0 0.0
    %4044 = vmatprep.subr.mxu0 0.0
    %4045 = vmatpush1.msra.mxu0 0.0
    %4046 = vmatprep.subr.mxu0 0.0
    %4047 = vmatpush1.msra.mxu0 %v4009
    %4048 = vmatprep.subr.mxu0 0.0
    %4049 = vmatpush1.msra.mxu0 %v4007
    %4050 = vmatprep.subr.mxu0 0.0
    %4051 = vmatpush2.msra.mxu0 0.0
    %4052 = vmatprep.subr.mxu0 0.0
    %4053 = vmatpush2.msra.mxu0 0.0
    %4054 = vmatprep.subr.mxu0 0.0
    %4055 = vmatpush2.msra.mxu0 0.0
    %4056 = vmatprep.subr.mxu0 0.0
    %4057 = vmatpush2.msra.mxu0 0.0
    %4058 = vmatprep.subr.mxu0 0.0
    %4059 = vmatpush2.msra.mxu0 0.0
    %4060 = vmatprep.subr.mxu0 0.0
    %4061 = vmatpush2.msra.mxu0 0.0
    %4062 = vmatprep.subr.mxu0 0.0
    %4063 = vmatpush2.msra.mxu0 0.0
    %4064 = vmatprep.subr.mxu0 0.0
    %4065 = vmatpush2.msra.mxu0 0.0
    %4066 = vmatprep.subr.mxu0 0.0
    %4067 = vmatpush2.msra.mxu0 0.0
    %4068 = vmatprep.subr.mxu0 0.0
    %4069 = vmatpush2.msra.mxu0 0.0
    %4070 = vmatprep.subr.mxu0 0.0
    %4071 = vmatpush2.msra.mxu0 0.0
    %4072 = vmatprep.subr.mxu0 0.0
    %4073 = vmatpush2.msra.mxu0 0.0
    %4074 = vmatprep.subr.mxu0 0.0
    %4075 = vmatpush2.msra.mxu0 0.0
    %4076 = vmatprep.subr.mxu0 0.0
    %4077 = vmatpush2.msra.mxu0 0.0
    %4078 = vmatprep.subr.mxu0 0.0
    %4079 = vmatpush2.msra.mxu0 0.0
    %4080 = vmatprep.subr.mxu0 0.0
    %4081 = vmatpush2.msra.mxu0 0.0
    %4082 = vmatprep.mubr.f32.mxu0 0.0
    %4083 = vmatmul.mubr.f32.gmra.mxu0 %v4013
    %v4084 = vpop.f32.mrf.mxu0
    %v4085 = vadd.f32 0.0, %v4084
    %v4086 = vpop.f32.mrf.mxu0
    %4087 = vmatprep.mubr.f32.mxu0 0.0
    %4088 = vmatmul.mubr.f32.gmra.mxu0 %v4016
    %v4089 = vpop.f32.mrf.mxu0
    %v4090 = vadd.f32 0.0, %v4089
    %v4091 = vpop.f32.mrf.mxu0
    %4092 = vdwg.mxu0
    %4093 = vrot.lane.b32.xlu0 %v2983, 64
    %v4094 = vpop.permute.xlu0 %4093
    %4095 = vrot.lane.b32.xlu0 %v2985, 64
    %v4096 = vpop.permute.xlu0 %4095
    %v4100 = vsel %vm195, %v3907, 0
    %v4103 = vsel %vm195, %v3908, 0
    %4105 = vmatprep.subr.mxu0 0.0
    %4106 = vmatpush1.msra.mxu0 0.0
    %4107 = vmatprep.subr.mxu0 0.0
    %4108 = vmatpush1.msra.mxu0 0.0
    %4109 = vmatprep.subr.mxu0 0.0
    %4110 = vmatpush1.msra.mxu0 0.0
    %4111 = vmatprep.subr.mxu0 0.0
    %4112 = vmatpush1.msra.mxu0 0.0
    %4113 = vmatprep.subr.mxu0 0.0
    %4114 = vmatpush1.msra.mxu0 0.0
    %4115 = vmatprep.subr.mxu0 0.0
    %4116 = vmatpush1.msra.mxu0 0.0
    %4117 = vmatprep.subr.mxu0 0.0
    %4118 = vmatpush1.msra.mxu0 0.0
    %4119 = vmatprep.subr.mxu0 0.0
    %4120 = vmatpush1.msra.mxu0 0.0
    %4121 = vmatprep.subr.mxu0 0.0
    %4122 = vmatpush1.msra.mxu0 0.0
    %4123 = vmatprep.subr.mxu0 0.0
    %4124 = vmatpush1.msra.mxu0 0.0
    %4125 = vmatprep.subr.mxu0 0.0
    %4126 = vmatpush1.msra.mxu0 0.0
    %4127 = vmatprep.subr.mxu0 0.0
    %4128 = vmatpush1.msra.mxu0 0.0
    %4129 = vmatprep.subr.mxu0 0.0
    %4130 = vmatpush1.msra.mxu0 0.0
    %4131 = vmatprep.subr.mxu0 0.0
    %4132 = vmatpush1.msra.mxu0 0.0
    %4133 = vmatprep.subr.mxu0 0.0
    %4134 = vmatpush1.msra.mxu0 %v4096
    %4135 = vmatprep.subr.mxu0 0.0
    %4136 = vmatpush1.msra.mxu0 %v4094
    %4137 = vmatprep.subr.mxu0 0.0
    %4138 = vmatpush2.msra.mxu0 0.0
    %4139 = vmatprep.subr.mxu0 0.0
    %4140 = vmatpush2.msra.mxu0 0.0
    %4141 = vmatprep.subr.mxu0 0.0
    %4142 = vmatpush2.msra.mxu0 0.0
    %4143 = vmatprep.subr.mxu0 0.0
    %4144 = vmatpush2.msra.mxu0 0.0
    %4145 = vmatprep.subr.mxu0 0.0
    %4146 = vmatpush2.msra.mxu0 0.0
    %4147 = vmatprep.subr.mxu0 0.0
    %4148 = vmatpush2.msra.mxu0 0.0
    %4149 = vmatprep.subr.mxu0 0.0
    %4150 = vmatpush2.msra.mxu0 0.0
    %4151 = vmatprep.subr.mxu0 0.0
    %4152 = vmatpush2.msra.mxu0 0.0
    %4153 = vmatprep.subr.mxu0 0.0
    %4154 = vmatpush2.msra.mxu0 0.0
    %4155 = vmatprep.subr.mxu0 0.0
    %4156 = vmatpush2.msra.mxu0 0.0
    %4157 = vmatprep.subr.mxu0 0.0
    %4158 = vmatpush2.msra.mxu0 0.0
    %4159 = vmatprep.subr.mxu0 0.0
    %4160 = vmatpush2.msra.mxu0 0.0
    %4161 = vmatprep.subr.mxu0 0.0
    %4162 = vmatpush2.msra.mxu0 0.0
    %4163 = vmatprep.subr.mxu0 0.0
    %4164 = vmatpush2.msra.mxu0 0.0
    %4165 = vmatprep.subr.mxu0 0.0
    %4166 = vmatpush2.msra.mxu0 0.0
    %4167 = vmatprep.subr.mxu0 0.0
    %4168 = vmatpush2.msra.mxu0 0.0
    %4169 = vmatprep.mubr.f32.mxu0 0.0
    %4170 = vmatmul.mubr.f32.gmra.mxu0 %v4100
    %v4171 = vpop.f32.mrf.mxu0
    %v4172 = vadd.f32 0.0, %v4171
    %v4173 = vpop.f32.mrf.mxu0
    %4174 = vmatprep.mubr.f32.mxu0 0.0
    %4175 = vmatmul.mubr.f32.gmra.mxu0 %v4103
    %v4176 = vpop.f32.mrf.mxu0
    %v4177 = vadd.f32 0.0, %v4176
    %v4178 = vpop.f32.mrf.mxu0
    %4179 = vdwg.mxu0
    %4180 = vrot.lane.b32.xlu0 %v2989, 64
    %v4181 = vpop.permute.xlu0 %4180
    %4182 = vrot.lane.b32.xlu0 %v2991, 64
    %v4183 = vpop.permute.xlu0 %4182
    %v4187 = vsel %vm195, %v3909, 0
    %v4190 = vsel %vm195, %v3910, 0
    %4192 = vmatprep.subr.mxu0 0.0
    %4193 = vmatpush1.msra.mxu0 0.0
    %4194 = vmatprep.subr.mxu0 0.0
    %4195 = vmatpush1.msra.mxu0 0.0
    %4196 = vmatprep.subr.mxu0 0.0
    %4197 = vmatpush1.msra.mxu0 0.0
    %4198 = vmatprep.subr.mxu0 0.0
    %4199 = vmatpush1.msra.mxu0 0.0
    %4200 = vmatprep.subr.mxu0 0.0
    %4201 = vmatpush1.msra.mxu0 0.0
    %4202 = vmatprep.subr.mxu0 0.0
    %4203 = vmatpush1.msra.mxu0 0.0
    %4204 = vmatprep.subr.mxu0 0.0
    %4205 = vmatpush1.msra.mxu0 0.0
    %4206 = vmatprep.subr.mxu0 0.0
    %4207 = vmatpush1.msra.mxu0 0.0
    %4208 = vmatprep.subr.mxu0 0.0
    %4209 = vmatpush1.msra.mxu0 0.0
    %4210 = vmatprep.subr.mxu0 0.0
    %4211 = vmatpush1.msra.mxu0 0.0
    %4212 = vmatprep.subr.mxu0 0.0
    %4213 = vmatpush1.msra.mxu0 0.0
    %4214 = vmatprep.subr.mxu0 0.0
    %4215 = vmatpush1.msra.mxu0 0.0
    %4216 = vmatprep.subr.mxu0 0.0
    %4217 = vmatpush1.msra.mxu0 0.0
    %4218 = vmatprep.subr.mxu0 0.0
    %4219 = vmatpush1.msra.mxu0 0.0
    %4220 = vmatprep.subr.mxu0 0.0
    %4221 = vmatpush1.msra.mxu0 %v4183
    %4222 = vmatprep.subr.mxu0 0.0
    %4223 = vmatpush1.msra.mxu0 %v4181
    %4224 = vmatprep.subr.mxu0 0.0
    %4225 = vmatpush2.msra.mxu0 0.0
    %4226 = vmatprep.subr.mxu0 0.0
    %4227 = vmatpush2.msra.mxu0 0.0
    %4228 = vmatprep.subr.mxu0 0.0
    %4229 = vmatpush2.msra.mxu0 0.0
    %4230 = vmatprep.subr.mxu0 0.0
    %4231 = vmatpush2.msra.mxu0 0.0
    %4232 = vmatprep.subr.mxu0 0.0
    %4233 = vmatpush2.msra.mxu0 0.0
    %4234 = vmatprep.subr.mxu0 0.0
    %4235 = vmatpush2.msra.mxu0 0.0
    %4236 = vmatprep.subr.mxu0 0.0
    %4237 = vmatpush2.msra.mxu0 0.0
    %4238 = vmatprep.subr.mxu0 0.0
    %4239 = vmatpush2.msra.mxu0 0.0
    %4240 = vmatprep.subr.mxu0 0.0
    %4241 = vmatpush2.msra.mxu0 0.0
    %4242 = vmatprep.subr.mxu0 0.0
    %4243 = vmatpush2.msra.mxu0 0.0
    %4244 = vmatprep.subr.mxu0 0.0
    %4245 = vmatpush2.msra.mxu0 0.0
    %4246 = vmatprep.subr.mxu0 0.0
    %4247 = vmatpush2.msra.mxu0 0.0
    %4248 = vmatprep.subr.mxu0 0.0
    %4249 = vmatpush2.msra.mxu0 0.0
    %4250 = vmatprep.subr.mxu0 0.0
    %4251 = vmatpush2.msra.mxu0 0.0
    %4252 = vmatprep.subr.mxu0 0.0
    %4253 = vmatpush2.msra.mxu0 0.0
    %4254 = vmatprep.subr.mxu0 0.0
    %4255 = vmatpush2.msra.mxu0 0.0
    %4256 = vmatprep.mubr.f32.mxu0 0.0
    %4257 = vmatmul.mubr.f32.gmra.mxu0 %v4187
    %v4258 = vpop.f32.mrf.mxu0
    %v4259 = vadd.f32 0.0, %v4258
    %v4260 = vpop.f32.mrf.mxu0
    %4261 = vmatprep.mubr.f32.mxu0 0.0
    %4262 = vmatmul.mubr.f32.gmra.mxu0 %v4190
    %v4263 = vpop.f32.mrf.mxu0
    %v4264 = vadd.f32 0.0, %v4263
    %v4265 = vpop.f32.mrf.mxu0
    %4266 = vdwg.mxu0
    %4267 = vrot.lane.b32.xlu0 %v2966, 64
    %v4268 = vpop.permute.xlu0 %4267
    %4269 = vrot.lane.b32.xlu0 %v2971, 64
    %v4270 = vpop.permute.xlu0 %4269
    %v4274 = vsel %vm195, %v3911, 0
    %v4277 = vsel %vm195, %v3912, 0
    %4279 = vmatprep.subr.mxu0 0.0
    %4280 = vmatpush1.msra.mxu0 0.0
    %4281 = vmatprep.subr.mxu0 0.0
    %4282 = vmatpush1.msra.mxu0 0.0
    %4283 = vmatprep.subr.mxu0 0.0
    %4284 = vmatpush1.msra.mxu0 0.0
    %4285 = vmatprep.subr.mxu0 0.0
    %4286 = vmatpush1.msra.mxu0 0.0
    %4287 = vmatprep.subr.mxu0 0.0
    %4288 = vmatpush1.msra.mxu0 0.0
    %4289 = vmatprep.subr.mxu0 0.0
    %4290 = vmatpush1.msra.mxu0 0.0
    %4291 = vmatprep.subr.mxu0 0.0
    %4292 = vmatpush1.msra.mxu0 0.0
    %4293 = vmatprep.subr.mxu0 0.0
    %4294 = vmatpush1.msra.mxu0 0.0
    %4295 = vmatprep.subr.mxu0 0.0
    %4296 = vmatpush1.msra.mxu0 0.0
    %4297 = vmatprep.subr.mxu0 0.0
    %4298 = vmatpush1.msra.mxu0 0.0
    %4299 = vmatprep.subr.mxu0 0.0
    %4300 = vmatpush1.msra.mxu0 0.0
    %4301 = vmatprep.subr.mxu0 0.0
    %4302 = vmatpush1.msra.mxu0 0.0
    %4303 = vmatprep.subr.mxu0 0.0
    %4304 = vmatpush1.msra.mxu0 0.0
    %4305 = vmatprep.subr.mxu0 0.0
    %4306 = vmatpush1.msra.mxu0 0.0
    %4307 = vmatprep.subr.mxu0 0.0
    %4308 = vmatpush1.msra.mxu0 %v4270
    %4309 = vmatprep.subr.mxu0 0.0
    %4310 = vmatpush1.msra.mxu0 %v4268
    %4311 = vmatprep.subr.mxu0 0.0
    %4312 = vmatpush2.msra.mxu0 0.0
    %4313 = vmatprep.subr.mxu0 0.0
    %4314 = vmatpush2.msra.mxu0 0.0
    %4315 = vmatprep.subr.mxu0 0.0
    %4316 = vmatpush2.msra.mxu0 0.0
    %4317 = vmatprep.subr.mxu0 0.0
    %4318 = vmatpush2.msra.mxu0 0.0
    %4319 = vmatprep.subr.mxu0 0.0
    %4320 = vmatpush2.msra.mxu0 0.0
    %4321 = vmatprep.subr.mxu0 0.0
    %4322 = vmatpush2.msra.mxu0 0.0
    %4323 = vmatprep.subr.mxu0 0.0
    %4324 = vmatpush2.msra.mxu0 0.0
    %4325 = vmatprep.subr.mxu0 0.0
    %4326 = vmatpush2.msra.mxu0 0.0
    %4327 = vmatprep.subr.mxu0 0.0
    %4328 = vmatpush2.msra.mxu0 0.0
    %4329 = vmatprep.subr.mxu0 0.0
    %4330 = vmatpush2.msra.mxu0 0.0
    %4331 = vmatprep.subr.mxu0 0.0
    %4332 = vmatpush2.msra.mxu0 0.0
    %4333 = vmatprep.subr.mxu0 0.0
    %4334 = vmatpush2.msra.mxu0 0.0
    %4335 = vmatprep.subr.mxu0 0.0
    %4336 = vmatpush2.msra.mxu0 0.0
    %4337 = vmatprep.subr.mxu0 0.0
    %4338 = vmatpush2.msra.mxu0 0.0
    %4339 = vmatprep.subr.mxu0 0.0
    %4340 = vmatpush2.msra.mxu0 0.0
    %4341 = vmatprep.subr.mxu0 0.0
    %4342 = vmatpush2.msra.mxu0 0.0
    %4343 = vmatprep.mubr.f32.mxu0 0.0
    %4344 = vmatmul.mubr.f32.gmra.mxu0 %v4274
    %v4345 = vpop.f32.mrf.mxu0
    %v4346 = vadd.f32 0.0, %v4345
    %v4347 = vpop.f32.mrf.mxu0
    %4348 = vmatprep.mubr.f32.mxu0 0.0
    %4349 = vmatmul.mubr.f32.gmra.mxu0 %v4277
    %v4350 = vpop.f32.mrf.mxu0
    %v4351 = vadd.f32 0.0, %v4350
    %v4352 = vpop.f32.mrf.mxu0
    %4353 = vdwg.mxu0
    %4354 = vrot.lane.b32.xlu0 %v2997, 64
    %v4355 = vpop.permute.xlu0 %4354
    %4356 = vrot.lane.b32.xlu0 %v2999, 64
    %v4357 = vpop.permute.xlu0 %4356
    %v4361 = vsel %vm195, %v3913, 0
    %v4364 = vsel %vm195, %v3914, 0
    %4366 = vmatprep.subr.mxu0 0.0
    %4367 = vmatpush1.msra.mxu0 0.0
    %4368 = vmatprep.subr.mxu0 0.0
    %4369 = vmatpush1.msra.mxu0 0.0
    %4370 = vmatprep.subr.mxu0 0.0
    %4371 = vmatpush1.msra.mxu0 0.0
    %4372 = vmatprep.subr.mxu0 0.0
    %4373 = vmatpush1.msra.mxu0 0.0
    %4374 = vmatprep.subr.mxu0 0.0
    %4375 = vmatpush1.msra.mxu0 0.0
    %4376 = vmatprep.subr.mxu0 0.0
    %4377 = vmatpush1.msra.mxu0 0.0
    %4378 = vmatprep.subr.mxu0 0.0
    %4379 = vmatpush1.msra.mxu0 0.0
    %4380 = vmatprep.subr.mxu0 0.0
    %4381 = vmatpush1.msra.mxu0 0.0
    %4382 = vmatprep.subr.mxu0 0.0
    %4383 = vmatpush1.msra.mxu0 0.0
    %4384 = vmatprep.subr.mxu0 0.0
    %4385 = vmatpush1.msra.mxu0 0.0
    %4386 = vmatprep.subr.mxu0 0.0
    %4387 = vmatpush1.msra.mxu0 0.0
    %4388 = vmatprep.subr.mxu0 0.0
    %4389 = vmatpush1.msra.mxu0 0.0
    %4390 = vmatprep.subr.mxu0 0.0
    %4391 = vmatpush1.msra.mxu0 0.0
    %4392 = vmatprep.subr.mxu0 0.0
    %4393 = vmatpush1.msra.mxu0 0.0
    %4394 = vmatprep.subr.mxu0 0.0
    %4395 = vmatpush1.msra.mxu0 %v4357
    %4396 = vmatprep.subr.mxu0 0.0
    %4397 = vmatpush1.msra.mxu0 %v4355
    %4398 = vmatprep.subr.mxu0 0.0
    %4399 = vmatpush2.msra.mxu0 0.0
    %4400 = vmatprep.subr.mxu0 0.0
    %4401 = vmatpush2.msra.mxu0 0.0
    %4402 = vmatprep.subr.mxu0 0.0
    %4403 = vmatpush2.msra.mxu0 0.0
    %4404 = vmatprep.subr.mxu0 0.0
    %4405 = vmatpush2.msra.mxu0 0.0
    %4406 = vmatprep.subr.mxu0 0.0
    %4407 = vmatpush2.msra.mxu0 0.0
    %4408 = vmatprep.subr.mxu0 0.0
    %4409 = vmatpush2.msra.mxu0 0.0
    %4410 = vmatprep.subr.mxu0 0.0
    %4411 = vmatpush2.msra.mxu0 0.0
    %4412 = vmatprep.subr.mxu0 0.0
    %4413 = vmatpush2.msra.mxu0 0.0
    %4414 = vmatprep.subr.mxu0 0.0
    %4415 = vmatpush2.msra.mxu0 0.0
    %4416 = vmatprep.subr.mxu0 0.0
    %4417 = vmatpush2.msra.mxu0 0.0
    %4418 = vmatprep.subr.mxu0 0.0
    %4419 = vmatpush2.msra.mxu0 0.0
    %4420 = vmatprep.subr.mxu0 0.0
    %4421 = vmatpush2.msra.mxu0 0.0
    %4422 = vmatprep.subr.mxu0 0.0
    %4423 = vmatpush2.msra.mxu0 0.0
    %4424 = vmatprep.subr.mxu0 0.0
    %4425 = vmatpush2.msra.mxu0 0.0
    %4426 = vmatprep.subr.mxu0 0.0
    %4427 = vmatpush2.msra.mxu0 0.0
    %4428 = vmatprep.subr.mxu0 0.0
    %4429 = vmatpush2.msra.mxu0 0.0
    %4430 = vmatprep.mubr.f32.mxu0 0.0
    %4431 = vmatmul.mubr.f32.gmra.mxu0 %v4361
    %v4432 = vpop.f32.mrf.mxu0
    %v4433 = vadd.f32 0.0, %v4432
    %v4434 = vpop.f32.mrf.mxu0
    %4435 = vmatprep.mubr.f32.mxu0 0.0
    %4436 = vmatmul.mubr.f32.gmra.mxu0 %v4364
    %v4437 = vpop.f32.mrf.mxu0
    %v4438 = vadd.f32 0.0, %v4437
    %v4439 = vpop.f32.mrf.mxu0
    %4440 = vdwg.mxu0
    %4441 = vrot.lane.b32.xlu0 %v3003, 64
    %v4442 = vpop.permute.xlu0 %4441
    %4443 = vrot.lane.b32.xlu0 %v3005, 64
    %v4444 = vpop.permute.xlu0 %4443
    %v4448 = vsel %vm195, %v3915, 0
    %v4451 = vsel %vm195, %v3916, 0
    %4453 = vmatprep.subr.mxu0 0.0
    %4454 = vmatpush1.msra.mxu0 0.0
    %4455 = vmatprep.subr.mxu0 0.0
    %4456 = vmatpush1.msra.mxu0 0.0
    %4457 = vmatprep.subr.mxu0 0.0
    %4458 = vmatpush1.msra.mxu0 0.0
    %4459 = vmatprep.subr.mxu0 0.0
    %4460 = vmatpush1.msra.mxu0 0.0
    %4461 = vmatprep.subr.mxu0 0.0
    %4462 = vmatpush1.msra.mxu0 0.0
    %4463 = vmatprep.subr.mxu0 0.0
    %4464 = vmatpush1.msra.mxu0 0.0
    %4465 = vmatprep.subr.mxu0 0.0
    %4466 = vmatpush1.msra.mxu0 0.0
    %4467 = vmatprep.subr.mxu0 0.0
    %4468 = vmatpush1.msra.mxu0 0.0
    %4469 = vmatprep.subr.mxu0 0.0
    %4470 = vmatpush1.msra.mxu0 0.0
    %4471 = vmatprep.subr.mxu0 0.0
    %4472 = vmatpush1.msra.mxu0 0.0
    %4473 = vmatprep.subr.mxu0 0.0
    %4474 = vmatpush1.msra.mxu0 0.0
    %4475 = vmatprep.subr.mxu0 0.0
    %4476 = vmatpush1.msra.mxu0 0.0
    %4477 = vmatprep.subr.mxu0 0.0
    %4478 = vmatpush1.msra.mxu0 0.0
    %4479 = vmatprep.subr.mxu0 0.0
    %4480 = vmatpush1.msra.mxu0 0.0
    %4481 = vmatprep.subr.mxu0 0.0
    %4482 = vmatpush1.msra.mxu0 %v4444
    %4483 = vmatprep.subr.mxu0 0.0
    %4484 = vmatpush1.msra.mxu0 %v4442
    %4485 = vmatprep.subr.mxu0 0.0
    %4486 = vmatpush2.msra.mxu0 0.0
    %4487 = vmatprep.subr.mxu0 0.0
    %4488 = vmatpush2.msra.mxu0 0.0
    %4489 = vmatprep.subr.mxu0 0.0
    %4490 = vmatpush2.msra.mxu0 0.0
    %4491 = vmatprep.subr.mxu0 0.0
    %4492 = vmatpush2.msra.mxu0 0.0
    %4493 = vmatprep.subr.mxu0 0.0
    %4494 = vmatpush2.msra.mxu0 0.0
    %4495 = vmatprep.subr.mxu0 0.0
    %4496 = vmatpush2.msra.mxu0 0.0
    %4497 = vmatprep.subr.mxu0 0.0
    %4498 = vmatpush2.msra.mxu0 0.0
    %4499 = vmatprep.subr.mxu0 0.0
    %4500 = vmatpush2.msra.mxu0 0.0
    %4501 = vmatprep.subr.mxu0 0.0
    %4502 = vmatpush2.msra.mxu0 0.0
    %4503 = vmatprep.subr.mxu0 0.0
    %4504 = vmatpush2.msra.mxu0 0.0
    %4505 = vmatprep.subr.mxu0 0.0
    %4506 = vmatpush2.msra.mxu0 0.0
    %4507 = vmatprep.subr.mxu0 0.0
    %4508 = vmatpush2.msra.mxu0 0.0
    %4509 = vmatprep.subr.mxu0 0.0
    %4510 = vmatpush2.msra.mxu0 0.0
    %4511 = vmatprep.subr.mxu0 0.0
    %4512 = vmatpush2.msra.mxu0 0.0
    %4513 = vmatprep.subr.mxu0 0.0
    %4514 = vmatpush2.msra.mxu0 0.0
    %4515 = vmatprep.subr.mxu0 0.0
    %4516 = vmatpush2.msra.mxu0 0.0
    %4517 = vmatprep.mubr.f32.mxu0 0.0
    %4518 = vmatmul.mubr.f32.gmra.mxu0 %v4448
    %v4519 = vpop.f32.mrf.mxu0
    %v4520 = vadd.f32 0.0, %v4519
    %v4521 = vpop.f32.mrf.mxu0
    %4522 = vmatprep.mubr.f32.mxu0 0.0
    %4523 = vmatmul.mubr.f32.gmra.mxu0 %v4451
    %v4524 = vpop.f32.mrf.mxu0
    %v4525 = vadd.f32 0.0, %v4524
    %v4526 = vpop.f32.mrf.mxu0
    %4527 = vdwg.mxu0
    %4528 = vrot.lane.b32.xlu0 %v3009, 64
    %v4529 = vpop.permute.xlu0 %4528
    %4530 = vrot.lane.b32.xlu0 %v3011, 64
    %v4531 = vpop.permute.xlu0 %4530
    %v4535 = vsel %vm195, %v3917, 0
    %v4538 = vsel %vm195, %v3918, 0
    %4540 = vmatprep.subr.mxu0 0.0
    %4541 = vmatpush1.msra.mxu0 0.0
    %4542 = vmatprep.subr.mxu0 0.0
    %4543 = vmatpush1.msra.mxu0 0.0
    %4544 = vmatprep.subr.mxu0 0.0
    %4545 = vmatpush1.msra.mxu0 0.0
    %4546 = vmatprep.subr.mxu0 0.0
    %4547 = vmatpush1.msra.mxu0 0.0
    %4548 = vmatprep.subr.mxu0 0.0
    %4549 = vmatpush1.msra.mxu0 0.0
    %4550 = vmatprep.subr.mxu0 0.0
    %4551 = vmatpush1.msra.mxu0 0.0
    %4552 = vmatprep.subr.mxu0 0.0
    %4553 = vmatpush1.msra.mxu0 0.0
    %4554 = vmatprep.subr.mxu0 0.0
    %4555 = vmatpush1.msra.mxu0 0.0
    %4556 = vmatprep.subr.mxu0 0.0
    %4557 = vmatpush1.msra.mxu0 0.0
    %4558 = vmatprep.subr.mxu0 0.0
    %4559 = vmatpush1.msra.mxu0 0.0
    %4560 = vmatprep.subr.mxu0 0.0
    %4561 = vmatpush1.msra.mxu0 0.0
    %4562 = vmatprep.subr.mxu0 0.0
    %4563 = vmatpush1.msra.mxu0 0.0
    %4564 = vmatprep.subr.mxu0 0.0
    %4565 = vmatpush1.msra.mxu0 0.0
    %4566 = vmatprep.subr.mxu0 0.0
    %4567 = vmatpush1.msra.mxu0 0.0
    %4568 = vmatprep.subr.mxu0 0.0
    %4569 = vmatpush1.msra.mxu0 %v4531
    %4570 = vmatprep.subr.mxu0 0.0
    %4571 = vmatpush1.msra.mxu0 %v4529
    %4572 = vmatprep.subr.mxu0 0.0
    %4573 = vmatpush2.msra.mxu0 0.0
    %4574 = vmatprep.subr.mxu0 0.0
    %4575 = vmatpush2.msra.mxu0 0.0
    %4576 = vmatprep.subr.mxu0 0.0
    %4577 = vmatpush2.msra.mxu0 0.0
    %4578 = vmatprep.subr.mxu0 0.0
    %4579 = vmatpush2.msra.mxu0 0.0
    %4580 = vmatprep.subr.mxu0 0.0
    %4581 = vmatpush2.msra.mxu0 0.0
    %4582 = vmatprep.subr.mxu0 0.0
    %4583 = vmatpush2.msra.mxu0 0.0
    %4584 = vmatprep.subr.mxu0 0.0
    %4585 = vmatpush2.msra.mxu0 0.0
    %4586 = vmatprep.subr.mxu0 0.0
    %4587 = vmatpush2.msra.mxu0 0.0
    %4588 = vmatprep.subr.mxu0 0.0
    %4589 = vmatpush2.msra.mxu0 0.0
    %4590 = vmatprep.subr.mxu0 0.0
    %4591 = vmatpush2.msra.mxu0 0.0
    %4592 = vmatprep.subr.mxu0 0.0
    %4593 = vmatpush2.msra.mxu0 0.0
    %4594 = vmatprep.subr.mxu0 0.0
    %4595 = vmatpush2.msra.mxu0 0.0
    %4596 = vmatprep.subr.mxu0 0.0
    %4597 = vmatpush2.msra.mxu0 0.0
    %4598 = vmatprep.subr.mxu0 0.0
    %4599 = vmatpush2.msra.mxu0 0.0
    %4600 = vmatprep.subr.mxu0 0.0
    %4601 = vmatpush2.msra.mxu0 0.0
    %4602 = vmatprep.subr.mxu0 0.0
    %4603 = vmatpush2.msra.mxu0 0.0
    %4604 = vmatprep.mubr.f32.mxu0 0.0
    %4605 = vmatmul.mubr.f32.gmra.mxu0 %v4535
    %v4606 = vpop.f32.mrf.mxu0
    %v4607 = vadd.f32 0.0, %v4606
    %v4608 = vpop.f32.mrf.mxu0
    %4609 = vmatprep.mubr.f32.mxu0 0.0
    %4610 = vmatmul.mubr.f32.gmra.mxu0 %v4538
    %v4611 = vpop.f32.mrf.mxu0
    %v4612 = vadd.f32 0.0, %v4611
    %v4613 = vpop.f32.mrf.mxu0
    %4614 = vdwg.mxu0
    %4617 = vrot.lane.b32.xlu0 %v4085, 8
    %v4618 = vpop.permute.xlu0 %4617
    %4619 = vrot.lane.b32.xlu0 %v4090, 8
    %v4620 = vpop.permute.xlu0 %4619
    %4625 = vrot.lane.b32.xlu0 %v4172, 16
    %v4626 = vpop.permute.xlu0 %4625
    %4627 = vrot.lane.b32.xlu0 %v4177, 16
    %v4628 = vpop.permute.xlu0 %4627
    %4633 = vrot.lane.b32.xlu0 %v4259, 24
    %v4634 = vpop.permute.xlu0 %4633
    %4635 = vrot.lane.b32.xlu0 %v4264, 24
    %v4636 = vpop.permute.xlu0 %4635
    %v4639 = vsel %vm3034, %v3998, %v4618
    %v4640 = vsel %vm3034, %v4003, %v4620
    %v4641 = vsel %vm195, %v4639, %v4626
    %v4642 = vsel %vm195, %v4640, %v4628
    %vm4643 = vcmask 195584
    %v4644 = vsel %vm4643, %v4641, %v4634
    %v4645 = vsel %vm4643, %v4642, %v4636
    %4648 = vrot.lane.b32.xlu0 %v4433, 8
    %v4649 = vpop.permute.xlu0 %4648
    %4650 = vrot.lane.b32.xlu0 %v4438, 8
    %v4651 = vpop.permute.xlu0 %4650
    %4656 = vrot.lane.b32.xlu0 %v4520, 16
    %v4657 = vpop.permute.xlu0 %4656
    %4658 = vrot.lane.b32.xlu0 %v4525, 16
    %v4659 = vpop.permute.xlu0 %4658
    %4664 = vrot.lane.b32.xlu0 %v4607, 24
    %v4665 = vpop.permute.xlu0 %4664
    %4666 = vrot.lane.b32.xlu0 %v4612, 24
    %v4667 = vpop.permute.xlu0 %4666
    %v4670 = vsel %vm3034, %v4346, %v4649
    %v4671 = vsel %vm3034, %v4351, %v4651
    %v4672 = vsel %vm195, %v4670, %v4657
    %v4673 = vsel %vm195, %v4671, %v4659
    %v4674 = vsel %vm4643, %v4672, %v4665
    %v4675 = vsel %vm4643, %v4673, %v4667
    %v4676 = vld [vmem:[%s37] sm:$0xff]
    %v4677 = vld [vmem:[%s37 + $0x8] sm:$0xff]
    %v4678 = vld [vmem:[%s37 + $0x10] sm:$0xff]
    %v4679 = vld [vmem:[%s37 + $0x18] sm:$0xff]
    %v4680 = vld [vmem:[%s25] sm:$0x1]
    %v4682 = vlaneseq
    %v4683 = vshrl.u32 %v4682, 7
    %v4684 = vsub.s32 0, %v4683
    %v4685 = vrot.slane %v4680, %v4684
    %v4688 = vsel %vm369, %v4644, 0
    %v4691 = vsel %vm369, %v4645, 0
    %v4694 = vsel %vm369, %v4674, 0
    %v4697 = vsel %vm369, %v4675, 0
    %4699 = vmatprep.subr.mxu0 0.0
    %4700 = vmatpush1.msra.mxu0 0.0
    %4701 = vmatprep.subr.mxu0 0.0
    %4702 = vmatpush1.msra.mxu0 0.0
    %4703 = vmatprep.subr.mxu0 0.0
    %4704 = vmatpush1.msra.mxu0 0.0
    %4705 = vmatprep.subr.mxu0 0.0
    %4706 = vmatpush1.msra.mxu0 0.0
    %4707 = vmatprep.subr.mxu0 0.0
    %4708 = vmatpush1.msra.mxu0 0.0
    %4709 = vmatprep.subr.mxu0 0.0
    %4710 = vmatpush1.msra.mxu0 0.0
    %4711 = vmatprep.subr.mxu0 0.0
    %4712 = vmatpush1.msra.mxu0 0.0
    %4713 = vmatprep.subr.mxu0 0.0
    %4714 = vmatpush1.msra.mxu0 0.0
    %4715 = vmatprep.subr.mxu0 0.0
    %4716 = vmatpush1.msra.mxu0 0.0
    %4717 = vmatprep.subr.mxu0 0.0
    %4718 = vmatpush1.msra.mxu0 0.0
    %4719 = vmatprep.subr.mxu0 0.0
    %4720 = vmatpush1.msra.mxu0 0.0
    %4721 = vmatprep.subr.mxu0 0.0
    %4722 = vmatpush1.msra.mxu0 0.0
    %4723 = vmatprep.subr.mxu0 0.0
    %4724 = vmatpush1.msra.mxu0 %v4679
    %4725 = vmatprep.subr.mxu0 0.0
    %4726 = vmatpush1.msra.mxu0 %v4678
    %4727 = vmatprep.subr.mxu0 0.0
    %4728 = vmatpush1.msra.mxu0 %v4677
    %4729 = vmatprep.subr.mxu0 0.0
    %4730 = vmatpush1.msra.mxu0 %v4676
    %4731 = vmatprep.subr.mxu0 0.0
    %4732 = vmatpush2.msra.mxu0 0.0
    %4733 = vmatprep.subr.mxu0 0.0
    %4734 = vmatpush2.msra.mxu0 0.0
    %4735 = vmatprep.subr.mxu0 0.0
    %4736 = vmatpush2.msra.mxu0 0.0
    %4737 = vmatprep.subr.mxu0 0.0
    %4738 = vmatpush2.msra.mxu0 0.0
    %4739 = vmatprep.subr.mxu0 0.0
    %4740 = vmatpush2.msra.mxu0 0.0
    %4741 = vmatprep.subr.mxu0 0.0
    %4742 = vmatpush2.msra.mxu0 0.0
    %4743 = vmatprep.subr.mxu0 0.0
    %4744 = vmatpush2.msra.mxu0 0.0
    %4745 = vmatprep.subr.mxu0 0.0
    %4746 = vmatpush2.msra.mxu0 0.0
    %4747 = vmatprep.subr.mxu0 0.0
    %4748 = vmatpush2.msra.mxu0 0.0
    %4749 = vmatprep.subr.mxu0 0.0
    %4750 = vmatpush2.msra.mxu0 0.0
    %4751 = vmatprep.subr.mxu0 0.0
    %4752 = vmatpush2.msra.mxu0 0.0
    %4753 = vmatprep.subr.mxu0 0.0
    %4754 = vmatpush2.msra.mxu0 0.0
    %4755 = vmatprep.subr.mxu0 0.0
    %4756 = vmatpush2.msra.mxu0 0.0
    %4757 = vmatprep.subr.mxu0 0.0
    %4758 = vmatpush2.msra.mxu0 0.0
    %4759 = vmatprep.subr.mxu0 0.0
    %4760 = vmatpush2.msra.mxu0 0.0
    %4761 = vmatprep.subr.mxu0 0.0
    %4762 = vmatpush2.msra.mxu0 0.0
    %4763 = vmatprep.mubr.f32.mxu0 0.0
    %4764 = vmatmul.mubr.f32.gmra.mxu0 %v4688
    %v4765 = vpop.f32.mrf.mxu0
    %v4766 = vadd.f32 %v4685, %v4765
    %v4767 = vpop.f32.mrf.mxu0
    %4768 = vmatprep.mubr.f32.mxu0 0.0
    %4769 = vmatmul.mubr.f32.gmra.mxu0 %v4691
    %v4770 = vpop.f32.mrf.mxu0
    %v4771 = vadd.f32 %v4685, %v4770
    %v4772 = vpop.f32.mrf.mxu0
    %4773 = vmatprep.mubr.f32.mxu0 0.0
    %4774 = vmatmul.mubr.f32.gmra.mxu0 %v4694
    %v4775 = vpop.f32.mrf.mxu0
    %v4776 = vadd.f32 %v4685, %v4775
    %v4777 = vpop.f32.mrf.mxu0
    %4778 = vmatprep.mubr.f32.mxu0 0.0
    %4779 = vmatmul.mubr.f32.gmra.mxu0 %v4697
    %v4780 = vpop.f32.mrf.mxu0
    %v4781 = vadd.f32 %v4685, %v4780
    %v4782 = vpop.f32.mrf.mxu0
    %4783 = vdwg.mxu0
    %v4784 = vadd.f32 %v2848, %v4766
    %v4785 = vadd.f32 %v2853, %v4771
    %v4786 = vadd.f32 %v2858, %v4776
    %v4787 = vadd.f32 %v2863, %v4781
    %v4788 = vld [vmem:[%s29] sm:$0x1]
    %v4789 = vld [vmem:[%s17] sm:$0x1]
    %v4790 = vsel %vm369, %v4784, 0.0
    %4791 = vadd.xlane.f32.xlu0 %v4790
    %v4792 = vpop.xlane.xlu0 %4791
    %v4793 = vsel %vm369, %v4785, 0.0
    %4794 = vadd.xlane.f32.xlu0 %v4793
    %v4795 = vpop.xlane.xlu0 %4794
    %v4796 = vsel %vm369, %v4786, 0.0
    %4797 = vadd.xlane.f32.xlu0 %v4796
    %v4798 = vpop.xlane.xlu0 %4797
    %v4799 = vsel %vm369, %v4787, 0.0
    %4800 = vadd.xlane.f32.xlu0 %v4799
    %v4801 = vpop.xlane.xlu0 %4800
    %v4802 = vrcp.pop 32.0
    %v4803 = vmul.f32 %v4792, %v4802
    %v4804 = vmul.f32 %v4795, %v4802
    %v4805 = vmul.f32 %v4798, %v4802
    %v4806 = vmul.f32 %v4801, %v4802
    %v4807 = vsub.f32 %v4784, %v4803
    %v4808 = vsub.f32 %v4785, %v4804
    %v4809 = vsub.f32 %v4786, %v4805
    %v4810 = vsub.f32 %v4787, %v4806
    %v4811 = vmul.f32 %v4807, %v4807
    %v4812 = vmul.f32 %v4808, %v4808
    %v4813 = vmul.f32 %v4809, %v4809
    %v4814 = vmul.f32 %v4810, %v4810
    %v4815 = vsel %vm369, %v4811, 0.0
    %4816 = vadd.xlane.f32.xlu0 %v4815
    %v4817 = vpop.xlane.xlu0 %4816
    %v4818 = vsel %vm369, %v4812, 0.0
    %4819 = vadd.xlane.f32.xlu0 %v4818
    %v4820 = vpop.xlane.xlu0 %4819
    %v4821 = vsel %vm369, %v4813, 0.0
    %4822 = vadd.xlane.f32.xlu0 %v4821
    %v4823 = vpop.xlane.xlu0 %4822
    %v4824 = vsel %vm369, %v4814, 0.0
    %4825 = vadd.xlane.f32.xlu0 %v4824
    %v4826 = vpop.xlane.xlu0 %4825
    %v4827 = vmul.f32 %v4817, %v4802
    %v4828 = vmul.f32 %v4820, %v4802
    %v4829 = vmul.f32 %v4823, %v4802
    %v4830 = vmul.f32 %v4826, %v4802
    %v4831 = vadd.f32 %v4827, 1e-05
    %v4832 = vadd.f32 %v4828, 1e-05
    %v4833 = vadd.f32 %v4829, 1e-05
    %v4834 = vadd.f32 %v4830, 1e-05
    %v4835 = vrsqrt.pop %v4831
    %v4836 = vrsqrt.pop %v4832
    %v4837 = vrsqrt.pop %v4833
    %v4838 = vrsqrt.pop %v4834
    %v4839 = vmul.f32 %v4807, %v4835
    %v4840 = vmul.f32 %v4808, %v4836
    %v4841 = vmul.f32 %v4809, %v4837
    %v4842 = vmul.f32 %v4810, %v4838
    %v4844 = vlaneseq
    %v4845 = vshrl.u32 %v4844, 7
    %v4846 = vsub.s32 0, %v4845
    %v4847 = vrot.slane %v4788, %v4846
    %v4849 = vmul.f32 %v4839, %v4847
    %v4850 = vmul.f32 %v4840, %v4847
    %v4851 = vmul.f32 %v4841, %v4847
    %v4852 = vmul.f32 %v4842, %v4847
    %v4854 = vlaneseq
    %v4855 = vshrl.u32 %v4854, 7
    %v4856 = vsub.s32 0, %v4855
    %v4857 = vrot.slane %v4789, %v4856
    %v4859 = vadd.f32 %v4849, %v4857
    %v4860 = vadd.f32 %v4850, %v4857
    %v4861 = vadd.f32 %v4851, %v4857
    %v4862 = vadd.f32 %v4852, %v4857
    %v4863 = vld [vmem:[%s33] sm:$0xff]
    %v4864 = vld [vmem:[%s33 + $0x8] sm:$0xff]
    %v4865 = vld [vmem:[%s33 + $0x10] sm:$0xff]
    %v4866 = vld [vmem:[%s33 + $0x18] sm:$0xff]
    %v4867 = vld [vmem:[%s21] sm:$0x1]
    %v4869 = vlaneseq
    %v4870 = vshrl.u32 %v4869, 7
    %v4871 = vsub.s32 0, %v4870
    %v4872 = vrot.slane %v4867, %v4871
    %v4875 = vsel %vm369, %v4859, 0
    %v4878 = vsel %vm369, %v4860, 0
    %v4881 = vsel %vm369, %v4861, 0
    %v4884 = vsel %vm369, %v4862, 0
    %4886 = vmatprep.subr.mxu0 0.0
    %4887 = vmatpush1.msra.mxu0 0.0
    %4888 = vmatprep.subr.mxu0 0.0
    %4889 = vmatpush1.msra.mxu0 0.0
    %4890 = vmatprep.subr.mxu0 0.0
    %4891 = vmatpush1.msra.mxu0 0.0
    %4892 = vmatprep.subr.mxu0 0.0
    %4893 = vmatpush1.msra.mxu0 0.0
    %4894 = vmatprep.subr.mxu0 0.0
    %4895 = vmatpush1.msra.mxu0 0.0
    %4896 = vmatprep.subr.mxu0 0.0
    %4897 = vmatpush1.msra.mxu0 0.0
    %4898 = vmatprep.subr.mxu0 0.0
    %4899 = vmatpush1.msra.mxu0 0.0
    %4900 = vmatprep.subr.mxu0 0.0
    %4901 = vmatpush1.msra.mxu0 0.0
    %4902 = vmatprep.subr.mxu0 0.0
    %4903 = vmatpush1.msra.mxu0 0.0
    %4904 = vmatprep.subr.mxu0 0.0
    %4905 = vmatpush1.msra.mxu0 0.0
    %4906 = vmatprep.subr.mxu0 0.0
    %4907 = vmatpush1.msra.mxu0 0.0
    %4908 = vmatprep.subr.mxu0 0.0
    %4909 = vmatpush1.msra.mxu0 0.0
    %4910 = vmatprep.subr.mxu0 0.0
    %4911 = vmatpush1.msra.mxu0 %v4866
    %4912 = vmatprep.subr.mxu0 0.0
    %4913 = vmatpush1.msra.mxu0 %v4865
    %4914 = vmatprep.subr.mxu0 0.0
    %4915 = vmatpush1.msra.mxu0 %v4864
    %4916 = vmatprep.subr.mxu0 0.0
    %4917 = vmatpush1.msra.mxu0 %v4863
    %4918 = vmatprep.subr.mxu0 0.0
    %4919 = vmatpush2.msra.mxu0 0.0
    %4920 = vmatprep.subr.mxu0 0.0
    %4921 = vmatpush2.msra.mxu0 0.0
    %4922 = vmatprep.subr.mxu0 0.0
    %4923 = vmatpush2.msra.mxu0 0.0
    %4924 = vmatprep.subr.mxu0 0.0
    %4925 = vmatpush2.msra.mxu0 0.0
    %4926 = vmatprep.subr.mxu0 0.0
    %4927 = vmatpush2.msra.mxu0 0.0
    %4928 = vmatprep.subr.mxu0 0.0
    %4929 = vmatpush2.msra.mxu0 0.0
    %4930 = vmatprep.subr.mxu0 0.0
    %4931 = vmatpush2.msra.mxu0 0.0
    %4932 = vmatprep.subr.mxu0 0.0
    %4933 = vmatpush2.msra.mxu0 0.0
    %4934 = vmatprep.subr.mxu0 0.0
    %4935 = vmatpush2.msra.mxu0 0.0
    %4936 = vmatprep.subr.mxu0 0.0
    %4937 = vmatpush2.msra.mxu0 0.0
    %4938 = vmatprep.subr.mxu0 0.0
    %4939 = vmatpush2.msra.mxu0 0.0
    %4940 = vmatprep.subr.mxu0 0.0
    %4941 = vmatpush2.msra.mxu0 0.0
    %4942 = vmatprep.subr.mxu0 0.0
    %4943 = vmatpush2.msra.mxu0 0.0
    %4944 = vmatprep.subr.mxu0 0.0
    %4945 = vmatpush2.msra.mxu0 0.0
    %4946 = vmatprep.subr.mxu0 0.0
    %4947 = vmatpush2.msra.mxu0 0.0
    %4948 = vmatprep.subr.mxu0 0.0
    %4949 = vmatpush2.msra.mxu0 0.0
    %4950 = vmatprep.mubr.f32.mxu0 0.0
    %4951 = vmatmul.mubr.f32.gmra.mxu0 %v4875
    %v4952 = vpop.f32.mrf.mxu0
    %v4953 = vadd.f32 %v4872, %v4952
    %v4954 = vpop.f32.mrf.mxu0
    %4955 = vmatprep.mubr.f32.mxu0 0.0
    %4956 = vmatmul.mubr.f32.gmra.mxu0 %v4878
    %v4957 = vpop.f32.mrf.mxu0
    %v4958 = vadd.f32 %v4872, %v4957
    %v4959 = vpop.f32.mrf.mxu0
    %4960 = vmatprep.mubr.f32.mxu0 0.0
    %4961 = vmatmul.mubr.f32.gmra.mxu0 %v4881
    %v4962 = vpop.f32.mrf.mxu0
    %v4963 = vadd.f32 %v4872, %v4962
    %v4964 = vpop.f32.mrf.mxu0
    %4965 = vmatprep.mubr.f32.mxu0 0.0
    %4966 = vmatmul.mubr.f32.gmra.mxu0 %v4884
    %v4967 = vpop.f32.mrf.mxu0
    %v4968 = vadd.f32 %v4872, %v4967
    %v4969 = vpop.f32.mrf.mxu0
    %4970 = vdwg.mxu0
    %v4971 = vmul.f32 %v4953, 0.5
    %v4972 = vmul.f32 %v4958, 0.5
    %v4973 = vmul.f32 %v4963, 0.5
    %v4974 = vmul.f32 %v4968, 0.5
    %v4975 = vmul.f32 %v4953, 0.70710677
    %v4976 = vmul.f32 %v4958, 0.70710677
    %v4977 = vmul.f32 %v4963, 0.70710677
    %v4978 = vmul.f32 %v4968, 0.70710677
    %v4979 = vand.u32 2147483647, %v4975
    %v4980 = vand.u32 2147483647, %v4976
    %v4981 = vand.u32 2147483647, %v4977
    %v4982 = vand.u32 2147483647, %v4978
    %v4983 = vmul.f32 %v4979, 0.3275911
    %v4984 = vmul.f32 %v4980, 0.3275911
    %v4985 = vmul.f32 %v4981, 0.3275911
    %v4986 = vmul.f32 %v4982, 0.3275911
    %v4987 = vadd.f32 %v4983, 1.0
    %v4988 = vadd.f32 %v4984, 1.0
    %v4989 = vadd.f32 %v4985, 1.0
    %v4990 = vadd.f32 %v4986, 1.0
    %v4991 = vrcp.pop %v4987
    %v4992 = vrcp.pop %v4988
    %v4993 = vrcp.pop %v4989
    %v4994 = vrcp.pop %v4990
    %v4995 = vmul.f32 %v4991, 1.0614054
    %v4996 = vmul.f32 %v4992, 1.0614054
    %v4997 = vmul.f32 %v4993, 1.0614054
    %v4998 = vmul.f32 %v4994, 1.0614054
    %v4999 = vsub.f32 %v4995, 1.4531521
    %v5000 = vsub.f32 %v4996, 1.4531521
    %v5001 = vsub.f32 %v4997, 1.4531521
    %v5002 = vsub.f32 %v4998, 1.4531521
    %v5003 = vmul.f32 %v4999, %v4991
    %v5004 = vmul.f32 %v5000, %v4992
    %v5005 = vmul.f32 %v5001, %v4993
    %v5006 = vmul.f32 %v5002, %v4994
    %v5007 = vadd.f32 %v5003, 1.4214138
    %v5008 = vadd.f32 %v5004, 1.4214138
    %v5009 = vadd.f32 %v5005, 1.4214138
    %v5010 = vadd.f32 %v5006, 1.4214138
    %v5011 = vmul.f32 %v5007, %v4991
    %v5012 = vmul.f32 %v5008, %v4992
    %v5013 = vmul.f32 %v5009, %v4993
    %v5014 = vmul.f32 %v5010, %v4994
    %v5015 = vsub.f32 %v5011, 0.28449672
    %v5016 = vsub.f32 %v5012, 0.28449672
    %v5017 = vsub.f32 %v5013, 0.28449672
    %v5018 = vsub.f32 %v5014, 0.28449672
    %v5019 = vmul.f32 %v5015, %v4991
    %v5020 = vmul.f32 %v5016, %v4992
    %v5021 = vmul.f32 %v5017, %v4993
    %v5022 = vmul.f32 %v5018, %v4994
    %v5023 = vadd.f32 %v5019, 0.2548296
    %v5024 = vadd.f32 %v5020, 0.2548296
    %v5025 = vadd.f32 %v5021, 0.2548296
    %v5026 = vadd.f32 %v5022, 0.2548296
    %v5027 = vmul.f32 %v5023, %v4991
    %v5028 = vmul.f32 %v5024, %v4992
    %v5029 = vmul.f32 %v5025, %v4993
    %v5030 = vmul.f32 %v5026, %v4994
    %v5031 = vsub.f32 0.0, %v4979
    %v5032 = vsub.f32 0.0, %v4980
    %v5033 = vsub.f32 0.0, %v4981
    %v5034 = vsub.f32 0.0, %v4982
    %v5035 = vmul.f32 %v5031, %v4979
    %v5036 = vmul.f32 %v5032, %v4980
    %v5037 = vmul.f32 %v5033, %v4981
    %v5038 = vmul.f32 %v5034, %v4982
    %v5039 = vmul.f32 %v5035, 1.442695
    %v5040 = vpow.pop %v5039
    %v5041 = vmul.f32 %v5036, 1.442695
    %v5042 = vpow.pop %v5041
    %v5043 = vmul.f32 %v5037, 1.442695
    %v5044 = vpow.pop %v5043
    %v5045 = vmul.f32 %v5038, 1.442695
    %v5046 = vpow.pop %v5045
    %v5047 = vmul.f32 %v5027, %v5040
    %v5048 = vmul.f32 %v5028, %v5042
    %v5049 = vmul.f32 %v5029, %v5044
    %v5050 = vmul.f32 %v5030, %v5046
    %v5051 = vsub.f32 1.0, %v5047
    %v5052 = vsub.f32 1.0, %v5048
    %v5053 = vsub.f32 1.0, %v5049
    %v5054 = vsub.f32 1.0, %v5050
    %vm5055 = vcmp.lt.f32.partialorder %v4975, 0.0
    %vm5056 = vcmp.lt.f32.partialorder %v4976, 0.0
    %vm5057 = vcmp.lt.f32.partialorder %v4977, 0.0
    %vm5058 = vcmp.lt.f32.partialorder %v4978, 0.0
    %v5059 = vsub.f32 0.0, %v5051
    %v5060 = vsub.f32 0.0, %v5052
    %v5061 = vsub.f32 0.0, %v5053
    %v5062 = vsub.f32 0.0, %v5054
    %v5063 = vsel %vm5055, %v5059, %v5051
    %v5064 = vsel %vm5056, %v5060, %v5052
    %v5065 = vsel %vm5057, %v5061, %v5053
    %v5066 = vsel %vm5058, %v5062, %v5054
    %v5067 = vadd.f32 %v5063, 1.0
    %v5068 = vadd.f32 %v5064, 1.0
    %v5069 = vadd.f32 %v5065, 1.0
    %v5070 = vadd.f32 %v5066, 1.0
    %v5071 = vmul.f32 %v4971, %v5067
    %v5072 = vmul.f32 %v4972, %v5068
    %v5073 = vmul.f32 %v4973, %v5069
    %v5074 = vmul.f32 %v4974, %v5070
    %v5075 = vld [vmem:[%s35] sm:$0xff]
    %v5076 = vld [vmem:[%s35 + $0x8] sm:$0xff]
    %v5077 = vld [vmem:[%s35 + $0x10] sm:$0xff]
    %v5078 = vld [vmem:[%s35 + $0x18] sm:$0xff]
    %v5079 = vld [vmem:[%s35 + $0x20] sm:$0xff]
    %v5080 = vld [vmem:[%s35 + $0x28] sm:$0xff]
    %v5081 = vld [vmem:[%s35 + $0x30] sm:$0xff]
    %v5082 = vld [vmem:[%s35 + $0x38] sm:$0xff]
    %v5083 = vld [vmem:[%s23] sm:$0x1]
    %v5085 = vlaneseq
    %v5086 = vshrl.u32 %v5085, 7
    %v5087 = vsub.s32 0, %v5086
    %v5088 = vrot.slane %v5083, %v5087
    %v5091 = vsel %vm2314, %v5071, 0
    %v5094 = vsel %vm2314, %v5072, 0
    %v5097 = vsel %vm2314, %v5073, 0
    %v5100 = vsel %vm2314, %v5074, 0
    %5102 = vmatprep.subr.mxu0 0.0
    %5103 = vmatpush1.msra.mxu0 0.0
    %5104 = vmatprep.subr.mxu0 0.0
    %5105 = vmatpush1.msra.mxu0 0.0
    %5106 = vmatprep.subr.mxu0 0.0
    %5107 = vmatpush1.msra.mxu0 0.0
    %5108 = vmatprep.subr.mxu0 0.0
    %5109 = vmatpush1.msra.mxu0 0.0
    %5110 = vmatprep.subr.mxu0 0.0
    %5111 = vmatpush1.msra.mxu0 0.0
    %5112 = vmatprep.subr.mxu0 0.0
    %5113 = vmatpush1.msra.mxu0 0.0
    %5114 = vmatprep.subr.mxu0 0.0
    %5115 = vmatpush1.msra.mxu0 0.0
    %5116 = vmatprep.subr.mxu0 0.0
    %5117 = vmatpush1.msra.mxu0 0.0
    %5118 = vmatprep.subr.mxu0 0.0
    %5119 = vmatpush1.msra.mxu0 %v5082
    %5120 = vmatprep.subr.mxu0 0.0
    %5121 = vmatpush1.msra.mxu0 %v5081
    %5122 = vmatprep.subr.mxu0 0.0
    %5123 = vmatpush1.msra.mxu0 %v5080
    %5124 = vmatprep.subr.mxu0 0.0
    %5125 = vmatpush1.msra.mxu0 %v5079
    %5126 = vmatprep.subr.mxu0 0.0
    %5127 = vmatpush1.msra.mxu0 %v5078
    %5128 = vmatprep.subr.mxu0 0.0
    %5129 = vmatpush1.msra.mxu0 %v5077
    %5130 = vmatprep.subr.mxu0 0.0
    %5131 = vmatpush1.msra.mxu0 %v5076
    %5132 = vmatprep.subr.mxu0 0.0
    %5133 = vmatpush1.msra.mxu0 %v5075
    %5134 = vmatprep.subr.mxu0 0.0
    %5135 = vmatpush2.msra.mxu0 0.0
    %5136 = vmatprep.subr.mxu0 0.0
    %5137 = vmatpush2.msra.mxu0 0.0
    %5138 = vmatprep.subr.mxu0 0.0
    %5139 = vmatpush2.msra.mxu0 0.0
    %5140 = vmatprep.subr.mxu0 0.0
    %5141 = vmatpush2.msra.mxu0 0.0
    %5142 = vmatprep.subr.mxu0 0.0
    %5143 = vmatpush2.msra.mxu0 0.0
    %5144 = vmatprep.subr.mxu0 0.0
    %5145 = vmatpush2.msra.mxu0 0.0
    %5146 = vmatprep.subr.mxu0 0.0
    %5147 = vmatpush2.msra.mxu0 0.0
    %5148 = vmatprep.subr.mxu0 0.0
    %5149 = vmatpush2.msra.mxu0 0.0
    %5150 = vmatprep.subr.mxu0 0.0
    %5151 = vmatpush2.msra.mxu0 0.0
    %5152 = vmatprep.subr.mxu0 0.0
    %5153 = vmatpush2.msra.mxu0 0.0
    %5154 = vmatprep.subr.mxu0 0.0
    %5155 = vmatpush2.msra.mxu0 0.0
    %5156 = vmatprep.subr.mxu0 0.0
    %5157 = vmatpush2.msra.mxu0 0.0
    %5158 = vmatprep.subr.mxu0 0.0
    %5159 = vmatpush2.msra.mxu0 0.0
    %5160 = vmatprep.subr.mxu0 0.0
    %5161 = vmatpush2.msra.mxu0 0.0
    %5162 = vmatprep.subr.mxu0 0.0
    %5163 = vmatpush2.msra.mxu0 0.0
    %5164 = vmatprep.subr.mxu0 0.0
    %5165 = vmatpush2.msra.mxu0 0.0
    %5166 = vmatprep.mubr.f32.mxu0 0.0
    %5167 = vmatmul.mubr.f32.gmra.mxu0 %v5091
    %v5168 = vpop.f32.mrf.mxu0
    %v5169 = vadd.f32 %v5088, %v5168
    %v5170 = vpop.f32.mrf.mxu0
    %5171 = vmatprep.mubr.f32.mxu0 0.0
    %5172 = vmatmul.mubr.f32.gmra.mxu0 %v5094
    %v5173 = vpop.f32.mrf.mxu0
    %v5174 = vadd.f32 %v5088, %v5173
    %v5175 = vpop.f32.mrf.mxu0
    %5176 = vmatprep.mubr.f32.mxu0 0.0
    %5177 = vmatmul.mubr.f32.gmra.mxu0 %v5097
    %v5178 = vpop.f32.mrf.mxu0
    %v5179 = vadd.f32 %v5088, %v5178
    %v5180 = vpop.f32.mrf.mxu0
    %5181 = vmatprep.mubr.f32.mxu0 0.0
    %5182 = vmatmul.mubr.f32.gmra.mxu0 %v5100
    %v5183 = vpop.f32.mrf.mxu0
    %v5184 = vadd.f32 %v5088, %v5183
    %v5185 = vpop.f32.mrf.mxu0
    %5186 = vdwg.mxu0
    %v5187 = vadd.f32 %v4859, %v5169
    %v5188 = vadd.f32 %v4860, %v5174
    %v5189 = vadd.f32 %v4861, %v5179
    %v5190 = vadd.f32 %v4862, %v5184
    %v5191 = vld [vmem:[%s31] sm:$0x1]
    %v5192 = vld [vmem:[%s19] sm:$0x1]
    %v5193 = vsel %vm369, %v5187, 0.0
    %5194 = vadd.xlane.f32.xlu0 %v5193
    %v5195 = vpop.xlane.xlu0 %5194
    %v5196 = vsel %vm369, %v5188, 0.0
    %5197 = vadd.xlane.f32.xlu0 %v5196
    %v5198 = vpop.xlane.xlu0 %5197
    %v5199 = vsel %vm369, %v5189, 0.0
    %5200 = vadd.xlane.f32.xlu0 %v5199
    %v5201 = vpop.xlane.xlu0 %5200
    %v5202 = vsel %vm369, %v5190, 0.0
    %5203 = vadd.xlane.f32.xlu0 %v5202
    %v5204 = vpop.xlane.xlu0 %5203
    %v5205 = vmul.f32 %v5195, %v4802
    %v5206 = vmul.f32 %v5198, %v4802
    %v5207 = vmul.f32 %v5201, %v4802
    %v5208 = vmul.f32 %v5204, %v4802
    %v5209 = vsub.f32 %v5187, %v5205
    %v5210 = vsub.f32 %v5188, %v5206
    %v5211 = vsub.f32 %v5189, %v5207
    %v5212 = vsub.f32 %v5190, %v5208
    %v5213 = vmul.f32 %v5209, %v5209
    %v5214 = vmul.f32 %v5210, %v5210
    %v5215 = vmul.f32 %v5211, %v5211
    %v5216 = vmul.f32 %v5212, %v5212
    %v5217 = vsel %vm369, %v5213, 0.0
    %5218 = vadd.xlane.f32.xlu0 %v5217
    %v5219 = vpop.xlane.xlu0 %5218
    %v5220 = vsel %vm369, %v5214, 0.0
    %5221 = vadd.xlane.f32.xlu0 %v5220
    %v5222 = vpop.xlane.xlu0 %5221
    %v5223 = vsel %vm369, %v5215, 0.0
    %5224 = vadd.xlane.f32.xlu0 %v5223
    %v5225 = vpop.xlane.xlu0 %5224
    %v5226 = vsel %vm369, %v5216, 0.0
    %5227 = vadd.xlane.f32.xlu0 %v5226
    %v5228 = vpop.xlane.xlu0 %5227
    %v5229 = vmul.f32 %v5219, %v4802
    %v5230 = vmul.f32 %v5222, %v4802
    %v5231 = vmul.f32 %v5225, %v4802
    %v5232 = vmul.f32 %v5228, %v4802
    %v5233 = vadd.f32 %v5229, 1e-05
    %v5234 = vadd.f32 %v5230, 1e-05
    %v5235 = vadd.f32 %v5231, 1e-05
    %v5236 = vadd.f32 %v5232, 1e-05
    %v5237 = vrsqrt.pop %v5233
    %v5238 = vrsqrt.pop %v5234
    %v5239 = vrsqrt.pop %v5235
    %v5240 = vrsqrt.pop %v5236
    %v5241 = vmul.f32 %v5209, %v5237
    %v5242 = vmul.f32 %v5210, %v5238
    %v5243 = vmul.f32 %v5211, %v5239
    %v5244 = vmul.f32 %v5212, %v5240
    %v5246 = vlaneseq
    %v5247 = vshrl.u32 %v5246, 7
    %v5248 = vsub.s32 0, %v5247
    %v5249 = vrot.slane %v5191, %v5248
    %v5251 = vmul.f32 %v5241, %v5249
    %v5252 = vmul.f32 %v5242, %v5249
    %v5253 = vmul.f32 %v5243, %v5249
    %v5254 = vmul.f32 %v5244, %v5249
    %v5256 = vlaneseq
    %v5257 = vshrl.u32 %v5256, 7
    %v5258 = vsub.s32 0, %v5257
    %v5259 = vrot.slane %v5192, %v5258
    %v5261 = vadd.f32 %v5251, %v5259
    %v5262 = vadd.f32 %v5252, %v5259
    %v5263 = vadd.f32 %v5253, %v5259
    %v5264 = vadd.f32 %v5254, %v5259
    %v5265 = vld [vmem:[%s63] sm:$0xff]
    %v5266 = vld [vmem:[%s63 + $0x8] sm:$0xff]
    %v5267 = vld [vmem:[%s63 + $0x10] sm:$0xff]
    %v5268 = vld [vmem:[%s63 + $0x18] sm:$0xff]
    %v5269 = vld [vmem:[%s51] sm:$0x1]
    %v5271 = vlaneseq
    %v5272 = vshrl.u32 %v5271, 7
    %v5273 = vsub.s32 0, %v5272
    %v5274 = vrot.slane %v5269, %v5273
    %v5277 = vsel %vm369, %v5261, 0
    %v5280 = vsel %vm369, %v5262, 0
    %v5283 = vsel %vm369, %v5263, 0
    %v5286 = vsel %vm369, %v5264, 0
    %5288 = vmatprep.subr.mxu0 0.0
    %5289 = vmatpush1.msra.mxu0 0.0
    %5290 = vmatprep.subr.mxu0 0.0
    %5291 = vmatpush1.msra.mxu0 0.0
    %5292 = vmatprep.subr.mxu0 0.0
    %5293 = vmatpush1.msra.mxu0 0.0
    %5294 = vmatprep.subr.mxu0 0.0
    %5295 = vmatpush1.msra.mxu0 0.0
    %5296 = vmatprep.subr.mxu0 0.0
    %5297 = vmatpush1.msra.mxu0 0.0
    %5298 = vmatprep.subr.mxu0 0.0
    %5299 = vmatpush1.msra.mxu0 0.0
    %5300 = vmatprep.subr.mxu0 0.0
    %5301 = vmatpush1.msra.mxu0 0.0
    %5302 = vmatprep.subr.mxu0 0.0
    %5303 = vmatpush1.msra.mxu0 0.0
    %5304 = vmatprep.subr.mxu0 0.0
    %5305 = vmatpush1.msra.mxu0 0.0
    %5306 = vmatprep.subr.mxu0 0.0
    %5307 = vmatpush1.msra.mxu0 0.0
    %5308 = vmatprep.subr.mxu0 0.0
    %5309 = vmatpush1.msra.mxu0 0.0
    %5310 = vmatprep.subr.mxu0 0.0
    %5311 = vmatpush1.msra.mxu0 0.0
    %5312 = vmatprep.subr.mxu0 0.0
    %5313 = vmatpush1.msra.mxu0 %v5268
    %5314 = vmatprep.subr.mxu0 0.0
    %5315 = vmatpush1.msra.mxu0 %v5267
    %5316 = vmatprep.subr.mxu0 0.0
    %5317 = vmatpush1.msra.mxu0 %v5266
    %5318 = vmatprep.subr.mxu0 0.0
    %5319 = vmatpush1.msra.mxu0 %v5265
    %5320 = vmatprep.subr.mxu0 0.0
    %5321 = vmatpush2.msra.mxu0 0.0
    %5322 = vmatprep.subr.mxu0 0.0
    %5323 = vmatpush2.msra.mxu0 0.0
    %5324 = vmatprep.subr.mxu0 0.0
    %5325 = vmatpush2.msra.mxu0 0.0
    %5326 = vmatprep.subr.mxu0 0.0
    %5327 = vmatpush2.msra.mxu0 0.0
    %5328 = vmatprep.subr.mxu0 0.0
    %5329 = vmatpush2.msra.mxu0 0.0
    %5330 = vmatprep.subr.mxu0 0.0
    %5331 = vmatpush2.msra.mxu0 0.0
    %5332 = vmatprep.subr.mxu0 0.0
    %5333 = vmatpush2.msra.mxu0 0.0
    %5334 = vmatprep.subr.mxu0 0.0
    %5335 = vmatpush2.msra.mxu0 0.0
    %5336 = vmatprep.subr.mxu0 0.0
    %5337 = vmatpush2.msra.mxu0 0.0
    %5338 = vmatprep.subr.mxu0 0.0
    %5339 = vmatpush2.msra.mxu0 0.0
    %5340 = vmatprep.subr.mxu0 0.0
    %5341 = vmatpush2.msra.mxu0 0.0
    %5342 = vmatprep.subr.mxu0 0.0
    %5343 = vmatpush2.msra.mxu0 0.0
    %5344 = vmatprep.subr.mxu0 0.0
    %5345 = vmatpush2.msra.mxu0 0.0
    %5346 = vmatprep.subr.mxu0 0.0
    %5347 = vmatpush2.msra.mxu0 0.0
    %5348 = vmatprep.subr.mxu0 0.0
    %5349 = vmatpush2.msra.mxu0 0.0
    %5350 = vmatprep.subr.mxu0 0.0
    %5351 = vmatpush2.msra.mxu0 0.0
    %5352 = vmatprep.mubr.f32.mxu0 0.0
    %5353 = vmatmul.mubr.f32.gmra.mxu0 %v5277
    %v5354 = vpop.f32.mrf.mxu0
    %v5355 = vadd.f32 %v5274, %v5354
    %v5356 = vpop.f32.mrf.mxu0
    %5357 = vmatprep.mubr.f32.mxu0 0.0
    %5358 = vmatmul.mubr.f32.gmra.mxu0 %v5280
    %v5359 = vpop.f32.mrf.mxu0
    %v5360 = vadd.f32 %v5274, %v5359
    %v5361 = vpop.f32.mrf.mxu0
    %5362 = vmatprep.mubr.f32.mxu0 0.0
    %5363 = vmatmul.mubr.f32.gmra.mxu0 %v5283
    %v5364 = vpop.f32.mrf.mxu0
    %v5365 = vadd.f32 %v5274, %v5364
    %v5366 = vpop.f32.mrf.mxu0
    %5367 = vmatprep.mubr.f32.mxu0 0.0
    %5368 = vmatmul.mubr.f32.gmra.mxu0 %v5286
    %v5369 = vpop.f32.mrf.mxu0
    %v5370 = vadd.f32 %v5274, %v5369
    %v5371 = vpop.f32.mrf.mxu0
    %5372 = vdwg.mxu0
    %5375 = vrot.lane.b32.xlu0 %v5355, 120
    %v5376 = vpop.permute.xlu0 %5375
    %5377 = vrot.lane.b32.xlu0 %v5360, 120
    %v5378 = vpop.permute.xlu0 %5377
    %5381 = vrot.lane.b32.xlu0 %v5355, 112
    %v5382 = vpop.permute.xlu0 %5381
    %5383 = vrot.lane.b32.xlu0 %v5360, 112
    %v5384 = vpop.permute.xlu0 %5383
    %5387 = vrot.lane.b32.xlu0 %v5355, 104
    %v5388 = vpop.permute.xlu0 %5387
    %5389 = vrot.lane.b32.xlu0 %v5360, 104
    %v5390 = vpop.permute.xlu0 %5389
    %5395 = vrot.lane.b32.xlu0 %v5365, 120
    %v5396 = vpop.permute.xlu0 %5395
    %5397 = vrot.lane.b32.xlu0 %v5370, 120
    %v5398 = vpop.permute.xlu0 %5397
    %5401 = vrot.lane.b32.xlu0 %v5365, 112
    %v5402 = vpop.permute.xlu0 %5401
    %5403 = vrot.lane.b32.xlu0 %v5370, 112
    %v5404 = vpop.permute.xlu0 %5403
    %5407 = vrot.lane.b32.xlu0 %v5365, 104
    %v5408 = vpop.permute.xlu0 %5407
    %5409 = vrot.lane.b32.xlu0 %v5370, 104
    %v5410 = vpop.permute.xlu0 %5409
    %v5413 = vmul.f32 %v5355, 0.35355338
    %v5414 = vmul.f32 %v5360, 0.35355338
    %v5415 = vmul.f32 %v5376, 0.35355338
    %v5416 = vmul.f32 %v5378, 0.35355338
    %v5417 = vmul.f32 %v5382, 0.35355338
    %v5418 = vmul.f32 %v5384, 0.35355338
    %v5419 = vmul.f32 %v5388, 0.35355338
    %v5420 = vmul.f32 %v5390, 0.35355338
    %v5421 = vmul.f32 %v5365, 0.35355338
    %v5422 = vmul.f32 %v5370, 0.35355338
    %v5423 = vmul.f32 %v5396, 0.35355338
    %v5424 = vmul.f32 %v5398, 0.35355338
    %v5425 = vmul.f32 %v5402, 0.35355338
    %v5426 = vmul.f32 %v5404, 0.35355338
    %v5427 = vmul.f32 %v5408, 0.35355338
    %v5428 = vmul.f32 %v5410, 0.35355338
    %5429 = vrot.lane.b32.xlu0 %v5355, 96
    %v5430 = vpop.permute.xlu0 %5429
    %5431 = vrot.lane.b32.xlu0 %v5360, 96
    %v5432 = vpop.permute.xlu0 %5431
    %v5434 = vsel %vm3034, %v5413, 0
    %v5437 = vsel %vm3034, %v5414, 0
    %v5439 = vsel %vm3034, %v5430, 0
    %v5441 = vsel %vm3034, %v5432, 0
    %5443 = vmatprep.subr.mxu0 0.0
    %5444 = vmatpush1.xpose.msra.mxu0 0.0
    %5445 = vmatprep.subr.mxu0 0.0
    %5446 = vmatpush1.xpose.msra.mxu0 0.0
    %5447 = vmatprep.subr.mxu0 0.0
    %5448 = vmatpush1.xpose.msra.mxu0 0.0
    %5449 = vmatprep.subr.mxu0 0.0
    %5450 = vmatpush1.xpose.msra.mxu0 0.0
    %5451 = vmatprep.subr.mxu0 0.0
    %5452 = vmatpush1.xpose.msra.mxu0 0.0
    %5453 = vmatprep.subr.mxu0 0.0
    %5454 = vmatpush1.xpose.msra.mxu0 0.0
    %5455 = vmatprep.subr.mxu0 0.0
    %5456 = vmatpush1.xpose.msra.mxu0 0.0
    %5457 = vmatprep.subr.mxu0 0.0
    %5458 = vmatpush1.xpose.msra.mxu0 0.0
    %5459 = vmatprep.subr.mxu0 0.0
    %5460 = vmatpush1.xpose.msra.mxu0 0.0
    %5461 = vmatprep.subr.mxu0 0.0
    %5462 = vmatpush1.xpose.msra.mxu0 0.0
    %5463 = vmatprep.subr.mxu0 0.0
    %5464 = vmatpush1.xpose.msra.mxu0 0.0
    %5465 = vmatprep.subr.mxu0 0.0
    %5466 = vmatpush1.xpose.msra.mxu0 0.0
    %5467 = vmatprep.subr.mxu0 0.0
    %5468 = vmatpush1.xpose.msra.mxu0 0.0
    %5469 = vmatprep.subr.mxu0 0.0
    %5470 = vmatpush1.xpose.msra.mxu0 0.0
    %5471 = vmatprep.subr.mxu0 0.0
    %5472 = vmatpush1.xpose.msra.mxu0 %v5441
    %5473 = vmatprep.subr.mxu0 0.0
    %5474 = vmatpush1.xpose.msra.mxu0 %v5439
    %5475 = vmatprep.subr.mxu0 0.0
    %5476 = vmatpush2.xpose.msra.mxu0 0.0
    %5477 = vmatprep.subr.mxu0 0.0
    %5478 = vmatpush2.xpose.msra.mxu0 0.0
    %5479 = vmatprep.subr.mxu0 0.0
    %5480 = vmatpush2.xpose.msra.mxu0 0.0
    %5481 = vmatprep.subr.mxu0 0.0
    %5482 = vmatpush2.xpose.msra.mxu0 0.0
    %5483 = vmatprep.subr.mxu0 0.0
    %5484 = vmatpush2.xpose.msra.mxu0 0.0
    %5485 = vmatprep.subr.mxu0 0.0
    %5486 = vmatpush2.xpose.msra.mxu0 0.0
    %5487 = vmatprep.subr.mxu0 0.0
    %5488 = vmatpush2.xpose.msra.mxu0 0.0
    %5489 = vmatprep.subr.mxu0 0.0
    %5490 = vmatpush2.xpose.msra.mxu0 0.0
    %5491 = vmatprep.subr.mxu0 0.0
    %5492 = vmatpush2.xpose.msra.mxu0 0.0
    %5493 = vmatprep.subr.mxu0 0.0
    %5494 = vmatpush2.xpose.msra.mxu0 0.0
    %5495 = vmatprep.subr.mxu0 0.0
    %5496 = vmatpush2.xpose.msra.mxu0 0.0
    %5497 = vmatprep.subr.mxu0 0.0
    %5498 = vmatpush2.xpose.msra.mxu0 0.0
    %5499 = vmatprep.subr.mxu0 0.0
    %5500 = vmatpush2.xpose.msra.mxu0 0.0
    %5501 = vmatprep.subr.mxu0 0.0
    %5502 = vmatpush2.xpose.msra.mxu0 0.0
    %5503 = vmatprep.subr.mxu0 0.0
    %5504 = vmatpush2.xpose.msra.mxu0 0.0
    %5505 = vmatprep.subr.mxu0 0.0
    %5506 = vmatpush2.xpose.msra.mxu0 0.0
    %5507 = vmatprep.mubr.f32.mxu0 0.0
    %5508 = vmatmul.mubr.f32.gmra.mxu0 %v5434
    %v5509 = vpop.f32.mrf.mxu0
    %v5510 = vadd.f32 0.0, %v5509
    %v5511 = vpop.f32.mrf.mxu0
    %5512 = vmatprep.mubr.f32.mxu0 0.0
    %5513 = vmatmul.mubr.f32.gmra.mxu0 %v5437
    %v5514 = vpop.f32.mrf.mxu0
    %v5515 = vadd.f32 0.0, %v5514
    %v5516 = vpop.f32.mrf.mxu0
    %5517 = vdwg.mxu0
    %5518 = vrot.lane.b32.xlu0 %v5376, 96
    %v5519 = vpop.permute.xlu0 %5518
    %5520 = vrot.lane.b32.xlu0 %v5378, 96
    %v5521 = vpop.permute.xlu0 %5520
    %v5523 = vsel %vm3034, %v5415, 0
    %v5526 = vsel %vm3034, %v5416, 0
    %v5528 = vsel %vm3034, %v5519, 0
    %v5530 = vsel %vm3034, %v5521, 0
    %5532 = vmatprep.subr.mxu0 0.0
    %5533 = vmatpush1.xpose.msra.mxu0 0.0
    %5534 = vmatprep.subr.mxu0 0.0
    %5535 = vmatpush1.xpose.msra.mxu0 0.0
    %5536 = vmatprep.subr.mxu0 0.0
    %5537 = vmatpush1.xpose.msra.mxu0 0.0
    %5538 = vmatprep.subr.mxu0 0.0
    %5539 = vmatpush1.xpose.msra.mxu0 0.0
    %5540 = vmatprep.subr.mxu0 0.0
    %5541 = vmatpush1.xpose.msra.mxu0 0.0
    %5542 = vmatprep.subr.mxu0 0.0
    %5543 = vmatpush1.xpose.msra.mxu0 0.0
    %5544 = vmatprep.subr.mxu0 0.0
    %5545 = vmatpush1.xpose.msra.mxu0 0.0
    %5546 = vmatprep.subr.mxu0 0.0
    %5547 = vmatpush1.xpose.msra.mxu0 0.0
    %5548 = vmatprep.subr.mxu0 0.0
    %5549 = vmatpush1.xpose.msra.mxu0 0.0
    %5550 = vmatprep.subr.mxu0 0.0
    %5551 = vmatpush1.xpose.msra.mxu0 0.0
    %5552 = vmatprep.subr.mxu0 0.0
    %5553 = vmatpush1.xpose.msra.mxu0 0.0
    %5554 = vmatprep.subr.mxu0 0.0
    %5555 = vmatpush1.xpose.msra.mxu0 0.0
    %5556 = vmatprep.subr.mxu0 0.0
    %5557 = vmatpush1.xpose.msra.mxu0 0.0
    %5558 = vmatprep.subr.mxu0 0.0
    %5559 = vmatpush1.xpose.msra.mxu0 0.0
    %5560 = vmatprep.subr.mxu0 0.0
    %5561 = vmatpush1.xpose.msra.mxu0 %v5530
    %5562 = vmatprep.subr.mxu0 0.0
    %5563 = vmatpush1.xpose.msra.mxu0 %v5528
    %5564 = vmatprep.subr.mxu0 0.0
    %5565 = vmatpush2.xpose.msra.mxu0 0.0
    %5566 = vmatprep.subr.mxu0 0.0
    %5567 = vmatpush2.xpose.msra.mxu0 0.0
    %5568 = vmatprep.subr.mxu0 0.0
    %5569 = vmatpush2.xpose.msra.mxu0 0.0
    %5570 = vmatprep.subr.mxu0 0.0
    %5571 = vmatpush2.xpose.msra.mxu0 0.0
    %5572 = vmatprep.subr.mxu0 0.0
    %5573 = vmatpush2.xpose.msra.mxu0 0.0
    %5574 = vmatprep.subr.mxu0 0.0
    %5575 = vmatpush2.xpose.msra.mxu0 0.0
    %5576 = vmatprep.subr.mxu0 0.0
    %5577 = vmatpush2.xpose.msra.mxu0 0.0
    %5578 = vmatprep.subr.mxu0 0.0
    %5579 = vmatpush2.xpose.msra.mxu0 0.0
    %5580 = vmatprep.subr.mxu0 0.0
    %5581 = vmatpush2.xpose.msra.mxu0 0.0
    %5582 = vmatprep.subr.mxu0 0.0
    %5583 = vmatpush2.xpose.msra.mxu0 0.0
    %5584 = vmatprep.subr.mxu0 0.0
    %5585 = vmatpush2.xpose.msra.mxu0 0.0
    %5586 = vmatprep.subr.mxu0 0.0
    %5587 = vmatpush2.xpose.msra.mxu0 0.0
    %5588 = vmatprep.subr.mxu0 0.0
    %5589 = vmatpush2.xpose.msra.mxu0 0.0
    %5590 = vmatprep.subr.mxu0 0.0
    %5591 = vmatpush2.xpose.msra.mxu0 0.0
    %5592 = vmatprep.subr.mxu0 0.0
    %5593 = vmatpush2.xpose.msra.mxu0 0.0
    %5594 = vmatprep.subr.mxu0 0.0
    %5595 = vmatpush2.xpose.msra.mxu0 0.0
    %5596 = vmatprep.mubr.f32.mxu0 0.0
    %5597 = vmatmul.mubr.f32.gmra.mxu0 %v5523
    %v5598 = vpop.f32.mrf.mxu0
    %v5599 = vadd.f32 0.0, %v5598
    %v5600 = vpop.f32.mrf.mxu0
    %5601 = vmatprep.mubr.f32.mxu0 0.0
    %5602 = vmatmul.mubr.f32.gmra.mxu0 %v5526
    %v5603 = vpop.f32.mrf.mxu0
    %v5604 = vadd.f32 0.0, %v5603
    %v5605 = vpop.f32.mrf.mxu0
    %5606 = vdwg.mxu0
    %5607 = vrot.lane.b32.xlu0 %v5382, 96
    %v5608 = vpop.permute.xlu0 %5607
    %5609 = vrot.lane.b32.xlu0 %v5384, 96
    %v5610 = vpop.permute.xlu0 %5609
    %v5612 = vsel %vm3034, %v5417, 0
    %v5615 = vsel %vm3034, %v5418, 0
    %v5617 = vsel %vm3034, %v5608, 0
    %v5619 = vsel %vm3034, %v5610, 0
    %5621 = vmatprep.subr.mxu0 0.0
    %5622 = vmatpush1.xpose.msra.mxu0 0.0
    %5623 = vmatprep.subr.mxu0 0.0
    %5624 = vmatpush1.xpose.msra.mxu0 0.0
    %5625 = vmatprep.subr.mxu0 0.0
    %5626 = vmatpush1.xpose.msra.mxu0 0.0
    %5627 = vmatprep.subr.mxu0 0.0
    %5628 = vmatpush1.xpose.msra.mxu0 0.0
    %5629 = vmatprep.subr.mxu0 0.0
    %5630 = vmatpush1.xpose.msra.mxu0 0.0
    %5631 = vmatprep.subr.mxu0 0.0
    %5632 = vmatpush1.xpose.msra.mxu0 0.0
    %5633 = vmatprep.subr.mxu0 0.0
    %5634 = vmatpush1.xpose.msra.mxu0 0.0
    %5635 = vmatprep.subr.mxu0 0.0
    %5636 = vmatpush1.xpose.msra.mxu0 0.0
    %5637 = vmatprep.subr.mxu0 0.0
    %5638 = vmatpush1.xpose.msra.mxu0 0.0
    %5639 = vmatprep.subr.mxu0 0.0
    %5640 = vmatpush1.xpose.msra.mxu0 0.0
    %5641 = vmatprep.subr.mxu0 0.0
    %5642 = vmatpush1.xpose.msra.mxu0 0.0
    %5643 = vmatprep.subr.mxu0 0.0
    %5644 = vmatpush1.xpose.msra.mxu0 0.0
    %5645 = vmatprep.subr.mxu0 0.0
    %5646 = vmatpush1.xpose.msra.mxu0 0.0
    %5647 = vmatprep.subr.mxu0 0.0
    %5648 = vmatpush1.xpose.msra.mxu0 0.0
    %5649 = vmatprep.subr.mxu0 0.0
    %5650 = vmatpush1.xpose.msra.mxu0 %v5619
    %5651 = vmatprep.subr.mxu0 0.0
    %5652 = vmatpush1.xpose.msra.mxu0 %v5617
    %5653 = vmatprep.subr.mxu0 0.0
    %5654 = vmatpush2.xpose.msra.mxu0 0.0
    %5655 = vmatprep.subr.mxu0 0.0
    %5656 = vmatpush2.xpose.msra.mxu0 0.0
    %5657 = vmatprep.subr.mxu0 0.0
    %5658 = vmatpush2.xpose.msra.mxu0 0.0
    %5659 = vmatprep.subr.mxu0 0.0
    %5660 = vmatpush2.xpose.msra.mxu0 0.0
    %5661 = vmatprep.subr.mxu0 0.0
    %5662 = vmatpush2.xpose.msra.mxu0 0.0
    %5663 = vmatprep.subr.mxu0 0.0
    %5664 = vmatpush2.xpose.msra.mxu0 0.0
    %5665 = vmatprep.subr.mxu0 0.0
    %5666 = vmatpush2.xpose.msra.mxu0 0.0
    %5667 = vmatprep.subr.mxu0 0.0
    %5668 = vmatpush2.xpose.msra.mxu0 0.0
    %5669 = vmatprep.subr.mxu0 0.0
    %5670 = vmatpush2.xpose.msra.mxu0 0.0
    %5671 = vmatprep.subr.mxu0 0.0
    %5672 = vmatpush2.xpose.msra.mxu0 0.0
    %5673 = vmatprep.subr.mxu0 0.0
    %5674 = vmatpush2.xpose.msra.mxu0 0.0
    %5675 = vmatprep.subr.mxu0 0.0
    %5676 = vmatpush2.xpose.msra.mxu0 0.0
    %5677 = vmatprep.subr.mxu0 0.0
    %5678 = vmatpush2.xpose.msra.mxu0 0.0
    %5679 = vmatprep.subr.mxu0 0.0
    %5680 = vmatpush2.xpose.msra.mxu0 0.0
    %5681 = vmatprep.subr.mxu0 0.0
    %5682 = vmatpush2.xpose.msra.mxu0 0.0
    %5683 = vmatprep.subr.mxu0 0.0
    %5684 = vmatpush2.xpose.msra.mxu0 0.0
    %5685 = vmatprep.mubr.f32.mxu0 0.0
    %5686 = vmatmul.mubr.f32.gmra.mxu0 %v5612
    %v5687 = vpop.f32.mrf.mxu0
    %v5688 = vadd.f32 0.0, %v5687
    %v5689 = vpop.f32.mrf.mxu0
    %5690 = vmatprep.mubr.f32.mxu0 0.0
    %5691 = vmatmul.mubr.f32.gmra.mxu0 %v5615
    %v5692 = vpop.f32.mrf.mxu0
    %v5693 = vadd.f32 0.0, %v5692
    %v5694 = vpop.f32.mrf.mxu0
    %5695 = vdwg.mxu0
    %5696 = vrot.lane.b32.xlu0 %v5388, 96
    %v5697 = vpop.permute.xlu0 %5696
    %5698 = vrot.lane.b32.xlu0 %v5390, 96
    %v5699 = vpop.permute.xlu0 %5698
    %v5701 = vsel %vm3034, %v5419, 0
    %v5704 = vsel %vm3034, %v5420, 0
    %v5706 = vsel %vm3034, %v5697, 0
    %v5708 = vsel %vm3034, %v5699, 0
    %5710 = vmatprep.subr.mxu0 0.0
    %5711 = vmatpush1.xpose.msra.mxu0 0.0
    %5712 = vmatprep.subr.mxu0 0.0
    %5713 = vmatpush1.xpose.msra.mxu0 0.0
    %5714 = vmatprep.subr.mxu0 0.0
    %5715 = vmatpush1.xpose.msra.mxu0 0.0
    %5716 = vmatprep.subr.mxu0 0.0
    %5717 = vmatpush1.xpose.msra.mxu0 0.0
    %5718 = vmatprep.subr.mxu0 0.0
    %5719 = vmatpush1.xpose.msra.mxu0 0.0
    %5720 = vmatprep.subr.mxu0 0.0
    %5721 = vmatpush1.xpose.msra.mxu0 0.0
    %5722 = vmatprep.subr.mxu0 0.0
    %5723 = vmatpush1.xpose.msra.mxu0 0.0
    %5724 = vmatprep.subr.mxu0 0.0
    %5725 = vmatpush1.xpose.msra.mxu0 0.0
    %5726 = vmatprep.subr.mxu0 0.0
    %5727 = vmatpush1.xpose.msra.mxu0 0.0
    %5728 = vmatprep.subr.mxu0 0.0
    %5729 = vmatpush1.xpose.msra.mxu0 0.0
    %5730 = vmatprep.subr.mxu0 0.0
    %5731 = vmatpush1.xpose.msra.mxu0 0.0
    %5732 = vmatprep.subr.mxu0 0.0
    %5733 = vmatpush1.xpose.msra.mxu0 0.0
    %5734 = vmatprep.subr.mxu0 0.0
    %5735 = vmatpush1.xpose.msra.mxu0 0.0
    %5736 = vmatprep.subr.mxu0 0.0
    %5737 = vmatpush1.xpose.msra.mxu0 0.0
    %5738 = vmatprep.subr.mxu0 0.0
    %5739 = vmatpush1.xpose.msra.mxu0 %v5708
    %5740 = vmatprep.subr.mxu0 0.0
    %5741 = vmatpush1.xpose.msra.mxu0 %v5706
    %5742 = vmatprep.subr.mxu0 0.0
    %5743 = vmatpush2.xpose.msra.mxu0 0.0
    %5744 = vmatprep.subr.mxu0 0.0
    %5745 = vmatpush2.xpose.msra.mxu0 0.0
    %5746 = vmatprep.subr.mxu0 0.0
    %5747 = vmatpush2.xpose.msra.mxu0 0.0
    %5748 = vmatprep.subr.mxu0 0.0
    %5749 = vmatpush2.xpose.msra.mxu0 0.0
    %5750 = vmatprep.subr.mxu0 0.0
    %5751 = vmatpush2.xpose.msra.mxu0 0.0
    %5752 = vmatprep.subr.mxu0 0.0
    %5753 = vmatpush2.xpose.msra.mxu0 0.0
    %5754 = vmatprep.subr.mxu0 0.0
    %5755 = vmatpush2.xpose.msra.mxu0 0.0
    %5756 = vmatprep.subr.mxu0 0.0
    %5757 = vmatpush2.xpose.msra.mxu0 0.0
    %5758 = vmatprep.subr.mxu0 0.0
    %5759 = vmatpush2.xpose.msra.mxu0 0.0
    %5760 = vmatprep.subr.mxu0 0.0
    %5761 = vmatpush2.xpose.msra.mxu0 0.0
    %5762 = vmatprep.subr.mxu0 0.0
    %5763 = vmatpush2.xpose.msra.mxu0 0.0
    %5764 = vmatprep.subr.mxu0 0.0
    %5765 = vmatpush2.xpose.msra.mxu0 0.0
    %5766 = vmatprep.subr.mxu0 0.0
    %5767 = vmatpush2.xpose.msra.mxu0 0.0
    %5768 = vmatprep.subr.mxu0 0.0
    %5769 = vmatpush2.xpose.msra.mxu0 0.0
    %5770 = vmatprep.subr.mxu0 0.0
    %5771 = vmatpush2.xpose.msra.mxu0 0.0
    %5772 = vmatprep.subr.mxu0 0.0
    %5773 = vmatpush2.xpose.msra.mxu0 0.0
    %5774 = vmatprep.mubr.f32.mxu0 0.0
    %5775 = vmatmul.mubr.f32.gmra.mxu0 %v5701
    %v5776 = vpop.f32.mrf.mxu0
    %v5777 = vadd.f32 0.0, %v5776
    %v5778 = vpop.f32.mrf.mxu0
    %5779 = vmatprep.mubr.f32.mxu0 0.0
    %5780 = vmatmul.mubr.f32.gmra.mxu0 %v5704
    %v5781 = vpop.f32.mrf.mxu0
    %v5782 = vadd.f32 0.0, %v5781
    %v5783 = vpop.f32.mrf.mxu0
    %5784 = vdwg.mxu0
    %5785 = vrot.lane.b32.xlu0 %v5365, 96
    %v5786 = vpop.permute.xlu0 %5785
    %5787 = vrot.lane.b32.xlu0 %v5370, 96
    %v5788 = vpop.permute.xlu0 %5787
    %v5790 = vsel %vm3034, %v5421, 0
    %v5793 = vsel %vm3034, %v5422, 0
    %v5795 = vsel %vm3034, %v5786, 0
    %v5797 = vsel %vm3034, %v5788, 0
    %5799 = vmatprep.subr.mxu0 0.0
    %5800 = vmatpush1.xpose.msra.mxu0 0.0
    %5801 = vmatprep.subr.mxu0 0.0
    %5802 = vmatpush1.xpose.msra.mxu0 0.0
    %5803 = vmatprep.subr.mxu0 0.0
    %5804 = vmatpush1.xpose.msra.mxu0 0.0
    %5805 = vmatprep.subr.mxu0 0.0
    %5806 = vmatpush1.xpose.msra.mxu0 0.0
    %5807 = vmatprep.subr.mxu0 0.0
    %5808 = vmatpush1.xpose.msra.mxu0 0.0
    %5809 = vmatprep.subr.mxu0 0.0
    %5810 = vmatpush1.xpose.msra.mxu0 0.0
    %5811 = vmatprep.subr.mxu0 0.0
    %5812 = vmatpush1.xpose.msra.mxu0 0.0
    %5813 = vmatprep.subr.mxu0 0.0
    %5814 = vmatpush1.xpose.msra.mxu0 0.0
    %5815 = vmatprep.subr.mxu0 0.0
    %5816 = vmatpush1.xpose.msra.mxu0 0.0
    %5817 = vmatprep.subr.mxu0 0.0
    %5818 = vmatpush1.xpose.msra.mxu0 0.0
    %5819 = vmatprep.subr.mxu0 0.0
    %5820 = vmatpush1.xpose.msra.mxu0 0.0
    %5821 = vmatprep.subr.mxu0 0.0
    %5822 = vmatpush1.xpose.msra.mxu0 0.0
    %5823 = vmatprep.subr.mxu0 0.0
    %5824 = vmatpush1.xpose.msra.mxu0 0.0
    %5825 = vmatprep.subr.mxu0 0.0
    %5826 = vmatpush1.xpose.msra.mxu0 0.0
    %5827 = vmatprep.subr.mxu0 0.0
    %5828 = vmatpush1.xpose.msra.mxu0 %v5797
    %5829 = vmatprep.subr.mxu0 0.0
    %5830 = vmatpush1.xpose.msra.mxu0 %v5795
    %5831 = vmatprep.subr.mxu0 0.0
    %5832 = vmatpush2.xpose.msra.mxu0 0.0
    %5833 = vmatprep.subr.mxu0 0.0
    %5834 = vmatpush2.xpose.msra.mxu0 0.0
    %5835 = vmatprep.subr.mxu0 0.0
    %5836 = vmatpush2.xpose.msra.mxu0 0.0
    %5837 = vmatprep.subr.mxu0 0.0
    %5838 = vmatpush2.xpose.msra.mxu0 0.0
    %5839 = vmatprep.subr.mxu0 0.0
    %5840 = vmatpush2.xpose.msra.mxu0 0.0
    %5841 = vmatprep.subr.mxu0 0.0
    %5842 = vmatpush2.xpose.msra.mxu0 0.0
    %5843 = vmatprep.subr.mxu0 0.0
    %5844 = vmatpush2.xpose.msra.mxu0 0.0
    %5845 = vmatprep.subr.mxu0 0.0
    %5846 = vmatpush2.xpose.msra.mxu0 0.0
    %5847 = vmatprep.subr.mxu0 0.0
    %5848 = vmatpush2.xpose.msra.mxu0 0.0
    %5849 = vmatprep.subr.mxu0 0.0
    %5850 = vmatpush2.xpose.msra.mxu0 0.0
    %5851 = vmatprep.subr.mxu0 0.0
    %5852 = vmatpush2.xpose.msra.mxu0 0.0
    %5853 = vmatprep.subr.mxu0 0.0
    %5854 = vmatpush2.xpose.msra.mxu0 0.0
    %5855 = vmatprep.subr.mxu0 0.0
    %5856 = vmatpush2.xpose.msra.mxu0 0.0
    %5857 = vmatprep.subr.mxu0 0.0
    %5858 = vmatpush2.xpose.msra.mxu0 0.0
    %5859 = vmatprep.subr.mxu0 0.0
    %5860 = vmatpush2.xpose.msra.mxu0 0.0
    %5861 = vmatprep.subr.mxu0 0.0
    %5862 = vmatpush2.xpose.msra.mxu0 0.0
    %5863 = vmatprep.mubr.f32.mxu0 0.0
    %5864 = vmatmul.mubr.f32.gmra.mxu0 %v5790
    %v5865 = vpop.f32.mrf.mxu0
    %v5866 = vadd.f32 0.0, %v5865
    %v5867 = vpop.f32.mrf.mxu0
    %5868 = vmatprep.mubr.f32.mxu0 0.0
    %5869 = vmatmul.mubr.f32.gmra.mxu0 %v5793
    %v5870 = vpop.f32.mrf.mxu0
    %v5871 = vadd.f32 0.0, %v5870
    %v5872 = vpop.f32.mrf.mxu0
    %5873 = vdwg.mxu0
    %5874 = vrot.lane.b32.xlu0 %v5396, 96
    %v5875 = vpop.permute.xlu0 %5874
    %5876 = vrot.lane.b32.xlu0 %v5398, 96
    %v5877 = vpop.permute.xlu0 %5876
    %v5879 = vsel %vm3034, %v5423, 0
    %v5882 = vsel %vm3034, %v5424, 0
    %v5884 = vsel %vm3034, %v5875, 0
    %v5886 = vsel %vm3034, %v5877, 0
    %5888 = vmatprep.subr.mxu0 0.0
    %5889 = vmatpush1.xpose.msra.mxu0 0.0
    %5890 = vmatprep.subr.mxu0 0.0
    %5891 = vmatpush1.xpose.msra.mxu0 0.0
    %5892 = vmatprep.subr.mxu0 0.0
    %5893 = vmatpush1.xpose.msra.mxu0 0.0
    %5894 = vmatprep.subr.mxu0 0.0
    %5895 = vmatpush1.xpose.msra.mxu0 0.0
    %5896 = vmatprep.subr.mxu0 0.0
    %5897 = vmatpush1.xpose.msra.mxu0 0.0
    %5898 = vmatprep.subr.mxu0 0.0
    %5899 = vmatpush1.xpose.msra.mxu0 0.0
    %5900 = vmatprep.subr.mxu0 0.0
    %5901 = vmatpush1.xpose.msra.mxu0 0.0
    %5902 = vmatprep.subr.mxu0 0.0
    %5903 = vmatpush1.xpose.msra.mxu0 0.0
    %5904 = vmatprep.subr.mxu0 0.0
    %5905 = vmatpush1.xpose.msra.mxu0 0.0
    %5906 = vmatprep.subr.mxu0 0.0
    %5907 = vmatpush1.xpose.msra.mxu0 0.0
    %5908 = vmatprep.subr.mxu0 0.0
    %5909 = vmatpush1.xpose.msra.mxu0 0.0
    %5910 = vmatprep.subr.mxu0 0.0
    %5911 = vmatpush1.xpose.msra.mxu0 0.0
    %5912 = vmatprep.subr.mxu0 0.0
    %5913 = vmatpush1.xpose.msra.mxu0 0.0
    %5914 = vmatprep.subr.mxu0 0.0
    %5915 = vmatpush1.xpose.msra.mxu0 0.0
    %5916 = vmatprep.subr.mxu0 0.0
    %5917 = vmatpush1.xpose.msra.mxu0 %v5886
    %5918 = vmatprep.subr.mxu0 0.0
    %5919 = vmatpush1.xpose.msra.mxu0 %v5884
    %5920 = vmatprep.subr.mxu0 0.0
    %5921 = vmatpush2.xpose.msra.mxu0 0.0
    %5922 = vmatprep.subr.mxu0 0.0
    %5923 = vmatpush2.xpose.msra.mxu0 0.0
    %5924 = vmatprep.subr.mxu0 0.0
    %5925 = vmatpush2.xpose.msra.mxu0 0.0
    %5926 = vmatprep.subr.mxu0 0.0
    %5927 = vmatpush2.xpose.msra.mxu0 0.0
    %5928 = vmatprep.subr.mxu0 0.0
    %5929 = vmatpush2.xpose.msra.mxu0 0.0
    %5930 = vmatprep.subr.mxu0 0.0
    %5931 = vmatpush2.xpose.msra.mxu0 0.0
    %5932 = vmatprep.subr.mxu0 0.0
    %5933 = vmatpush2.xpose.msra.mxu0 0.0
    %5934 = vmatprep.subr.mxu0 0.0
    %5935 = vmatpush2.xpose.msra.mxu0 0.0
    %5936 = vmatprep.subr.mxu0 0.0
    %5937 = vmatpush2.xpose.msra.mxu0 0.0
    %5938 = vmatprep.subr.mxu0 0.0
    %5939 = vmatpush2.xpose.msra.mxu0 0.0
    %5940 = vmatprep.subr.mxu0 0.0
    %5941 = vmatpush2.xpose.msra.mxu0 0.0
    %5942 = vmatprep.subr.mxu0 0.0
    %5943 = vmatpush2.xpose.msra.mxu0 0.0
    %5944 = vmatprep.subr.mxu0 0.0
    %5945 = vmatpush2.xpose.msra.mxu0 0.0
    %5946 = vmatprep.subr.mxu0 0.0
    %5947 = vmatpush2.xpose.msra.mxu0 0.0
    %5948 = vmatprep.subr.mxu0 0.0
    %5949 = vmatpush2.xpose.msra.mxu0 0.0
    %5950 = vmatprep.subr.mxu0 0.0
    %5951 = vmatpush2.xpose.msra.mxu0 0.0
    %5952 = vmatprep.mubr.f32.mxu0 0.0
    %5953 = vmatmul.mubr.f32.gmra.mxu0 %v5879
    %v5954 = vpop.f32.mrf.mxu0
    %v5955 = vadd.f32 0.0, %v5954
    %v5956 = vpop.f32.mrf.mxu0
    %5957 = vmatprep.mubr.f32.mxu0 0.0
    %5958 = vmatmul.mubr.f32.gmra.mxu0 %v5882
    %v5959 = vpop.f32.mrf.mxu0
    %v5960 = vadd.f32 0.0, %v5959
    %v5961 = vpop.f32.mrf.mxu0
    %5962 = vdwg.mxu0
    %5963 = vrot.lane.b32.xlu0 %v5402, 96
    %v5964 = vpop.permute.xlu0 %5963
    %5965 = vrot.lane.b32.xlu0 %v5404, 96
    %v5966 = vpop.permute.xlu0 %5965
    %v5968 = vsel %vm3034, %v5425, 0
    %v5971 = vsel %vm3034, %v5426, 0
    %v5973 = vsel %vm3034, %v5964, 0
    %v5975 = vsel %vm3034, %v5966, 0
    %5977 = vmatprep.subr.mxu0 0.0
    %5978 = vmatpush1.xpose.msra.mxu0 0.0
    %5979 = vmatprep.subr.mxu0 0.0
    %5980 = vmatpush1.xpose.msra.mxu0 0.0
    %5981 = vmatprep.subr.mxu0 0.0
    %5982 = vmatpush1.xpose.msra.mxu0 0.0
    %5983 = vmatprep.subr.mxu0 0.0
    %5984 = vmatpush1.xpose.msra.mxu0 0.0
    %5985 = vmatprep.subr.mxu0 0.0
    %5986 = vmatpush1.xpose.msra.mxu0 0.0
    %5987 = vmatprep.subr.mxu0 0.0
    %5988 = vmatpush1.xpose.msra.mxu0 0.0
    %5989 = vmatprep.subr.mxu0 0.0
    %5990 = vmatpush1.xpose.msra.mxu0 0.0
    %5991 = vmatprep.subr.mxu0 0.0
    %5992 = vmatpush1.xpose.msra.mxu0 0.0
    %5993 = vmatprep.subr.mxu0 0.0
    %5994 = vmatpush1.xpose.msra.mxu0 0.0
    %5995 = vmatprep.subr.mxu0 0.0
    %5996 = vmatpush1.xpose.msra.mxu0 0.0
    %5997 = vmatprep.subr.mxu0 0.0
    %5998 = vmatpush1.xpose.msra.mxu0 0.0
    %5999 = vmatprep.subr.mxu0 0.0
    %6000 = vmatpush1.xpose.msra.mxu0 0.0
    %6001 = vmatprep.subr.mxu0 0.0
    %6002 = vmatpush1.xpose.msra.mxu0 0.0
    %6003 = vmatprep.subr.mxu0 0.0
    %6004 = vmatpush1.xpose.msra.mxu0 0.0
    %6005 = vmatprep.subr.mxu0 0.0
    %6006 = vmatpush1.xpose.msra.mxu0 %v5975
    %6007 = vmatprep.subr.mxu0 0.0
    %6008 = vmatpush1.xpose.msra.mxu0 %v5973
    %6009 = vmatprep.subr.mxu0 0.0
    %6010 = vmatpush2.xpose.msra.mxu0 0.0
    %6011 = vmatprep.subr.mxu0 0.0
    %6012 = vmatpush2.xpose.msra.mxu0 0.0
    %6013 = vmatprep.subr.mxu0 0.0
    %6014 = vmatpush2.xpose.msra.mxu0 0.0
    %6015 = vmatprep.subr.mxu0 0.0
    %6016 = vmatpush2.xpose.msra.mxu0 0.0
    %6017 = vmatprep.subr.mxu0 0.0
    %6018 = vmatpush2.xpose.msra.mxu0 0.0
    %6019 = vmatprep.subr.mxu0 0.0
    %6020 = vmatpush2.xpose.msra.mxu0 0.0
    %6021 = vmatprep.subr.mxu0 0.0
    %6022 = vmatpush2.xpose.msra.mxu0 0.0
    %6023 = vmatprep.subr.mxu0 0.0
    %6024 = vmatpush2.xpose.msra.mxu0 0.0
    %6025 = vmatprep.subr.mxu0 0.0
    %6026 = vmatpush2.xpose.msra.mxu0 0.0
    %6027 = vmatprep.subr.mxu0 0.0
    %6028 = vmatpush2.xpose.msra.mxu0 0.0
    %6029 = vmatprep.subr.mxu0 0.0
    %6030 = vmatpush2.xpose.msra.mxu0 0.0
    %6031 = vmatprep.subr.mxu0 0.0
    %6032 = vmatpush2.xpose.msra.mxu0 0.0
    %6033 = vmatprep.subr.mxu0 0.0
    %6034 = vmatpush2.xpose.msra.mxu0 0.0
    %6035 = vmatprep.subr.mxu0 0.0
    %6036 = vmatpush2.xpose.msra.mxu0 0.0
    %6037 = vmatprep.subr.mxu0 0.0
    %6038 = vmatpush2.xpose.msra.mxu0 0.0
    %6039 = vmatprep.subr.mxu0 0.0
    %6040 = vmatpush2.xpose.msra.mxu0 0.0
    %6041 = vmatprep.mubr.f32.mxu0 0.0
    %6042 = vmatmul.mubr.f32.gmra.mxu0 %v5968
    %v6043 = vpop.f32.mrf.mxu0
    %v6044 = vadd.f32 0.0, %v6043
    %v6045 = vpop.f32.mrf.mxu0
    %6046 = vmatprep.mubr.f32.mxu0 0.0
    %6047 = vmatmul.mubr.f32.gmra.mxu0 %v5971
    %v6048 = vpop.f32.mrf.mxu0
    %v6049 = vadd.f32 0.0, %v6048
    %v6050 = vpop.f32.mrf.mxu0
    %6051 = vdwg.mxu0
    %6052 = vrot.lane.b32.xlu0 %v5408, 96
    %v6053 = vpop.permute.xlu0 %6052
    %6054 = vrot.lane.b32.xlu0 %v5410, 96
    %v6055 = vpop.permute.xlu0 %6054
    %v6057 = vsel %vm3034, %v5427, 0
    %v6060 = vsel %vm3034, %v5428, 0
    %v6062 = vsel %vm3034, %v6053, 0
    %v6064 = vsel %vm3034, %v6055, 0
    %6066 = vmatprep.subr.mxu0 0.0
    %6067 = vmatpush1.xpose.msra.mxu0 0.0
    %6068 = vmatprep.subr.mxu0 0.0
    %6069 = vmatpush1.xpose.msra.mxu0 0.0
    %6070 = vmatprep.subr.mxu0 0.0
    %6071 = vmatpush1.xpose.msra.mxu0 0.0
    %6072 = vmatprep.subr.mxu0 0.0
    %6073 = vmatpush1.xpose.msra.mxu0 0.0
    %6074 = vmatprep.subr.mxu0 0.0
    %6075 = vmatpush1.xpose.msra.mxu0 0.0
    %6076 = vmatprep.subr.mxu0 0.0
    %6077 = vmatpush1.xpose.msra.mxu0 0.0
    %6078 = vmatprep.subr.mxu0 0.0
    %6079 = vmatpush1.xpose.msra.mxu0 0.0
    %6080 = vmatprep.subr.mxu0 0.0
    %6081 = vmatpush1.xpose.msra.mxu0 0.0
    %6082 = vmatprep.subr.mxu0 0.0
    %6083 = vmatpush1.xpose.msra.mxu0 0.0
    %6084 = vmatprep.subr.mxu0 0.0
    %6085 = vmatpush1.xpose.msra.mxu0 0.0
    %6086 = vmatprep.subr.mxu0 0.0
    %6087 = vmatpush1.xpose.msra.mxu0 0.0
    %6088 = vmatprep.subr.mxu0 0.0
    %6089 = vmatpush1.xpose.msra.mxu0 0.0
    %6090 = vmatprep.subr.mxu0 0.0
    %6091 = vmatpush1.xpose.msra.mxu0 0.0
    %6092 = vmatprep.subr.mxu0 0.0
    %6093 = vmatpush1.xpose.msra.mxu0 0.0
    %6094 = vmatprep.subr.mxu0 0.0
    %6095 = vmatpush1.xpose.msra.mxu0 %v6064
    %6096 = vmatprep.subr.mxu0 0.0
    %6097 = vmatpush1.xpose.msra.mxu0 %v6062
    %6098 = vmatprep.subr.mxu0 0.0
    %6099 = vmatpush2.xpose.msra.mxu0 0.0
    %6100 = vmatprep.subr.mxu0 0.0
    %6101 = vmatpush2.xpose.msra.mxu0 0.0
    %6102 = vmatprep.subr.mxu0 0.0
    %6103 = vmatpush2.xpose.msra.mxu0 0.0
    %6104 = vmatprep.subr.mxu0 0.0
    %6105 = vmatpush2.xpose.msra.mxu0 0.0
    %6106 = vmatprep.subr.mxu0 0.0
    %6107 = vmatpush2.xpose.msra.mxu0 0.0
    %6108 = vmatprep.subr.mxu0 0.0
    %6109 = vmatpush2.xpose.msra.mxu0 0.0
    %6110 = vmatprep.subr.mxu0 0.0
    %6111 = vmatpush2.xpose.msra.mxu0 0.0
    %6112 = vmatprep.subr.mxu0 0.0
    %6113 = vmatpush2.xpose.msra.mxu0 0.0
    %6114 = vmatprep.subr.mxu0 0.0
    %6115 = vmatpush2.xpose.msra.mxu0 0.0
    %6116 = vmatprep.subr.mxu0 0.0
    %6117 = vmatpush2.xpose.msra.mxu0 0.0
    %6118 = vmatprep.subr.mxu0 0.0
    %6119 = vmatpush2.xpose.msra.mxu0 0.0
    %6120 = vmatprep.subr.mxu0 0.0
    %6121 = vmatpush2.xpose.msra.mxu0 0.0
    %6122 = vmatprep.subr.mxu0 0.0
    %6123 = vmatpush2.xpose.msra.mxu0 0.0
    %6124 = vmatprep.subr.mxu0 0.0
    %6125 = vmatpush2.xpose.msra.mxu0 0.0
    %6126 = vmatprep.subr.mxu0 0.0
    %6127 = vmatpush2.xpose.msra.mxu0 0.0
    %6128 = vmatprep.subr.mxu0 0.0
    %6129 = vmatpush2.xpose.msra.mxu0 0.0
    %6130 = vmatprep.mubr.f32.mxu0 0.0
    %6131 = vmatmul.mubr.f32.gmra.mxu0 %v6057
    %v6132 = vpop.f32.mrf.mxu0
    %v6133 = vadd.f32 0.0, %v6132
    %v6134 = vpop.f32.mrf.mxu0
    %6135 = vmatprep.mubr.f32.mxu0 0.0
    %6136 = vmatmul.mubr.f32.gmra.mxu0 %v6060
    %v6137 = vpop.f32.mrf.mxu0
    %v6138 = vadd.f32 0.0, %v6137
    %v6139 = vpop.f32.mrf.mxu0
    %6140 = vdwg.mxu0
    %v6141 = vsel %vm195, %v5510, -inf
    %6142 = vmax.xlane.f32.xlu0 %v6141
    %v6143 = vpop.xlane.xlu0 %6142
    %v6144 = vsel %vm195, %v5515, -inf
    %6145 = vmax.xlane.f32.xlu0 %v6144
    %v6146 = vpop.xlane.xlu0 %6145
    %v6147 = vsel %vm195, %v5599, -inf
    %6148 = vmax.xlane.f32.xlu0 %v6147
    %v6149 = vpop.xlane.xlu0 %6148
    %v6150 = vsel %vm195, %v5604, -inf
    %6151 = vmax.xlane.f32.xlu0 %v6150
    %v6152 = vpop.xlane.xlu0 %6151
    %v6153 = vsel %vm195, %v5688, -inf
    %6154 = vmax.xlane.f32.xlu0 %v6153
    %v6155 = vpop.xlane.xlu0 %6154
    %v6156 = vsel %vm195, %v5693, -inf
    %6157 = vmax.xlane.f32.xlu0 %v6156
    %v6158 = vpop.xlane.xlu0 %6157
    %v6159 = vsel %vm195, %v5777, -inf
    %6160 = vmax.xlane.f32.xlu0 %v6159
    %v6161 = vpop.xlane.xlu0 %6160
    %v6162 = vsel %vm195, %v5782, -inf
    %6163 = vmax.xlane.f32.xlu0 %v6162
    %v6164 = vpop.xlane.xlu0 %6163
    %v6165 = vsel %vm195, %v5866, -inf
    %6166 = vmax.xlane.f32.xlu0 %v6165
    %v6167 = vpop.xlane.xlu0 %6166
    %v6168 = vsel %vm195, %v5871, -inf
    %6169 = vmax.xlane.f32.xlu0 %v6168
    %v6170 = vpop.xlane.xlu0 %6169
    %v6171 = vsel %vm195, %v5955, -inf
    %6172 = vmax.xlane.f32.xlu0 %v6171
    %v6173 = vpop.xlane.xlu0 %6172
    %v6174 = vsel %vm195, %v5960, -inf
    %6175 = vmax.xlane.f32.xlu0 %v6174
    %v6176 = vpop.xlane.xlu0 %6175
    %v6177 = vsel %vm195, %v6044, -inf
    %6178 = vmax.xlane.f32.xlu0 %v6177
    %v6179 = vpop.xlane.xlu0 %6178
    %v6180 = vsel %vm195, %v6049, -inf
    %6181 = vmax.xlane.f32.xlu0 %v6180
    %v6182 = vpop.xlane.xlu0 %6181
    %v6183 = vsel %vm195, %v6133, -inf
    %6184 = vmax.xlane.f32.xlu0 %v6183
    %v6185 = vpop.xlane.xlu0 %6184
    %v6186 = vsel %vm195, %v6138, -inf
    %6187 = vmax.xlane.f32.xlu0 %v6186
    %v6188 = vpop.xlane.xlu0 %6187
    %v6189 = vsub.f32 %v5510, %v6143
    %v6190 = vsub.f32 %v5515, %v6146
    %v6191 = vsub.f32 %v5599, %v6149
    %v6192 = vsub.f32 %v5604, %v6152
    %v6193 = vsub.f32 %v5688, %v6155
    %v6194 = vsub.f32 %v5693, %v6158
    %v6195 = vsub.f32 %v5777, %v6161
    %v6196 = vsub.f32 %v5782, %v6164
    %v6197 = vsub.f32 %v5866, %v6167
    %v6198 = vsub.f32 %v5871, %v6170
    %v6199 = vsub.f32 %v5955, %v6173
    %v6200 = vsub.f32 %v5960, %v6176
    %v6201 = vsub.f32 %v6044, %v6179
    %v6202 = vsub.f32 %v6049, %v6182
    %v6203 = vsub.f32 %v6133, %v6185
    %v6204 = vsub.f32 %v6138, %v6188
    %v6205 = vmul.f32 %v6189, 1.442695
    %v6206 = vpow.pop %v6205
    %v6207 = vmul.f32 %v6190, 1.442695
    %v6208 = vpow.pop %v6207
    %v6209 = vmul.f32 %v6191, 1.442695
    %v6210 = vpow.pop %v6209
    %v6211 = vmul.f32 %v6192, 1.442695
    %v6212 = vpow.pop %v6211
    %v6213 = vmul.f32 %v6193, 1.442695
    %v6214 = vpow.pop %v6213
    %v6215 = vmul.f32 %v6194, 1.442695
    %v6216 = vpow.pop %v6215
    %v6217 = vmul.f32 %v6195, 1.442695
    %v6218 = vpow.pop %v6217
    %v6219 = vmul.f32 %v6196, 1.442695
    %v6220 = vpow.pop %v6219
    %v6221 = vmul.f32 %v6197, 1.442695
    %v6222 = vpow.pop %v6221
    %v6223 = vmul.f32 %v6198, 1.442695
    %v6224 = vpow.pop %v6223
    %v6225 = vmul.f32 %v6199, 1.442695
    %v6226 = vpow.pop %v6225
    %v6227 = vmul.f32 %v6200, 1.442695
    %v6228 = vpow.pop %v6227
    %v6229 = vmul.f32 %v6201, 1.442695
    %v6230 = vpow.pop %v6229
    %v6231 = vmul.f32 %v6202, 1.442695
    %v6232 = vpow.pop %v6231
    %v6233 = vmul.f32 %v6203, 1.442695
    %v6234 = vpow.pop %v6233
    %v6235 = vmul.f32 %v6204, 1.442695
    %v6236 = vpow.pop %v6235
    %v6237 = vsel %vm195, %v6206, 0.0
    %6238 = vadd.xlane.f32.xlu0 %v6237
    %v6239 = vpop.xlane.xlu0 %6238
    %v6240 = vsel %vm195, %v6208, 0.0
    %6241 = vadd.xlane.f32.xlu0 %v6240
    %v6242 = vpop.xlane.xlu0 %6241
    %v6243 = vsel %vm195, %v6210, 0.0
    %6244 = vadd.xlane.f32.xlu0 %v6243
    %v6245 = vpop.xlane.xlu0 %6244
    %v6246 = vsel %vm195, %v6212, 0.0
    %6247 = vadd.xlane.f32.xlu0 %v6246
    %v6248 = vpop.xlane.xlu0 %6247
    %v6249 = vsel %vm195, %v6214, 0.0
    %6250 = vadd.xlane.f32.xlu0 %v6249
    %v6251 = vpop.xlane.xlu0 %6250
    %v6252 = vsel %vm195, %v6216, 0.0
    %6253 = vadd.xlane.f32.xlu0 %v6252
    %v6254 = vpop.xlane.xlu0 %6253
    %v6255 = vsel %vm195, %v6218, 0.0
    %6256 = vadd.xlane.f32.xlu0 %v6255
    %v6257 = vpop.xlane.xlu0 %6256
    %v6258 = vsel %vm195, %v6220, 0.0
    %6259 = vadd.xlane.f32.xlu0 %v6258
    %v6260 = vpop.xlane.xlu0 %6259
    %v6261 = vsel %vm195, %v6222, 0.0
    %6262 = vadd.xlane.f32.xlu0 %v6261
    %v6263 = vpop.xlane.xlu0 %6262
    %v6264 = vsel %vm195, %v6224, 0.0
    %6265 = vadd.xlane.f32.xlu0 %v6264
    %v6266 = vpop.xlane.xlu0 %6265
    %v6267 = vsel %vm195, %v6226, 0.0
    %6268 = vadd.xlane.f32.xlu0 %v6267
    %v6269 = vpop.xlane.xlu0 %6268
    %v6270 = vsel %vm195, %v6228, 0.0
    %6271 = vadd.xlane.f32.xlu0 %v6270
    %v6272 = vpop.xlane.xlu0 %6271
    %v6273 = vsel %vm195, %v6230, 0.0
    %6274 = vadd.xlane.f32.xlu0 %v6273
    %v6275 = vpop.xlane.xlu0 %6274
    %v6276 = vsel %vm195, %v6232, 0.0
    %6277 = vadd.xlane.f32.xlu0 %v6276
    %v6278 = vpop.xlane.xlu0 %6277
    %v6279 = vsel %vm195, %v6234, 0.0
    %6280 = vadd.xlane.f32.xlu0 %v6279
    %v6281 = vpop.xlane.xlu0 %6280
    %v6282 = vsel %vm195, %v6236, 0.0
    %6283 = vadd.xlane.f32.xlu0 %v6282
    %v6284 = vpop.xlane.xlu0 %6283
    %v6285 = vrcp.pop %v6239
    %v6286 = vrcp.pop %v6242
    %v6287 = vrcp.pop %v6245
    %v6288 = vrcp.pop %v6248
    %v6289 = vrcp.pop %v6251
    %v6290 = vrcp.pop %v6254
    %v6291 = vrcp.pop %v6257
    %v6292 = vrcp.pop %v6260
    %v6293 = vrcp.pop %v6263
    %v6294 = vrcp.pop %v6266
    %v6295 = vrcp.pop %v6269
    %v6296 = vrcp.pop %v6272
    %v6297 = vrcp.pop %v6275
    %v6298 = vrcp.pop %v6278
    %v6299 = vrcp.pop %v6281
    %v6300 = vrcp.pop %v6284
    %v6301 = vmul.f32 %v6206, %v6285
    %v6302 = vmul.f32 %v6208, %v6286
    %v6303 = vmul.f32 %v6210, %v6287
    %v6304 = vmul.f32 %v6212, %v6288
    %v6305 = vmul.f32 %v6214, %v6289
    %v6306 = vmul.f32 %v6216, %v6290
    %v6307 = vmul.f32 %v6218, %v6291
    %v6308 = vmul.f32 %v6220, %v6292
    %v6309 = vmul.f32 %v6222, %v6293
    %v6310 = vmul.f32 %v6224, %v6294
    %v6311 = vmul.f32 %v6226, %v6295
    %v6312 = vmul.f32 %v6228, %v6296
    %v6313 = vmul.f32 %v6230, %v6297
    %v6314 = vmul.f32 %v6232, %v6298
    %v6315 = vmul.f32 %v6234, %v6299
    %v6316 = vmul.f32 %v6236, %v6300
    %6317 = vrot.lane.b32.xlu0 %v5355, 64
    %v6318 = vpop.permute.xlu0 %6317
    %6319 = vrot.lane.b32.xlu0 %v5360, 64
    %v6320 = vpop.permute.xlu0 %6319
    %v6324 = vsel %vm195, %v6301, 0
    %v6327 = vsel %vm195, %v6302, 0
    %6329 = vmatprep.subr.mxu0 0.0
    %6330 = vmatpush1.msra.mxu0 0.0
    %6331 = vmatprep.subr.mxu0 0.0
    %6332 = vmatpush1.msra.mxu0 0.0
    %6333 = vmatprep.subr.mxu0 0.0
    %6334 = vmatpush1.msra.mxu0 0.0
    %6335 = vmatprep.subr.mxu0 0.0
    %6336 = vmatpush1.msra.mxu0 0.0
    %6337 = vmatprep.subr.mxu0 0.0
    %6338 = vmatpush1.msra.mxu0 0.0
    %6339 = vmatprep.subr.mxu0 0.0
    %6340 = vmatpush1.msra.mxu0 0.0
    %6341 = vmatprep.subr.mxu0 0.0
    %6342 = vmatpush1.msra.mxu0 0.0
    %6343 = vmatprep.subr.mxu0 0.0
    %6344 = vmatpush1.msra.mxu0 0.0
    %6345 = vmatprep.subr.mxu0 0.0
    %6346 = vmatpush1.msra.mxu0 0.0
    %6347 = vmatprep.subr.mxu0 0.0
    %6348 = vmatpush1.msra.mxu0 0.0
    %6349 = vmatprep.subr.mxu0 0.0
    %6350 = vmatpush1.msra.mxu0 0.0
    %6351 = vmatprep.subr.mxu0 0.0
    %6352 = vmatpush1.msra.mxu0 0.0
    %6353 = vmatprep.subr.mxu0 0.0
    %6354 = vmatpush1.msra.mxu0 0.0
    %6355 = vmatprep.subr.mxu0 0.0
    %6356 = vmatpush1.msra.mxu0 0.0
    %6357 = vmatprep.subr.mxu0 0.0
    %6358 = vmatpush1.msra.mxu0 %v6320
    %6359 = vmatprep.subr.mxu0 0.0
    %6360 = vmatpush1.msra.mxu0 %v6318
    %6361 = vmatprep.subr.mxu0 0.0
    %6362 = vmatpush2.msra.mxu0 0.0
    %6363 = vmatprep.subr.mxu0 0.0
    %6364 = vmatpush2.msra.mxu0 0.0
    %6365 = vmatprep.subr.mxu0 0.0
    %6366 = vmatpush2.msra.mxu0 0.0
    %6367 = vmatprep.subr.mxu0 0.0
    %6368 = vmatpush2.msra.mxu0 0.0
    %6369 = vmatprep.subr.mxu0 0.0
    %6370 = vmatpush2.msra.mxu0 0.0
    %6371 = vmatprep.subr.mxu0 0.0
    %6372 = vmatpush2.msra.mxu0 0.0
    %6373 = vmatprep.subr.mxu0 0.0
    %6374 = vmatpush2.msra.mxu0 0.0
    %6375 = vmatprep.subr.mxu0 0.0
    %6376 = vmatpush2.msra.mxu0 0.0
    %6377 = vmatprep.subr.mxu0 0.0
    %6378 = vmatpush2.msra.mxu0 0.0
    %6379 = vmatprep.subr.mxu0 0.0
    %6380 = vmatpush2.msra.mxu0 0.0
    %6381 = vmatprep.subr.mxu0 0.0
    %6382 = vmatpush2.msra.mxu0 0.0
    %6383 = vmatprep.subr.mxu0 0.0
    %6384 = vmatpush2.msra.mxu0 0.0
    %6385 = vmatprep.subr.mxu0 0.0
    %6386 = vmatpush2.msra.mxu0 0.0
    %6387 = vmatprep.subr.mxu0 0.0
    %6388 = vmatpush2.msra.mxu0 0.0
    %6389 = vmatprep.subr.mxu0 0.0
    %6390 = vmatpush2.msra.mxu0 0.0
    %6391 = vmatprep.subr.mxu0 0.0
    %6392 = vmatpush2.msra.mxu0 0.0
    %6393 = vmatprep.mubr.f32.mxu0 0.0
    %6394 = vmatmul.mubr.f32.gmra.mxu0 %v6324
    %v6395 = vpop.f32.mrf.mxu0
    %v6396 = vadd.f32 0.0, %v6395
    %v6397 = vpop.f32.mrf.mxu0
    %6398 = vmatprep.mubr.f32.mxu0 0.0
    %6399 = vmatmul.mubr.f32.gmra.mxu0 %v6327
    %v6400 = vpop.f32.mrf.mxu0
    %v6401 = vadd.f32 0.0, %v6400
    %v6402 = vpop.f32.mrf.mxu0
    %6403 = vdwg.mxu0
    %6404 = vrot.lane.b32.xlu0 %v5376, 64
    %v6405 = vpop.permute.xlu0 %6404
    %6406 = vrot.lane.b32.xlu0 %v5378, 64
    %v6407 = vpop.permute.xlu0 %6406
    %v6411 = vsel %vm195, %v6303, 0
    %v6414 = vsel %vm195, %v6304, 0
    %6416 = vmatprep.subr.mxu0 0.0
    %6417 = vmatpush1.msra.mxu0 0.0
    %6418 = vmatprep.subr.mxu0 0.0
    %6419 = vmatpush1.msra.mxu0 0.0
    %6420 = vmatprep.subr.mxu0 0.0
    %6421 = vmatpush1.msra.mxu0 0.0
    %6422 = vmatprep.subr.mxu0 0.0
    %6423 = vmatpush1.msra.mxu0 0.0
    %6424 = vmatprep.subr.mxu0 0.0
    %6425 = vmatpush1.msra.mxu0 0.0
    %6426 = vmatprep.subr.mxu0 0.0
    %6427 = vmatpush1.msra.mxu0 0.0
    %6428 = vmatprep.subr.mxu0 0.0
    %6429 = vmatpush1.msra.mxu0 0.0
    %6430 = vmatprep.subr.mxu0 0.0
    %6431 = vmatpush1.msra.mxu0 0.0
    %6432 = vmatprep.subr.mxu0 0.0
    %6433 = vmatpush1.msra.mxu0 0.0
    %6434 = vmatprep.subr.mxu0 0.0
    %6435 = vmatpush1.msra.mxu0 0.0
    %6436 = vmatprep.subr.mxu0 0.0
    %6437 = vmatpush1.msra.mxu0 0.0
    %6438 = vmatprep.subr.mxu0 0.0
    %6439 = vmatpush1.msra.mxu0 0.0
    %6440 = vmatprep.subr.mxu0 0.0
    %6441 = vmatpush1.msra.mxu0 0.0
    %6442 = vmatprep.subr.mxu0 0.0
    %6443 = vmatpush1.msra.mxu0 0.0
    %6444 = vmatprep.subr.mxu0 0.0
    %6445 = vmatpush1.msra.mxu0 %v6407
    %6446 = vmatprep.subr.mxu0 0.0
    %6447 = vmatpush1.msra.mxu0 %v6405
    %6448 = vmatprep.subr.mxu0 0.0
    %6449 = vmatpush2.msra.mxu0 0.0
    %6450 = vmatprep.subr.mxu0 0.0
    %6451 = vmatpush2.msra.mxu0 0.0
    %6452 = vmatprep.subr.mxu0 0.0
    %6453 = vmatpush2.msra.mxu0 0.0
    %6454 = vmatprep.subr.mxu0 0.0
    %6455 = vmatpush2.msra.mxu0 0.0
    %6456 = vmatprep.subr.mxu0 0.0
    %6457 = vmatpush2.msra.mxu0 0.0
    %6458 = vmatprep.subr.mxu0 0.0
    %6459 = vmatpush2.msra.mxu0 0.0
    %6460 = vmatprep.subr.mxu0 0.0
    %6461 = vmatpush2.msra.mxu0 0.0
    %6462 = vmatprep.subr.mxu0 0.0
    %6463 = vmatpush2.msra.mxu0 0.0
    %6464 = vmatprep.subr.mxu0 0.0
    %6465 = vmatpush2.msra.mxu0 0.0
    %6466 = vmatprep.subr.mxu0 0.0
    %6467 = vmatpush2.msra.mxu0 0.0
    %6468 = vmatprep.subr.mxu0 0.0
    %6469 = vmatpush2.msra.mxu0 0.0
    %6470 = vmatprep.subr.mxu0 0.0
    %6471 = vmatpush2.msra.mxu0 0.0
    %6472 = vmatprep.subr.mxu0 0.0
    %6473 = vmatpush2.msra.mxu0 0.0
    %6474 = vmatprep.subr.mxu0 0.0
    %6475 = vmatpush2.msra.mxu0 0.0
    %6476 = vmatprep.subr.mxu0 0.0
    %6477 = vmatpush2.msra.mxu0 0.0
    %6478 = vmatprep.subr.mxu0 0.0
    %6479 = vmatpush2.msra.mxu0 0.0
    %6480 = vmatprep.mubr.f32.mxu0 0.0
    %6481 = vmatmul.mubr.f32.gmra.mxu0 %v6411
    %v6482 = vpop.f32.mrf.mxu0
    %v6483 = vadd.f32 0.0, %v6482
    %v6484 = vpop.f32.mrf.mxu0
    %6485 = vmatprep.mubr.f32.mxu0 0.0
    %6486 = vmatmul.mubr.f32.gmra.mxu0 %v6414
    %v6487 = vpop.f32.mrf.mxu0
    %v6488 = vadd.f32 0.0, %v6487
    %v6489 = vpop.f32.mrf.mxu0
    %6490 = vdwg.mxu0
    %6491 = vrot.lane.b32.xlu0 %v5382, 64
    %v6492 = vpop.permute.xlu0 %6491
    %6493 = vrot.lane.b32.xlu0 %v5384, 64
    %v6494 = vpop.permute.xlu0 %6493
    %v6498 = vsel %vm195, %v6305, 0
    %v6501 = vsel %vm195, %v6306, 0
    %6503 = vmatprep.subr.mxu0 0.0
    %6504 = vmatpush1.msra.mxu0 0.0
    %6505 = vmatprep.subr.mxu0 0.0
    %6506 = vmatpush1.msra.mxu0 0.0
    %6507 = vmatprep.subr.mxu0 0.0
    %6508 = vmatpush1.msra.mxu0 0.0
    %6509 = vmatprep.subr.mxu0 0.0
    %6510 = vmatpush1.msra.mxu0 0.0
    %6511 = vmatprep.subr.mxu0 0.0
    %6512 = vmatpush1.msra.mxu0 0.0
    %6513 = vmatprep.subr.mxu0 0.0
    %6514 = vmatpush1.msra.mxu0 0.0
    %6515 = vmatprep.subr.mxu0 0.0
    %6516 = vmatpush1.msra.mxu0 0.0
    %6517 = vmatprep.subr.mxu0 0.0
    %6518 = vmatpush1.msra.mxu0 0.0
    %6519 = vmatprep.subr.mxu0 0.0
    %6520 = vmatpush1.msra.mxu0 0.0
    %6521 = vmatprep.subr.mxu0 0.0
    %6522 = vmatpush1.msra.mxu0 0.0
    %6523 = vmatprep.subr.mxu0 0.0
    %6524 = vmatpush1.msra.mxu0 0.0
    %6525 = vmatprep.subr.mxu0 0.0
    %6526 = vmatpush1.msra.mxu0 0.0
    %6527 = vmatprep.subr.mxu0 0.0
    %6528 = vmatpush1.msra.mxu0 0.0
    %6529 = vmatprep.subr.mxu0 0.0
    %6530 = vmatpush1.msra.mxu0 0.0
    %6531 = vmatprep.subr.mxu0 0.0
    %6532 = vmatpush1.msra.mxu0 %v6494
    %6533 = vmatprep.subr.mxu0 0.0
    %6534 = vmatpush1.msra.mxu0 %v6492
    %6535 = vmatprep.subr.mxu0 0.0
    %6536 = vmatpush2.msra.mxu0 0.0
    %6537 = vmatprep.subr.mxu0 0.0
    %6538 = vmatpush2.msra.mxu0 0.0
    %6539 = vmatprep.subr.mxu0 0.0
    %6540 = vmatpush2.msra.mxu0 0.0
    %6541 = vmatprep.subr.mxu0 0.0
    %6542 = vmatpush2.msra.mxu0 0.0
    %6543 = vmatprep.subr.mxu0 0.0
    %6544 = vmatpush2.msra.mxu0 0.0
    %6545 = vmatprep.subr.mxu0 0.0
    %6546 = vmatpush2.msra.mxu0 0.0
    %6547 = vmatprep.subr.mxu0 0.0
    %6548 = vmatpush2.msra.mxu0 0.0
    %6549 = vmatprep.subr.mxu0 0.0
    %6550 = vmatpush2.msra.mxu0 0.0
    %6551 = vmatprep.subr.mxu0 0.0
    %6552 = vmatpush2.msra.mxu0 0.0
    %6553 = vmatprep.subr.mxu0 0.0
    %6554 = vmatpush2.msra.mxu0 0.0
    %6555 = vmatprep.subr.mxu0 0.0
    %6556 = vmatpush2.msra.mxu0 0.0
    %6557 = vmatprep.subr.mxu0 0.0
    %6558 = vmatpush2.msra.mxu0 0.0
    %6559 = vmatprep.subr.mxu0 0.0
    %6560 = vmatpush2.msra.mxu0 0.0
    %6561 = vmatprep.subr.mxu0 0.0
    %6562 = vmatpush2.msra.mxu0 0.0
    %6563 = vmatprep.subr.mxu0 0.0
    %6564 = vmatpush2.msra.mxu0 0.0
    %6565 = vmatprep.subr.mxu0 0.0
    %6566 = vmatpush2.msra.mxu0 0.0
    %6567 = vmatprep.mubr.f32.mxu0 0.0
    %6568 = vmatmul.mubr.f32.gmra.mxu0 %v6498
    %v6569 = vpop.f32.mrf.mxu0
    %v6570 = vadd.f32 0.0, %v6569
    %v6571 = vpop.f32.mrf.mxu0
    %6572 = vmatprep.mubr.f32.mxu0 0.0
    %6573 = vmatmul.mubr.f32.gmra.mxu0 %v6501
    %v6574 = vpop.f32.mrf.mxu0
    %v6575 = vadd.f32 0.0, %v6574
    %v6576 = vpop.f32.mrf.mxu0
    %6577 = vdwg.mxu0
    %6578 = vrot.lane.b32.xlu0 %v5388, 64
    %v6579 = vpop.permute.xlu0 %6578
    %6580 = vrot.lane.b32.xlu0 %v5390, 64
    %v6581 = vpop.permute.xlu0 %6580
    %v6585 = vsel %vm195, %v6307, 0
    %v6588 = vsel %vm195, %v6308, 0
    %6590 = vmatprep.subr.mxu0 0.0
    %6591 = vmatpush1.msra.mxu0 0.0
    %6592 = vmatprep.subr.mxu0 0.0
    %6593 = vmatpush1.msra.mxu0 0.0
    %6594 = vmatprep.subr.mxu0 0.0
    %6595 = vmatpush1.msra.mxu0 0.0
    %6596 = vmatprep.subr.mxu0 0.0
    %6597 = vmatpush1.msra.mxu0 0.0
    %6598 = vmatprep.subr.mxu0 0.0
    %6599 = vmatpush1.msra.mxu0 0.0
    %6600 = vmatprep.subr.mxu0 0.0
    %6601 = vmatpush1.msra.mxu0 0.0
    %6602 = vmatprep.subr.mxu0 0.0
    %6603 = vmatpush1.msra.mxu0 0.0
    %6604 = vmatprep.subr.mxu0 0.0
    %6605 = vmatpush1.msra.mxu0 0.0
    %6606 = vmatprep.subr.mxu0 0.0
    %6607 = vmatpush1.msra.mxu0 0.0
    %6608 = vmatprep.subr.mxu0 0.0
    %6609 = vmatpush1.msra.mxu0 0.0
    %6610 = vmatprep.subr.mxu0 0.0
    %6611 = vmatpush1.msra.mxu0 0.0
    %6612 = vmatprep.subr.mxu0 0.0
    %6613 = vmatpush1.msra.mxu0 0.0
    %6614 = vmatprep.subr.mxu0 0.0
    %6615 = vmatpush1.msra.mxu0 0.0
    %6616 = vmatprep.subr.mxu0 0.0
    %6617 = vmatpush1.msra.mxu0 0.0
    %6618 = vmatprep.subr.mxu0 0.0
    %6619 = vmatpush1.msra.mxu0 %v6581
    %6620 = vmatprep.subr.mxu0 0.0
    %6621 = vmatpush1.msra.mxu0 %v6579
    %6622 = vmatprep.subr.mxu0 0.0
    %6623 = vmatpush2.msra.mxu0 0.0
    %6624 = vmatprep.subr.mxu0 0.0
    %6625 = vmatpush2.msra.mxu0 0.0
    %6626 = vmatprep.subr.mxu0 0.0
    %6627 = vmatpush2.msra.mxu0 0.0
    %6628 = vmatprep.subr.mxu0 0.0
    %6629 = vmatpush2.msra.mxu0 0.0
    %6630 = vmatprep.subr.mxu0 0.0
    %6631 = vmatpush2.msra.mxu0 0.0
    %6632 = vmatprep.subr.mxu0 0.0
    %6633 = vmatpush2.msra.mxu0 0.0
    %6634 = vmatprep.subr.mxu0 0.0
    %6635 = vmatpush2.msra.mxu0 0.0
    %6636 = vmatprep.subr.mxu0 0.0
    %6637 = vmatpush2.msra.mxu0 0.0
    %6638 = vmatprep.subr.mxu0 0.0
    %6639 = vmatpush2.msra.mxu0 0.0
    %6640 = vmatprep.subr.mxu0 0.0
    %6641 = vmatpush2.msra.mxu0 0.0
    %6642 = vmatprep.subr.mxu0 0.0
    %6643 = vmatpush2.msra.mxu0 0.0
    %6644 = vmatprep.subr.mxu0 0.0
    %6645 = vmatpush2.msra.mxu0 0.0
    %6646 = vmatprep.subr.mxu0 0.0
    %6647 = vmatpush2.msra.mxu0 0.0
    %6648 = vmatprep.subr.mxu0 0.0
    %6649 = vmatpush2.msra.mxu0 0.0
    %6650 = vmatprep.subr.mxu0 0.0
    %6651 = vmatpush2.msra.mxu0 0.0
    %6652 = vmatprep.subr.mxu0 0.0
    %6653 = vmatpush2.msra.mxu0 0.0
    %6654 = vmatprep.mubr.f32.mxu0 0.0
    %6655 = vmatmul.mubr.f32.gmra.mxu0 %v6585
    %v6656 = vpop.f32.mrf.mxu0
    %v6657 = vadd.f32 0.0, %v6656
    %v6658 = vpop.f32.mrf.mxu0
    %6659 = vmatprep.mubr.f32.mxu0 0.0
    %6660 = vmatmul.mubr.f32.gmra.mxu0 %v6588
    %v6661 = vpop.f32.mrf.mxu0
    %v6662 = vadd.f32 0.0, %v6661
    %v6663 = vpop.f32.mrf.mxu0
    %6664 = vdwg.mxu0
    %6665 = vrot.lane.b32.xlu0 %v5365, 64
    %v6666 = vpop.permute.xlu0 %6665
    %6667 = vrot.lane.b32.xlu0 %v5370, 64
    %v6668 = vpop.permute.xlu0 %6667
    %v6672 = vsel %vm195, %v6309, 0
    %v6675 = vsel %vm195, %v6310, 0
    %6677 = vmatprep.subr.mxu0 0.0
    %6678 = vmatpush1.msra.mxu0 0.0
    %6679 = vmatprep.subr.mxu0 0.0
    %6680 = vmatpush1.msra.mxu0 0.0
    %6681 = vmatprep.subr.mxu0 0.0
    %6682 = vmatpush1.msra.mxu0 0.0
    %6683 = vmatprep.subr.mxu0 0.0
    %6684 = vmatpush1.msra.mxu0 0.0
    %6685 = vmatprep.subr.mxu0 0.0
    %6686 = vmatpush1.msra.mxu0 0.0
    %6687 = vmatprep.subr.mxu0 0.0
    %6688 = vmatpush1.msra.mxu0 0.0
    %6689 = vmatprep.subr.mxu0 0.0
    %6690 = vmatpush1.msra.mxu0 0.0
    %6691 = vmatprep.subr.mxu0 0.0
    %6692 = vmatpush1.msra.mxu0 0.0
    %6693 = vmatprep.subr.mxu0 0.0
    %6694 = vmatpush1.msra.mxu0 0.0
    %6695 = vmatprep.subr.mxu0 0.0
    %6696 = vmatpush1.msra.mxu0 0.0
    %6697 = vmatprep.subr.mxu0 0.0
    %6698 = vmatpush1.msra.mxu0 0.0
    %6699 = vmatprep.subr.mxu0 0.0
    %6700 = vmatpush1.msra.mxu0 0.0
    %6701 = vmatprep.subr.mxu0 0.0
    %6702 = vmatpush1.msra.mxu0 0.0
    %6703 = vmatprep.subr.mxu0 0.0
    %6704 = vmatpush1.msra.mxu0 0.0
    %6705 = vmatprep.subr.mxu0 0.0
    %6706 = vmatpush1.msra.mxu0 %v6668
    %6707 = vmatprep.subr.mxu0 0.0
    %6708 = vmatpush1.msra.mxu0 %v6666
    %6709 = vmatprep.subr.mxu0 0.0
    %6710 = vmatpush2.msra.mxu0 0.0
    %6711 = vmatprep.subr.mxu0 0.0
    %6712 = vmatpush2.msra.mxu0 0.0
    %6713 = vmatprep.subr.mxu0 0.0
    %6714 = vmatpush2.msra.mxu0 0.0
    %6715 = vmatprep.subr.mxu0 0.0
    %6716 = vmatpush2.msra.mxu0 0.0
    %6717 = vmatprep.subr.mxu0 0.0
    %6718 = vmatpush2.msra.mxu0 0.0
    %6719 = vmatprep.subr.mxu0 0.0
    %6720 = vmatpush2.msra.mxu0 0.0
    %6721 = vmatprep.subr.mxu0 0.0
    %6722 = vmatpush2.msra.mxu0 0.0
    %6723 = vmatprep.subr.mxu0 0.0
    %6724 = vmatpush2.msra.mxu0 0.0
    %6725 = vmatprep.subr.mxu0 0.0
    %6726 = vmatpush2.msra.mxu0 0.0
    %6727 = vmatprep.subr.mxu0 0.0
    %6728 = vmatpush2.msra.mxu0 0.0
    %6729 = vmatprep.subr.mxu0 0.0
    %6730 = vmatpush2.msra.mxu0 0.0
    %6731 = vmatprep.subr.mxu0 0.0
    %6732 = vmatpush2.msra.mxu0 0.0
    %6733 = vmatprep.subr.mxu0 0.0
    %6734 = vmatpush2.msra.mxu0 0.0
    %6735 = vmatprep.subr.mxu0 0.0
    %6736 = vmatpush2.msra.mxu0 0.0
    %6737 = vmatprep.subr.mxu0 0.0
    %6738 = vmatpush2.msra.mxu0 0.0
    %6739 = vmatprep.subr.mxu0 0.0
    %6740 = vmatpush2.msra.mxu0 0.0
    %6741 = vmatprep.mubr.f32.mxu0 0.0
    %6742 = vmatmul.mubr.f32.gmra.mxu0 %v6672
    %v6743 = vpop.f32.mrf.mxu0
    %v6744 = vadd.f32 0.0, %v6743
    %v6745 = vpop.f32.mrf.mxu0
    %6746 = vmatprep.mubr.f32.mxu0 0.0
    %6747 = vmatmul.mubr.f32.gmra.mxu0 %v6675
    %v6748 = vpop.f32.mrf.mxu0
    %v6749 = vadd.f32 0.0, %v6748
    %v6750 = vpop.f32.mrf.mxu0
    %6751 = vdwg.mxu0
    %6752 = vrot.lane.b32.xlu0 %v5396, 64
    %v6753 = vpop.permute.xlu0 %6752
    %6754 = vrot.lane.b32.xlu0 %v5398, 64
    %v6755 = vpop.permute.xlu0 %6754
    %v6759 = vsel %vm195, %v6311, 0
    %v6762 = vsel %vm195, %v6312, 0
    %6764 = vmatprep.subr.mxu0 0.0
    %6765 = vmatpush1.msra.mxu0 0.0
    %6766 = vmatprep.subr.mxu0 0.0
    %6767 = vmatpush1.msra.mxu0 0.0
    %6768 = vmatprep.subr.mxu0 0.0
    %6769 = vmatpush1.msra.mxu0 0.0
    %6770 = vmatprep.subr.mxu0 0.0
    %6771 = vmatpush1.msra.mxu0 0.0
    %6772 = vmatprep.subr.mxu0 0.0
    %6773 = vmatpush1.msra.mxu0 0.0
    %6774 = vmatprep.subr.mxu0 0.0
    %6775 = vmatpush1.msra.mxu0 0.0
    %6776 = vmatprep.subr.mxu0 0.0
    %6777 = vmatpush1.msra.mxu0 0.0
    %6778 = vmatprep.subr.mxu0 0.0
    %6779 = vmatpush1.msra.mxu0 0.0
    %6780 = vmatprep.subr.mxu0 0.0
    %6781 = vmatpush1.msra.mxu0 0.0
    %6782 = vmatprep.subr.mxu0 0.0
    %6783 = vmatpush1.msra.mxu0 0.0
    %6784 = vmatprep.subr.mxu0 0.0
    %6785 = vmatpush1.msra.mxu0 0.0
    %6786 = vmatprep.subr.mxu0 0.0
    %6787 = vmatpush1.msra.mxu0 0.0
    %6788 = vmatprep.subr.mxu0 0.0
    %6789 = vmatpush1.msra.mxu0 0.0
    %6790 = vmatprep.subr.mxu0 0.0
    %6791 = vmatpush1.msra.mxu0 0.0
    %6792 = vmatprep.subr.mxu0 0.0
    %6793 = vmatpush1.msra.mxu0 %v6755
    %6794 = vmatprep.subr.mxu0 0.0
    %6795 = vmatpush1.msra.mxu0 %v6753
    %6796 = vmatprep.subr.mxu0 0.0
    %6797 = vmatpush2.msra.mxu0 0.0
    %6798 = vmatprep.subr.mxu0 0.0
    %6799 = vmatpush2.msra.mxu0 0.0
    %6800 = vmatprep.subr.mxu0 0.0
    %6801 = vmatpush2.msra.mxu0 0.0
    %6802 = vmatprep.subr.mxu0 0.0
    %6803 = vmatpush2.msra.mxu0 0.0
    %6804 = vmatprep.subr.mxu0 0.0
    %6805 = vmatpush2.msra.mxu0 0.0
    %6806 = vmatprep.subr.mxu0 0.0
    %6807 = vmatpush2.msra.mxu0 0.0
    %6808 = vmatprep.subr.mxu0 0.0
    %6809 = vmatpush2.msra.mxu0 0.0
    %6810 = vmatprep.subr.mxu0 0.0
    %6811 = vmatpush2.msra.mxu0 0.0
    %6812 = vmatprep.subr.mxu0 0.0
    %6813 = vmatpush2.msra.mxu0 0.0
    %6814 = vmatprep.subr.mxu0 0.0
    %6815 = vmatpush2.msra.mxu0 0.0
    %6816 = vmatprep.subr.mxu0 0.0
    %6817 = vmatpush2.msra.mxu0 0.0
    %6818 = vmatprep.subr.mxu0 0.0
    %6819 = vmatpush2.msra.mxu0 0.0
    %6820 = vmatprep.subr.mxu0 0.0
    %6821 = vmatpush2.msra.mxu0 0.0
    %6822 = vmatprep.subr.mxu0 0.0
    %6823 = vmatpush2.msra.mxu0 0.0
    %6824 = vmatprep.subr.mxu0 0.0
    %6825 = vmatpush2.msra.mxu0 0.0
    %6826 = vmatprep.subr.mxu0 0.0
    %6827 = vmatpush2.msra.mxu0 0.0
    %6828 = vmatprep.mubr.f32.mxu0 0.0
    %6829 = vmatmul.mubr.f32.gmra.mxu0 %v6759
    %v6830 = vpop.f32.mrf.mxu0
    %v6831 = vadd.f32 0.0, %v6830
    %v6832 = vpop.f32.mrf.mxu0
    %6833 = vmatprep.mubr.f32.mxu0 0.0
    %6834 = vmatmul.mubr.f32.gmra.mxu0 %v6762
    %v6835 = vpop.f32.mrf.mxu0
    %v6836 = vadd.f32 0.0, %v6835
    %v6837 = vpop.f32.mrf.mxu0
    %6838 = vdwg.mxu0
    %6839 = vrot.lane.b32.xlu0 %v5402, 64
    %v6840 = vpop.permute.xlu0 %6839
    %6841 = vrot.lane.b32.xlu0 %v5404, 64
    %v6842 = vpop.permute.xlu0 %6841
    %v6846 = vsel %vm195, %v6313, 0
    %v6849 = vsel %vm195, %v6314, 0
    %6851 = vmatprep.subr.mxu0 0.0
    %6852 = vmatpush1.msra.mxu0 0.0
    %6853 = vmatprep.subr.mxu0 0.0
    %6854 = vmatpush1.msra.mxu0 0.0
    %6855 = vmatprep.subr.mxu0 0.0
    %6856 = vmatpush1.msra.mxu0 0.0
    %6857 = vmatprep.subr.mxu0 0.0
    %6858 = vmatpush1.msra.mxu0 0.0
    %6859 = vmatprep.subr.mxu0 0.0
    %6860 = vmatpush1.msra.mxu0 0.0
    %6861 = vmatprep.subr.mxu0 0.0
    %6862 = vmatpush1.msra.mxu0 0.0
    %6863 = vmatprep.subr.mxu0 0.0
    %6864 = vmatpush1.msra.mxu0 0.0
    %6865 = vmatprep.subr.mxu0 0.0
    %6866 = vmatpush1.msra.mxu0 0.0
    %6867 = vmatprep.subr.mxu0 0.0
    %6868 = vmatpush1.msra.mxu0 0.0
    %6869 = vmatprep.subr.mxu0 0.0
    %6870 = vmatpush1.msra.mxu0 0.0
    %6871 = vmatprep.subr.mxu0 0.0
    %6872 = vmatpush1.msra.mxu0 0.0
    %6873 = vmatprep.subr.mxu0 0.0
    %6874 = vmatpush1.msra.mxu0 0.0
    %6875 = vmatprep.subr.mxu0 0.0
    %6876 = vmatpush1.msra.mxu0 0.0
    %6877 = vmatprep.subr.mxu0 0.0
    %6878 = vmatpush1.msra.mxu0 0.0
    %6879 = vmatprep.subr.mxu0 0.0
    %6880 = vmatpush1.msra.mxu0 %v6842
    %6881 = vmatprep.subr.mxu0 0.0
    %6882 = vmatpush1.msra.mxu0 %v6840
    %6883 = vmatprep.subr.mxu0 0.0
    %6884 = vmatpush2.msra.mxu0 0.0
    %6885 = vmatprep.subr.mxu0 0.0
    %6886 = vmatpush2.msra.mxu0 0.0
    %6887 = vmatprep.subr.mxu0 0.0
    %6888 = vmatpush2.msra.mxu0 0.0
    %6889 = vmatprep.subr.mxu0 0.0
    %6890 = vmatpush2.msra.mxu0 0.0
    %6891 = vmatprep.subr.mxu0 0.0
    %6892 = vmatpush2.msra.mxu0 0.0
    %6893 = vmatprep.subr.mxu0 0.0
    %6894 = vmatpush2.msra.mxu0 0.0
    %6895 = vmatprep.subr.mxu0 0.0
    %6896 = vmatpush2.msra.mxu0 0.0
    %6897 = vmatprep.subr.mxu0 0.0
    %6898 = vmatpush2.msra.mxu0 0.0
    %6899 = vmatprep.subr.mxu0 0.0
    %6900 = vmatpush2.msra.mxu0 0.0
    %6901 = vmatprep.subr.mxu0 0.0
    %6902 = vmatpush2.msra.mxu0 0.0
    %6903 = vmatprep.subr.mxu0 0.0
    %6904 = vmatpush2.msra.mxu0 0.0
    %6905 = vmatprep.subr.mxu0 0.0
    %6906 = vmatpush2.msra.mxu0 0.0
    %6907 = vmatprep.subr.mxu0 0.0
    %6908 = vmatpush2.msra.mxu0 0.0
    %6909 = vmatprep.subr.mxu0 0.0
    %6910 = vmatpush2.msra.mxu0 0.0
    %6911 = vmatprep.subr.mxu0 0.0
    %6912 = vmatpush2.msra.mxu0 0.0
    %6913 = vmatprep.subr.mxu0 0.0
    %6914 = vmatpush2.msra.mxu0 0.0
    %6915 = vmatprep.mubr.f32.mxu0 0.0
    %6916 = vmatmul.mubr.f32.gmra.mxu0 %v6846
    %v6917 = vpop.f32.mrf.mxu0
    %v6918 = vadd.f32 0.0, %v6917
    %v6919 = vpop.f32.mrf.mxu0
    %6920 = vmatprep.mubr.f32.mxu0 0.0
    %6921 = vmatmul.mubr.f32.gmra.mxu0 %v6849
    %v6922 = vpop.f32.mrf.mxu0
    %v6923 = vadd.f32 0.0, %v6922
    %v6924 = vpop.f32.mrf.mxu0
    %6925 = vdwg.mxu0
    %6926 = vrot.lane.b32.xlu0 %v5408, 64
    %v6927 = vpop.permute.xlu0 %6926
    %6928 = vrot.lane.b32.xlu0 %v5410, 64
    %v6929 = vpop.permute.xlu0 %6928
    %v6933 = vsel %vm195, %v6315, 0
    %v6936 = vsel %vm195, %v6316, 0
    %6938 = vmatprep.subr.mxu0 0.0
    %6939 = vmatpush1.msra.mxu0 0.0
    %6940 = vmatprep.subr.mxu0 0.0
    %6941 = vmatpush1.msra.mxu0 0.0
    %6942 = vmatprep.subr.mxu0 0.0
    %6943 = vmatpush1.msra.mxu0 0.0
    %6944 = vmatprep.subr.mxu0 0.0
    %6945 = vmatpush1.msra.mxu0 0.0
    %6946 = vmatprep.subr.mxu0 0.0
    %6947 = vmatpush1.msra.mxu0 0.0
    %6948 = vmatprep.subr.mxu0 0.0
    %6949 = vmatpush1.msra.mxu0 0.0
    %6950 = vmatprep.subr.mxu0 0.0
    %6951 = vmatpush1.msra.mxu0 0.0
    %6952 = vmatprep.subr.mxu0 0.0
    %6953 = vmatpush1.msra.mxu0 0.0
    %6954 = vmatprep.subr.mxu0 0.0
    %6955 = vmatpush1.msra.mxu0 0.0
    %6956 = vmatprep.subr.mxu0 0.0
    %6957 = vmatpush1.msra.mxu0 0.0
    %6958 = vmatprep.subr.mxu0 0.0
    %6959 = vmatpush1.msra.mxu0 0.0
    %6960 = vmatprep.subr.mxu0 0.0
    %6961 = vmatpush1.msra.mxu0 0.0
    %6962 = vmatprep.subr.mxu0 0.0
    %6963 = vmatpush1.msra.mxu0 0.0
    %6964 = vmatprep.subr.mxu0 0.0
    %6965 = vmatpush1.msra.mxu0 0.0
    %6966 = vmatprep.subr.mxu0 0.0
    %6967 = vmatpush1.msra.mxu0 %v6929
    %6968 = vmatprep.subr.mxu0 0.0
    %6969 = vmatpush1.msra.mxu0 %v6927
    %6970 = vmatprep.subr.mxu0 0.0
    %6971 = vmatpush2.msra.mxu0 0.0
    %6972 = vmatprep.subr.mxu0 0.0
    %6973 = vmatpush2.msra.mxu0 0.0
    %6974 = vmatprep.subr.mxu0 0.0
    %6975 = vmatpush2.msra.mxu0 0.0
    %6976 = vmatprep.subr.mxu0 0.0
    %6977 = vmatpush2.msra.mxu0 0.0
    %6978 = vmatprep.subr.mxu0 0.0
    %6979 = vmatpush2.msra.mxu0 0.0
    %6980 = vmatprep.subr.mxu0 0.0
    %6981 = vmatpush2.msra.mxu0 0.0
    %6982 = vmatprep.subr.mxu0 0.0
    %6983 = vmatpush2.msra.mxu0 0.0
    %6984 = vmatprep.subr.mxu0 0.0
    %6985 = vmatpush2.msra.mxu0 0.0
    %6986 = vmatprep.subr.mxu0 0.0
    %6987 = vmatpush2.msra.mxu0 0.0
    %6988 = vmatprep.subr.mxu0 0.0
    %6989 = vmatpush2.msra.mxu0 0.0
    %6990 = vmatprep.subr.mxu0 0.0
    %6991 = vmatpush2.msra.mxu0 0.0
    %6992 = vmatprep.subr.mxu0 0.0
    %6993 = vmatpush2.msra.mxu0 0.0
    %6994 = vmatprep.subr.mxu0 0.0
    %6995 = vmatpush2.msra.mxu0 0.0
    %6996 = vmatprep.subr.mxu0 0.0
    %6997 = vmatpush2.msra.mxu0 0.0
    %6998 = vmatprep.subr.mxu0 0.0
    %6999 = vmatpush2.msra.mxu0 0.0
    %7000 = vmatprep.subr.mxu0 0.0
    %7001 = vmatpush2.msra.mxu0 0.0
    %7002 = vmatprep.mubr.f32.mxu0 0.0
    %7003 = vmatmul.mubr.f32.gmra.mxu0 %v6933
    %v7004 = vpop.f32.mrf.mxu0
    %v7005 = vadd.f32 0.0, %v7004
    %v7006 = vpop.f32.mrf.mxu0
    %7007 = vmatprep.mubr.f32.mxu0 0.0
    %7008 = vmatmul.mubr.f32.gmra.mxu0 %v6936
    %v7009 = vpop.f32.mrf.mxu0
    %v7010 = vadd.f32 0.0, %v7009
    %v7011 = vpop.f32.mrf.mxu0
    %7012 = vdwg.mxu0
    %7015 = vrot.lane.b32.xlu0 %v6483, 8
    %v7016 = vpop.permute.xlu0 %7015
    %7017 = vrot.lane.b32.xlu0 %v6488, 8
    %v7018 = vpop.permute.xlu0 %7017
    %7023 = vrot.lane.b32.xlu0 %v6570, 16
    %v7024 = vpop.permute.xlu0 %7023
    %7025 = vrot.lane.b32.xlu0 %v6575, 16
    %v7026 = vpop.permute.xlu0 %7025
    %7031 = vrot.lane.b32.xlu0 %v6657, 24
    %v7032 = vpop.permute.xlu0 %7031
    %7033 = vrot.lane.b32.xlu0 %v6662, 24
    %v7034 = vpop.permute.xlu0 %7033
    %v7037 = vsel %vm3034, %v6396, %v7016
    %v7038 = vsel %vm3034, %v6401, %v7018
    %v7039 = vsel %vm195, %v7037, %v7024
    %v7040 = vsel %vm195, %v7038, %v7026
    %v7041 = vsel %vm4643, %v7039, %v7032
    %v7042 = vsel %vm4643, %v7040, %v7034
    %7045 = vrot.lane.b32.xlu0 %v6831, 8
    %v7046 = vpop.permute.xlu0 %7045
    %7047 = vrot.lane.b32.xlu0 %v6836, 8
    %v7048 = vpop.permute.xlu0 %7047
    %7053 = vrot.lane.b32.xlu0 %v6918, 16
    %v7054 = vpop.permute.xlu0 %7053
    %7055 = vrot.lane.b32.xlu0 %v6923, 16
    %v7056 = vpop.permute.xlu0 %7055
    %7061 = vrot.lane.b32.xlu0 %v7005, 24
    %v7062 = vpop.permute.xlu0 %7061
    %7063 = vrot.lane.b32.xlu0 %v7010, 24
    %v7064 = vpop.permute.xlu0 %7063
    %v7067 = vsel %vm3034, %v6744, %v7046
    %v7068 = vsel %vm3034, %v6749, %v7048
    %v7069 = vsel %vm195, %v7067, %v7054
    %v7070 = vsel %vm195, %v7068, %v7056
    %v7071 = vsel %vm4643, %v7069, %v7062
    %v7072 = vsel %vm4643, %v7070, %v7064
    %v7073 = vld [vmem:[%s61] sm:$0xff]
    %v7074 = vld [vmem:[%s61 + $0x8] sm:$0xff]
    %v7075 = vld [vmem:[%s61 + $0x10] sm:$0xff]
    %v7076 = vld [vmem:[%s61 + $0x18] sm:$0xff]
    %v7077 = vld [vmem:[%s49] sm:$0x1]
    %v7079 = vlaneseq
    %v7080 = vshrl.u32 %v7079, 7
    %v7081 = vsub.s32 0, %v7080
    %v7082 = vrot.slane %v7077, %v7081
    %v7085 = vsel %vm369, %v7041, 0
    %v7088 = vsel %vm369, %v7042, 0
    %v7091 = vsel %vm369, %v7071, 0
    %v7094 = vsel %vm369, %v7072, 0
    %7096 = vmatprep.subr.mxu0 0.0
    %7097 = vmatpush1.msra.mxu0 0.0
    %7098 = vmatprep.subr.mxu0 0.0
    %7099 = vmatpush1.msra.mxu0 0.0
    %7100 = vmatprep.subr.mxu0 0.0
    %7101 = vmatpush1.msra.mxu0 0.0
    %7102 = vmatprep.subr.mxu0 0.0
    %7103 = vmatpush1.msra.mxu0 0.0
    %7104 = vmatprep.subr.mxu0 0.0
    %7105 = vmatpush1.msra.mxu0 0.0
    %7106 = vmatprep.subr.mxu0 0.0
    %7107 = vmatpush1.msra.mxu0 0.0
    %7108 = vmatprep.subr.mxu0 0.0
    %7109 = vmatpush1.msra.mxu0 0.0
    %7110 = vmatprep.subr.mxu0 0.0
    %7111 = vmatpush1.msra.mxu0 0.0
    %7112 = vmatprep.subr.mxu0 0.0
    %7113 = vmatpush1.msra.mxu0 0.0
    %7114 = vmatprep.subr.mxu0 0.0
    %7115 = vmatpush1.msra.mxu0 0.0
    %7116 = vmatprep.subr.mxu0 0.0
    %7117 = vmatpush1.msra.mxu0 0.0
    %7118 = vmatprep.subr.mxu0 0.0
    %7119 = vmatpush1.msra.mxu0 0.0
    %7120 = vmatprep.subr.mxu0 0.0
    %7121 = vmatpush1.msra.mxu0 %v7076
    %7122 = vmatprep.subr.mxu0 0.0
    %7123 = vmatpush1.msra.mxu0 %v7075
    %7124 = vmatprep.subr.mxu0 0.0
    %7125 = vmatpush1.msra.mxu0 %v7074
    %7126 = vmatprep.subr.mxu0 0.0
    %7127 = vmatpush1.msra.mxu0 %v7073
    %7128 = vmatprep.subr.mxu0 0.0
    %7129 = vmatpush2.msra.mxu0 0.0
    %7130 = vmatprep.subr.mxu0 0.0
    %7131 = vmatpush2.msra.mxu0 0.0
    %7132 = vmatprep.subr.mxu0 0.0
    %7133 = vmatpush2.msra.mxu0 0.0
    %7134 = vmatprep.subr.mxu0 0.0
    %7135 = vmatpush2.msra.mxu0 0.0
    %7136 = vmatprep.subr.mxu0 0.0
    %7137 = vmatpush2.msra.mxu0 0.0
    %7138 = vmatprep.subr.mxu0 0.0
    %7139 = vmatpush2.msra.mxu0 0.0
    %7140 = vmatprep.subr.mxu0 0.0
    %7141 = vmatpush2.msra.mxu0 0.0
    %7142 = vmatprep.subr.mxu0 0.0
    %7143 = vmatpush2.msra.mxu0 0.0
    %7144 = vmatprep.subr.mxu0 0.0
    %7145 = vmatpush2.msra.mxu0 0.0
    %7146 = vmatprep.subr.mxu0 0.0
    %7147 = vmatpush2.msra.mxu0 0.0
    %7148 = vmatprep.subr.mxu0 0.0
    %7149 = vmatpush2.msra.mxu0 0.0
    %7150 = vmatprep.subr.mxu0 0.0
    %7151 = vmatpush2.msra.mxu0 0.0
    %7152 = vmatprep.subr.mxu0 0.0
    %7153 = vmatpush2.msra.mxu0 0.0
    %7154 = vmatprep.subr.mxu0 0.0
    %7155 = vmatpush2.msra.mxu0 0.0
    %7156 = vmatprep.subr.mxu0 0.0
    %7157 = vmatpush2.msra.mxu0 0.0
    %7158 = vmatprep.subr.mxu0 0.0
    %7159 = vmatpush2.msra.mxu0 0.0
    %7160 = vmatprep.mubr.f32.mxu0 0.0
    %7161 = vmatmul.mubr.f32.gmra.mxu0 %v7085
    %v7162 = vpop.f32.mrf.mxu0
    %v7163 = vadd.f32 %v7082, %v7162
    %v7164 = vpop.f32.mrf.mxu0
    %7165 = vmatprep.mubr.f32.mxu0 0.0
    %7166 = vmatmul.mubr.f32.gmra.mxu0 %v7088
    %v7167 = vpop.f32.mrf.mxu0
    %v7168 = vadd.f32 %v7082, %v7167
    %v7169 = vpop.f32.mrf.mxu0
    %7170 = vmatprep.mubr.f32.mxu0 0.0
    %7171 = vmatmul.mubr.f32.gmra.mxu0 %v7091
    %v7172 = vpop.f32.mrf.mxu0
    %v7173 = vadd.f32 %v7082, %v7172
    %v7174 = vpop.f32.mrf.mxu0
    %7175 = vmatprep.mubr.f32.mxu0 0.0
    %7176 = vmatmul.mubr.f32.gmra.mxu0 %v7094
    %v7177 = vpop.f32.mrf.mxu0
    %v7178 = vadd.f32 %v7082, %v7177
    %v7179 = vpop.f32.mrf.mxu0
    %7180 = vdwg.mxu0
    %v7181 = vadd.f32 %v5261, %v7163
    %v7182 = vadd.f32 %v5262, %v7168
    %v7183 = vadd.f32 %v5263, %v7173
    %v7184 = vadd.f32 %v5264, %v7178
    %v7185 = vld [vmem:[%s53] sm:$0x1]
    %v7186 = vld [vmem:[%s41] sm:$0x1]
    %v7187 = vsel %vm369, %v7181, 0.0
    %7188 = vadd.xlane.f32.xlu0 %v7187
    %v7189 = vpop.xlane.xlu0 %7188
    %v7190 = vsel %vm369, %v7182, 0.0
    %7191 = vadd.xlane.f32.xlu0 %v7190
    %v7192 = vpop.xlane.xlu0 %7191
    %v7193 = vsel %vm369, %v7183, 0.0
    %7194 = vadd.xlane.f32.xlu0 %v7193
    %v7195 = vpop.xlane.xlu0 %7194
    %v7196 = vsel %vm369, %v7184, 0.0
    %7197 = vadd.xlane.f32.xlu0 %v7196
    %v7198 = vpop.xlane.xlu0 %7197
    %v7199 = vmul.f32 %v7189, %v4802
    %v7200 = vmul.f32 %v7192, %v4802
    %v7201 = vmul.f32 %v7195, %v4802
    %v7202 = vmul.f32 %v7198, %v4802
    %v7203 = vsub.f32 %v7181, %v7199
    %v7204 = vsub.f32 %v7182, %v7200
    %v7205 = vsub.f32 %v7183, %v7201
    %v7206 = vsub.f32 %v7184, %v7202
    %v7207 = vmul.f32 %v7203, %v7203
    %v7208 = vmul.f32 %v7204, %v7204
    %v7209 = vmul.f32 %v7205, %v7205
    %v7210 = vmul.f32 %v7206, %v7206
    %v7211 = vsel %vm369, %v7207, 0.0
    %7212 = vadd.xlane.f32.xlu0 %v7211
    %v7213 = vpop.xlane.xlu0 %7212
    %v7214 = vsel %vm369, %v7208, 0.0
    %7215 = vadd.xlane.f32.xlu0 %v7214
    %v7216 = vpop.xlane.xlu0 %7215
    %v7217 = vsel %vm369, %v7209, 0.0
    %7218 = vadd.xlane.f32.xlu0 %v7217
    %v7219 = vpop.xlane.xlu0 %7218
    %v7220 = vsel %vm369, %v7210, 0.0
    %7221 = vadd.xlane.f32.xlu0 %v7220
    %v7222 = vpop.xlane.xlu0 %7221
    %v7223 = vmul.f32 %v7213, %v4802
    %v7224 = vmul.f32 %v7216, %v4802
    %v7225 = vmul.f32 %v7219, %v4802
    %v7226 = vmul.f32 %v7222, %v4802
    %v7227 = vadd.f32 %v7223, 1e-05
    %v7228 = vadd.f32 %v7224, 1e-05
    %v7229 = vadd.f32 %v7225, 1e-05
    %v7230 = vadd.f32 %v7226, 1e-05
    %v7231 = vrsqrt.pop %v7227
    %v7232 = vrsqrt.pop %v7228
    %v7233 = vrsqrt.pop %v7229
    %v7234 = vrsqrt.pop %v7230
    %v7235 = vmul.f32 %v7203, %v7231
    %v7236 = vmul.f32 %v7204, %v7232
    %v7237 = vmul.f32 %v7205, %v7233
    %v7238 = vmul.f32 %v7206, %v7234
    %v7240 = vlaneseq
    %v7241 = vshrl.u32 %v7240, 7
    %v7242 = vsub.s32 0, %v7241
    %v7243 = vrot.slane %v7185, %v7242
    %v7245 = vmul.f32 %v7235, %v7243
    %v7246 = vmul.f32 %v7236, %v7243
    %v7247 = vmul.f32 %v7237, %v7243
    %v7248 = vmul.f32 %v7238, %v7243
    %v7250 = vlaneseq
    %v7251 = vshrl.u32 %v7250, 7
    %v7252 = vsub.s32 0, %v7251
    %v7253 = vrot.slane %v7186, %v7252
    %v7255 = vadd.f32 %v7245, %v7253
    %v7256 = vadd.f32 %v7246, %v7253
    %v7257 = vadd.f32 %v7247, %v7253
    %v7258 = vadd.f32 %v7248, %v7253
    %v7259 = vld [vmem:[%s57] sm:$0xff]
    %v7260 = vld [vmem:[%s57 + $0x8] sm:$0xff]
    %v7261 = vld [vmem:[%s57 + $0x10] sm:$0xff]
    %v7262 = vld [vmem:[%s57 + $0x18] sm:$0xff]
    %v7263 = vld [vmem:[%s45] sm:$0x1]
    %v7265 = vlaneseq
    %v7266 = vshrl.u32 %v7265, 7
    %v7267 = vsub.s32 0, %v7266
    %v7268 = vrot.slane %v7263, %v7267
    %v7271 = vsel %vm369, %v7255, 0
    %v7274 = vsel %vm369, %v7256, 0
    %v7277 = vsel %vm369, %v7257, 0
    %v7280 = vsel %vm369, %v7258, 0
    %7282 = vmatprep.subr.mxu0 0.0
    %7283 = vmatpush1.msra.mxu0 0.0
    %7284 = vmatprep.subr.mxu0 0.0
    %7285 = vmatpush1.msra.mxu0 0.0
    %7286 = vmatprep.subr.mxu0 0.0
    %7287 = vmatpush1.msra.mxu0 0.0
    %7288 = vmatprep.subr.mxu0 0.0
    %7289 = vmatpush1.msra.mxu0 0.0
    %7290 = vmatprep.subr.mxu0 0.0
    %7291 = vmatpush1.msra.mxu0 0.0
    %7292 = vmatprep.subr.mxu0 0.0
    %7293 = vmatpush1.msra.mxu0 0.0
    %7294 = vmatprep.subr.mxu0 0.0
    %7295 = vmatpush1.msra.mxu0 0.0
    %7296 = vmatprep.subr.mxu0 0.0
    %7297 = vmatpush1.msra.mxu0 0.0
    %7298 = vmatprep.subr.mxu0 0.0
    %7299 = vmatpush1.msra.mxu0 0.0
    %7300 = vmatprep.subr.mxu0 0.0
    %7301 = vmatpush1.msra.mxu0 0.0
    %7302 = vmatprep.subr.mxu0 0.0
    %7303 = vmatpush1.msra.mxu0 0.0
    %7304 = vmatprep.subr.mxu0 0.0
    %7305 = vmatpush1.msra.mxu0 0.0
    %7306 = vmatprep.subr.mxu0 0.0
    %7307 = vmatpush1.msra.mxu0 %v7262
    %7308 = vmatprep.subr.mxu0 0.0
    %7309 = vmatpush1.msra.mxu0 %v7261
    %7310 = vmatprep.subr.mxu0 0.0
    %7311 = vmatpush1.msra.mxu0 %v7260
    %7312 = vmatprep.subr.mxu0 0.0
    %7313 = vmatpush1.msra.mxu0 %v7259
    %7314 = vmatprep.subr.mxu0 0.0
    %7315 = vmatpush2.msra.mxu0 0.0
    %7316 = vmatprep.subr.mxu0 0.0
    %7317 = vmatpush2.msra.mxu0 0.0
    %7318 = vmatprep.subr.mxu0 0.0
    %7319 = vmatpush2.msra.mxu0 0.0
    %7320 = vmatprep.subr.mxu0 0.0
    %7321 = vmatpush2.msra.mxu0 0.0
    %7322 = vmatprep.subr.mxu0 0.0
    %7323 = vmatpush2.msra.mxu0 0.0
    %7324 = vmatprep.subr.mxu0 0.0
    %7325 = vmatpush2.msra.mxu0 0.0
    %7326 = vmatprep.subr.mxu0 0.0
    %7327 = vmatpush2.msra.mxu0 0.0
    %7328 = vmatprep.subr.mxu0 0.0
    %7329 = vmatpush2.msra.mxu0 0.0
    %7330 = vmatprep.subr.mxu0 0.0
    %7331 = vmatpush2.msra.mxu0 0.0
    %7332 = vmatprep.subr.mxu0 0.0
    %7333 = vmatpush2.msra.mxu0 0.0
    %7334 = vmatprep.subr.mxu0 0.0
    %7335 = vmatpush2.msra.mxu0 0.0
    %7336 = vmatprep.subr.mxu0 0.0
    %7337 = vmatpush2.msra.mxu0 0.0
    %7338 = vmatprep.subr.mxu0 0.0
    %7339 = vmatpush2.msra.mxu0 0.0
    %7340 = vmatprep.subr.mxu0 0.0
    %7341 = vmatpush2.msra.mxu0 0.0
    %7342 = vmatprep.subr.mxu0 0.0
    %7343 = vmatpush2.msra.mxu0 0.0
    %7344 = vmatprep.subr.mxu0 0.0
    %7345 = vmatpush2.msra.mxu0 0.0
    %7346 = vmatprep.mubr.f32.mxu0 0.0
    %7347 = vmatmul.mubr.f32.gmra.mxu0 %v7271
    %v7348 = vpop.f32.mrf.mxu0
    %v7349 = vadd.f32 %v7268, %v7348
    %v7350 = vpop.f32.mrf.mxu0
    %7351 = vmatprep.mubr.f32.mxu0 0.0
    %7352 = vmatmul.mubr.f32.gmra.mxu0 %v7274
    %v7353 = vpop.f32.mrf.mxu0
    %v7354 = vadd.f32 %v7268, %v7353
    %v7355 = vpop.f32.mrf.mxu0
    %7356 = vmatprep.mubr.f32.mxu0 0.0
    %7357 = vmatmul.mubr.f32.gmra.mxu0 %v7277
    %v7358 = vpop.f32.mrf.mxu0
    %v7359 = vadd.f32 %v7268, %v7358
    %v7360 = vpop.f32.mrf.mxu0
    %7361 = vmatprep.mubr.f32.mxu0 0.0
    %7362 = vmatmul.mubr.f32.gmra.mxu0 %v7280
    %v7363 = vpop.f32.mrf.mxu0
    %v7364 = vadd.f32 %v7268, %v7363
    %v7365 = vpop.f32.mrf.mxu0
    %7366 = vdwg.mxu0
    %v7367 = vmul.f32 %v7349, 0.5
    %v7368 = vmul.f32 %v7354, 0.5
    %v7369 = vmul.f32 %v7359, 0.5
    %v7370 = vmul.f32 %v7364, 0.5
    %v7371 = vmul.f32 %v7349, 0.70710677
    %v7372 = vmul.f32 %v7354, 0.70710677
    %v7373 = vmul.f32 %v7359, 0.70710677
    %v7374 = vmul.f32 %v7364, 0.70710677
    %v7375 = vand.u32 2147483647, %v7371
    %v7376 = vand.u32 2147483647, %v7372
    %v7377 = vand.u32 2147483647, %v7373
    %v7378 = vand.u32 2147483647, %v7374
    %v7379 = vmul.f32 %v7375, 0.3275911
    %v7380 = vmul.f32 %v7376, 0.3275911
    %v7381 = vmul.f32 %v7377, 0.3275911
    %v7382 = vmul.f32 %v7378, 0.3275911
    %v7383 = vadd.f32 %v7379, 1.0
    %v7384 = vadd.f32 %v7380, 1.0
    %v7385 = vadd.f32 %v7381, 1.0
    %v7386 = vadd.f32 %v7382, 1.0
    %v7387 = vrcp.pop %v7383
    %v7388 = vrcp.pop %v7384
    %v7389 = vrcp.pop %v7385
    %v7390 = vrcp.pop %v7386
    %v7391 = vmul.f32 %v7387, 1.0614054
    %v7392 = vmul.f32 %v7388, 1.0614054
    %v7393 = vmul.f32 %v7389, 1.0614054
    %v7394 = vmul.f32 %v7390, 1.0614054
    %v7395 = vsub.f32 %v7391, 1.4531521
    %v7396 = vsub.f32 %v7392, 1.4531521
    %v7397 = vsub.f32 %v7393, 1.4531521
    %v7398 = vsub.f32 %v7394, 1.4531521
    %v7399 = vmul.f32 %v7395, %v7387
    %v7400 = vmul.f32 %v7396, %v7388
    %v7401 = vmul.f32 %v7397, %v7389
    %v7402 = vmul.f32 %v7398, %v7390
    %v7403 = vadd.f32 %v7399, 1.4214138
    %v7404 = vadd.f32 %v7400, 1.4214138
    %v7405 = vadd.f32 %v7401, 1.4214138
    %v7406 = vadd.f32 %v7402, 1.4214138
    %v7407 = vmul.f32 %v7403, %v7387
    %v7408 = vmul.f32 %v7404, %v7388
    %v7409 = vmul.f32 %v7405, %v7389
    %v7410 = vmul.f32 %v7406, %v7390
    %v7411 = vsub.f32 %v7407, 0.28449672
    %v7412 = vsub.f32 %v7408, 0.28449672
    %v7413 = vsub.f32 %v7409, 0.28449672
    %v7414 = vsub.f32 %v7410, 0.28449672
    %v7415 = vmul.f32 %v7411, %v7387
    %v7416 = vmul.f32 %v7412, %v7388
    %v7417 = vmul.f32 %v7413, %v7389
    %v7418 = vmul.f32 %v7414, %v7390
    %v7419 = vadd.f32 %v7415, 0.2548296
    %v7420 = vadd.f32 %v7416, 0.2548296
    %v7421 = vadd.f32 %v7417, 0.2548296
    %v7422 = vadd.f32 %v7418, 0.2548296
    %v7423 = vmul.f32 %v7419, %v7387
    %v7424 = vmul.f32 %v7420, %v7388
    %v7425 = vmul.f32 %v7421, %v7389
    %v7426 = vmul.f32 %v7422, %v7390
    %v7427 = vsub.f32 0.0, %v7375
    %v7428 = vsub.f32 0.0, %v7376
    %v7429 = vsub.f32 0.0, %v7377
    %v7430 = vsub.f32 0.0, %v7378
    %v7431 = vmul.f32 %v7427, %v7375
    %v7432 = vmul.f32 %v7428, %v7376
    %v7433 = vmul.f32 %v7429, %v7377
    %v7434 = vmul.f32 %v7430, %v7378
    %v7435 = vmul.f32 %v7431, 1.442695
    %v7436 = vpow.pop %v7435
    %v7437 = vmul.f32 %v7432, 1.442695
    %v7438 = vpow.pop %v7437
    %v7439 = vmul.f32 %v7433, 1.442695
    %v7440 = vpow.pop %v7439
    %v7441 = vmul.f32 %v7434, 1.442695
    %v7442 = vpow.pop %v7441
    %v7443 = vmul.f32 %v7423, %v7436
    %v7444 = vmul.f32 %v7424, %v7438
    %v7445 = vmul.f32 %v7425, %v7440
    %v7446 = vmul.f32 %v7426, %v7442
    %v7447 = vsub.f32 1.0, %v7443
    %v7448 = vsub.f32 1.0, %v7444
    %v7449 = vsub.f32 1.0, %v7445
    %v7450 = vsub.f32 1.0, %v7446
    %vm7451 = vcmp.lt.f32.partialorder %v7371, 0.0
    %vm7452 = vcmp.lt.f32.partialorder %v7372, 0.0
    %vm7453 = vcmp.lt.f32.partialorder %v7373, 0.0
    %vm7454 = vcmp.lt.f32.partialorder %v7374, 0.0
    %v7455 = vsub.f32 0.0, %v7447
    %v7456 = vsub.f32 0.0, %v7448
    %v7457 = vsub.f32 0.0, %v7449
    %v7458 = vsub.f32 0.0, %v7450
    %v7459 = vsel %vm7451, %v7455, %v7447
    %v7460 = vsel %vm7452, %v7456, %v7448
    %v7461 = vsel %vm7453, %v7457, %v7449
    %v7462 = vsel %vm7454, %v7458, %v7450
    %v7463 = vadd.f32 %v7459, 1.0
    %v7464 = vadd.f32 %v7460, 1.0
    %v7465 = vadd.f32 %v7461, 1.0
    %v7466 = vadd.f32 %v7462, 1.0
    %v7467 = vmul.f32 %v7367, %v7463
    %v7468 = vmul.f32 %v7368, %v7464
    %v7469 = vmul.f32 %v7369, %v7465
    %v7470 = vmul.f32 %v7370, %v7466
    %v7471 = vld [vmem:[%s59] sm:$0xff]
    %v7472 = vld [vmem:[%s59 + $0x8] sm:$0xff]
    %v7473 = vld [vmem:[%s59 + $0x10] sm:$0xff]
    %v7474 = vld [vmem:[%s59 + $0x18] sm:$0xff]
    %v7475 = vld [vmem:[%s59 + $0x20] sm:$0xff]
    %v7476 = vld [vmem:[%s59 + $0x28] sm:$0xff]
    %v7477 = vld [vmem:[%s59 + $0x30] sm:$0xff]
    %v7478 = vld [vmem:[%s59 + $0x38] sm:$0xff]
    %v7479 = vld [vmem:[%s47] sm:$0x1]
    %v7481 = vlaneseq
    %v7482 = vshrl.u32 %v7481, 7
    %v7483 = vsub.s32 0, %v7482
    %v7484 = vrot.slane %v7479, %v7483
    %v7487 = vsel %vm2314, %v7467, 0
    %v7490 = vsel %vm2314, %v7468, 0
    %v7493 = vsel %vm2314, %v7469, 0
    %v7496 = vsel %vm2314, %v7470, 0
    %7498 = vmatprep.subr.mxu0 0.0
    %7499 = vmatpush1.msra.mxu0 0.0
    %7500 = vmatprep.subr.mxu0 0.0
    %7501 = vmatpush1.msra.mxu0 0.0
    %7502 = vmatprep.subr.mxu0 0.0
    %7503 = vmatpush1.msra.mxu0 0.0
    %7504 = vmatprep.subr.mxu0 0.0
    %7505 = vmatpush1.msra.mxu0 0.0
    %7506 = vmatprep.subr.mxu0 0.0
    %7507 = vmatpush1.msra.mxu0 0.0
    %7508 = vmatprep.subr.mxu0 0.0
    %7509 = vmatpush1.msra.mxu0 0.0
    %7510 = vmatprep.subr.mxu0 0.0
    %7511 = vmatpush1.msra.mxu0 0.0
    %7512 = vmatprep.subr.mxu0 0.0
    %7513 = vmatpush1.msra.mxu0 0.0
    %7514 = vmatprep.subr.mxu0 0.0
    %7515 = vmatpush1.msra.mxu0 %v7478
    %7516 = vmatprep.subr.mxu0 0.0
    %7517 = vmatpush1.msra.mxu0 %v7477
    %7518 = vmatprep.subr.mxu0 0.0
    %7519 = vmatpush1.msra.mxu0 %v7476
    %7520 = vmatprep.subr.mxu0 0.0
    %7521 = vmatpush1.msra.mxu0 %v7475
    %7522 = vmatprep.subr.mxu0 0.0
    %7523 = vmatpush1.msra.mxu0 %v7474
    %7524 = vmatprep.subr.mxu0 0.0
    %7525 = vmatpush1.msra.mxu0 %v7473
    %7526 = vmatprep.subr.mxu0 0.0
    %7527 = vmatpush1.msra.mxu0 %v7472
    %7528 = vmatprep.subr.mxu0 0.0
    %7529 = vmatpush1.msra.mxu0 %v7471
    %7530 = vmatprep.subr.mxu0 0.0
    %7531 = vmatpush2.msra.mxu0 0.0
    %7532 = vmatprep.subr.mxu0 0.0
    %7533 = vmatpush2.msra.mxu0 0.0
    %7534 = vmatprep.subr.mxu0 0.0
    %7535 = vmatpush2.msra.mxu0 0.0
    %7536 = vmatprep.subr.mxu0 0.0
    %7537 = vmatpush2.msra.mxu0 0.0
    %7538 = vmatprep.subr.mxu0 0.0
    %7539 = vmatpush2.msra.mxu0 0.0
    %7540 = vmatprep.subr.mxu0 0.0
    %7541 = vmatpush2.msra.mxu0 0.0
    %7542 = vmatprep.subr.mxu0 0.0
    %7543 = vmatpush2.msra.mxu0 0.0
    %7544 = vmatprep.subr.mxu0 0.0
    %7545 = vmatpush2.msra.mxu0 0.0
    %7546 = vmatprep.subr.mxu0 0.0
    %7547 = vmatpush2.msra.mxu0 0.0
    %7548 = vmatprep.subr.mxu0 0.0
    %7549 = vmatpush2.msra.mxu0 0.0
    %7550 = vmatprep.subr.mxu0 0.0
    %7551 = vmatpush2.msra.mxu0 0.0
    %7552 = vmatprep.subr.mxu0 0.0
    %7553 = vmatpush2.msra.mxu0 0.0
    %7554 = vmatprep.subr.mxu0 0.0
    %7555 = vmatpush2.msra.mxu0 0.0
    %7556 = vmatprep.subr.mxu0 0.0
    %7557 = vmatpush2.msra.mxu0 0.0
    %7558 = vmatprep.subr.mxu0 0.0
    %7559 = vmatpush2.msra.mxu0 0.0
    %7560 = vmatprep.subr.mxu0 0.0
    %7561 = vmatpush2.msra.mxu0 0.0
    %7562 = vmatprep.mubr.f32.mxu0 0.0
    %7563 = vmatmul.mubr.f32.gmra.mxu0 %v7487
    %v7564 = vpop.f32.mrf.mxu0
    %v7565 = vadd.f32 %v7484, %v7564
    %v7566 = vpop.f32.mrf.mxu0
    %7567 = vmatprep.mubr.f32.mxu0 0.0
    %7568 = vmatmul.mubr.f32.gmra.mxu0 %v7490
    %v7569 = vpop.f32.mrf.mxu0
    %v7570 = vadd.f32 %v7484, %v7569
    %v7571 = vpop.f32.mrf.mxu0
    %7572 = vmatprep.mubr.f32.mxu0 0.0
    %7573 = vmatmul.mubr.f32.gmra.mxu0 %v7493
    %v7574 = vpop.f32.mrf.mxu0
    %v7575 = vadd.f32 %v7484, %v7574
    %v7576 = vpop.f32.mrf.mxu0
    %7577 = vmatprep.mubr.f32.mxu0 0.0
    %7578 = vmatmul.mubr.f32.gmra.mxu0 %v7496
    %v7579 = vpop.f32.mrf.mxu0
    %v7580 = vadd.f32 %v7484, %v7579
    %v7581 = vpop.f32.mrf.mxu0
    %7582 = vdwg.mxu0
    %v7583 = vadd.f32 %v7255, %v7565
    %v7584 = vadd.f32 %v7256, %v7570
    %v7585 = vadd.f32 %v7257, %v7575
    %v7586 = vadd.f32 %v7258, %v7580
    %v7587 = vld [vmem:[%s55] sm:$0x1]
    %v7588 = vld [vmem:[%s43] sm:$0x1]
    %v7589 = vsel %vm369, %v7583, 0.0
    %7590 = vadd.xlane.f32.xlu0 %v7589
    %v7591 = vpop.xlane.xlu0 %7590
    %v7592 = vsel %vm369, %v7584, 0.0
    %7593 = vadd.xlane.f32.xlu0 %v7592
    %v7594 = vpop.xlane.xlu0 %7593
    %v7595 = vsel %vm369, %v7585, 0.0
    %7596 = vadd.xlane.f32.xlu0 %v7595
    %v7597 = vpop.xlane.xlu0 %7596
    %v7598 = vsel %vm369, %v7586, 0.0
    %7599 = vadd.xlane.f32.xlu0 %v7598
    %v7600 = vpop.xlane.xlu0 %7599
    %v7601 = vmul.f32 %v7591, %v4802
    %v7602 = vmul.f32 %v7594, %v4802
    %v7603 = vmul.f32 %v7597, %v4802
    %v7604 = vmul.f32 %v7600, %v4802
    %v7605 = vsub.f32 %v7583, %v7601
    %v7606 = vsub.f32 %v7584, %v7602
    %v7607 = vsub.f32 %v7585, %v7603
    %v7608 = vsub.f32 %v7586, %v7604
    %v7609 = vmul.f32 %v7605, %v7605
    %v7610 = vmul.f32 %v7606, %v7606
    %v7611 = vmul.f32 %v7607, %v7607
    %v7612 = vmul.f32 %v7608, %v7608
    %v7613 = vsel %vm369, %v7609, 0.0
    %7614 = vadd.xlane.f32.xlu0 %v7613
    %v7615 = vpop.xlane.xlu0 %7614
    %v7616 = vsel %vm369, %v7610, 0.0
    %7617 = vadd.xlane.f32.xlu0 %v7616
    %v7618 = vpop.xlane.xlu0 %7617
    %v7619 = vsel %vm369, %v7611, 0.0
    %7620 = vadd.xlane.f32.xlu0 %v7619
    %v7621 = vpop.xlane.xlu0 %7620
    %v7622 = vsel %vm369, %v7612, 0.0
    %7623 = vadd.xlane.f32.xlu0 %v7622
    %v7624 = vpop.xlane.xlu0 %7623
    %v7625 = vmul.f32 %v7615, %v4802
    %v7626 = vmul.f32 %v7618, %v4802
    %v7627 = vmul.f32 %v7621, %v4802
    %v7628 = vmul.f32 %v7624, %v4802
    %v7629 = vadd.f32 %v7625, 1e-05
    %v7630 = vadd.f32 %v7626, 1e-05
    %v7631 = vadd.f32 %v7627, 1e-05
    %v7632 = vadd.f32 %v7628, 1e-05
    %v7633 = vrsqrt.pop %v7629
    %v7634 = vrsqrt.pop %v7630
    %v7635 = vrsqrt.pop %v7631
    %v7636 = vrsqrt.pop %v7632
    %v7637 = vmul.f32 %v7605, %v7633
    %v7638 = vmul.f32 %v7606, %v7634
    %v7639 = vmul.f32 %v7607, %v7635
    %v7640 = vmul.f32 %v7608, %v7636
    %v7642 = vlaneseq
    %v7643 = vshrl.u32 %v7642, 7
    %v7644 = vsub.s32 0, %v7643
    %v7645 = vrot.slane %v7587, %v7644
    %v7647 = vmul.f32 %v7637, %v7645
    %v7648 = vmul.f32 %v7638, %v7645
    %v7649 = vmul.f32 %v7639, %v7645
    %v7650 = vmul.f32 %v7640, %v7645
    %v7652 = vlaneseq
    %v7653 = vshrl.u32 %v7652, 7
    %v7654 = vsub.s32 0, %v7653
    %v7655 = vrot.slane %v7588, %v7654
    %v7657 = vadd.f32 %v7647, %v7655
    %v7658 = vadd.f32 %v7648, %v7655
    %v7659 = vadd.f32 %v7649, %v7655
    %v7660 = vadd.f32 %v7650, %v7655
    %v7661 = vld [vmem:[%s83] sm:$0xff]
    %v7662 = vld [vmem:[%s83 + $0x8] sm:$0xff]
    %v7663 = vld [vmem:[%s83 + $0x10] sm:$0xff]
    %v7664 = vld [vmem:[%s83 + $0x18] sm:$0xff]
    %v7666 = vsel %vm369, %v7661, 0
    %v7669 = vsel %vm369, %v7662, 0
    %v7672 = vsel %vm369, %v7663, 0
    %v7675 = vsel %vm369, %v7664, 0
    %7677 = vmatprep.subr.mxu0 0.0
    %7678 = vmatpush1.msra.mxu0 0.0
    %7679 = vmatprep.subr.mxu0 0.0
    %7680 = vmatpush1.msra.mxu0 0.0
    %7681 = vmatprep.subr.mxu0 0.0
    %7682 = vmatpush1.msra.mxu0 0.0
    %7683 = vmatprep.subr.mxu0 0.0
    %7684 = vmatpush1.msra.mxu0 0.0
    %7685 = vmatprep.subr.mxu0 0.0
    %7686 = vmatpush1.msra.mxu0 0.0
    %7687 = vmatprep.subr.mxu0 0.0
    %7688 = vmatpush1.msra.mxu0 0.0
    %7689 = vmatprep.subr.mxu0 0.0
    %7690 = vmatpush1.msra.mxu0 0.0
    %7691 = vmatprep.subr.mxu0 0.0
    %7692 = vmatpush1.msra.mxu0 0.0
    %7693 = vmatprep.subr.mxu0 0.0
    %7694 = vmatpush1.msra.mxu0 0.0
    %7695 = vmatprep.subr.mxu0 0.0
    %7696 = vmatpush1.msra.mxu0 0.0
    %7697 = vmatprep.subr.mxu0 0.0
    %7698 = vmatpush1.msra.mxu0 0.0
    %7699 = vmatprep.subr.mxu0 0.0
    %7700 = vmatpush1.msra.mxu0 0.0
    %7701 = vmatprep.subr.mxu0 0.0
    %7702 = vmatpush1.msra.mxu0 %v7660
    %7703 = vmatprep.subr.mxu0 0.0
    %7704 = vmatpush1.msra.mxu0 %v7659
    %7705 = vmatprep.subr.mxu0 0.0
    %7706 = vmatpush1.msra.mxu0 %v7658
    %7707 = vmatprep.subr.mxu0 0.0
    %7708 = vmatpush1.msra.mxu0 %v7657
    %7709 = vmatprep.subr.mxu0 0.0
    %7710 = vmatpush2.msra.mxu0 0.0
    %7711 = vmatprep.subr.mxu0 0.0
    %7712 = vmatpush2.msra.mxu0 0.0
    %7713 = vmatprep.subr.mxu0 0.0
    %7714 = vmatpush2.msra.mxu0 0.0
    %7715 = vmatprep.subr.mxu0 0.0
    %7716 = vmatpush2.msra.mxu0 0.0
    %7717 = vmatprep.subr.mxu0 0.0
    %7718 = vmatpush2.msra.mxu0 0.0
    %7719 = vmatprep.subr.mxu0 0.0
    %7720 = vmatpush2.msra.mxu0 0.0
    %7721 = vmatprep.subr.mxu0 0.0
    %7722 = vmatpush2.msra.mxu0 0.0
    %7723 = vmatprep.subr.mxu0 0.0
    %7724 = vmatpush2.msra.mxu0 0.0
    %7725 = vmatprep.subr.mxu0 0.0
    %7726 = vmatpush2.msra.mxu0 0.0
    %7727 = vmatprep.subr.mxu0 0.0
    %7728 = vmatpush2.msra.mxu0 0.0
    %7729 = vmatprep.subr.mxu0 0.0
    %7730 = vmatpush2.msra.mxu0 0.0
    %7731 = vmatprep.subr.mxu0 0.0
    %7732 = vmatpush2.msra.mxu0 0.0
    %7733 = vmatprep.subr.mxu0 0.0
    %7734 = vmatpush2.msra.mxu0 0.0
    %7735 = vmatprep.subr.mxu0 0.0
    %7736 = vmatpush2.msra.mxu0 0.0
    %7737 = vmatprep.subr.mxu0 0.0
    %7738 = vmatpush2.msra.mxu0 0.0
    %7739 = vmatprep.subr.mxu0 0.0
    %7740 = vmatpush2.msra.mxu0 0.0
    %7741 = vmatprep.mubr.f32.mxu0 0.0
    %7742 = vmatmul.mubr.f32.gmra.mxu0 %v7666
    %v7743 = vpop.f32.mrf.mxu0
    %v7744 = vadd.f32 0.0, %v7743
    %v7745 = vpop.f32.mrf.mxu0
    %7746 = vmatprep.mubr.f32.mxu0 0.0
    %7747 = vmatmul.mubr.f32.gmra.mxu0 %v7669
    %v7748 = vpop.f32.mrf.mxu0
    %v7749 = vadd.f32 0.0, %v7748
    %v7750 = vpop.f32.mrf.mxu0
    %7751 = vmatprep.mubr.f32.mxu0 0.0
    %7752 = vmatmul.mubr.f32.gmra.mxu0 %v7672
    %v7753 = vpop.f32.mrf.mxu0
    %v7754 = vadd.f32 0.0, %v7753
    %v7755 = vpop.f32.mrf.mxu0
    %7756 = vmatprep.mubr.f32.mxu0 0.0
    %7757 = vmatmul.mubr.f32.gmra.mxu0 %v7675
    %v7758 = vpop.f32.mrf.mxu0
    %v7759 = vadd.f32 0.0, %v7758
    %v7760 = vpop.f32.mrf.mxu0
    %7761 = vdwg.mxu0
    %v7762 = vld [vmem:[%s81] sm:$0xff]
    %v7763 = vld [vmem:[%s81 + $0x8] sm:$0xff]
    %v7764 = vld [vmem:[%s81 + $0x10] sm:$0xff]
    %v7765 = vld [vmem:[%s81 + $0x18] sm:$0xff]
    %v7767 = vsel %vm369, %v7762, 0
    %v7770 = vsel %vm369, %v7763, 0
    %v7773 = vsel %vm369, %v7764, 0
    %v7776 = vsel %vm369, %v7765, 0
    %7778 = vmatprep.subr.mxu0 0.0
    %7779 = vmatpush1.msra.mxu0 0.0
    %7780 = vmatprep.subr.mxu0 0.0
    %7781 = vmatpush1.msra.mxu0 0.0
    %7782 = vmatprep.subr.mxu0 0.0
    %7783 = vmatpush1.msra.mxu0 0.0
    %7784 = vmatprep.subr.mxu0 0.0
    %7785 = vmatpush1.msra.mxu0 0.0
    %7786 = vmatprep.subr.mxu0 0.0
    %7787 = vmatpush1.msra.mxu0 0.0
    %7788 = vmatprep.subr.mxu0 0.0
    %7789 = vmatpush1.msra.mxu0 0.0
    %7790 = vmatprep.subr.mxu0 0.0
    %7791 = vmatpush1.msra.mxu0 0.0
    %7792 = vmatprep.subr.mxu0 0.0
    %7793 = vmatpush1.msra.mxu0 0.0
    %7794 = vmatprep.subr.mxu0 0.0
    %7795 = vmatpush1.msra.mxu0 0.0
    %7796 = vmatprep.subr.mxu0 0.0
    %7797 = vmatpush1.msra.mxu0 0.0
    %7798 = vmatprep.subr.mxu0 0.0
    %7799 = vmatpush1.msra.mxu0 0.0
    %7800 = vmatprep.subr.mxu0 0.0
    %7801 = vmatpush1.msra.mxu0 0.0
    %7802 = vmatprep.subr.mxu0 0.0
    %7803 = vmatpush1.msra.mxu0 %v7660
    %7804 = vmatprep.subr.mxu0 0.0
    %7805 = vmatpush1.msra.mxu0 %v7659
    %7806 = vmatprep.subr.mxu0 0.0
    %7807 = vmatpush1.msra.mxu0 %v7658
    %7808 = vmatprep.subr.mxu0 0.0
    %7809 = vmatpush1.msra.mxu0 %v7657
    %7810 = vmatprep.subr.mxu0 0.0
    %7811 = vmatpush2.msra.mxu0 0.0
    %7812 = vmatprep.subr.mxu0 0.0
    %7813 = vmatpush2.msra.mxu0 0.0
    %7814 = vmatprep.subr.mxu0 0.0
    %7815 = vmatpush2.msra.mxu0 0.0
    %7816 = vmatprep.subr.mxu0 0.0
    %7817 = vmatpush2.msra.mxu0 0.0
    %7818 = vmatprep.subr.mxu0 0.0
    %7819 = vmatpush2.msra.mxu0 0.0
    %7820 = vmatprep.subr.mxu0 0.0
    %7821 = vmatpush2.msra.mxu0 0.0
    %7822 = vmatprep.subr.mxu0 0.0
    %7823 = vmatpush2.msra.mxu0 0.0
    %7824 = vmatprep.subr.mxu0 0.0
    %7825 = vmatpush2.msra.mxu0 0.0
    %7826 = vmatprep.subr.mxu0 0.0
    %7827 = vmatpush2.msra.mxu0 0.0
    %7828 = vmatprep.subr.mxu0 0.0
    %7829 = vmatpush2.msra.mxu0 0.0
    %7830 = vmatprep.subr.mxu0 0.0
    %7831 = vmatpush2.msra.mxu0 0.0
    %7832 = vmatprep.subr.mxu0 0.0
    %7833 = vmatpush2.msra.mxu0 0.0
    %7834 = vmatprep.subr.mxu0 0.0
    %7835 = vmatpush2.msra.mxu0 0.0
    %7836 = vmatprep.subr.mxu0 0.0
    %7837 = vmatpush2.msra.mxu0 0.0
    %7838 = vmatprep.subr.mxu0 0.0
    %7839 = vmatpush2.msra.mxu0 0.0
    %7840 = vmatprep.subr.mxu0 0.0
    %7841 = vmatpush2.msra.mxu0 0.0
    %7842 = vmatprep.mubr.f32.mxu0 0.0
    %7843 = vmatmul.mubr.f32.gmra.mxu0 %v7767
    %v7844 = vpop.f32.mrf.mxu0
    %v7845 = vadd.f32 0.0, %v7844
    %v7846 = vpop.f32.mrf.mxu0
    %7847 = vmatprep.mubr.f32.mxu0 0.0
    %7848 = vmatmul.mubr.f32.gmra.mxu0 %v7770
    %v7849 = vpop.f32.mrf.mxu0
    %v7850 = vadd.f32 0.0, %v7849
    %v7851 = vpop.f32.mrf.mxu0
    %7852 = vmatprep.mubr.f32.mxu0 0.0
    %7853 = vmatmul.mubr.f32.gmra.mxu0 %v7773
    %v7854 = vpop.f32.mrf.mxu0
    %v7855 = vadd.f32 0.0, %v7854
    %v7856 = vpop.f32.mrf.mxu0
    %7857 = vmatprep.mubr.f32.mxu0 0.0
    %7858 = vmatmul.mubr.f32.gmra.mxu0 %v7776
    %v7859 = vpop.f32.mrf.mxu0
    %v7860 = vadd.f32 0.0, %v7859
    %v7861 = vpop.f32.mrf.mxu0
    %7862 = vdwg.mxu0
    %v7863 = vld [vmem:[%s13] sm:$0xff]
    %v7864 = vld [vmem:[%s13 + $0x8] sm:$0xff]
    %v7865 = vld [vmem:[%s13 + $0x10] sm:$0xff]
    %v7866 = vld [vmem:[%s13 + $0x18] sm:$0xff]
    %s7867 = scalar_lea.vmem %s13, 32
    %v7868 = vld [vmem:[%s7867] sm:$0xff]
    %v7869 = vld [vmem:[%s7867 + $0x8] sm:$0xff]
    %v7870 = vld [vmem:[%s7867 + $0x10] sm:$0xff]
    %v7871 = vld [vmem:[%s7867 + $0x18] sm:$0xff]
    %v7873 = vsel %vm369, %v7657, 0
    %v7876 = vsel %vm369, %v7658, 0
    %v7879 = vsel %vm369, %v7659, 0
    %v7882 = vsel %vm369, %v7660, 0
    %7884 = vmatprep.subr.mxu0 0.0
    %7885 = vmatpush1.msra.mxu0 0.0
    %7886 = vmatprep.subr.mxu0 0.0
    %7887 = vmatpush1.msra.mxu0 0.0
    %7888 = vmatprep.subr.mxu0 0.0
    %7889 = vmatpush1.msra.mxu0 0.0
    %7890 = vmatprep.subr.mxu0 0.0
    %7891 = vmatpush1.msra.mxu0 0.0
    %7892 = vmatprep.subr.mxu0 0.0
    %7893 = vmatpush1.msra.mxu0 0.0
    %7894 = vmatprep.subr.mxu0 0.0
    %7895 = vmatpush1.msra.mxu0 0.0
    %7896 = vmatprep.subr.mxu0 0.0
    %7897 = vmatpush1.msra.mxu0 0.0
    %7898 = vmatprep.subr.mxu0 0.0
    %7899 = vmatpush1.msra.mxu0 0.0
    %7900 = vmatprep.subr.mxu0 0.0
    %7901 = vmatpush1.msra.mxu0 0.0
    %7902 = vmatprep.subr.mxu0 0.0
    %7903 = vmatpush1.msra.mxu0 0.0
    %7904 = vmatprep.subr.mxu0 0.0
    %7905 = vmatpush1.msra.mxu0 0.0
    %7906 = vmatprep.subr.mxu0 0.0
    %7907 = vmatpush1.msra.mxu0 0.0
    %7908 = vmatprep.subr.mxu0 0.0
    %7909 = vmatpush1.msra.mxu0 %v7871
    %7910 = vmatprep.subr.mxu0 0.0
    %7911 = vmatpush1.msra.mxu0 %v7870
    %7912 = vmatprep.subr.mxu0 0.0
    %7913 = vmatpush1.msra.mxu0 %v7869
    %7914 = vmatprep.subr.mxu0 0.0
    %7915 = vmatpush1.msra.mxu0 %v7868
    %7916 = vmatprep.subr.mxu0 0.0
    %7917 = vmatpush2.msra.mxu0 0.0
    %7918 = vmatprep.subr.mxu0 0.0
    %7919 = vmatpush2.msra.mxu0 0.0
    %7920 = vmatprep.subr.mxu0 0.0
    %7921 = vmatpush2.msra.mxu0 0.0
    %7922 = vmatprep.subr.mxu0 0.0
    %7923 = vmatpush2.msra.mxu0 0.0
    %7924 = vmatprep.subr.mxu0 0.0
    %7925 = vmatpush2.msra.mxu0 0.0
    %7926 = vmatprep.subr.mxu0 0.0
    %7927 = vmatpush2.msra.mxu0 0.0
    %7928 = vmatprep.subr.mxu0 0.0
    %7929 = vmatpush2.msra.mxu0 0.0
    %7930 = vmatprep.subr.mxu0 0.0
    %7931 = vmatpush2.msra.mxu0 0.0
    %7932 = vmatprep.subr.mxu0 0.0
    %7933 = vmatpush2.msra.mxu0 0.0
    %7934 = vmatprep.subr.mxu0 0.0
    %7935 = vmatpush2.msra.mxu0 0.0
    %7936 = vmatprep.subr.mxu0 0.0
    %7937 = vmatpush2.msra.mxu0 0.0
    %7938 = vmatprep.subr.mxu0 0.0
    %7939 = vmatpush2.msra.mxu0 0.0
    %7940 = vmatprep.subr.mxu0 0.0
    %7941 = vmatpush2.msra.mxu0 0.0
    %7942 = vmatprep.subr.mxu0 0.0
    %7943 = vmatpush2.msra.mxu0 0.0
    %7944 = vmatprep.subr.mxu0 0.0
    %7945 = vmatpush2.msra.mxu0 0.0
    %7946 = vmatprep.subr.mxu0 0.0
    %7947 = vmatpush2.msra.mxu0 0.0
    %7948 = vmatprep.mubr.f32.mxu0 0.0
    %7949 = vmatmul.mubr.f32.gmra.mxu0 %v7873
    %v7950 = vpop.f32.mrf.mxu0
    %v7951 = vadd.f32 0.0, %v7950
    %v7952 = vpop.f32.mrf.mxu0
    %7953 = vmatprep.mubr.f32.mxu0 0.0
    %7954 = vmatmul.mubr.f32.gmra.mxu0 %v7876
    %v7955 = vpop.f32.mrf.mxu0
    %v7956 = vadd.f32 0.0, %v7955
    %v7957 = vpop.f32.mrf.mxu0
    %7958 = vmatprep.mubr.f32.mxu0 0.0
    %7959 = vmatmul.mubr.f32.gmra.mxu0 %v7879
    %v7960 = vpop.f32.mrf.mxu0
    %v7961 = vadd.f32 0.0, %v7960
    %v7962 = vpop.f32.mrf.mxu0
    %7963 = vmatprep.mubr.f32.mxu0 0.0
    %7964 = vmatmul.mubr.f32.gmra.mxu0 %v7882
    %v7965 = vpop.f32.mrf.mxu0
    %v7966 = vadd.f32 0.0, %v7965
    %v7967 = vpop.f32.mrf.mxu0
    %7968 = vdwg.mxu0
    %v7970 = vsel %vm369, %v7744, 0
    %v7973 = vsel %vm369, %v7749, 0
    %v7976 = vsel %vm369, %v7754, 0
    %v7979 = vsel %vm369, %v7759, 0
    %7981 = vmatprep.subr.mxu0 0.0
    %7982 = vmatpush1.msra.mxu0 0.0
    %7983 = vmatprep.subr.mxu0 0.0
    %7984 = vmatpush1.msra.mxu0 0.0
    %7985 = vmatprep.subr.mxu0 0.0
    %7986 = vmatpush1.msra.mxu0 0.0
    %7987 = vmatprep.subr.mxu0 0.0
    %7988 = vmatpush1.msra.mxu0 0.0
    %7989 = vmatprep.subr.mxu0 0.0
    %7990 = vmatpush1.msra.mxu0 0.0
    %7991 = vmatprep.subr.mxu0 0.0
    %7992 = vmatpush1.msra.mxu0 0.0
    %7993 = vmatprep.subr.mxu0 0.0
    %7994 = vmatpush1.msra.mxu0 0.0
    %7995 = vmatprep.subr.mxu0 0.0
    %7996 = vmatpush1.msra.mxu0 0.0
    %7997 = vmatprep.subr.mxu0 0.0
    %7998 = vmatpush1.msra.mxu0 0.0
    %7999 = vmatprep.subr.mxu0 0.0
    %8000 = vmatpush1.msra.mxu0 0.0
    %8001 = vmatprep.subr.mxu0 0.0
    %8002 = vmatpush1.msra.mxu0 0.0
    %8003 = vmatprep.subr.mxu0 0.0
    %8004 = vmatpush1.msra.mxu0 0.0
    %8005 = vmatprep.subr.mxu0 0.0
    %8006 = vmatpush1.msra.mxu0 %v7866
    %8007 = vmatprep.subr.mxu0 0.0
    %8008 = vmatpush1.msra.mxu0 %v7865
    %8009 = vmatprep.subr.mxu0 0.0
    %8010 = vmatpush1.msra.mxu0 %v7864
    %8011 = vmatprep.subr.mxu0 0.0
    %8012 = vmatpush1.msra.mxu0 %v7863
    %8013 = vmatprep.subr.mxu0 0.0
    %8014 = vmatpush2.msra.mxu0 0.0
    %8015 = vmatprep.subr.mxu0 0.0
    %8016 = vmatpush2.msra.mxu0 0.0
    %8017 = vmatprep.subr.mxu0 0.0
    %8018 = vmatpush2.msra.mxu0 0.0
    %8019 = vmatprep.subr.mxu0 0.0
    %8020 = vmatpush2.msra.mxu0 0.0
    %8021 = vmatprep.subr.mxu0 0.0
    %8022 = vmatpush2.msra.mxu0 0.0
    %8023 = vmatprep.subr.mxu0 0.0
    %8024 = vmatpush2.msra.mxu0 0.0
    %8025 = vmatprep.subr.mxu0 0.0
    %8026 = vmatpush2.msra.mxu0 0.0
    %8027 = vmatprep.subr.mxu0 0.0
    %8028 = vmatpush2.msra.mxu0 0.0
    %8029 = vmatprep.subr.mxu0 0.0
    %8030 = vmatpush2.msra.mxu0 0.0
    %8031 = vmatprep.subr.mxu0 0.0
    %8032 = vmatpush2.msra.mxu0 0.0
    %8033 = vmatprep.subr.mxu0 0.0
    %8034 = vmatpush2.msra.mxu0 0.0
    %8035 = vmatprep.subr.mxu0 0.0
    %8036 = vmatpush2.msra.mxu0 0.0
    %8037 = vmatprep.subr.mxu0 0.0
    %8038 = vmatpush2.msra.mxu0 0.0
    %8039 = vmatprep.subr.mxu0 0.0
    %8040 = vmatpush2.msra.mxu0 0.0
    %8041 = vmatprep.subr.mxu0 0.0
    %8042 = vmatpush2.msra.mxu0 0.0
    %8043 = vmatprep.subr.mxu0 0.0
    %8044 = vmatpush2.msra.mxu0 0.0
    %8045 = vmatprep.mubr.f32.mxu0 0.0
    %8046 = vmatmul.mubr.f32.gmra.mxu0 %v7970
    %v8047 = vpop.f32.mrf.mxu0
    %v8048 = vadd.f32 %v7951, %v8047
    %v8049 = vpop.f32.mrf.mxu0
    %8050 = vmatprep.mubr.f32.mxu0 0.0
    %8051 = vmatmul.mubr.f32.gmra.mxu0 %v7973
    %v8052 = vpop.f32.mrf.mxu0
    %v8053 = vadd.f32 %v7956, %v8052
    %v8054 = vpop.f32.mrf.mxu0
    %8055 = vmatprep.mubr.f32.mxu0 0.0
    %8056 = vmatmul.mubr.f32.gmra.mxu0 %v7976
    %v8057 = vpop.f32.mrf.mxu0
    %v8058 = vadd.f32 %v7961, %v8057
    %v8059 = vpop.f32.mrf.mxu0
    %8060 = vmatprep.mubr.f32.mxu0 0.0
    %8061 = vmatmul.mubr.f32.gmra.mxu0 %v7979
    %v8062 = vpop.f32.mrf.mxu0
    %v8063 = vadd.f32 %v7966, %v8062
    %v8064 = vpop.f32.mrf.mxu0
    %8065 = vdwg.mxu0
    %s8066 = scalar_lea.vmem %s13, 64
    %v8067 = vld [vmem:[%s8066] sm:$0xff]
    %v8068 = vld [vmem:[%s8066 + $0x8] sm:$0xff]
    %v8069 = vld [vmem:[%s8066 + $0x10] sm:$0xff]
    %v8070 = vld [vmem:[%s8066 + $0x18] sm:$0xff]
    %v8072 = vsel %vm369, %v7845, 0
    %v8075 = vsel %vm369, %v7850, 0
    %v8078 = vsel %vm369, %v7855, 0
    %v8081 = vsel %vm369, %v7860, 0
    %8083 = vmatprep.subr.mxu0 0.0
    %8084 = vmatpush1.msra.mxu0 0.0
    %8085 = vmatprep.subr.mxu0 0.0
    %8086 = vmatpush1.msra.mxu0 0.0
    %8087 = vmatprep.subr.mxu0 0.0
    %8088 = vmatpush1.msra.mxu0 0.0
    %8089 = vmatprep.subr.mxu0 0.0
    %8090 = vmatpush1.msra.mxu0 0.0
    %8091 = vmatprep.subr.mxu0 0.0
    %8092 = vmatpush1.msra.mxu0 0.0
    %8093 = vmatprep.subr.mxu0 0.0
    %8094 = vmatpush1.msra.mxu0 0.0
    %8095 = vmatprep.subr.mxu0 0.0
    %8096 = vmatpush1.msra.mxu0 0.0
    %8097 = vmatprep.subr.mxu0 0.0
    %8098 = vmatpush1.msra.mxu0 0.0
    %8099 = vmatprep.subr.mxu0 0.0
    %8100 = vmatpush1.msra.mxu0 0.0
    %8101 = vmatprep.subr.mxu0 0.0
    %8102 = vmatpush1.msra.mxu0 0.0
    %8103 = vmatprep.subr.mxu0 0.0
    %8104 = vmatpush1.msra.mxu0 0.0
    %8105 = vmatprep.subr.mxu0 0.0
    %8106 = vmatpush1.msra.mxu0 0.0
    %8107 = vmatprep.subr.mxu0 0.0
    %8108 = vmatpush1.msra.mxu0 %v8070
    %8109 = vmatprep.subr.mxu0 0.0
    %8110 = vmatpush1.msra.mxu0 %v8069
    %8111 = vmatprep.subr.mxu0 0.0
    %8112 = vmatpush1.msra.mxu0 %v8068
    %8113 = vmatprep.subr.mxu0 0.0
    %8114 = vmatpush1.msra.mxu0 %v8067
    %8115 = vmatprep.subr.mxu0 0.0
    %8116 = vmatpush2.msra.mxu0 0.0
    %8117 = vmatprep.subr.mxu0 0.0
    %8118 = vmatpush2.msra.mxu0 0.0
    %8119 = vmatprep.subr.mxu0 0.0
    %8120 = vmatpush2.msra.mxu0 0.0
    %8121 = vmatprep.subr.mxu0 0.0
    %8122 = vmatpush2.msra.mxu0 0.0
    %8123 = vmatprep.subr.mxu0 0.0
    %8124 = vmatpush2.msra.mxu0 0.0
    %8125 = vmatprep.subr.mxu0 0.0
    %8126 = vmatpush2.msra.mxu0 0.0
    %8127 = vmatprep.subr.mxu0 0.0
    %8128 = vmatpush2.msra.mxu0 0.0
    %8129 = vmatprep.subr.mxu0 0.0
    %8130 = vmatpush2.msra.mxu0 0.0
    %8131 = vmatprep.subr.mxu0 0.0
    %8132 = vmatpush2.msra.mxu0 0.0
    %8133 = vmatprep.subr.mxu0 0.0
    %8134 = vmatpush2.msra.mxu0 0.0
    %8135 = vmatprep.subr.mxu0 0.0
    %8136 = vmatpush2.msra.mxu0 0.0
    %8137 = vmatprep.subr.mxu0 0.0
    %8138 = vmatpush2.msra.mxu0 0.0
    %8139 = vmatprep.subr.mxu0 0.0
    %8140 = vmatpush2.msra.mxu0 0.0
    %8141 = vmatprep.subr.mxu0 0.0
    %8142 = vmatpush2.msra.mxu0 0.0
    %8143 = vmatprep.subr.mxu0 0.0
    %8144 = vmatpush2.msra.mxu0 0.0
    %8145 = vmatprep.subr.mxu0 0.0
    %8146 = vmatpush2.msra.mxu0 0.0
    %8147 = vmatprep.mubr.f32.mxu0 0.0
    %8148 = vmatmul.mubr.f32.gmra.mxu0 %v8072
    %v8149 = vpop.f32.mrf.mxu0
    %v8150 = vadd.f32 0.0, %v8149
    %v8151 = vpop.f32.mrf.mxu0
    %8152 = vmatprep.mubr.f32.mxu0 0.0
    %8153 = vmatmul.mubr.f32.gmra.mxu0 %v8075
    %v8154 = vpop.f32.mrf.mxu0
    %v8155 = vadd.f32 0.0, %v8154
    %v8156 = vpop.f32.mrf.mxu0
    %8157 = vmatprep.mubr.f32.mxu0 0.0
    %8158 = vmatmul.mubr.f32.gmra.mxu0 %v8078
    %v8159 = vpop.f32.mrf.mxu0
    %v8160 = vadd.f32 0.0, %v8159
    %v8161 = vpop.f32.mrf.mxu0
    %8162 = vmatprep.mubr.f32.mxu0 0.0
    %8163 = vmatmul.mubr.f32.gmra.mxu0 %v8081
    %v8164 = vpop.f32.mrf.mxu0
    %v8165 = vadd.f32 0.0, %v8164
    %v8166 = vpop.f32.mrf.mxu0
    %8167 = vdwg.mxu0
    %v8168 = vadd.f32 %v8048, %v8150
    %v8169 = vadd.f32 %v8053, %v8155
    %v8170 = vadd.f32 %v8058, %v8160
    %v8171 = vadd.f32 %v8063, %v8165
    %v8172 = vld [vmem:[%s11] sm:$0x1]
    %v8174 = vlaneseq
    %v8175 = vshrl.u32 %v8174, 7
    %v8176 = vsub.s32 0, %v8175
    %v8177 = vrot.slane %v8172, %v8176
    %v8179 = vadd.f32 %v8168, %v8177
    %v8180 = vadd.f32 %v8169, %v8177
    %v8181 = vadd.f32 %v8170, %v8177
    %v8182 = vadd.f32 %v8171, %v8177
    %8183 = vst.msk [vmem:[#allocation2] sm:$0xff] %vm2314, %v8179
    %8184 = vst.msk [vmem:[#allocation2 + $0x8] sm:$0xff] %vm2314, %v8180
    %8185 = vst.msk [vmem:[#allocation2 + $0x10] sm:$0xff] %vm2314, %v8181
    %8186 = vst.msk [vmem:[#allocation2 + $0x18] sm:$0xff] %vm2314, %v8182
    // Predicated region
    $region186: #{vq_decoder_v3_forward.1} parent=1 // pred_check
      _
    $region187: #{vq_decoder_v3_forward.1} parent=1 // pred_check_branch
      %8188 = sbr.rel (0) target = $region189
    $region188: #{vq_decoder_v3_forward.1} parent=1 // pred_region
      %s8190 = ssub.s32 512, 512
      %8191 = vsyncadd [#allocation3], %s8190
      %s8192 = sshll.u32 [#allocation2], 4
      %s8193 = int_to_ptr.vmem [resolvable:$true] %s8192
      %8198 = dma.vmem_to_hbm [thread:$0]  %s8193, 512, %s93, [#allocation3], 128, 128, 8
    $region189: #{vq_decoder_v3_forward.1} parent=1 // pred_fallthru
      _
    // Predicated region
    $region190: #{vq_decoder_v3_forward.1} parent=1 // pred_check
      _
    $region191: #{vq_decoder_v3_forward.1} parent=1 // pred_check_branch
      %8200 = sbr.rel (0) target = $region193
    $region192: #{vq_decoder_v3_forward.1} parent=1 // pred_region
      %8201 = dma.done [#allocation3], 512
    $region193: #{vq_decoder_v3_forward.1} parent=1 // pred_fallthru
      _
    %8202 = vsyncpa [#allocation3], 1

</llo_original>
